<compile_context>
chip_gen: v5e
topology: v5e:2x2
jax: 0.10.0
libtpu: 0.0.40
codegen_flags: <defaults>
</compile_context>

<pallas_src>
import functools

import jax
import jax.numpy as jnp
from jax import lax
from jax.experimental import pallas as pl
from jax.experimental.pallas import tpu as pltpu

LANE = 128


def _round_up(x, m):
    return (x + m - 1) // m * m


# --------------------- fused stage-1 + sequence-embed kernel ---------------------

def _featurize_kernel(x_ref, pm_ref, invdim_ref, w1_ref, b1_ref, w2_ref, b2_ref, o_ref):
    # stage-1 feature lift (substitute for glib.PointTransformerNetwork)
    feat = (
        jnp.dot(x_ref[...], w1_ref[...], preferred_element_type=jnp.float32)
        + b1_ref[...]
    )
    # sinusoidal sequence embedding computed in-kernel (sin/cos go to the EUP slot)
    pm = pm_ref[...]                              # (TM, 1) f32
    pos = pm * invdim_ref[...]                    # (TM, H)
    fid = lax.broadcasted_iota(jnp.int32, pos.shape, 1)
    tri = jnp.where((fid % 2) == 0, jnp.sin(pos), jnp.cos(pos))
    seq = (
        jnp.dot(tri, w2_ref[...], preferred_element_type=jnp.float32)
        + b2_ref[...]
    )
    valid = (pm != -1.0).astype(jnp.float32)      # (TM, 1) mask
    o_ref[...] = (feat + valid * seq).astype(o_ref.dtype)


def featurize(x, pm, inv_dim_t, w1, b1, w2, b2, *, tile_m=256, out_dtype=jnp.bfloat16):
    """out = x @ w1 + b1 + (pm != -1) * (sin/cos(pm/dim_t) @ w2 + b2), row-tiled."""
    M, Din = x.shape
    H = inv_dim_t.shape[-1]
    Dout = w1.shape[1]                            # already lane-padded to 128
    M_pad = _round_up(M, tile_m)
    if M_pad != M:
        x = jnp.pad(x, ((0, M_pad - M), (0, 0)))
        pm = jnp.pad(pm, ((0, M_pad - M), (0, 0)))
    out = pl.pallas_call(
        _featurize_kernel,
        out_shape=jax.ShapeDtypeStruct((M_pad, Dout), out_dtype),
        grid=(M_pad // tile_m,),
        in_specs=[
            pl.BlockSpec((tile_m, Din), lambda i: (i, 0)),
            pl.BlockSpec((tile_m, 1), lambda i: (i, 0)),
            pl.BlockSpec((1, H), lambda i: (0, 0)),
            pl.BlockSpec((Din, Dout), lambda i: (0, 0)),
            pl.BlockSpec((1, Dout), lambda i: (0, 0)),
            pl.BlockSpec((H, Dout), lambda i: (0, 0)),
            pl.BlockSpec((1, Dout), lambda i: (0, 0)),
        ],
        out_specs=pl.BlockSpec((tile_m, Dout), lambda i: (i, 0)),
        compiler_params=pltpu.CompilerParams(dimension_semantics=("parallel",)),
    )(x, pm, inv_dim_t, w1, b1, w2, b2)
    return out[:M]


# --------------- fused dual-softmax matching + weighted Procrustes ---------------

def _match_arun_kernel(inv_temp, n_valid, sf_ref, tf_ref, sp_ref, tp_ref,
                       conf_ref, h_ref, sc_ref, tc_ref):
    s = sf_ref[0]   # (Nk, Hp)  bf16
    t = tf_ref[0]   # (Ntp, Hp) bf16
    # similarity on the MXU: bf16 operands, f32 accumulation; 1/T folded into a mul.
    sim = lax.dot_general(
        s, t, (((1,), (1,)), ((), ())), preferred_element_type=jnp.float32
    ) * inv_temp                                                        # (Nk, Ntp) f32
    # mask lane-padding columns so padded conf == 0 exactly (no NaN: exp(-1e30)->0).
    col = lax.broadcasted_iota(jnp.int32, sim.shape, 1)
    sim = jnp.where(col < n_valid, sim, -1e30)

    # dual softmax (LoFTR-style). TODO(synk): glib one_way variant not available.
    e_r = jnp.exp(sim - jnp.max(sim, axis=-1, keepdims=True))
    p_row = e_r * pl.reciprocal(jnp.sum(e_r, axis=-1, keepdims=True), approx=True)
    e_c = jnp.exp(sim - jnp.max(sim, axis=-2, keepdims=True))
    p_col = e_c * pl.reciprocal(jnp.sum(e_c, axis=-2, keepdims=True), approx=True)
    conf = p_row * p_col
    conf_ref[0] = conf                                                  # single HBM write

    # weighted Procrustes reductions on the in-VMEM conf (no HBM round trip).
    sp = sp_ref[0]  # (Nk, 3)
    tp = tp_ref[0]  # (Ntp, 3) (padded rows carry zero weight)
    a = jnp.sum(conf, axis=1, keepdims=True)                            # (Nk, 1)
    wsum = jnp.sum(a)
    inv_w = 1.0 / wsum
    ct = jnp.dot(conf, tp, preferred_element_type=jnp.float32)          # (Nk, 3)
    sc = lax.dot_general(
        a, sp, (((0,), (0,)), ((), ())), preferred_element_type=jnp.float32
    ) * inv_w                                                           # (1, 3)
    tc = jnp.sum(ct, axis=0, keepdims=True) * inv_w                     # (1, 3)
    m = lax.dot_general(
        sp, ct, (((0,), (0,)), ((), ())), preferred_element_type=jnp.float32
    )                                                                   # (3, 3) sp^T conf tp
    outer = lax.dot_general(
        sc, tc, (((0,), (0,)), ((), ())), preferred_element_type=jnp.float32
    )                                                                   # (3, 3) sc^T tc
    h_ref[0] = m - wsum * outer
    sc_ref[0] = sc
    tc_ref[0] = tc


def match_and_arun(src_feat, tgt_feat, src_pcd, tgt_pcd, n_tgt_valid, temperature=1.0):
    """Fused DualSoftmax conf matrix + weighted-Procrustes reductions per batch."""
    B, Nk, Hp = src_feat.shape
    _, Ntp, _ = tgt_feat.shape
    kernel = functools.partial(_match_arun_kernel, float(1.0 / temperature),
                               int(n_tgt_valid))
    conf, h, sc, tc = pl.pallas_call(
        kernel,
        out_shape=(
            jax.ShapeDtypeStruct((B, Nk, Ntp), jnp.float32),
            jax.ShapeDtypeStruct((B, 3, 3), jnp.float32),
            jax.ShapeDtypeStruct((B, 1, 3), jnp.float32),
            jax.ShapeDtypeStruct((B, 1, 3), jnp.float32),
        ),
        grid=(B,),
        in_specs=[
            pl.BlockSpec((1, Nk, Hp), lambda b: (b, 0, 0)),
            pl.BlockSpec((1, Ntp, Hp), lambda b: (b, 0, 0)),
            pl.BlockSpec((1, Nk, 3), lambda b: (b, 0, 0)),
            pl.BlockSpec((1, Ntp, 3), lambda b: (b, 0, 0)),
        ],
        out_specs=(
            pl.BlockSpec((1, Nk, Ntp), lambda b: (b, 0, 0)),
            pl.BlockSpec((1, 3, 3), lambda b: (b, 0, 0)),
            pl.BlockSpec((1, 1, 3), lambda b: (b, 0, 0)),
            pl.BlockSpec((1, 1, 3), lambda b: (b, 0, 0)),
        ),
        compiler_params=pltpu.CompilerParams(dimension_semantics=("parallel",)),
    )(src_feat, tgt_feat, src_pcd.astype(jnp.float32), tgt_pcd.astype(jnp.float32))
    return conf, h, sc[:, 0, :], tc[:, 0, :]


# ------------------------------------ forward ------------------------------------

def forward(params, batch, hidden_dim=32, matching_temperature=1.0):
    src = dict(batch["src"]["t"])
    tgt = dict(batch["tgt"]["t"])
    B, N, _ = src["pcd"].shape

    # ---- Initial Data Preparation (XLA glue) ----
    raw, pms = [], []
    for item in (src, tgt):
        Rrf = item["X_to_robot_frame"][:, :3, :3]
        trf = item["X_to_robot_frame"][:, :3, 3]
        item["robot_pcd"] = (
            jnp.einsum("bij,bnj->bni", Rrf, item["pcd"]) + trf[:, None, :]
        )
        open_f = item["open"].reshape(B, 1, 1).astype(jnp.float32)
        ign_f = item["ignore_col"].reshape(B, 1, 1).astype(jnp.float32)
        feat = jnp.concatenate(
            [
                item["pcd"], item["rgb"], item["normal"], item["robot_pcd"],
                jnp.broadcast_to(open_f, (B, N, 1)),
                jnp.broadcast_to(ign_f, (B, N, 1)),
            ],
            axis=-1,
        )  # (B, N, 14)
        raw.append(feat.reshape(B * N, -1).astype(jnp.float32))
        pms.append(item["position_mask"].astype(jnp.float32).reshape(B * N, 1))
        # TODO(synk): glib.knn indices only feed the unavailable transformer blocks.

    # ---- Stage 1 + sequence embed: one fused Pallas call over stacked src|tgt ----
    x_all = jnp.concatenate(raw, axis=0)     # (2*B*N, 14)
    pm_all = jnp.concatenate(pms, axis=0)    # (2*B*N, 1)

    H = hidden_dim
    Dout = _round_up(H, LANE)                # lane-dense hidden (padded channels == 0)
    w1 = jnp.zeros((x_all.shape[1], Dout), jnp.float32).at[:, :H].set(
        params["stage1_w"].astype(jnp.float32))
    b1 = jnp.zeros((1, Dout), jnp.float32).at[:, :H].set(
        params["stage1_b"].astype(jnp.float32))
    w2 = jnp.zeros((H, Dout), jnp.float32).at[:, :H].set(
        params["seq_w"].astype(jnp.float32))
    b2 = jnp.zeros((1, Dout), jnp.float32).at[:, :H].set(
        params["seq_b"].astype(jnp.float32))
    # TODO(synk): glib.distance_embed source not provided; standard sinusoidal embed.
    dim_t = jnp.arange(H, dtype=jnp.float32)
    dim_t = 10000.0 ** (2.0 * jnp.floor(dim_t / 2.0) / H)
    inv_dim_t = (1.0 / dim_t).reshape(1, H)

    feat_all = featurize(x_all, pm_all, inv_dim_t, w1, b1, w2, b2)   # (2BN, 128) bf16
    src_feat = feat_all[: B * N].reshape(B, N, Dout)
    tgt_feat = feat_all[B * N:].reshape(B, N, Dout)

    # ---- Creating key feature (gather of feat+seq == original ko_feat + seq[key]) ----
    key_idx = batch["meta"]["key_indices"]                              # (B, Nk)
    src_ko_pcd = jnp.take_along_axis(src["pcd"], key_idx[..., None], axis=1)
    src_ko_feat = jnp.take_along_axis(src_feat, key_idx[..., None], axis=1)

    # ---- Stage 2. registration: fused dual-softmax + weighted Procrustes ----
    # TODO(synk): glib.KnnTransformerNetwork unavailable; cross/self blocks are
    # identity, only the final positioning layer's conf_matrix + arun is computed.
    Nt = N
    Ntp = _round_up(Nt, LANE)
    if Ntp != Nt:
        tgt_feat_p = jnp.pad(tgt_feat, ((0, 0), (0, Ntp - Nt), (0, 0)))
        tgt_pcd_p = jnp.pad(tgt["pcd"].astype(jnp.float32),
                            ((0, 0), (0, Ntp - Nt), (0, 0)))
    else:
        tgt_feat_p = tgt_feat
        tgt_pcd_p = tgt["pcd"].astype(jnp.float32)

    conf_pad, h, sc, tc = match_and_arun(
        src_ko_feat, tgt_feat_p, src_ko_pcd, tgt_pcd_p, Nt, matching_temperature)
    conf_matrix = lax.stop_gradient(conf_pad[:, :, :Nt])                # .detach()

    # 3x3 SVD has no Pallas equivalent; solve rotation in plain JAX.
    def _kabsch(h_i, sc_i, tc_i):
        u, _, vt = jnp.linalg.svd(h_i)
        v = vt.T
        d = jnp.sign(jnp.linalg.det(v @ u.T))
        d = jnp.where(d == 0, jnp.float32(1.0), d)   # degenerate-weight guard
        dd = jnp.diag(jnp.concatenate([jnp.ones(2, jnp.float32), d[None]]))
        r = v @ dd @ u.T
        t = tc_i - r @ sc_i
        return r, t

    R0, t0 = jax.vmap(_kabsch)(h, sc, tc)

    src_tp1 = src["robot_position_t+1"]                                  # (B, M, 3)
    tgt_tp1_hat = jnp.einsum("bij,bmj->bmi", R0, src_tp1) + t0[:, None, :]

    output = {"Rt": [R0, t0], "predict_frame": tgt_tp1_hat, "conf_matrix": conf_matrix}
    loss_dict = {}    # training-only branch (focal matching loss) not exercised (eval)
    metric_dict = {}
    if tgt.get("robot_position_t+1", None) is not None:
        l1 = jnp.abs(tgt_tp1_hat - tgt["robot_position_t+1"]).sum(axis=-1)  # (B, M)
        metric_dict["action(reg)_l1_t"] = l1[:, 0].mean()
        metric_dict["action(reg)_l1_xyz"] = l1[:, 1:].mean()
    return {"output": output, "loss_dict": loss_dict, "metric_dict": metric_dict}


# ---------------------------------- example run ----------------------------------

if __name__ == "__main__":
    B, N, Nk, M = 2, 64, 32, 4
    in_dim, hidden = 14, 32

    key = jax.random.PRNGKey(0)
    ks = jax.random.split(key, 20)

    params = {
        "stage1_w": 0.1 * jax.random.normal(ks[0], (in_dim, hidden), jnp.float32),
        "stage1_b": 0.01 * jax.random.normal(ks[1], (hidden,), jnp.float32),
        "seq_w": 0.1 * jax.random.normal(ks[2], (hidden, hidden), jnp.float32),
        "seq_b": 0.01 * jax.random.normal(ks[3], (hidden,), jnp.float32),
    }

    def make_item(kseq):
        X = jnp.tile(jnp.eye(4, dtype=jnp.float32)[None], (B, 1, 1))
        X = X.at[:, :3, 3].set(0.1 * jax.random.normal(kseq[4], (B, 3)))
        return {
            "pcd": jax.random.normal(kseq[0], (B, N, 3), jnp.float32),
            "rgb": jax.random.uniform(kseq[1], (B, N, 3), jnp.float32),
            "normal": jax.random.normal(kseq[2], (B, N, 3), jnp.float32),
            "open": jax.random.bernoulli(kseq[3], 0.5, (B,)).astype(jnp.float32),
            "ignore_col": jnp.zeros((B,), jnp.float32),
            "X_to_robot_frame": X,
            "position_mask": jax.random.randint(kseq[5], (B, N), -1, 3),
            "robot_position_t+1": jax.random.normal(kseq[6], (B, M, 3), jnp.float32),
        }

    src_item = make_item(ks[4:11])
    tgt_item = make_item(ks[11:18])

    batch = {
        "meta": {
            "key_indices": jnp.tile(jnp.arange(Nk, dtype=jnp.int32)[None], (B, 1)),
        },
        "src": {"t": src_item},
        "tgt": {"t": tgt_item},
    }

    result = forward(params, batch, hidden_dim=hidden, matching_temperature=1.0)
    jax.block_until_ready(result["output"]["conf_matrix"])
    jax.block_until_ready(result["output"]["predict_frame"])
    jax.block_until_ready(result["metric_dict"]["action(reg)_l1_xyz"])
    print("KERNEL_OK")
</pallas_src>

<mosaic_0001>
module attributes {stable_mosaic.version = 11 : i64} {
  func.func @_featurize_kernel(%arg0: i32, %arg1: memref<256x14xf32, #tpu.memory_space<vmem>>, %arg2: memref<256x1xf32, #tpu.memory_space<vmem>>, %arg3: memref<1x32xf32, #tpu.memory_space<vmem>>, %arg4: memref<14x128xf32, #tpu.memory_space<vmem>>, %arg5: memref<1x128xf32, #tpu.memory_space<vmem>>, %arg6: memref<32x128xf32, #tpu.memory_space<vmem>>, %arg7: memref<1x128xf32, #tpu.memory_space<vmem>>, %arg8: memref<256x128xbf16, #tpu.memory_space<vmem>>) attributes {dimension_semantics = [#tpu.dimension_semantics<parallel>], iteration_bounds = array<i64: 1>, scalar_prefetch = 0 : i64, scratch_operands = 0 : i64, tpu.core_type = #tpu.core_type<tc>, window_params = [{transform_indices = @transform_0, window_bounds = array<i64: 256, 14>}, {transform_indices = @transform_1, window_bounds = array<i64: 256, 1>}, {pipeline_mode = #tpu.pipeline_mode<synchronous>, transform_indices = @transform_2, window_bounds = array<i64: 1, 32>}, {pipeline_mode = #tpu.pipeline_mode<synchronous>, transform_indices = @transform_3, window_bounds = array<i64: 14, 128>}, {pipeline_mode = #tpu.pipeline_mode<synchronous>, transform_indices = @transform_4, window_bounds = array<i64: 1, 128>}, {pipeline_mode = #tpu.pipeline_mode<synchronous>, transform_indices = @transform_5, window_bounds = array<i64: 32, 128>}, {pipeline_mode = #tpu.pipeline_mode<synchronous>, transform_indices = @transform_6, window_bounds = array<i64: 1, 128>}, {transform_indices = @transform_7, window_bounds = array<i64: 256, 128>}]} {
    %c0 = arith.constant 0 : index
    %c0_0 = arith.constant 0 : index
    %0 = vector.load %arg1[%c0, %c0_0] : memref<256x14xf32, #tpu.memory_space<vmem>>, vector<256x14xf32>
    %c0_1 = arith.constant 0 : index
    %c0_2 = arith.constant 0 : index
    %1 = vector.load %arg4[%c0_1, %c0_2] : memref<14x128xf32, #tpu.memory_space<vmem>>, vector<14x128xf32>
    %cst = arith.constant dense<0.000000e+00> : vector<256x128xf32>
    %2 = tpu.matmul %0, %1, %cst {dimension_numbers = #tpu.dot_dimension_numbers<[1], [0], [0], [1], [0, 0, 1, 1], [], []>} : vector<256x14xf32>, vector<14x128xf32>, vector<256x128xf32> -> vector<256x128xf32>
    %c0_3 = arith.constant 0 : index
    %c0_4 = arith.constant 0 : index
    %3 = vector.load %arg5[%c0_3, %c0_4] : memref<1x128xf32, #tpu.memory_space<vmem>>, vector<1x128xf32>
    %4 = vector.broadcast %3 : vector<1x128xf32> to vector<256x128xf32>
    %5 = arith.addf %2, %4 : vector<256x128xf32>
    %c0_5 = arith.constant 0 : index
    %c0_6 = arith.constant 0 : index
    %6 = vector.load %arg2[%c0_5, %c0_6] : memref<256x1xf32, #tpu.memory_space<vmem>>, vector<256x1xf32>
    %c0_7 = arith.constant 0 : index
    %c0_8 = arith.constant 0 : index
    %7 = vector.load %arg3[%c0_7, %c0_8] : memref<1x32xf32, #tpu.memory_space<vmem>>, vector<1x32xf32>
    %8 = vector.broadcast %6 : vector<256x1xf32> to vector<256x32xf32>
    %9 = vector.broadcast %7 : vector<1x32xf32> to vector<256x32xf32>
    %10 = arith.mulf %8, %9 : vector<256x32xf32>
    %11 = tpu.iota {dimensions = array<i32: 1>} : vector<256x32xi32>
    %c2_i32 = arith.constant 2 : i32
    %c0_i32 = arith.constant 0 : i32
    %12 = arith.cmpi eq, %c2_i32, %c0_i32 : i32
    %c1_i32 = arith.constant 1 : i32
    %13 = arith.select %12, %c1_i32, %c2_i32 : i32
    %14 = vector.broadcast %13 : i32 to vector<256x32xi32>
    %15 = arith.remsi %11, %14 : vector<256x32xi32>
    %c0_i32_9 = arith.constant 0 : i32
    %16 = vector.broadcast %c0_i32_9 : i32 to vector<256x32xi32>
    %17 = arith.cmpi ne, %15, %16 : vector<256x32xi32>
    %c0_i32_10 = arith.constant 0 : i32
    %18 = vector.broadcast %c0_i32_10 : i32 to vector<256x32xi32>
    %19 = arith.cmpi slt, %15, %18 : vector<256x32xi32>
    %c0_i32_11 = arith.constant 0 : i32
    %20 = arith.cmpi slt, %13, %c0_i32_11 : i32
    %21 = vector.broadcast %20 : i1 to vector<256x32xi1>
    %22 = vector.broadcast %21 : vector<256x32xi1> to vector<256x32xi1>
    %23 = arith.xori %19, %22 : vector<256x32xi1>
    %24 = arith.andi %23, %17 : vector<256x32xi1>
    %25 = vector.broadcast %13 : i32 to vector<256x32xi32>
    %26 = arith.addi %15, %25 : vector<256x32xi32>
    %27 = arith.select %24, %26, %15 : vector<256x32xi1>, vector<256x32xi32>
    %c0_i32_12 = arith.constant 0 : i32
    %28 = vector.broadcast %c0_i32_12 : i32 to vector<256x32xi32>
    %29 = arith.cmpi eq, %27, %28 : vector<256x32xi32>
    %30 = math.sin %10 : vector<256x32xf32>
    %31 = math.cos %10 : vector<256x32xf32>
    %32 = arith.select %29, %30, %31 : vector<256x32xi1>, vector<256x32xf32>
    %c0_13 = arith.constant 0 : index
    %c0_14 = arith.constant 0 : index
    %33 = vector.load %arg6[%c0_13, %c0_14] : memref<32x128xf32, #tpu.memory_space<vmem>>, vector<32x128xf32>
    %cst_15 = arith.constant dense<0.000000e+00> : vector<256x128xf32>
    %34 = tpu.matmul %32, %33, %cst_15 {dimension_numbers = #tpu.dot_dimension_numbers<[1], [0], [0], [1], [0, 0, 1, 1], [], []>} : vector<256x32xf32>, vector<32x128xf32>, vector<256x128xf32> -> vector<256x128xf32>
    %c0_16 = arith.constant 0 : index
    %c0_17 = arith.constant 0 : index
    %35 = vector.load %arg7[%c0_16, %c0_17] : memref<1x128xf32, #tpu.memory_space<vmem>>, vector<1x128xf32>
    %36 = vector.broadcast %35 : vector<1x128xf32> to vector<256x128xf32>
    %37 = arith.addf %34, %36 : vector<256x128xf32>
    %cst_18 = arith.constant -1.000000e+00 : f32
    %38 = vector.broadcast %cst_18 : f32 to vector<256x1xf32>
    %39 = arith.cmpf one, %6, %38 : vector<256x1xf32>
    %40 = arith.extui %39 : vector<256x1xi1> to vector<256x1xi32>
    %41 = arith.sitofp %40 : vector<256x1xi32> to vector<256x1xf32>
    %42 = vector.broadcast %41 : vector<256x1xf32> to vector<256x128xf32>
    %43 = arith.mulf %42, %37 : vector<256x128xf32>
    %44 = arith.addf %5, %43 : vector<256x128xf32>
    %45 = arith.truncf %44 : vector<256x128xf32> to vector<256x128xbf16>
    %c0_19 = arith.constant 0 : index
    %c0_20 = arith.constant 0 : index
    %46 = vector.load %arg8[%c0_19, %c0_20] : memref<256x128xbf16, #tpu.memory_space<vmem>>, vector<256x128xbf16>
    tpu.vector_store %arg8[%c0_19, %c0_20], %45 {strides = array<i32>} : memref<256x128xbf16, #tpu.memory_space<vmem>>, vector<256x128xbf16>,
    return
  }
  func.func @transform_0(%arg0: i32) -> (i32, i32) {
    %c0_i32 = arith.constant 0 : i32
    %c0_i32_0 = arith.constant 0 : i32
    return %arg0, %c0_i32 : i32, i32
  }
  func.func @transform_1(%arg0: i32) -> (i32, i32) {
    %c0_i32 = arith.constant 0 : i32
    %c0_i32_0 = arith.constant 0 : i32
    return %arg0, %c0_i32 : i32, i32
  }
  func.func @transform_2(%arg0: i32) -> (i32, i32) {
    %c0_i32 = arith.constant 0 : i32
    %c0_i32_0 = arith.constant 0 : i32
    %c0_i32_1 = arith.constant 0 : i32
    return %c0_i32, %c0_i32_0 : i32, i32
  }
  func.func @transform_3(%arg0: i32) -> (i32, i32) {
    %c0_i32 = arith.constant 0 : i32
    %c0_i32_0 = arith.constant 0 : i32
    %c0_i32_1 = arith.constant 0 : i32
    return %c0_i32, %c0_i32_0 : i32, i32
  }
  func.func @transform_4(%arg0: i32) -> (i32, i32) {
    %c0_i32 = arith.constant 0 : i32
    %c0_i32_0 = arith.constant 0 : i32
    %c0_i32_1 = arith.constant 0 : i32
    return %c0_i32, %c0_i32_0 : i32, i32
  }
  func.func @transform_5(%arg0: i32) -> (i32, i32) {
    %c0_i32 = arith.constant 0 : i32
    %c0_i32_0 = arith.constant 0 : i32
    %c0_i32_1 = arith.constant 0 : i32
    return %c0_i32, %c0_i32_0 : i32, i32
  }
  func.func @transform_6(%arg0: i32) -> (i32, i32) {
    %c0_i32 = arith.constant 0 : i32
    %c0_i32_0 = arith.constant 0 : i32
    %c0_i32_1 = arith.constant 0 : i32
    return %c0_i32, %c0_i32_0 : i32, i32
  }
  func.func @transform_7(%arg0: i32) -> (i32, i32) {
    %c0_i32 = arith.constant 0 : i32
    %c0_i32_0 = arith.constant 0 : i32
    return %arg0, %c0_i32 : i32, i32
  }
}

</mosaic_0001>

<llo_original>
// kernel: tpu_custom_call.1
$region0: #{tpu_custom_call.1}
  #allocation0 [shape = 'u32[]', space=smem, size = 0x4, offset = 0x4, fixed_abs, tag = 'smem constant byte address 0x4 - core index']
  #allocation1 [shape = 'u32[72,128]{1,0:T(1,128)}', space=vmem, size = 0x9000, scoped, tag = 'internal scratch']
  %s0 = inlined_call_operand.vmem [shape: f32[256,14], index: 0, kind: input, shape index: {}]
  %s1 = inlined_call_operand.vmem [shape: f32[256,1], index: 1, kind: input, shape index: {}]
  %s2 = inlined_call_operand.vmem [shape: f32[1,32], index: 2, kind: input, shape index: {}]
  %s3 = inlined_call_operand.vmem [shape: f32[14,128], index: 3, kind: input, shape index: {}]
  %s4 = inlined_call_operand.vmem [shape: f32[1,128], index: 4, kind: input, shape index: {}]
  %s5 = inlined_call_operand.vmem [shape: f32[32,128], index: 5, kind: input, shape index: {}]
  %s6 = inlined_call_operand.vmem [shape: f32[1,128], index: 6, kind: input, shape index: {}]
  %s7 = inlined_call_operand.hbm [shape: bf16[256,128], index: 7, kind: output, shape index: {}]
  %s8 = sld [smem:[#allocation0]]
  $region38: #{tpu_custom_call.1} parent=0
    _
  %s10 = ssub.s32 1, %s8
  %s11 = scalar_select 0, %s10, %s8
  $region1: #{tpu_custom_call.1} parent=0
    #allocation2 [shape = 'u8[65536]{0}', space=vmem, size = 0x10000, scoped, tag = 'output window, operand 0, single buffered']
    #allocation3 [shape = 's32[1]{0}', space=sflag, size = 0x4, scoped, tag = 'scoped memory for tpu_custom_call.1']
    %12 = vsyncpa [#allocation3], 0
    // Predicated region
    $region2: #{tpu_custom_call.1} parent=1 // pred_check
      _
    $region3: #{tpu_custom_call.1} parent=1 // pred_check_branch
      %14 = sbr.rel (0) target = $region5
    $region4: #{tpu_custom_call.1} parent=1 // pred_region
      _
    $region5: #{tpu_custom_call.1} parent=1 // pred_fallthru
      _
    // Predicated region
    $region6: #{tpu_custom_call.1} parent=1 // pred_check
      _
    $region7: #{tpu_custom_call.1} parent=1 // pred_check_branch
      %16 = sbr.rel (0) target = $region9
    $region8: #{tpu_custom_call.1} parent=1 // pred_region
      _
    $region9: #{tpu_custom_call.1} parent=1 // pred_fallthru
      _
    // Predicated region
    $region10: #{tpu_custom_call.1} parent=1 // pred_check
      _
    $region11: #{tpu_custom_call.1} parent=1 // pred_check_branch
      %18 = sbr.rel (0) target = $region13
    $region12: #{tpu_custom_call.1} parent=1 // pred_region
      _
    $region13: #{tpu_custom_call.1} parent=1 // pred_fallthru
      _
    // Predicated region
    $region14: #{tpu_custom_call.1} parent=1 // pred_check
      _
    $region15: #{tpu_custom_call.1} parent=1 // pred_check_branch
      %20 = sbr.rel (0) target = $region17
    $region16: #{tpu_custom_call.1} parent=1 // pred_region
      _
    $region17: #{tpu_custom_call.1} parent=1 // pred_fallthru
      _
    // Predicated region
    $region18: #{tpu_custom_call.1} parent=1 // pred_check
      _
    $region19: #{tpu_custom_call.1} parent=1 // pred_check_branch
      %22 = sbr.rel (0) target = $region21
    $region20: #{tpu_custom_call.1} parent=1 // pred_region
      _
    $region21: #{tpu_custom_call.1} parent=1 // pred_fallthru
      _
    // Predicated region
    $region22: #{tpu_custom_call.1} parent=1 // pred_check
      _
    $region23: #{tpu_custom_call.1} parent=1 // pred_check_branch
      %24 = sbr.rel (0) target = $region25
    $region24: #{tpu_custom_call.1} parent=1 // pred_region
      _
    $region25: #{tpu_custom_call.1} parent=1 // pred_fallthru
      _
    // Predicated region
    $region26: #{tpu_custom_call.1} parent=1 // pred_check
      _
    $region27: #{tpu_custom_call.1} parent=1 // pred_check_branch
      %26 = sbr.rel (0) target = $region29
    $region28: #{tpu_custom_call.1} parent=1 // pred_region
      _
    $region29: #{tpu_custom_call.1} parent=1 // pred_fallthru
      _
    %v27 = vld [vmem:[%s0] sm:$0xff]
    %v28 = vld [vmem:[%s0 + $0x8] sm:$0xff]
    %v29 = vld [vmem:[%s0 + $0x10] sm:$0xff]
    %v30 = vld [vmem:[%s0 + $0x18] sm:$0xff]
    %v31 = vld [vmem:[%s0 + $0x20] sm:$0xff]
    %v32 = vld [vmem:[%s0 + $0x28] sm:$0xff]
    %v33 = vld [vmem:[%s0 + $0x30] sm:$0xff]
    %v34 = vld [vmem:[%s0 + $0x38] sm:$0xff]
    %v35 = vld [vmem:[%s0 + $0x40] sm:$0xff]
    %v36 = vld [vmem:[%s0 + $0x48] sm:$0xff]
    %v37 = vld [vmem:[%s0 + $0x50] sm:$0xff]
    %v38 = vld [vmem:[%s0 + $0x58] sm:$0xff]
    %v39 = vld [vmem:[%s0 + $0x60] sm:$0xff]
    %v40 = vld [vmem:[%s0 + $0x68] sm:$0xff]
    %v41 = vld [vmem:[%s0 + $0x70] sm:$0xff]
    %v42 = vld [vmem:[%s0 + $0x78] sm:$0xff]
    %v43 = vld [vmem:[%s0 + $0x80] sm:$0xff]
    %v44 = vld [vmem:[%s0 + $0x88] sm:$0xff]
    %v45 = vld [vmem:[%s0 + $0x90] sm:$0xff]
    %v46 = vld [vmem:[%s0 + $0x98] sm:$0xff]
    %v47 = vld [vmem:[%s0 + $0xa0] sm:$0xff]
    %v48 = vld [vmem:[%s0 + $0xa8] sm:$0xff]
    %v49 = vld [vmem:[%s0 + $0xb0] sm:$0xff]
    %v50 = vld [vmem:[%s0 + $0xb8] sm:$0xff]
    %v51 = vld [vmem:[%s0 + $0xc0] sm:$0xff]
    %v52 = vld [vmem:[%s0 + $0xc8] sm:$0xff]
    %v53 = vld [vmem:[%s0 + $0xd0] sm:$0xff]
    %v54 = vld [vmem:[%s0 + $0xd8] sm:$0xff]
    %v55 = vld [vmem:[%s0 + $0xe0] sm:$0xff]
    %v56 = vld [vmem:[%s0 + $0xe8] sm:$0xff]
    %v57 = vld [vmem:[%s0 + $0xf0] sm:$0xff]
    %v58 = vld [vmem:[%s0 + $0xf8] sm:$0xff]
    %v59 = vld [vmem:[%s3] sm:$0xff]
    %v60 = vld [vmem:[%s3 + $0x8] sm:$0x3f]
    %v61 = vld [vmem:[%s4] sm:$0x1]
    %v63 = vperm.slane %v61, 0
    %vm65 = vcmask 113664
    %v67 = vsel %vm65, %v27, 0
    %v70 = vsel %vm65, %v28, 0
    %v73 = vsel %vm65, %v29, 0
    %v76 = vsel %vm65, %v30, 0
    %v79 = vsel %vm65, %v31, 0
    %v82 = vsel %vm65, %v32, 0
    %v85 = vsel %vm65, %v33, 0
    %v88 = vsel %vm65, %v34, 0
    %v91 = vsel %vm65, %v35, 0
    %v94 = vsel %vm65, %v36, 0
    %v97 = vsel %vm65, %v37, 0
    %v100 = vsel %vm65, %v38, 0
    %v103 = vsel %vm65, %v39, 0
    %v106 = vsel %vm65, %v40, 0
    %v109 = vsel %vm65, %v41, 0
    %v112 = vsel %vm65, %v42, 0
    %v115 = vsel %vm65, %v43, 0
    %v118 = vsel %vm65, %v44, 0
    %v121 = vsel %vm65, %v45, 0
    %v124 = vsel %vm65, %v46, 0
    %v127 = vsel %vm65, %v47, 0
    %v130 = vsel %vm65, %v48, 0
    %v133 = vsel %vm65, %v49, 0
    %v136 = vsel %vm65, %v50, 0
    %v139 = vsel %vm65, %v51, 0
    %v142 = vsel %vm65, %v52, 0
    %v145 = vsel %vm65, %v53, 0
    %v148 = vsel %vm65, %v54, 0
    %v151 = vsel %vm65, %v55, 0
    %v154 = vsel %vm65, %v56, 0
    %v157 = vsel %vm65, %v57, 0
    %v160 = vsel %vm65, %v58, 0
    %vm162 = vcmask 1045504
    %v164 = vsel %vm162, %v60, 0
    %166 = vmatpush.msra.mxu0 0.0
    %167 = vmatpush.msra.mxu0 0.0
    %168 = vmatpush.msra.mxu0 0.0
    %169 = vmatpush.msra.mxu0 0.0
    %170 = vmatpush.msra.mxu0 0.0
    %171 = vmatpush.msra.mxu0 0.0
    %172 = vmatpush.msra.mxu0 0.0
    %173 = vmatpush.msra.mxu0 0.0
    %174 = vmatpush.msra.mxu0 0.0
    %175 = vmatpush.msra.mxu0 0.0
    %176 = vmatpush.msra.mxu0 0.0
    %177 = vmatpush.msra.mxu0 0.0
    %178 = vmatpush.msra.mxu0 0.0
    %179 = vmatpush.msra.mxu0 0.0
    %180 = vmatpush.msra.mxu0 %v164
    %181 = vmatpush.msra.mxu0 %v59
    %182 = vmatmul.f32.gmra.mxu0 %v67
    %v183 = vpop.f32.mrf.mxu0
    %v184 = vadd.f32 %v63, %v183
    %185 = vmatmul.f32.gmra.mxu0 %v70
    %v186 = vpop.f32.mrf.mxu0
    %v187 = vadd.f32 %v63, %v186
    %188 = vmatmul.f32.gmra.mxu0 %v73
    %v189 = vpop.f32.mrf.mxu0
    %v190 = vadd.f32 %v63, %v189
    %191 = vmatmul.f32.gmra.mxu0 %v76
    %v192 = vpop.f32.mrf.mxu0
    %v193 = vadd.f32 %v63, %v192
    %194 = vmatmul.f32.gmra.mxu0 %v79
    %v195 = vpop.f32.mrf.mxu0
    %v196 = vadd.f32 %v63, %v195
    %197 = vmatmul.f32.gmra.mxu0 %v82
    %v198 = vpop.f32.mrf.mxu0
    %v199 = vadd.f32 %v63, %v198
    %200 = vmatmul.f32.gmra.mxu0 %v85
    %v201 = vpop.f32.mrf.mxu0
    %v202 = vadd.f32 %v63, %v201
    %203 = vmatmul.f32.gmra.mxu0 %v88
    %v204 = vpop.f32.mrf.mxu0
    %v205 = vadd.f32 %v63, %v204
    %206 = vmatmul.f32.gmra.mxu0 %v91
    %v207 = vpop.f32.mrf.mxu0
    %v208 = vadd.f32 %v63, %v207
    %209 = vmatmul.f32.gmra.mxu0 %v94
    %v210 = vpop.f32.mrf.mxu0
    %v211 = vadd.f32 %v63, %v210
    %212 = vmatmul.f32.gmra.mxu0 %v97
    %v213 = vpop.f32.mrf.mxu0
    %v214 = vadd.f32 %v63, %v213
    %215 = vmatmul.f32.gmra.mxu0 %v100
    %v216 = vpop.f32.mrf.mxu0
    %v217 = vadd.f32 %v63, %v216
    %218 = vmatmul.f32.gmra.mxu0 %v103
    %v219 = vpop.f32.mrf.mxu0
    %v220 = vadd.f32 %v63, %v219
    %221 = vmatmul.f32.gmra.mxu0 %v106
    %v222 = vpop.f32.mrf.mxu0
    %v223 = vadd.f32 %v63, %v222
    %224 = vmatmul.f32.gmra.mxu0 %v109
    %v225 = vpop.f32.mrf.mxu0
    %v226 = vadd.f32 %v63, %v225
    %227 = vmatmul.f32.gmra.mxu0 %v112
    %v228 = vpop.f32.mrf.mxu0
    %v229 = vadd.f32 %v63, %v228
    %230 = vmatmul.f32.gmra.mxu0 %v115
    %v231 = vpop.f32.mrf.mxu0
    %v232 = vadd.f32 %v63, %v231
    %233 = vmatmul.f32.gmra.mxu0 %v118
    %v234 = vpop.f32.mrf.mxu0
    %v235 = vadd.f32 %v63, %v234
    %236 = vmatmul.f32.gmra.mxu0 %v121
    %v237 = vpop.f32.mrf.mxu0
    %v238 = vadd.f32 %v63, %v237
    %239 = vmatmul.f32.gmra.mxu0 %v124
    %v240 = vpop.f32.mrf.mxu0
    %v241 = vadd.f32 %v63, %v240
    %242 = vmatmul.f32.gmra.mxu0 %v127
    %v243 = vpop.f32.mrf.mxu0
    %v244 = vadd.f32 %v63, %v243
    %245 = vmatmul.f32.gmra.mxu0 %v130
    %v246 = vpop.f32.mrf.mxu0
    %v247 = vadd.f32 %v63, %v246
    %248 = vmatmul.f32.gmra.mxu0 %v133
    %v249 = vpop.f32.mrf.mxu0
    %v250 = vadd.f32 %v63, %v249
    %251 = vmatmul.f32.gmra.mxu0 %v136
    %v252 = vpop.f32.mrf.mxu0
    %v253 = vadd.f32 %v63, %v252
    %254 = vmatmul.f32.gmra.mxu0 %v139
    %v255 = vpop.f32.mrf.mxu0
    %v256 = vadd.f32 %v63, %v255
    %257 = vmatmul.f32.gmra.mxu0 %v142
    %v258 = vpop.f32.mrf.mxu0
    %v259 = vadd.f32 %v63, %v258
    %260 = vmatmul.f32.gmra.mxu0 %v145
    %v261 = vpop.f32.mrf.mxu0
    %v262 = vadd.f32 %v63, %v261
    %263 = vmatmul.f32.gmra.mxu0 %v148
    %v264 = vpop.f32.mrf.mxu0
    %v265 = vadd.f32 %v63, %v264
    %266 = vmatmul.f32.gmra.mxu0 %v151
    %v267 = vpop.f32.mrf.mxu0
    %v268 = vadd.f32 %v63, %v267
    %269 = vmatmul.f32.gmra.mxu0 %v154
    %v270 = vpop.f32.mrf.mxu0
    %v271 = vadd.f32 %v63, %v270
    %272 = vmatmul.f32.gmra.mxu0 %v157
    %v273 = vpop.f32.mrf.mxu0
    %v274 = vadd.f32 %v63, %v273
    %275 = vmatmul.f32.gmra.mxu0 %v160
    %v276 = vpop.f32.mrf.mxu0
    %v277 = vadd.f32 %v63, %v276
    %278 = vdwg.mxu0
    %v279 = vld [vmem:[%s1] sm:$0xff]
    %v280 = vld [vmem:[%s1 + $0x8] sm:$0xff]
    %v281 = vld [vmem:[%s1 + $0x10] sm:$0xff]
    %v282 = vld [vmem:[%s1 + $0x18] sm:$0xff]
    %v283 = vld [vmem:[%s1 + $0x20] sm:$0xff]
    %v284 = vld [vmem:[%s1 + $0x28] sm:$0xff]
    %v285 = vld [vmem:[%s1 + $0x30] sm:$0xff]
    %v286 = vld [vmem:[%s1 + $0x38] sm:$0xff]
    %v287 = vld [vmem:[%s1 + $0x40] sm:$0xff]
    %v288 = vld [vmem:[%s1 + $0x48] sm:$0xff]
    %v289 = vld [vmem:[%s1 + $0x50] sm:$0xff]
    %v290 = vld [vmem:[%s1 + $0x58] sm:$0xff]
    %v291 = vld [vmem:[%s1 + $0x60] sm:$0xff]
    %v292 = vld [vmem:[%s1 + $0x68] sm:$0xff]
    %v293 = vld [vmem:[%s1 + $0x70] sm:$0xff]
    %v294 = vld [vmem:[%s1 + $0x78] sm:$0xff]
    %v295 = vld [vmem:[%s1 + $0x80] sm:$0xff]
    %v296 = vld [vmem:[%s1 + $0x88] sm:$0xff]
    %v297 = vld [vmem:[%s1 + $0x90] sm:$0xff]
    %v298 = vld [vmem:[%s1 + $0x98] sm:$0xff]
    %v299 = vld [vmem:[%s1 + $0xa0] sm:$0xff]
    %v300 = vld [vmem:[%s1 + $0xa8] sm:$0xff]
    %v301 = vld [vmem:[%s1 + $0xb0] sm:$0xff]
    %v302 = vld [vmem:[%s1 + $0xb8] sm:$0xff]
    %v303 = vld [vmem:[%s1 + $0xc0] sm:$0xff]
    %v304 = vld [vmem:[%s1 + $0xc8] sm:$0xff]
    %v305 = vld [vmem:[%s1 + $0xd0] sm:$0xff]
    %v306 = vld [vmem:[%s1 + $0xd8] sm:$0xff]
    %v307 = vld [vmem:[%s1 + $0xe0] sm:$0xff]
    %v308 = vld [vmem:[%s1 + $0xe8] sm:$0xff]
    %v309 = vld [vmem:[%s1 + $0xf0] sm:$0xff]
    %v310 = vld [vmem:[%s1 + $0xf8] sm:$0xff]
    %v311 = vld [vmem:[%s2] sm:$0x1]
    %313 = vset.pattern.permute.xlu0 0
    %314 = vperm.xlu0 %313, %v279
    %v315 = vpop.permute.xlu0 %314
    %318 = vset.pattern.permute.xlu0 0
    %319 = vperm.xlu0 %318, %v280
    %v320 = vpop.permute.xlu0 %319
    %323 = vset.pattern.permute.xlu0 0
    %324 = vperm.xlu0 %323, %v281
    %v325 = vpop.permute.xlu0 %324
    %328 = vset.pattern.permute.xlu0 0
    %329 = vperm.xlu0 %328, %v282
    %v330 = vpop.permute.xlu0 %329
    %333 = vset.pattern.permute.xlu0 0
    %334 = vperm.xlu0 %333, %v283
    %v335 = vpop.permute.xlu0 %334
    %338 = vset.pattern.permute.xlu0 0
    %339 = vperm.xlu0 %338, %v284
    %v340 = vpop.permute.xlu0 %339
    %343 = vset.pattern.permute.xlu0 0
    %344 = vperm.xlu0 %343, %v285
    %v345 = vpop.permute.xlu0 %344
    %348 = vset.pattern.permute.xlu0 0
    %349 = vperm.xlu0 %348, %v286
    %v350 = vpop.permute.xlu0 %349
    %353 = vset.pattern.permute.xlu0 0
    %354 = vperm.xlu0 %353, %v287
    %v355 = vpop.permute.xlu0 %354
    %358 = vset.pattern.permute.xlu0 0
    %359 = vperm.xlu0 %358, %v288
    %v360 = vpop.permute.xlu0 %359
    %363 = vset.pattern.permute.xlu0 0
    %364 = vperm.xlu0 %363, %v289
    %v365 = vpop.permute.xlu0 %364
    %368 = vset.pattern.permute.xlu0 0
    %369 = vperm.xlu0 %368, %v290
    %v370 = vpop.permute.xlu0 %369
    %373 = vset.pattern.permute.xlu0 0
    %374 = vperm.xlu0 %373, %v291
    %v375 = vpop.permute.xlu0 %374
    %378 = vset.pattern.permute.xlu0 0
    %379 = vperm.xlu0 %378, %v292
    %v380 = vpop.permute.xlu0 %379
    %383 = vset.pattern.permute.xlu0 0
    %384 = vperm.xlu0 %383, %v293
    %v385 = vpop.permute.xlu0 %384
    %388 = vset.pattern.permute.xlu0 0
    %389 = vperm.xlu0 %388, %v294
    %v390 = vpop.permute.xlu0 %389
    %393 = vset.pattern.permute.xlu0 0
    %394 = vperm.xlu0 %393, %v295
    %v395 = vpop.permute.xlu0 %394
    %398 = vset.pattern.permute.xlu0 0
    %399 = vperm.xlu0 %398, %v296
    %v400 = vpop.permute.xlu0 %399
    %403 = vset.pattern.permute.xlu0 0
    %404 = vperm.xlu0 %403, %v297
    %v405 = vpop.permute.xlu0 %404
    %408 = vset.pattern.permute.xlu0 0
    %409 = vperm.xlu0 %408, %v298
    %v410 = vpop.permute.xlu0 %409
    %413 = vset.pattern.permute.xlu0 0
    %414 = vperm.xlu0 %413, %v299
    %v415 = vpop.permute.xlu0 %414
    %418 = vset.pattern.permute.xlu0 0
    %419 = vperm.xlu0 %418, %v300
    %v420 = vpop.permute.xlu0 %419
    %423 = vset.pattern.permute.xlu0 0
    %424 = vperm.xlu0 %423, %v301
    %v425 = vpop.permute.xlu0 %424
    %428 = vset.pattern.permute.xlu0 0
    %429 = vperm.xlu0 %428, %v302
    %v430 = vpop.permute.xlu0 %429
    %433 = vset.pattern.permute.xlu0 0
    %434 = vperm.xlu0 %433, %v303
    %v435 = vpop.permute.xlu0 %434
    %438 = vset.pattern.permute.xlu0 0
    %439 = vperm.xlu0 %438, %v304
    %v440 = vpop.permute.xlu0 %439
    %443 = vset.pattern.permute.xlu0 0
    %444 = vperm.xlu0 %443, %v305
    %v445 = vpop.permute.xlu0 %444
    %448 = vset.pattern.permute.xlu0 0
    %449 = vperm.xlu0 %448, %v306
    %v450 = vpop.permute.xlu0 %449
    %453 = vset.pattern.permute.xlu0 0
    %454 = vperm.xlu0 %453, %v307
    %v455 = vpop.permute.xlu0 %454
    %458 = vset.pattern.permute.xlu0 0
    %459 = vperm.xlu0 %458, %v308
    %v460 = vpop.permute.xlu0 %459
    %463 = vset.pattern.permute.xlu0 0
    %464 = vperm.xlu0 %463, %v309
    %v465 = vpop.permute.xlu0 %464
    %468 = vset.pattern.permute.xlu0 0
    %469 = vperm.xlu0 %468, %v310
    %v470 = vpop.permute.xlu0 %469
    %v473 = vperm.slane %v311, 0
    %v475 = vmul.f32 %v315, %v473
    %v476 = vmul.f32 %v320, %v473
    %v477 = vmul.f32 %v325, %v473
    %v478 = vmul.f32 %v330, %v473
    %v479 = vmul.f32 %v335, %v473
    %v480 = vmul.f32 %v340, %v473
    %v481 = vmul.f32 %v345, %v473
    %v482 = vmul.f32 %v350, %v473
    %v483 = vmul.f32 %v355, %v473
    %v484 = vmul.f32 %v360, %v473
    %v485 = vmul.f32 %v365, %v473
    %v486 = vmul.f32 %v370, %v473
    %v487 = vmul.f32 %v375, %v473
    %v488 = vmul.f32 %v380, %v473
    %v489 = vmul.f32 %v385, %v473
    %v490 = vmul.f32 %v390, %v473
    %v491 = vmul.f32 %v395, %v473
    %v492 = vmul.f32 %v400, %v473
    %v493 = vmul.f32 %v405, %v473
    %v494 = vmul.f32 %v410, %v473
    %v495 = vmul.f32 %v415, %v473
    %v496 = vmul.f32 %v420, %v473
    %v497 = vmul.f32 %v425, %v473
    %v498 = vmul.f32 %v430, %v473
    %v499 = vmul.f32 %v435, %v473
    %v500 = vmul.f32 %v440, %v473
    %v501 = vmul.f32 %v445, %v473
    %v502 = vmul.f32 %v450, %v473
    %v503 = vmul.f32 %v455, %v473
    %v504 = vmul.f32 %v460, %v473
    %v505 = vmul.f32 %v465, %v473
    %v506 = vmul.f32 %v470, %v473
    %v507 = vlaneseq
    %v508 = vand.u32 %v507, 127
    %vm509 = vcmp.lt.s32.totalorder %v508, 0
    %v510 = vsub.s32 0, %v508
    %v511 = vsel %vm509, %v510, %v508
    %v512 = vshrl.u32 %v511, 1
    %v513 = vand.u32 %v511, 1
    %v514 = vsub.s32 0, %v513
    %v515 = vsel %vm509, %v514, %v513
    %vm516 = vcmp.ne.s32.totalorder %v515, 0
    %vm517 = vcmp.lt.s32.totalorder %v515, 0
    %vm518 = vmand %vm517, %vm516
    %v519 = vadd.s32 %v515, 2
    %v520 = vsel %vm518, %v519, %v515
    %vm521 = vcmp.eq.s32.totalorder %v520, 0
    %v522 = vand.u32 2147483647, %v475
    %vm523 = vcmp.le.f32.partialorder %v522, 0.7853982
    %vm524 = vcmp.lt.s32.totalorder %v475, 0
    %v525 = vand.u32 %v475, 2139095040
    %v526 = vshrl.u32 %v525, 23
    %v527 = vsub.s32 %v526, 127
    %v528 = vand.u32 2147483647, %v475
    %v529 = vand.u32 %v528, 8388607
    %v530 = vor.u32 %v529, 8388608
    %v531 = vsub.s32 0, %v530
    %v532 = vadd.s32 %v527, 1
    %vm533 = vcmp.gt.s32.totalorder %v532, 0
    %v534 = vsel %vm533, %v532, 0
    %v535 = vshrl.u32 %v534, 5
    %v536 = vand.u32 %v534, 31
    %v537 = vsub.s32 32, %v536
    %v538 = vshrl.u32 683565275, %v537
    %v539 = vshll.u32 683565275, %v536
    %v540 = vshrl.u32 2475754826, %v537
    %v541 = vor.u32 %v539, %v540
    %v542 = vshll.u32 2475754826, %v536
    %v543 = vshrl.u32 2131351028, %v537
    %v544 = vor.u32 %v542, %v543
    %v545 = vshll.u32 2131351028, %v536
    %v546 = vshrl.u32 2102212464, %v537
    %v547 = vor.u32 %v545, %v546
    %v548 = vshll.u32 2102212464, %v536
    %v549 = vshrl.u32 920167782, %v537
    %v550 = vor.u32 %v548, %v549
    %v551 = vshll.u32 920167782, %v536
    %v552 = vshrl.u32 1326507024, %v537
    %v553 = vor.u32 %v551, %v552
    %vm554 = vcmp.lt.s32.totalorder %v535, 1
    %vm555 = vcmp.lt.s32.totalorder %v535, 2
    %vm556 = vcmp.lt.s32.totalorder %v535, 3
    %vm557 = vcmp.lt.s32.totalorder %v535, 4
    %v558 = vsel %vm554, %v538, %v541
    %v559 = vsel %vm557, %v547, 2102212464
    %v560 = vsel %vm556, %v544, %v559
    %v561 = vsel %vm555, %v558, %v560
    %v562 = vsel %vm554, %v541, %v544
    %v563 = vsel %vm557, %v550, 920167782
    %v564 = vsel %vm556, %v547, %v563
    %v565 = vsel %vm555, %v562, %v564
    %v566 = vsel %vm554, %v544, %v547
    %v567 = vsel %vm557, %v553, 1326507024
    %v568 = vsel %vm556, %v550, %v567
    %v569 = vsel %vm555, %v566, %v568
    %v570 = vshll.u32 %v530, 8
    %v571 = vand.u32 %v570, 65535
    %v572 = vshrl.u32 %v570, 16
    %v573 = vand.u32 %v569, 65535
    %v574 = vshrl.u32 %v569, 16
    %v575 = vmul.u32 %v571, %v573
    %v576 = vmul.u32 %v571, %v574
    %v577 = vmul.u32 %v572, %v573
    %v578 = vmul.u32 %v572, %v574
    %v579 = vshll.u32 %v576, 16
    %v580 = vshrl.u32 %v576, 16
    %v581 = vshll.u32 %v577, 16
    %v582 = vshrl.u32 %v577, 16
    %vm583 = vc.u32 %v575, %v579
    %v584 = vsel %vm583, 1, 0
    %v585 = vadd.s32 %v575, %v579
    %v586 = vadd.s32 %v578, %v584
    %vm587 = vc.u32 %v585, %v581
    %v588 = vsel %vm587, 1, 0
    %v589 = vadd.s32 %v585, %v581
    %v590 = vadd.s32 %v586, %v588
    %v591 = vadd.s32 %v590, %v580
    %v592 = vadd.s32 %v591, %v582
    %v593 = vand.u32 %v570, 65535
    %v594 = vshrl.u32 %v570, 16
    %v595 = vand.u32 %v565, 65535
    %v596 = vshrl.u32 %v565, 16
    %v597 = vmul.u32 %v593, %v595
    %v598 = vmul.u32 %v593, %v596
    %v599 = vmul.u32 %v594, %v595
    %v600 = vmul.u32 %v594, %v596
    %v601 = vshll.u32 %v598, 16
    %v602 = vshrl.u32 %v598, 16
    %v603 = vshll.u32 %v599, 16
    %v604 = vshrl.u32 %v599, 16
    %vm605 = vc.u32 %v597, %v601
    %v606 = vsel %vm605, 1, 0
    %v607 = vadd.s32 %v597, %v601
    %v608 = vadd.s32 %v600, %v606
    %vm609 = vc.u32 %v607, %v603
    %v610 = vsel %vm609, 1, 0
    %v611 = vadd.s32 %v607, %v603
    %v612 = vadd.s32 %v608, %v610
    %v613 = vadd.s32 %v612, %v602
    %v614 = vadd.s32 %v613, %v604
    %v615 = vmul.u32 %v570, %v561
    %v616 = vadd.s32 %v592, %v611
    %vm617 = vc.u32 %v592, %v611
    %v618 = vadd.s32 %v614, 1
    %v619 = vsel %vm617, %v618, %v614
    %v620 = vadd.s32 %v615, %v619
    %v621 = vadd.s32 %v620, 536870912
    %v622 = vshrl.u32 %v621, 30
    %v623 = vshll.u32 %v622, 30
    %v624 = vsub.s32 %v620, %v623
    %vm625 = vcmp.lt.s32.totalorder %v624, 0
    %v626 = vsub.s32 0, %v624
    %v627 = vsel %vm625, %v626, %v624
    %v628 = vclz %v627
    %v629 = vsub.s32 %v628, 2
    %vm630 = vcmp.gt.s32.totalorder 0, %v629
    %v631 = vsel %vm630, 0, %v629
    %v632 = vsub.s32 32, %v631
    %v633 = vshll.u32 %v624, %v631
    %v634 = vshrl.u32 %v616, %v632
    %v635 = vor.u32 %v633, %v634
    %v636 = vsub.s32 4294967266, %v631
    %v637 = vadd.s32 %v636, 127
    %v638 = vshll.u32 %v637, 23
    %v639 = vor.u32 4788187, %v638
    %v640 = vand.u32 2147483647, %v639
    %v642 = vcvt.s32.f32 %v635
    %v643 = vmul.f32 %v642, %v640
    %v644 = vxor.u32 %v643, 2147483648
    %v645 = vsel %vm524, %v644, %v643
    %v646 = vsub.s32 4, %v622
    %v647 = vsel %vm524, %v646, %v622
    %v648 = vsel %vm523, %v475, %v645
    %v649 = vsel %vm523, 0, %v647
    %v650 = vmul.f32 %v648, %v648
    %v651 = vmul.f32 %v650, -0.001358992
    %v652 = vadd.f32 %v651, 0.041655596
    %v653 = vmul.f32 %v650, %v652
    %v654 = vadd.f32 %v653, -0.4999988
    %v655 = vmul.f32 %v650, %v654
    %v656 = vadd.f32 1.0, %v655
    %v657 = vmul.f32 %v648, %v648
    %v658 = vmul.f32 %v657, -0.00019511016
    %v659 = vadd.f32 %v658, 0.008332121
    %v660 = vmul.f32 %v657, %v659
    %v661 = vadd.f32 %v660, -0.16666654
    %v662 = vmul.f32 %v657, %v661
    %v663 = vadd.f32 %v662, 1.0
    %v664 = vmul.f32 %v663, %v648
    %vm665 = vweird.f32 %v475
    %v666 = vadd.s32 %v649, 3
    %v667 = vand.u32 %v666, 3
    %vm668 = vcmp.lt.s32.totalorder %v667, 2
    %vm669 = vcmp.eq.s32.totalorder %v667, 0
    %v670 = vxor.u32 %v664, 2147483648
    %v671 = vsel %vm669, %v656, %v670
    %vm672 = vcmp.eq.s32.totalorder %v667, 2
    %v673 = vxor.u32 %v656, 2147483648
    %v674 = vsel %vm672, %v673, %v664
    %v675 = vsel %vm668, %v671, %v674
    %v676 = vsel %vm665, nan, %v675
    %v677 = vand.u32 2147483647, %v476
    %vm678 = vcmp.le.f32.partialorder %v677, 0.7853982
    %vm679 = vcmp.lt.s32.totalorder %v476, 0
    %v680 = vand.u32 %v476, 2139095040
    %v681 = vshrl.u32 %v680, 23
    %v682 = vsub.s32 %v681, 127
    %v683 = vand.u32 2147483647, %v476
    %v684 = vand.u32 %v683, 8388607
    %v685 = vor.u32 %v684, 8388608
    %v686 = vsub.s32 0, %v685
    %v687 = vadd.s32 %v682, 1
    %vm688 = vcmp.gt.s32.totalorder %v687, 0
    %v689 = vsel %vm688, %v687, 0
    %v690 = vshrl.u32 %v689, 5
    %v691 = vand.u32 %v689, 31
    %v692 = vsub.s32 32, %v691
    %v693 = vshrl.u32 683565275, %v692
    %v694 = vshll.u32 683565275, %v691
    %v695 = vshrl.u32 2475754826, %v692
    %v696 = vor.u32 %v694, %v695
    %v697 = vshll.u32 2475754826, %v691
    %v698 = vshrl.u32 2131351028, %v692
    %v699 = vor.u32 %v697, %v698
    %v700 = vshll.u32 2131351028, %v691
    %v701 = vshrl.u32 2102212464, %v692
    %v702 = vor.u32 %v700, %v701
    %v703 = vshll.u32 2102212464, %v691
    %v704 = vshrl.u32 920167782, %v692
    %v705 = vor.u32 %v703, %v704
    %v706 = vshll.u32 920167782, %v691
    %v707 = vshrl.u32 1326507024, %v692
    %v708 = vor.u32 %v706, %v707
    %vm709 = vcmp.lt.s32.totalorder %v690, 1
    %vm710 = vcmp.lt.s32.totalorder %v690, 2
    %vm711 = vcmp.lt.s32.totalorder %v690, 3
    %vm712 = vcmp.lt.s32.totalorder %v690, 4
    %v713 = vsel %vm709, %v693, %v696
    %v714 = vsel %vm712, %v702, 2102212464
    %v715 = vsel %vm711, %v699, %v714
    %v716 = vsel %vm710, %v713, %v715
    %v717 = vsel %vm709, %v696, %v699
    %v718 = vsel %vm712, %v705, 920167782
    %v719 = vsel %vm711, %v702, %v718
    %v720 = vsel %vm710, %v717, %v719
    %v721 = vsel %vm709, %v699, %v702
    %v722 = vsel %vm712, %v708, 1326507024
    %v723 = vsel %vm711, %v705, %v722
    %v724 = vsel %vm710, %v721, %v723
    %v725 = vshll.u32 %v685, 8
    %v726 = vand.u32 %v725, 65535
    %v727 = vshrl.u32 %v725, 16
    %v728 = vand.u32 %v724, 65535
    %v729 = vshrl.u32 %v724, 16
    %v730 = vmul.u32 %v726, %v728
    %v731 = vmul.u32 %v726, %v729
    %v732 = vmul.u32 %v727, %v728
    %v733 = vmul.u32 %v727, %v729
    %v734 = vshll.u32 %v731, 16
    %v735 = vshrl.u32 %v731, 16
    %v736 = vshll.u32 %v732, 16
    %v737 = vshrl.u32 %v732, 16
    %vm738 = vc.u32 %v730, %v734
    %v739 = vsel %vm738, 1, 0
    %v740 = vadd.s32 %v730, %v734
    %v741 = vadd.s32 %v733, %v739
    %vm742 = vc.u32 %v740, %v736
    %v743 = vsel %vm742, 1, 0
    %v744 = vadd.s32 %v740, %v736
    %v745 = vadd.s32 %v741, %v743
    %v746 = vadd.s32 %v745, %v735
    %v747 = vadd.s32 %v746, %v737
    %v748 = vand.u32 %v725, 65535
    %v749 = vshrl.u32 %v725, 16
    %v750 = vand.u32 %v720, 65535
    %v751 = vshrl.u32 %v720, 16
    %v752 = vmul.u32 %v748, %v750
    %v753 = vmul.u32 %v748, %v751
    %v754 = vmul.u32 %v749, %v750
    %v755 = vmul.u32 %v749, %v751
    %v756 = vshll.u32 %v753, 16
    %v757 = vshrl.u32 %v753, 16
    %v758 = vshll.u32 %v754, 16
    %v759 = vshrl.u32 %v754, 16
    %vm760 = vc.u32 %v752, %v756
    %v761 = vsel %vm760, 1, 0
    %v762 = vadd.s32 %v752, %v756
    %v763 = vadd.s32 %v755, %v761
    %vm764 = vc.u32 %v762, %v758
    %v765 = vsel %vm764, 1, 0
    %v766 = vadd.s32 %v762, %v758
    %v767 = vadd.s32 %v763, %v765
    %v768 = vadd.s32 %v767, %v757
    %v769 = vadd.s32 %v768, %v759
    %v770 = vmul.u32 %v725, %v716
    %v771 = vadd.s32 %v747, %v766
    %vm772 = vc.u32 %v747, %v766
    %v773 = vadd.s32 %v769, 1
    %v774 = vsel %vm772, %v773, %v769
    %v775 = vadd.s32 %v770, %v774
    %v776 = vadd.s32 %v775, 536870912
    %v777 = vshrl.u32 %v776, 30
    %v778 = vshll.u32 %v777, 30
    %v779 = vsub.s32 %v775, %v778
    %vm780 = vcmp.lt.s32.totalorder %v779, 0
    %v781 = vsub.s32 0, %v779
    %v782 = vsel %vm780, %v781, %v779
    %v783 = vclz %v782
    %v784 = vsub.s32 %v783, 2
    %vm785 = vcmp.gt.s32.totalorder 0, %v784
    %v786 = vsel %vm785, 0, %v784
    %v787 = vsub.s32 32, %v786
    %v788 = vshll.u32 %v779, %v786
    %v789 = vshrl.u32 %v771, %v787
    %v790 = vor.u32 %v788, %v789
    %v791 = vsub.s32 4294967266, %v786
    %v792 = vadd.s32 %v791, 127
    %v793 = vshll.u32 %v792, 23
    %v794 = vor.u32 4788187, %v793
    %v795 = vand.u32 2147483647, %v794
    %v797 = vcvt.s32.f32 %v790
    %v798 = vmul.f32 %v797, %v795
    %v799 = vxor.u32 %v798, 2147483648
    %v800 = vsel %vm679, %v799, %v798
    %v801 = vsub.s32 4, %v777
    %v802 = vsel %vm679, %v801, %v777
    %v803 = vsel %vm678, %v476, %v800
    %v804 = vsel %vm678, 0, %v802
    %v805 = vmul.f32 %v803, %v803
    %v806 = vmul.f32 %v805, -0.001358992
    %v807 = vadd.f32 %v806, 0.041655596
    %v808 = vmul.f32 %v805, %v807
    %v809 = vadd.f32 %v808, -0.4999988
    %v810 = vmul.f32 %v805, %v809
    %v811 = vadd.f32 1.0, %v810
    %v812 = vmul.f32 %v803, %v803
    %v813 = vmul.f32 %v812, -0.00019511016
    %v814 = vadd.f32 %v813, 0.008332121
    %v815 = vmul.f32 %v812, %v814
    %v816 = vadd.f32 %v815, -0.16666654
    %v817 = vmul.f32 %v812, %v816
    %v818 = vadd.f32 %v817, 1.0
    %v819 = vmul.f32 %v818, %v803
    %vm820 = vweird.f32 %v476
    %v821 = vadd.s32 %v804, 3
    %v822 = vand.u32 %v821, 3
    %vm823 = vcmp.lt.s32.totalorder %v822, 2
    %vm824 = vcmp.eq.s32.totalorder %v822, 0
    %v825 = vxor.u32 %v819, 2147483648
    %v826 = vsel %vm824, %v811, %v825
    %vm827 = vcmp.eq.s32.totalorder %v822, 2
    %v828 = vxor.u32 %v811, 2147483648
    %v829 = vsel %vm827, %v828, %v819
    %v830 = vsel %vm823, %v826, %v829
    %v831 = vsel %vm820, nan, %v830
    %v832 = vand.u32 2147483647, %v477
    %vm833 = vcmp.le.f32.partialorder %v832, 0.7853982
    %vm834 = vcmp.lt.s32.totalorder %v477, 0
    %v835 = vand.u32 %v477, 2139095040
    %v836 = vshrl.u32 %v835, 23
    %v837 = vsub.s32 %v836, 127
    %v838 = vand.u32 2147483647, %v477
    %v839 = vand.u32 %v838, 8388607
    %v840 = vor.u32 %v839, 8388608
    %v841 = vsub.s32 0, %v840
    %v842 = vadd.s32 %v837, 1
    %vm843 = vcmp.gt.s32.totalorder %v842, 0
    %v844 = vsel %vm843, %v842, 0
    %v845 = vshrl.u32 %v844, 5
    %v846 = vand.u32 %v844, 31
    %v847 = vsub.s32 32, %v846
    %v848 = vshrl.u32 683565275, %v847
    %v849 = vshll.u32 683565275, %v846
    %v850 = vshrl.u32 2475754826, %v847
    %v851 = vor.u32 %v849, %v850
    %v852 = vshll.u32 2475754826, %v846
    %v853 = vshrl.u32 2131351028, %v847
    %v854 = vor.u32 %v852, %v853
    %v855 = vshll.u32 2131351028, %v846
    %v856 = vshrl.u32 2102212464, %v847
    %v857 = vor.u32 %v855, %v856
    %v858 = vshll.u32 2102212464, %v846
    %v859 = vshrl.u32 920167782, %v847
    %v860 = vor.u32 %v858, %v859
    %v861 = vshll.u32 920167782, %v846
    %v862 = vshrl.u32 1326507024, %v847
    %v863 = vor.u32 %v861, %v862
    %vm864 = vcmp.lt.s32.totalorder %v845, 1
    %vm865 = vcmp.lt.s32.totalorder %v845, 2
    %vm866 = vcmp.lt.s32.totalorder %v845, 3
    %vm867 = vcmp.lt.s32.totalorder %v845, 4
    %v868 = vsel %vm864, %v848, %v851
    %v869 = vsel %vm867, %v857, 2102212464
    %v870 = vsel %vm866, %v854, %v869
    %v871 = vsel %vm865, %v868, %v870
    %v872 = vsel %vm864, %v851, %v854
    %v873 = vsel %vm867, %v860, 920167782
    %v874 = vsel %vm866, %v857, %v873
    %v875 = vsel %vm865, %v872, %v874
    %v876 = vsel %vm864, %v854, %v857
    %v877 = vsel %vm867, %v863, 1326507024
    %v878 = vsel %vm866, %v860, %v877
    %v879 = vsel %vm865, %v876, %v878
    %v880 = vshll.u32 %v840, 8
    %v881 = vand.u32 %v880, 65535
    %v882 = vshrl.u32 %v880, 16
    %v883 = vand.u32 %v879, 65535
    %v884 = vshrl.u32 %v879, 16
    %v885 = vmul.u32 %v881, %v883
    %v886 = vmul.u32 %v881, %v884
    %v887 = vmul.u32 %v882, %v883
    %v888 = vmul.u32 %v882, %v884
    %v889 = vshll.u32 %v886, 16
    %v890 = vshrl.u32 %v886, 16
    %v891 = vshll.u32 %v887, 16
    %v892 = vshrl.u32 %v887, 16
    %vm893 = vc.u32 %v885, %v889
    %v894 = vsel %vm893, 1, 0
    %v895 = vadd.s32 %v885, %v889
    %v896 = vadd.s32 %v888, %v894
    %vm897 = vc.u32 %v895, %v891
    %v898 = vsel %vm897, 1, 0
    %v899 = vadd.s32 %v895, %v891
    %v900 = vadd.s32 %v896, %v898
    %v901 = vadd.s32 %v900, %v890
    %v902 = vadd.s32 %v901, %v892
    %v903 = vand.u32 %v880, 65535
    %v904 = vshrl.u32 %v880, 16
    %v905 = vand.u32 %v875, 65535
    %v906 = vshrl.u32 %v875, 16
    %v907 = vmul.u32 %v903, %v905
    %v908 = vmul.u32 %v903, %v906
    %v909 = vmul.u32 %v904, %v905
    %v910 = vmul.u32 %v904, %v906
    %v911 = vshll.u32 %v908, 16
    %v912 = vshrl.u32 %v908, 16
    %v913 = vshll.u32 %v909, 16
    %v914 = vshrl.u32 %v909, 16
    %vm915 = vc.u32 %v907, %v911
    %v916 = vsel %vm915, 1, 0
    %v917 = vadd.s32 %v907, %v911
    %v918 = vadd.s32 %v910, %v916
    %vm919 = vc.u32 %v917, %v913
    %v920 = vsel %vm919, 1, 0
    %v921 = vadd.s32 %v917, %v913
    %v922 = vadd.s32 %v918, %v920
    %v923 = vadd.s32 %v922, %v912
    %v924 = vadd.s32 %v923, %v914
    %v925 = vmul.u32 %v880, %v871
    %v926 = vadd.s32 %v902, %v921
    %vm927 = vc.u32 %v902, %v921
    %v928 = vadd.s32 %v924, 1
    %v929 = vsel %vm927, %v928, %v924
    %v930 = vadd.s32 %v925, %v929
    %v931 = vadd.s32 %v930, 536870912
    %v932 = vshrl.u32 %v931, 30
    %v933 = vshll.u32 %v932, 30
    %v934 = vsub.s32 %v930, %v933
    %vm935 = vcmp.lt.s32.totalorder %v934, 0
    %v936 = vsub.s32 0, %v934
    %v937 = vsel %vm935, %v936, %v934
    %v938 = vclz %v937
    %v939 = vsub.s32 %v938, 2
    %vm940 = vcmp.gt.s32.totalorder 0, %v939
    %v941 = vsel %vm940, 0, %v939
    %v942 = vsub.s32 32, %v941
    %v943 = vshll.u32 %v934, %v941
    %v944 = vshrl.u32 %v926, %v942
    %v945 = vor.u32 %v943, %v944
    %v946 = vsub.s32 4294967266, %v941
    %v947 = vadd.s32 %v946, 127
    %v948 = vshll.u32 %v947, 23
    %v949 = vor.u32 4788187, %v948
    %v950 = vand.u32 2147483647, %v949
    %v952 = vcvt.s32.f32 %v945
    %v953 = vmul.f32 %v952, %v950
    %v954 = vxor.u32 %v953, 2147483648
    %v955 = vsel %vm834, %v954, %v953
    %v956 = vsub.s32 4, %v932
    %v957 = vsel %vm834, %v956, %v932
    %v958 = vsel %vm833, %v477, %v955
    %v959 = vsel %vm833, 0, %v957
    %v960 = vmul.f32 %v958, %v958
    %v961 = vmul.f32 %v960, -0.001358992
    %v962 = vadd.f32 %v961, 0.041655596
    %v963 = vmul.f32 %v960, %v962
    %v964 = vadd.f32 %v963, -0.4999988
    %v965 = vmul.f32 %v960, %v964
    %v966 = vadd.f32 1.0, %v965
    %v967 = vmul.f32 %v958, %v958
    %v968 = vmul.f32 %v967, -0.00019511016
    %v969 = vadd.f32 %v968, 0.008332121
    %v970 = vmul.f32 %v967, %v969
    %v971 = vadd.f32 %v970, -0.16666654
    %v972 = vmul.f32 %v967, %v971
    %v973 = vadd.f32 %v972, 1.0
    %v974 = vmul.f32 %v973, %v958
    %vm975 = vweird.f32 %v477
    %v976 = vadd.s32 %v959, 3
    %v977 = vand.u32 %v976, 3
    %vm978 = vcmp.lt.s32.totalorder %v977, 2
    %vm979 = vcmp.eq.s32.totalorder %v977, 0
    %v980 = vxor.u32 %v974, 2147483648
    %v981 = vsel %vm979, %v966, %v980
    %vm982 = vcmp.eq.s32.totalorder %v977, 2
    %v983 = vxor.u32 %v966, 2147483648
    %v984 = vsel %vm982, %v983, %v974
    %v985 = vsel %vm978, %v981, %v984
    %v986 = vsel %vm975, nan, %v985
    %v987 = vand.u32 2147483647, %v478
    %vm988 = vcmp.le.f32.partialorder %v987, 0.7853982
    %vm989 = vcmp.lt.s32.totalorder %v478, 0
    %v990 = vand.u32 %v478, 2139095040
    %v991 = vshrl.u32 %v990, 23
    %v992 = vsub.s32 %v991, 127
    %v993 = vand.u32 2147483647, %v478
    %v994 = vand.u32 %v993, 8388607
    %v995 = vor.u32 %v994, 8388608
    %v996 = vsub.s32 0, %v995
    %v997 = vadd.s32 %v992, 1
    %vm998 = vcmp.gt.s32.totalorder %v997, 0
    %v999 = vsel %vm998, %v997, 0
    %v1000 = vshrl.u32 %v999, 5
    %v1001 = vand.u32 %v999, 31
    %v1002 = vsub.s32 32, %v1001
    %v1003 = vshrl.u32 683565275, %v1002
    %v1004 = vshll.u32 683565275, %v1001
    %v1005 = vshrl.u32 2475754826, %v1002
    %v1006 = vor.u32 %v1004, %v1005
    %v1007 = vshll.u32 2475754826, %v1001
    %v1008 = vshrl.u32 2131351028, %v1002
    %v1009 = vor.u32 %v1007, %v1008
    %v1010 = vshll.u32 2131351028, %v1001
    %v1011 = vshrl.u32 2102212464, %v1002
    %v1012 = vor.u32 %v1010, %v1011
    %v1013 = vshll.u32 2102212464, %v1001
    %v1014 = vshrl.u32 920167782, %v1002
    %v1015 = vor.u32 %v1013, %v1014
    %v1016 = vshll.u32 920167782, %v1001
    %v1017 = vshrl.u32 1326507024, %v1002
    %v1018 = vor.u32 %v1016, %v1017
    %vm1019 = vcmp.lt.s32.totalorder %v1000, 1
    %vm1020 = vcmp.lt.s32.totalorder %v1000, 2
    %vm1021 = vcmp.lt.s32.totalorder %v1000, 3
    %vm1022 = vcmp.lt.s32.totalorder %v1000, 4
    %v1023 = vsel %vm1019, %v1003, %v1006
    %v1024 = vsel %vm1022, %v1012, 2102212464
    %v1025 = vsel %vm1021, %v1009, %v1024
    %v1026 = vsel %vm1020, %v1023, %v1025
    %v1027 = vsel %vm1019, %v1006, %v1009
    %v1028 = vsel %vm1022, %v1015, 920167782
    %v1029 = vsel %vm1021, %v1012, %v1028
    %v1030 = vsel %vm1020, %v1027, %v1029
    %v1031 = vsel %vm1019, %v1009, %v1012
    %v1032 = vsel %vm1022, %v1018, 1326507024
    %v1033 = vsel %vm1021, %v1015, %v1032
    %v1034 = vsel %vm1020, %v1031, %v1033
    %v1035 = vshll.u32 %v995, 8
    %v1036 = vand.u32 %v1035, 65535
    %v1037 = vshrl.u32 %v1035, 16
    %v1038 = vand.u32 %v1034, 65535
    %v1039 = vshrl.u32 %v1034, 16
    %v1040 = vmul.u32 %v1036, %v1038
    %v1041 = vmul.u32 %v1036, %v1039
    %v1042 = vmul.u32 %v1037, %v1038
    %v1043 = vmul.u32 %v1037, %v1039
    %v1044 = vshll.u32 %v1041, 16
    %v1045 = vshrl.u32 %v1041, 16
    %v1046 = vshll.u32 %v1042, 16
    %v1047 = vshrl.u32 %v1042, 16
    %vm1048 = vc.u32 %v1040, %v1044
    %v1049 = vsel %vm1048, 1, 0
    %v1050 = vadd.s32 %v1040, %v1044
    %v1051 = vadd.s32 %v1043, %v1049
    %vm1052 = vc.u32 %v1050, %v1046
    %v1053 = vsel %vm1052, 1, 0
    %v1054 = vadd.s32 %v1050, %v1046
    %v1055 = vadd.s32 %v1051, %v1053
    %v1056 = vadd.s32 %v1055, %v1045
    %v1057 = vadd.s32 %v1056, %v1047
    %v1058 = vand.u32 %v1035, 65535
    %v1059 = vshrl.u32 %v1035, 16
    %v1060 = vand.u32 %v1030, 65535
    %v1061 = vshrl.u32 %v1030, 16
    %v1062 = vmul.u32 %v1058, %v1060
    %v1063 = vmul.u32 %v1058, %v1061
    %v1064 = vmul.u32 %v1059, %v1060
    %v1065 = vmul.u32 %v1059, %v1061
    %v1066 = vshll.u32 %v1063, 16
    %v1067 = vshrl.u32 %v1063, 16
    %v1068 = vshll.u32 %v1064, 16
    %v1069 = vshrl.u32 %v1064, 16
    %vm1070 = vc.u32 %v1062, %v1066
    %v1071 = vsel %vm1070, 1, 0
    %v1072 = vadd.s32 %v1062, %v1066
    %v1073 = vadd.s32 %v1065, %v1071
    %vm1074 = vc.u32 %v1072, %v1068
    %v1075 = vsel %vm1074, 1, 0
    %v1076 = vadd.s32 %v1072, %v1068
    %v1077 = vadd.s32 %v1073, %v1075
    %v1078 = vadd.s32 %v1077, %v1067
    %v1079 = vadd.s32 %v1078, %v1069
    %v1080 = vmul.u32 %v1035, %v1026
    %v1081 = vadd.s32 %v1057, %v1076
    %vm1082 = vc.u32 %v1057, %v1076
    %v1083 = vadd.s32 %v1079, 1
    %v1084 = vsel %vm1082, %v1083, %v1079
    %v1085 = vadd.s32 %v1080, %v1084
    %v1086 = vadd.s32 %v1085, 536870912
    %v1087 = vshrl.u32 %v1086, 30
    %v1088 = vshll.u32 %v1087, 30
    %v1089 = vsub.s32 %v1085, %v1088
    %vm1090 = vcmp.lt.s32.totalorder %v1089, 0
    %v1091 = vsub.s32 0, %v1089
    %v1092 = vsel %vm1090, %v1091, %v1089
    %v1093 = vclz %v1092
    %v1094 = vsub.s32 %v1093, 2
    %vm1095 = vcmp.gt.s32.totalorder 0, %v1094
    %v1096 = vsel %vm1095, 0, %v1094
    %v1097 = vsub.s32 32, %v1096
    %v1098 = vshll.u32 %v1089, %v1096
    %v1099 = vshrl.u32 %v1081, %v1097
    %v1100 = vor.u32 %v1098, %v1099
    %v1101 = vsub.s32 4294967266, %v1096
    %v1102 = vadd.s32 %v1101, 127
    %v1103 = vshll.u32 %v1102, 23
    %v1104 = vor.u32 4788187, %v1103
    %v1105 = vand.u32 2147483647, %v1104
    %v1107 = vcvt.s32.f32 %v1100
    %v1108 = vmul.f32 %v1107, %v1105
    %v1109 = vxor.u32 %v1108, 2147483648
    %v1110 = vsel %vm989, %v1109, %v1108
    %v1111 = vsub.s32 4, %v1087
    %v1112 = vsel %vm989, %v1111, %v1087
    %v1113 = vsel %vm988, %v478, %v1110
    %v1114 = vsel %vm988, 0, %v1112
    %v1115 = vmul.f32 %v1113, %v1113
    %v1116 = vmul.f32 %v1115, -0.001358992
    %v1117 = vadd.f32 %v1116, 0.041655596
    %v1118 = vmul.f32 %v1115, %v1117
    %v1119 = vadd.f32 %v1118, -0.4999988
    %v1120 = vmul.f32 %v1115, %v1119
    %v1121 = vadd.f32 1.0, %v1120
    %v1122 = vmul.f32 %v1113, %v1113
    %v1123 = vmul.f32 %v1122, -0.00019511016
    %v1124 = vadd.f32 %v1123, 0.008332121
    %v1125 = vmul.f32 %v1122, %v1124
    %v1126 = vadd.f32 %v1125, -0.16666654
    %v1127 = vmul.f32 %v1122, %v1126
    %v1128 = vadd.f32 %v1127, 1.0
    %v1129 = vmul.f32 %v1128, %v1113
    %vm1130 = vweird.f32 %v478
    %v1131 = vadd.s32 %v1114, 3
    %v1132 = vand.u32 %v1131, 3
    %vm1133 = vcmp.lt.s32.totalorder %v1132, 2
    %vm1134 = vcmp.eq.s32.totalorder %v1132, 0
    %v1135 = vxor.u32 %v1129, 2147483648
    %v1136 = vsel %vm1134, %v1121, %v1135
    %vm1137 = vcmp.eq.s32.totalorder %v1132, 2
    %v1138 = vxor.u32 %v1121, 2147483648
    %v1139 = vsel %vm1137, %v1138, %v1129
    %v1140 = vsel %vm1133, %v1136, %v1139
    %v1141 = vsel %vm1130, nan, %v1140
    %v1142 = vand.u32 2147483647, %v479
    %vm1143 = vcmp.le.f32.partialorder %v1142, 0.7853982
    %vm1144 = vcmp.lt.s32.totalorder %v479, 0
    %v1145 = vand.u32 %v479, 2139095040
    %v1146 = vshrl.u32 %v1145, 23
    %v1147 = vsub.s32 %v1146, 127
    %v1148 = vand.u32 2147483647, %v479
    %v1149 = vand.u32 %v1148, 8388607
    %v1150 = vor.u32 %v1149, 8388608
    %v1151 = vsub.s32 0, %v1150
    %v1152 = vadd.s32 %v1147, 1
    %vm1153 = vcmp.gt.s32.totalorder %v1152, 0
    %v1154 = vsel %vm1153, %v1152, 0
    %v1155 = vshrl.u32 %v1154, 5
    %v1156 = vand.u32 %v1154, 31
    %v1157 = vsub.s32 32, %v1156
    %v1158 = vshrl.u32 683565275, %v1157
    %v1159 = vshll.u32 683565275, %v1156
    %v1160 = vshrl.u32 2475754826, %v1157
    %v1161 = vor.u32 %v1159, %v1160
    %v1162 = vshll.u32 2475754826, %v1156
    %v1163 = vshrl.u32 2131351028, %v1157
    %v1164 = vor.u32 %v1162, %v1163
    %v1165 = vshll.u32 2131351028, %v1156
    %v1166 = vshrl.u32 2102212464, %v1157
    %v1167 = vor.u32 %v1165, %v1166
    %v1168 = vshll.u32 2102212464, %v1156
    %v1169 = vshrl.u32 920167782, %v1157
    %v1170 = vor.u32 %v1168, %v1169
    %v1171 = vshll.u32 920167782, %v1156
    %v1172 = vshrl.u32 1326507024, %v1157
    %v1173 = vor.u32 %v1171, %v1172
    %vm1174 = vcmp.lt.s32.totalorder %v1155, 1
    %vm1175 = vcmp.lt.s32.totalorder %v1155, 2
    %vm1176 = vcmp.lt.s32.totalorder %v1155, 3
    %vm1177 = vcmp.lt.s32.totalorder %v1155, 4
    %v1178 = vsel %vm1174, %v1158, %v1161
    %v1179 = vsel %vm1177, %v1167, 2102212464
    %v1180 = vsel %vm1176, %v1164, %v1179
    %v1181 = vsel %vm1175, %v1178, %v1180
    %v1182 = vsel %vm1174, %v1161, %v1164
    %v1183 = vsel %vm1177, %v1170, 920167782
    %v1184 = vsel %vm1176, %v1167, %v1183
    %v1185 = vsel %vm1175, %v1182, %v1184
    %v1186 = vsel %vm1174, %v1164, %v1167
    %v1187 = vsel %vm1177, %v1173, 1326507024
    %v1188 = vsel %vm1176, %v1170, %v1187
    %v1189 = vsel %vm1175, %v1186, %v1188
    %v1190 = vshll.u32 %v1150, 8
    %v1191 = vand.u32 %v1190, 65535
    %v1192 = vshrl.u32 %v1190, 16
    %v1193 = vand.u32 %v1189, 65535
    %v1194 = vshrl.u32 %v1189, 16
    %v1195 = vmul.u32 %v1191, %v1193
    %v1196 = vmul.u32 %v1191, %v1194
    %v1197 = vmul.u32 %v1192, %v1193
    %v1198 = vmul.u32 %v1192, %v1194
    %v1199 = vshll.u32 %v1196, 16
    %v1200 = vshrl.u32 %v1196, 16
    %v1201 = vshll.u32 %v1197, 16
    %v1202 = vshrl.u32 %v1197, 16
    %vm1203 = vc.u32 %v1195, %v1199
    %v1204 = vsel %vm1203, 1, 0
    %v1205 = vadd.s32 %v1195, %v1199
    %v1206 = vadd.s32 %v1198, %v1204
    %vm1207 = vc.u32 %v1205, %v1201
    %v1208 = vsel %vm1207, 1, 0
    %v1209 = vadd.s32 %v1205, %v1201
    %v1210 = vadd.s32 %v1206, %v1208
    %v1211 = vadd.s32 %v1210, %v1200
    %v1212 = vadd.s32 %v1211, %v1202
    %v1213 = vand.u32 %v1190, 65535
    %v1214 = vshrl.u32 %v1190, 16
    %v1215 = vand.u32 %v1185, 65535
    %v1216 = vshrl.u32 %v1185, 16
    %v1217 = vmul.u32 %v1213, %v1215
    %v1218 = vmul.u32 %v1213, %v1216
    %v1219 = vmul.u32 %v1214, %v1215
    %v1220 = vmul.u32 %v1214, %v1216
    %v1221 = vshll.u32 %v1218, 16
    %v1222 = vshrl.u32 %v1218, 16
    %v1223 = vshll.u32 %v1219, 16
    %v1224 = vshrl.u32 %v1219, 16
    %vm1225 = vc.u32 %v1217, %v1221
    %v1226 = vsel %vm1225, 1, 0
    %v1227 = vadd.s32 %v1217, %v1221
    %v1228 = vadd.s32 %v1220, %v1226
    %vm1229 = vc.u32 %v1227, %v1223
    %v1230 = vsel %vm1229, 1, 0
    %v1231 = vadd.s32 %v1227, %v1223
    %v1232 = vadd.s32 %v1228, %v1230
    %v1233 = vadd.s32 %v1232, %v1222
    %v1234 = vadd.s32 %v1233, %v1224
    %v1235 = vmul.u32 %v1190, %v1181
    %v1236 = vadd.s32 %v1212, %v1231
    %vm1237 = vc.u32 %v1212, %v1231
    %v1238 = vadd.s32 %v1234, 1
    %v1239 = vsel %vm1237, %v1238, %v1234
    %v1240 = vadd.s32 %v1235, %v1239
    %v1241 = vadd.s32 %v1240, 536870912
    %v1242 = vshrl.u32 %v1241, 30
    %v1243 = vshll.u32 %v1242, 30
    %v1244 = vsub.s32 %v1240, %v1243
    %vm1245 = vcmp.lt.s32.totalorder %v1244, 0
    %v1246 = vsub.s32 0, %v1244
    %v1247 = vsel %vm1245, %v1246, %v1244
    %v1248 = vclz %v1247
    %v1249 = vsub.s32 %v1248, 2
    %vm1250 = vcmp.gt.s32.totalorder 0, %v1249
    %v1251 = vsel %vm1250, 0, %v1249
    %v1252 = vsub.s32 32, %v1251
    %v1253 = vshll.u32 %v1244, %v1251
    %v1254 = vshrl.u32 %v1236, %v1252
    %v1255 = vor.u32 %v1253, %v1254
    %v1256 = vsub.s32 4294967266, %v1251
    %v1257 = vadd.s32 %v1256, 127
    %v1258 = vshll.u32 %v1257, 23
    %v1259 = vor.u32 4788187, %v1258
    %v1260 = vand.u32 2147483647, %v1259
    %v1262 = vcvt.s32.f32 %v1255
    %v1263 = vmul.f32 %v1262, %v1260
    %v1264 = vxor.u32 %v1263, 2147483648
    %v1265 = vsel %vm1144, %v1264, %v1263
    %v1266 = vsub.s32 4, %v1242
    %v1267 = vsel %vm1144, %v1266, %v1242
    %v1268 = vsel %vm1143, %v479, %v1265
    %v1269 = vsel %vm1143, 0, %v1267
    %v1270 = vmul.f32 %v1268, %v1268
    %v1271 = vmul.f32 %v1270, -0.001358992
    %v1272 = vadd.f32 %v1271, 0.041655596
    %v1273 = vmul.f32 %v1270, %v1272
    %v1274 = vadd.f32 %v1273, -0.4999988
    %v1275 = vmul.f32 %v1270, %v1274
    %v1276 = vadd.f32 1.0, %v1275
    %v1277 = vmul.f32 %v1268, %v1268
    %v1278 = vmul.f32 %v1277, -0.00019511016
    %v1279 = vadd.f32 %v1278, 0.008332121
    %v1280 = vmul.f32 %v1277, %v1279
    %v1281 = vadd.f32 %v1280, -0.16666654
    %v1282 = vmul.f32 %v1277, %v1281
    %v1283 = vadd.f32 %v1282, 1.0
    %v1284 = vmul.f32 %v1283, %v1268
    %vm1285 = vweird.f32 %v479
    %v1286 = vadd.s32 %v1269, 3
    %v1287 = vand.u32 %v1286, 3
    %vm1288 = vcmp.lt.s32.totalorder %v1287, 2
    %vm1289 = vcmp.eq.s32.totalorder %v1287, 0
    %v1290 = vxor.u32 %v1284, 2147483648
    %v1291 = vsel %vm1289, %v1276, %v1290
    %vm1292 = vcmp.eq.s32.totalorder %v1287, 2
    %v1293 = vxor.u32 %v1276, 2147483648
    %v1294 = vsel %vm1292, %v1293, %v1284
    %v1295 = vsel %vm1288, %v1291, %v1294
    %v1296 = vsel %vm1285, nan, %v1295
    %v1297 = vand.u32 2147483647, %v480
    %vm1298 = vcmp.le.f32.partialorder %v1297, 0.7853982
    %vm1299 = vcmp.lt.s32.totalorder %v480, 0
    %v1300 = vand.u32 %v480, 2139095040
    %v1301 = vshrl.u32 %v1300, 23
    %v1302 = vsub.s32 %v1301, 127
    %v1303 = vand.u32 2147483647, %v480
    %v1304 = vand.u32 %v1303, 8388607
    %v1305 = vor.u32 %v1304, 8388608
    %v1306 = vsub.s32 0, %v1305
    %v1307 = vadd.s32 %v1302, 1
    %vm1308 = vcmp.gt.s32.totalorder %v1307, 0
    %v1309 = vsel %vm1308, %v1307, 0
    %v1310 = vshrl.u32 %v1309, 5
    %v1311 = vand.u32 %v1309, 31
    %v1312 = vsub.s32 32, %v1311
    %v1313 = vshrl.u32 683565275, %v1312
    %v1314 = vshll.u32 683565275, %v1311
    %v1315 = vshrl.u32 2475754826, %v1312
    %v1316 = vor.u32 %v1314, %v1315
    %v1317 = vshll.u32 2475754826, %v1311
    %v1318 = vshrl.u32 2131351028, %v1312
    %v1319 = vor.u32 %v1317, %v1318
    %v1320 = vshll.u32 2131351028, %v1311
    %v1321 = vshrl.u32 2102212464, %v1312
    %v1322 = vor.u32 %v1320, %v1321
    %v1323 = vshll.u32 2102212464, %v1311
    %v1324 = vshrl.u32 920167782, %v1312
    %v1325 = vor.u32 %v1323, %v1324
    %v1326 = vshll.u32 920167782, %v1311
    %v1327 = vshrl.u32 1326507024, %v1312
    %v1328 = vor.u32 %v1326, %v1327
    %vm1329 = vcmp.lt.s32.totalorder %v1310, 1
    %vm1330 = vcmp.lt.s32.totalorder %v1310, 2
    %vm1331 = vcmp.lt.s32.totalorder %v1310, 3
    %vm1332 = vcmp.lt.s32.totalorder %v1310, 4
    %v1333 = vsel %vm1329, %v1313, %v1316
    %v1334 = vsel %vm1332, %v1322, 2102212464
    %v1335 = vsel %vm1331, %v1319, %v1334
    %v1336 = vsel %vm1330, %v1333, %v1335
    %v1337 = vsel %vm1329, %v1316, %v1319
    %v1338 = vsel %vm1332, %v1325, 920167782
    %v1339 = vsel %vm1331, %v1322, %v1338
    %v1340 = vsel %vm1330, %v1337, %v1339
    %v1341 = vsel %vm1329, %v1319, %v1322
    %v1342 = vsel %vm1332, %v1328, 1326507024
    %v1343 = vsel %vm1331, %v1325, %v1342
    %v1344 = vsel %vm1330, %v1341, %v1343
    %v1345 = vshll.u32 %v1305, 8
    %v1346 = vand.u32 %v1345, 65535
    %v1347 = vshrl.u32 %v1345, 16
    %v1348 = vand.u32 %v1344, 65535
    %v1349 = vshrl.u32 %v1344, 16
    %v1350 = vmul.u32 %v1346, %v1348
    %v1351 = vmul.u32 %v1346, %v1349
    %v1352 = vmul.u32 %v1347, %v1348
    %v1353 = vmul.u32 %v1347, %v1349
    %v1354 = vshll.u32 %v1351, 16
    %v1355 = vshrl.u32 %v1351, 16
    %v1356 = vshll.u32 %v1352, 16
    %v1357 = vshrl.u32 %v1352, 16
    %vm1358 = vc.u32 %v1350, %v1354
    %v1359 = vsel %vm1358, 1, 0
    %v1360 = vadd.s32 %v1350, %v1354
    %v1361 = vadd.s32 %v1353, %v1359
    %vm1362 = vc.u32 %v1360, %v1356
    %v1363 = vsel %vm1362, 1, 0
    %v1364 = vadd.s32 %v1360, %v1356
    %v1365 = vadd.s32 %v1361, %v1363
    %v1366 = vadd.s32 %v1365, %v1355
    %v1367 = vadd.s32 %v1366, %v1357
    %v1368 = vand.u32 %v1345, 65535
    %v1369 = vshrl.u32 %v1345, 16
    %v1370 = vand.u32 %v1340, 65535
    %v1371 = vshrl.u32 %v1340, 16
    %v1372 = vmul.u32 %v1368, %v1370
    %v1373 = vmul.u32 %v1368, %v1371
    %v1374 = vmul.u32 %v1369, %v1370
    %v1375 = vmul.u32 %v1369, %v1371
    %v1376 = vshll.u32 %v1373, 16
    %v1377 = vshrl.u32 %v1373, 16
    %v1378 = vshll.u32 %v1374, 16
    %v1379 = vshrl.u32 %v1374, 16
    %vm1380 = vc.u32 %v1372, %v1376
    %v1381 = vsel %vm1380, 1, 0
    %v1382 = vadd.s32 %v1372, %v1376
    %v1383 = vadd.s32 %v1375, %v1381
    %vm1384 = vc.u32 %v1382, %v1378
    %v1385 = vsel %vm1384, 1, 0
    %v1386 = vadd.s32 %v1382, %v1378
    %v1387 = vadd.s32 %v1383, %v1385
    %v1388 = vadd.s32 %v1387, %v1377
    %v1389 = vadd.s32 %v1388, %v1379
    %v1390 = vmul.u32 %v1345, %v1336
    %v1391 = vadd.s32 %v1367, %v1386
    %vm1392 = vc.u32 %v1367, %v1386
    %v1393 = vadd.s32 %v1389, 1
    %v1394 = vsel %vm1392, %v1393, %v1389
    %v1395 = vadd.s32 %v1390, %v1394
    %v1396 = vadd.s32 %v1395, 536870912
    %v1397 = vshrl.u32 %v1396, 30
    %v1398 = vshll.u32 %v1397, 30
    %v1399 = vsub.s32 %v1395, %v1398
    %vm1400 = vcmp.lt.s32.totalorder %v1399, 0
    %v1401 = vsub.s32 0, %v1399
    %v1402 = vsel %vm1400, %v1401, %v1399
    %v1403 = vclz %v1402
    %v1404 = vsub.s32 %v1403, 2
    %vm1405 = vcmp.gt.s32.totalorder 0, %v1404
    %v1406 = vsel %vm1405, 0, %v1404
    %v1407 = vsub.s32 32, %v1406
    %v1408 = vshll.u32 %v1399, %v1406
    %v1409 = vshrl.u32 %v1391, %v1407
    %v1410 = vor.u32 %v1408, %v1409
    %v1411 = vsub.s32 4294967266, %v1406
    %v1412 = vadd.s32 %v1411, 127
    %v1413 = vshll.u32 %v1412, 23
    %v1414 = vor.u32 4788187, %v1413
    %v1415 = vand.u32 2147483647, %v1414
    %v1417 = vcvt.s32.f32 %v1410
    %v1418 = vmul.f32 %v1417, %v1415
    %v1419 = vxor.u32 %v1418, 2147483648
    %v1420 = vsel %vm1299, %v1419, %v1418
    %v1421 = vsub.s32 4, %v1397
    %v1422 = vsel %vm1299, %v1421, %v1397
    %v1423 = vsel %vm1298, %v480, %v1420
    %v1424 = vsel %vm1298, 0, %v1422
    %v1425 = vmul.f32 %v1423, %v1423
    %v1426 = vmul.f32 %v1425, -0.001358992
    %v1427 = vadd.f32 %v1426, 0.041655596
    %v1428 = vmul.f32 %v1425, %v1427
    %v1429 = vadd.f32 %v1428, -0.4999988
    %v1430 = vmul.f32 %v1425, %v1429
    %v1431 = vadd.f32 1.0, %v1430
    %v1432 = vmul.f32 %v1423, %v1423
    %v1433 = vmul.f32 %v1432, -0.00019511016
    %v1434 = vadd.f32 %v1433, 0.008332121
    %v1435 = vmul.f32 %v1432, %v1434
    %v1436 = vadd.f32 %v1435, -0.16666654
    %v1437 = vmul.f32 %v1432, %v1436
    %v1438 = vadd.f32 %v1437, 1.0
    %v1439 = vmul.f32 %v1438, %v1423
    %vm1440 = vweird.f32 %v480
    %v1441 = vadd.s32 %v1424, 3
    %v1442 = vand.u32 %v1441, 3
    %vm1443 = vcmp.lt.s32.totalorder %v1442, 2
    %vm1444 = vcmp.eq.s32.totalorder %v1442, 0
    %v1445 = vxor.u32 %v1439, 2147483648
    %v1446 = vsel %vm1444, %v1431, %v1445
    %vm1447 = vcmp.eq.s32.totalorder %v1442, 2
    %v1448 = vxor.u32 %v1431, 2147483648
    %v1449 = vsel %vm1447, %v1448, %v1439
    %v1450 = vsel %vm1443, %v1446, %v1449
    %v1451 = vsel %vm1440, nan, %v1450
    %v1452 = vand.u32 2147483647, %v481
    %vm1453 = vcmp.le.f32.partialorder %v1452, 0.7853982
    %vm1454 = vcmp.lt.s32.totalorder %v481, 0
    %v1455 = vand.u32 %v481, 2139095040
    %v1456 = vshrl.u32 %v1455, 23
    %v1457 = vsub.s32 %v1456, 127
    %v1458 = vand.u32 2147483647, %v481
    %v1459 = vand.u32 %v1458, 8388607
    %v1460 = vor.u32 %v1459, 8388608
    %v1461 = vsub.s32 0, %v1460
    %v1462 = vadd.s32 %v1457, 1
    %vm1463 = vcmp.gt.s32.totalorder %v1462, 0
    %v1464 = vsel %vm1463, %v1462, 0
    %v1465 = vshrl.u32 %v1464, 5
    %v1466 = vand.u32 %v1464, 31
    %v1467 = vsub.s32 32, %v1466
    %v1468 = vshrl.u32 683565275, %v1467
    %v1469 = vshll.u32 683565275, %v1466
    %v1470 = vshrl.u32 2475754826, %v1467
    %v1471 = vor.u32 %v1469, %v1470
    %v1472 = vshll.u32 2475754826, %v1466
    %v1473 = vshrl.u32 2131351028, %v1467
    %v1474 = vor.u32 %v1472, %v1473
    %v1475 = vshll.u32 2131351028, %v1466
    %v1476 = vshrl.u32 2102212464, %v1467
    %v1477 = vor.u32 %v1475, %v1476
    %v1478 = vshll.u32 2102212464, %v1466
    %v1479 = vshrl.u32 920167782, %v1467
    %v1480 = vor.u32 %v1478, %v1479
    %v1481 = vshll.u32 920167782, %v1466
    %v1482 = vshrl.u32 1326507024, %v1467
    %v1483 = vor.u32 %v1481, %v1482
    %vm1484 = vcmp.lt.s32.totalorder %v1465, 1
    %vm1485 = vcmp.lt.s32.totalorder %v1465, 2
    %vm1486 = vcmp.lt.s32.totalorder %v1465, 3
    %vm1487 = vcmp.lt.s32.totalorder %v1465, 4
    %v1488 = vsel %vm1484, %v1468, %v1471
    %v1489 = vsel %vm1487, %v1477, 2102212464
    %v1490 = vsel %vm1486, %v1474, %v1489
    %v1491 = vsel %vm1485, %v1488, %v1490
    %v1492 = vsel %vm1484, %v1471, %v1474
    %v1493 = vsel %vm1487, %v1480, 920167782
    %v1494 = vsel %vm1486, %v1477, %v1493
    %v1495 = vsel %vm1485, %v1492, %v1494
    %v1496 = vsel %vm1484, %v1474, %v1477
    %v1497 = vsel %vm1487, %v1483, 1326507024
    %v1498 = vsel %vm1486, %v1480, %v1497
    %v1499 = vsel %vm1485, %v1496, %v1498
    %v1500 = vshll.u32 %v1460, 8
    %v1501 = vand.u32 %v1500, 65535
    %v1502 = vshrl.u32 %v1500, 16
    %v1503 = vand.u32 %v1499, 65535
    %v1504 = vshrl.u32 %v1499, 16
    %v1505 = vmul.u32 %v1501, %v1503
    %v1506 = vmul.u32 %v1501, %v1504
    %v1507 = vmul.u32 %v1502, %v1503
    %v1508 = vmul.u32 %v1502, %v1504
    %v1509 = vshll.u32 %v1506, 16
    %v1510 = vshrl.u32 %v1506, 16
    %v1511 = vshll.u32 %v1507, 16
    %v1512 = vshrl.u32 %v1507, 16
    %vm1513 = vc.u32 %v1505, %v1509
    %v1514 = vsel %vm1513, 1, 0
    %v1515 = vadd.s32 %v1505, %v1509
    %v1516 = vadd.s32 %v1508, %v1514
    %vm1517 = vc.u32 %v1515, %v1511
    %v1518 = vsel %vm1517, 1, 0
    %v1519 = vadd.s32 %v1515, %v1511
    %v1520 = vadd.s32 %v1516, %v1518
    %v1521 = vadd.s32 %v1520, %v1510
    %v1522 = vadd.s32 %v1521, %v1512
    %v1523 = vand.u32 %v1500, 65535
    %v1524 = vshrl.u32 %v1500, 16
    %v1525 = vand.u32 %v1495, 65535
    %v1526 = vshrl.u32 %v1495, 16
    %v1527 = vmul.u32 %v1523, %v1525
    %v1528 = vmul.u32 %v1523, %v1526
    %v1529 = vmul.u32 %v1524, %v1525
    %v1530 = vmul.u32 %v1524, %v1526
    %v1531 = vshll.u32 %v1528, 16
    %v1532 = vshrl.u32 %v1528, 16
    %v1533 = vshll.u32 %v1529, 16
    %v1534 = vshrl.u32 %v1529, 16
    %vm1535 = vc.u32 %v1527, %v1531
    %v1536 = vsel %vm1535, 1, 0
    %v1537 = vadd.s32 %v1527, %v1531
    %v1538 = vadd.s32 %v1530, %v1536
    %vm1539 = vc.u32 %v1537, %v1533
    %v1540 = vsel %vm1539, 1, 0
    %v1541 = vadd.s32 %v1537, %v1533
    %v1542 = vadd.s32 %v1538, %v1540
    %v1543 = vadd.s32 %v1542, %v1532
    %v1544 = vadd.s32 %v1543, %v1534
    %v1545 = vmul.u32 %v1500, %v1491
    %v1546 = vadd.s32 %v1522, %v1541
    %vm1547 = vc.u32 %v1522, %v1541
    %v1548 = vadd.s32 %v1544, 1
    %v1549 = vsel %vm1547, %v1548, %v1544
    %v1550 = vadd.s32 %v1545, %v1549
    %v1551 = vadd.s32 %v1550, 536870912
    %v1552 = vshrl.u32 %v1551, 30
    %v1553 = vshll.u32 %v1552, 30
    %v1554 = vsub.s32 %v1550, %v1553
    %vm1555 = vcmp.lt.s32.totalorder %v1554, 0
    %v1556 = vsub.s32 0, %v1554
    %v1557 = vsel %vm1555, %v1556, %v1554
    %v1558 = vclz %v1557
    %v1559 = vsub.s32 %v1558, 2
    %vm1560 = vcmp.gt.s32.totalorder 0, %v1559
    %v1561 = vsel %vm1560, 0, %v1559
    %v1562 = vsub.s32 32, %v1561
    %v1563 = vshll.u32 %v1554, %v1561
    %v1564 = vshrl.u32 %v1546, %v1562
    %v1565 = vor.u32 %v1563, %v1564
    %v1566 = vsub.s32 4294967266, %v1561
    %v1567 = vadd.s32 %v1566, 127
    %v1568 = vshll.u32 %v1567, 23
    %v1569 = vor.u32 4788187, %v1568
    %v1570 = vand.u32 2147483647, %v1569
    %v1572 = vcvt.s32.f32 %v1565
    %v1573 = vmul.f32 %v1572, %v1570
    %v1574 = vxor.u32 %v1573, 2147483648
    %v1575 = vsel %vm1454, %v1574, %v1573
    %v1576 = vsub.s32 4, %v1552
    %v1577 = vsel %vm1454, %v1576, %v1552
    %v1578 = vsel %vm1453, %v481, %v1575
    %v1579 = vsel %vm1453, 0, %v1577
    %v1580 = vmul.f32 %v1578, %v1578
    %v1581 = vmul.f32 %v1580, -0.001358992
    %v1582 = vadd.f32 %v1581, 0.041655596
    %v1583 = vmul.f32 %v1580, %v1582
    %v1584 = vadd.f32 %v1583, -0.4999988
    %v1585 = vmul.f32 %v1580, %v1584
    %v1586 = vadd.f32 1.0, %v1585
    %v1587 = vmul.f32 %v1578, %v1578
    %v1588 = vmul.f32 %v1587, -0.00019511016
    %v1589 = vadd.f32 %v1588, 0.008332121
    %v1590 = vmul.f32 %v1587, %v1589
    %v1591 = vadd.f32 %v1590, -0.16666654
    %v1592 = vmul.f32 %v1587, %v1591
    %v1593 = vadd.f32 %v1592, 1.0
    %v1594 = vmul.f32 %v1593, %v1578
    %vm1595 = vweird.f32 %v481
    %v1596 = vadd.s32 %v1579, 3
    %v1597 = vand.u32 %v1596, 3
    %vm1598 = vcmp.lt.s32.totalorder %v1597, 2
    %vm1599 = vcmp.eq.s32.totalorder %v1597, 0
    %v1600 = vxor.u32 %v1594, 2147483648
    %v1601 = vsel %vm1599, %v1586, %v1600
    %vm1602 = vcmp.eq.s32.totalorder %v1597, 2
    %v1603 = vxor.u32 %v1586, 2147483648
    %v1604 = vsel %vm1602, %v1603, %v1594
    %v1605 = vsel %vm1598, %v1601, %v1604
    %v1606 = vsel %vm1595, nan, %v1605
    %v1607 = vand.u32 2147483647, %v482
    %vm1608 = vcmp.le.f32.partialorder %v1607, 0.7853982
    %vm1609 = vcmp.lt.s32.totalorder %v482, 0
    %v1610 = vand.u32 %v482, 2139095040
    %v1611 = vshrl.u32 %v1610, 23
    %v1612 = vsub.s32 %v1611, 127
    %v1613 = vand.u32 2147483647, %v482
    %v1614 = vand.u32 %v1613, 8388607
    %v1615 = vor.u32 %v1614, 8388608
    %v1616 = vsub.s32 0, %v1615
    %v1617 = vadd.s32 %v1612, 1
    %vm1618 = vcmp.gt.s32.totalorder %v1617, 0
    %v1619 = vsel %vm1618, %v1617, 0
    %v1620 = vshrl.u32 %v1619, 5
    %v1621 = vand.u32 %v1619, 31
    %v1622 = vsub.s32 32, %v1621
    %v1623 = vshrl.u32 683565275, %v1622
    %v1624 = vshll.u32 683565275, %v1621
    %v1625 = vshrl.u32 2475754826, %v1622
    %v1626 = vor.u32 %v1624, %v1625
    %v1627 = vshll.u32 2475754826, %v1621
    %v1628 = vshrl.u32 2131351028, %v1622
    %v1629 = vor.u32 %v1627, %v1628
    %v1630 = vshll.u32 2131351028, %v1621
    %v1631 = vshrl.u32 2102212464, %v1622
    %v1632 = vor.u32 %v1630, %v1631
    %v1633 = vshll.u32 2102212464, %v1621
    %v1634 = vshrl.u32 920167782, %v1622
    %v1635 = vor.u32 %v1633, %v1634
    %v1636 = vshll.u32 920167782, %v1621
    %v1637 = vshrl.u32 1326507024, %v1622
    %v1638 = vor.u32 %v1636, %v1637
    %vm1639 = vcmp.lt.s32.totalorder %v1620, 1
    %vm1640 = vcmp.lt.s32.totalorder %v1620, 2
    %vm1641 = vcmp.lt.s32.totalorder %v1620, 3
    %vm1642 = vcmp.lt.s32.totalorder %v1620, 4
    %v1643 = vsel %vm1639, %v1623, %v1626
    %v1644 = vsel %vm1642, %v1632, 2102212464
    %v1645 = vsel %vm1641, %v1629, %v1644
    %v1646 = vsel %vm1640, %v1643, %v1645
    %v1647 = vsel %vm1639, %v1626, %v1629
    %v1648 = vsel %vm1642, %v1635, 920167782
    %v1649 = vsel %vm1641, %v1632, %v1648
    %v1650 = vsel %vm1640, %v1647, %v1649
    %v1651 = vsel %vm1639, %v1629, %v1632
    %v1652 = vsel %vm1642, %v1638, 1326507024
    %v1653 = vsel %vm1641, %v1635, %v1652
    %v1654 = vsel %vm1640, %v1651, %v1653
    %v1655 = vshll.u32 %v1615, 8
    %v1656 = vand.u32 %v1655, 65535
    %v1657 = vshrl.u32 %v1655, 16
    %v1658 = vand.u32 %v1654, 65535
    %v1659 = vshrl.u32 %v1654, 16
    %v1660 = vmul.u32 %v1656, %v1658
    %v1661 = vmul.u32 %v1656, %v1659
    %v1662 = vmul.u32 %v1657, %v1658
    %v1663 = vmul.u32 %v1657, %v1659
    %v1664 = vshll.u32 %v1661, 16
    %v1665 = vshrl.u32 %v1661, 16
    %v1666 = vshll.u32 %v1662, 16
    %v1667 = vshrl.u32 %v1662, 16
    %vm1668 = vc.u32 %v1660, %v1664
    %v1669 = vsel %vm1668, 1, 0
    %v1670 = vadd.s32 %v1660, %v1664
    %v1671 = vadd.s32 %v1663, %v1669
    %vm1672 = vc.u32 %v1670, %v1666
    %v1673 = vsel %vm1672, 1, 0
    %v1674 = vadd.s32 %v1670, %v1666
    %v1675 = vadd.s32 %v1671, %v1673
    %v1676 = vadd.s32 %v1675, %v1665
    %v1677 = vadd.s32 %v1676, %v1667
    %v1678 = vand.u32 %v1655, 65535
    %v1679 = vshrl.u32 %v1655, 16
    %v1680 = vand.u32 %v1650, 65535
    %v1681 = vshrl.u32 %v1650, 16
    %v1682 = vmul.u32 %v1678, %v1680
    %v1683 = vmul.u32 %v1678, %v1681
    %v1684 = vmul.u32 %v1679, %v1680
    %v1685 = vmul.u32 %v1679, %v1681
    %v1686 = vshll.u32 %v1683, 16
    %v1687 = vshrl.u32 %v1683, 16
    %v1688 = vshll.u32 %v1684, 16
    %v1689 = vshrl.u32 %v1684, 16
    %vm1690 = vc.u32 %v1682, %v1686
    %v1691 = vsel %vm1690, 1, 0
    %v1692 = vadd.s32 %v1682, %v1686
    %v1693 = vadd.s32 %v1685, %v1691
    %vm1694 = vc.u32 %v1692, %v1688
    %v1695 = vsel %vm1694, 1, 0
    %v1696 = vadd.s32 %v1692, %v1688
    %v1697 = vadd.s32 %v1693, %v1695
    %v1698 = vadd.s32 %v1697, %v1687
    %v1699 = vadd.s32 %v1698, %v1689
    %v1700 = vmul.u32 %v1655, %v1646
    %v1701 = vadd.s32 %v1677, %v1696
    %vm1702 = vc.u32 %v1677, %v1696
    %v1703 = vadd.s32 %v1699, 1
    %v1704 = vsel %vm1702, %v1703, %v1699
    %v1705 = vadd.s32 %v1700, %v1704
    %v1706 = vadd.s32 %v1705, 536870912
    %v1707 = vshrl.u32 %v1706, 30
    %v1708 = vshll.u32 %v1707, 30
    %v1709 = vsub.s32 %v1705, %v1708
    %vm1710 = vcmp.lt.s32.totalorder %v1709, 0
    %v1711 = vsub.s32 0, %v1709
    %v1712 = vsel %vm1710, %v1711, %v1709
    %v1713 = vclz %v1712
    %v1714 = vsub.s32 %v1713, 2
    %vm1715 = vcmp.gt.s32.totalorder 0, %v1714
    %v1716 = vsel %vm1715, 0, %v1714
    %v1717 = vsub.s32 32, %v1716
    %v1718 = vshll.u32 %v1709, %v1716
    %v1719 = vshrl.u32 %v1701, %v1717
    %v1720 = vor.u32 %v1718, %v1719
    %v1721 = vsub.s32 4294967266, %v1716
    %v1722 = vadd.s32 %v1721, 127
    %v1723 = vshll.u32 %v1722, 23
    %v1724 = vor.u32 4788187, %v1723
    %v1725 = vand.u32 2147483647, %v1724
    %v1727 = vcvt.s32.f32 %v1720
    %v1728 = vmul.f32 %v1727, %v1725
    %v1729 = vxor.u32 %v1728, 2147483648
    %v1730 = vsel %vm1609, %v1729, %v1728
    %v1731 = vsub.s32 4, %v1707
    %v1732 = vsel %vm1609, %v1731, %v1707
    %v1733 = vsel %vm1608, %v482, %v1730
    %v1734 = vsel %vm1608, 0, %v1732
    %v1735 = vmul.f32 %v1733, %v1733
    %v1736 = vmul.f32 %v1735, -0.001358992
    %v1737 = vadd.f32 %v1736, 0.041655596
    %v1738 = vmul.f32 %v1735, %v1737
    %v1739 = vadd.f32 %v1738, -0.4999988
    %v1740 = vmul.f32 %v1735, %v1739
    %v1741 = vadd.f32 1.0, %v1740
    %v1742 = vmul.f32 %v1733, %v1733
    %v1743 = vmul.f32 %v1742, -0.00019511016
    %v1744 = vadd.f32 %v1743, 0.008332121
    %v1745 = vmul.f32 %v1742, %v1744
    %v1746 = vadd.f32 %v1745, -0.16666654
    %v1747 = vmul.f32 %v1742, %v1746
    %v1748 = vadd.f32 %v1747, 1.0
    %v1749 = vmul.f32 %v1748, %v1733
    %vm1750 = vweird.f32 %v482
    %v1751 = vadd.s32 %v1734, 3
    %v1752 = vand.u32 %v1751, 3
    %vm1753 = vcmp.lt.s32.totalorder %v1752, 2
    %vm1754 = vcmp.eq.s32.totalorder %v1752, 0
    %v1755 = vxor.u32 %v1749, 2147483648
    %v1756 = vsel %vm1754, %v1741, %v1755
    %vm1757 = vcmp.eq.s32.totalorder %v1752, 2
    %v1758 = vxor.u32 %v1741, 2147483648
    %v1759 = vsel %vm1757, %v1758, %v1749
    %v1760 = vsel %vm1753, %v1756, %v1759
    %v1761 = vsel %vm1750, nan, %v1760
    %v1762 = vand.u32 2147483647, %v483
    %vm1763 = vcmp.le.f32.partialorder %v1762, 0.7853982
    %vm1764 = vcmp.lt.s32.totalorder %v483, 0
    %v1765 = vand.u32 %v483, 2139095040
    %v1766 = vshrl.u32 %v1765, 23
    %v1767 = vsub.s32 %v1766, 127
    %v1768 = vand.u32 2147483647, %v483
    %v1769 = vand.u32 %v1768, 8388607
    %v1770 = vor.u32 %v1769, 8388608
    %v1771 = vsub.s32 0, %v1770
    %v1772 = vadd.s32 %v1767, 1
    %vm1773 = vcmp.gt.s32.totalorder %v1772, 0
    %v1774 = vsel %vm1773, %v1772, 0
    %v1775 = vshrl.u32 %v1774, 5
    %v1776 = vand.u32 %v1774, 31
    %v1777 = vsub.s32 32, %v1776
    %v1778 = vshrl.u32 683565275, %v1777
    %v1779 = vshll.u32 683565275, %v1776
    %v1780 = vshrl.u32 2475754826, %v1777
    %v1781 = vor.u32 %v1779, %v1780
    %v1782 = vshll.u32 2475754826, %v1776
    %v1783 = vshrl.u32 2131351028, %v1777
    %v1784 = vor.u32 %v1782, %v1783
    %v1785 = vshll.u32 2131351028, %v1776
    %v1786 = vshrl.u32 2102212464, %v1777
    %v1787 = vor.u32 %v1785, %v1786
    %v1788 = vshll.u32 2102212464, %v1776
    %v1789 = vshrl.u32 920167782, %v1777
    %v1790 = vor.u32 %v1788, %v1789
    %v1791 = vshll.u32 920167782, %v1776
    %v1792 = vshrl.u32 1326507024, %v1777
    %v1793 = vor.u32 %v1791, %v1792
    %vm1794 = vcmp.lt.s32.totalorder %v1775, 1
    %vm1795 = vcmp.lt.s32.totalorder %v1775, 2
    %vm1796 = vcmp.lt.s32.totalorder %v1775, 3
    %vm1797 = vcmp.lt.s32.totalorder %v1775, 4
    %v1798 = vsel %vm1794, %v1778, %v1781
    %v1799 = vsel %vm1797, %v1787, 2102212464
    %v1800 = vsel %vm1796, %v1784, %v1799
    %v1801 = vsel %vm1795, %v1798, %v1800
    %v1802 = vsel %vm1794, %v1781, %v1784
    %v1803 = vsel %vm1797, %v1790, 920167782
    %v1804 = vsel %vm1796, %v1787, %v1803
    %v1805 = vsel %vm1795, %v1802, %v1804
    %v1806 = vsel %vm1794, %v1784, %v1787
    %v1807 = vsel %vm1797, %v1793, 1326507024
    %v1808 = vsel %vm1796, %v1790, %v1807
    %v1809 = vsel %vm1795, %v1806, %v1808
    %v1810 = vshll.u32 %v1770, 8
    %v1811 = vand.u32 %v1810, 65535
    %v1812 = vshrl.u32 %v1810, 16
    %v1813 = vand.u32 %v1809, 65535
    %v1814 = vshrl.u32 %v1809, 16
    %v1815 = vmul.u32 %v1811, %v1813
    %v1816 = vmul.u32 %v1811, %v1814
    %v1817 = vmul.u32 %v1812, %v1813
    %v1818 = vmul.u32 %v1812, %v1814
    %v1819 = vshll.u32 %v1816, 16
    %v1820 = vshrl.u32 %v1816, 16
    %v1821 = vshll.u32 %v1817, 16
    %v1822 = vshrl.u32 %v1817, 16
    %vm1823 = vc.u32 %v1815, %v1819
    %v1824 = vsel %vm1823, 1, 0
    %v1825 = vadd.s32 %v1815, %v1819
    %v1826 = vadd.s32 %v1818, %v1824
    %vm1827 = vc.u32 %v1825, %v1821
    %v1828 = vsel %vm1827, 1, 0
    %v1829 = vadd.s32 %v1825, %v1821
    %v1830 = vadd.s32 %v1826, %v1828
    %v1831 = vadd.s32 %v1830, %v1820
    %v1832 = vadd.s32 %v1831, %v1822
    %v1833 = vand.u32 %v1810, 65535
    %v1834 = vshrl.u32 %v1810, 16
    %v1835 = vand.u32 %v1805, 65535
    %v1836 = vshrl.u32 %v1805, 16
    %v1837 = vmul.u32 %v1833, %v1835
    %v1838 = vmul.u32 %v1833, %v1836
    %v1839 = vmul.u32 %v1834, %v1835
    %v1840 = vmul.u32 %v1834, %v1836
    %v1841 = vshll.u32 %v1838, 16
    %v1842 = vshrl.u32 %v1838, 16
    %v1843 = vshll.u32 %v1839, 16
    %v1844 = vshrl.u32 %v1839, 16
    %vm1845 = vc.u32 %v1837, %v1841
    %v1846 = vsel %vm1845, 1, 0
    %v1847 = vadd.s32 %v1837, %v1841
    %v1848 = vadd.s32 %v1840, %v1846
    %vm1849 = vc.u32 %v1847, %v1843
    %v1850 = vsel %vm1849, 1, 0
    %v1851 = vadd.s32 %v1847, %v1843
    %v1852 = vadd.s32 %v1848, %v1850
    %v1853 = vadd.s32 %v1852, %v1842
    %v1854 = vadd.s32 %v1853, %v1844
    %v1855 = vmul.u32 %v1810, %v1801
    %v1856 = vadd.s32 %v1832, %v1851
    %vm1857 = vc.u32 %v1832, %v1851
    %v1858 = vadd.s32 %v1854, 1
    %v1859 = vsel %vm1857, %v1858, %v1854
    %v1860 = vadd.s32 %v1855, %v1859
    %v1861 = vadd.s32 %v1860, 536870912
    %v1862 = vshrl.u32 %v1861, 30
    %v1863 = vshll.u32 %v1862, 30
    %v1864 = vsub.s32 %v1860, %v1863
    %vm1865 = vcmp.lt.s32.totalorder %v1864, 0
    %v1866 = vsub.s32 0, %v1864
    %v1867 = vsel %vm1865, %v1866, %v1864
    %v1868 = vclz %v1867
    %v1869 = vsub.s32 %v1868, 2
    %vm1870 = vcmp.gt.s32.totalorder 0, %v1869
    %v1871 = vsel %vm1870, 0, %v1869
    %v1872 = vsub.s32 32, %v1871
    %v1873 = vshll.u32 %v1864, %v1871
    %v1874 = vshrl.u32 %v1856, %v1872
    %v1875 = vor.u32 %v1873, %v1874
    %v1876 = vsub.s32 4294967266, %v1871
    %v1877 = vadd.s32 %v1876, 127
    %v1878 = vshll.u32 %v1877, 23
    %v1879 = vor.u32 4788187, %v1878
    %v1880 = vand.u32 2147483647, %v1879
    %v1882 = vcvt.s32.f32 %v1875
    %v1883 = vmul.f32 %v1882, %v1880
    %v1884 = vxor.u32 %v1883, 2147483648
    %v1885 = vsel %vm1764, %v1884, %v1883
    %v1886 = vsub.s32 4, %v1862
    %v1887 = vsel %vm1764, %v1886, %v1862
    %v1888 = vsel %vm1763, %v483, %v1885
    %v1889 = vsel %vm1763, 0, %v1887
    %v1890 = vmul.f32 %v1888, %v1888
    %v1891 = vmul.f32 %v1890, -0.001358992
    %v1892 = vadd.f32 %v1891, 0.041655596
    %v1893 = vmul.f32 %v1890, %v1892
    %v1894 = vadd.f32 %v1893, -0.4999988
    %v1895 = vmul.f32 %v1890, %v1894
    %v1896 = vadd.f32 1.0, %v1895
    %v1897 = vmul.f32 %v1888, %v1888
    %v1898 = vmul.f32 %v1897, -0.00019511016
    %v1899 = vadd.f32 %v1898, 0.008332121
    %v1900 = vmul.f32 %v1897, %v1899
    %v1901 = vadd.f32 %v1900, -0.16666654
    %v1902 = vmul.f32 %v1897, %v1901
    %v1903 = vadd.f32 %v1902, 1.0
    %v1904 = vmul.f32 %v1903, %v1888
    %vm1905 = vweird.f32 %v483
    %v1906 = vadd.s32 %v1889, 3
    %v1907 = vand.u32 %v1906, 3
    %vm1908 = vcmp.lt.s32.totalorder %v1907, 2
    %vm1909 = vcmp.eq.s32.totalorder %v1907, 0
    %v1910 = vxor.u32 %v1904, 2147483648
    %v1911 = vsel %vm1909, %v1896, %v1910
    %vm1912 = vcmp.eq.s32.totalorder %v1907, 2
    %v1913 = vxor.u32 %v1896, 2147483648
    %v1914 = vsel %vm1912, %v1913, %v1904
    %v1915 = vsel %vm1908, %v1911, %v1914
    %v1916 = vsel %vm1905, nan, %v1915
    %v1917 = vand.u32 2147483647, %v484
    %vm1918 = vcmp.le.f32.partialorder %v1917, 0.7853982
    %vm1919 = vcmp.lt.s32.totalorder %v484, 0
    %v1920 = vand.u32 %v484, 2139095040
    %v1921 = vshrl.u32 %v1920, 23
    %v1922 = vsub.s32 %v1921, 127
    %v1923 = vand.u32 2147483647, %v484
    %v1924 = vand.u32 %v1923, 8388607
    %v1925 = vor.u32 %v1924, 8388608
    %v1926 = vsub.s32 0, %v1925
    %v1927 = vadd.s32 %v1922, 1
    %vm1928 = vcmp.gt.s32.totalorder %v1927, 0
    %v1929 = vsel %vm1928, %v1927, 0
    %v1930 = vshrl.u32 %v1929, 5
    %v1931 = vand.u32 %v1929, 31
    %v1932 = vsub.s32 32, %v1931
    %v1933 = vshrl.u32 683565275, %v1932
    %v1934 = vshll.u32 683565275, %v1931
    %v1935 = vshrl.u32 2475754826, %v1932
    %v1936 = vor.u32 %v1934, %v1935
    %v1937 = vshll.u32 2475754826, %v1931
    %v1938 = vshrl.u32 2131351028, %v1932
    %v1939 = vor.u32 %v1937, %v1938
    %v1940 = vshll.u32 2131351028, %v1931
    %v1941 = vshrl.u32 2102212464, %v1932
    %v1942 = vor.u32 %v1940, %v1941
    %v1943 = vshll.u32 2102212464, %v1931
    %v1944 = vshrl.u32 920167782, %v1932
    %v1945 = vor.u32 %v1943, %v1944
    %v1946 = vshll.u32 920167782, %v1931
    %v1947 = vshrl.u32 1326507024, %v1932
    %v1948 = vor.u32 %v1946, %v1947
    %vm1949 = vcmp.lt.s32.totalorder %v1930, 1
    %vm1950 = vcmp.lt.s32.totalorder %v1930, 2
    %vm1951 = vcmp.lt.s32.totalorder %v1930, 3
    %vm1952 = vcmp.lt.s32.totalorder %v1930, 4
    %v1953 = vsel %vm1949, %v1933, %v1936
    %v1954 = vsel %vm1952, %v1942, 2102212464
    %v1955 = vsel %vm1951, %v1939, %v1954
    %v1956 = vsel %vm1950, %v1953, %v1955
    %v1957 = vsel %vm1949, %v1936, %v1939
    %v1958 = vsel %vm1952, %v1945, 920167782
    %v1959 = vsel %vm1951, %v1942, %v1958
    %v1960 = vsel %vm1950, %v1957, %v1959
    %v1961 = vsel %vm1949, %v1939, %v1942
    %v1962 = vsel %vm1952, %v1948, 1326507024
    %v1963 = vsel %vm1951, %v1945, %v1962
    %v1964 = vsel %vm1950, %v1961, %v1963
    %v1965 = vshll.u32 %v1925, 8
    %v1966 = vand.u32 %v1965, 65535
    %v1967 = vshrl.u32 %v1965, 16
    %v1968 = vand.u32 %v1964, 65535
    %v1969 = vshrl.u32 %v1964, 16
    %v1970 = vmul.u32 %v1966, %v1968
    %v1971 = vmul.u32 %v1966, %v1969
    %v1972 = vmul.u32 %v1967, %v1968
    %v1973 = vmul.u32 %v1967, %v1969
    %v1974 = vshll.u32 %v1971, 16
    %v1975 = vshrl.u32 %v1971, 16
    %v1976 = vshll.u32 %v1972, 16
    %v1977 = vshrl.u32 %v1972, 16
    %vm1978 = vc.u32 %v1970, %v1974
    %v1979 = vsel %vm1978, 1, 0
    %v1980 = vadd.s32 %v1970, %v1974
    %v1981 = vadd.s32 %v1973, %v1979
    %vm1982 = vc.u32 %v1980, %v1976
    %v1983 = vsel %vm1982, 1, 0
    %v1984 = vadd.s32 %v1980, %v1976
    %v1985 = vadd.s32 %v1981, %v1983
    %v1986 = vadd.s32 %v1985, %v1975
    %v1987 = vadd.s32 %v1986, %v1977
    %v1988 = vand.u32 %v1965, 65535
    %v1989 = vshrl.u32 %v1965, 16
    %v1990 = vand.u32 %v1960, 65535
    %v1991 = vshrl.u32 %v1960, 16
    %v1992 = vmul.u32 %v1988, %v1990
    %v1993 = vmul.u32 %v1988, %v1991
    %v1994 = vmul.u32 %v1989, %v1990
    %v1995 = vmul.u32 %v1989, %v1991
    %v1996 = vshll.u32 %v1993, 16
    %v1997 = vshrl.u32 %v1993, 16
    %v1998 = vshll.u32 %v1994, 16
    %v1999 = vshrl.u32 %v1994, 16
    %vm2000 = vc.u32 %v1992, %v1996
    %v2001 = vsel %vm2000, 1, 0
    %v2002 = vadd.s32 %v1992, %v1996
    %v2003 = vadd.s32 %v1995, %v2001
    %vm2004 = vc.u32 %v2002, %v1998
    %v2005 = vsel %vm2004, 1, 0
    %v2006 = vadd.s32 %v2002, %v1998
    %v2007 = vadd.s32 %v2003, %v2005
    %v2008 = vadd.s32 %v2007, %v1997
    %v2009 = vadd.s32 %v2008, %v1999
    %v2010 = vmul.u32 %v1965, %v1956
    %v2011 = vadd.s32 %v1987, %v2006
    %vm2012 = vc.u32 %v1987, %v2006
    %v2013 = vadd.s32 %v2009, 1
    %v2014 = vsel %vm2012, %v2013, %v2009
    %v2015 = vadd.s32 %v2010, %v2014
    %v2016 = vadd.s32 %v2015, 536870912
    %v2017 = vshrl.u32 %v2016, 30
    %v2018 = vshll.u32 %v2017, 30
    %v2019 = vsub.s32 %v2015, %v2018
    %vm2020 = vcmp.lt.s32.totalorder %v2019, 0
    %v2021 = vsub.s32 0, %v2019
    %v2022 = vsel %vm2020, %v2021, %v2019
    %v2023 = vclz %v2022
    %v2024 = vsub.s32 %v2023, 2
    %vm2025 = vcmp.gt.s32.totalorder 0, %v2024
    %v2026 = vsel %vm2025, 0, %v2024
    %v2027 = vsub.s32 32, %v2026
    %v2028 = vshll.u32 %v2019, %v2026
    %v2029 = vshrl.u32 %v2011, %v2027
    %v2030 = vor.u32 %v2028, %v2029
    %v2031 = vsub.s32 4294967266, %v2026
    %v2032 = vadd.s32 %v2031, 127
    %v2033 = vshll.u32 %v2032, 23
    %v2034 = vor.u32 4788187, %v2033
    %v2035 = vand.u32 2147483647, %v2034
    %v2037 = vcvt.s32.f32 %v2030
    %v2038 = vmul.f32 %v2037, %v2035
    %v2039 = vxor.u32 %v2038, 2147483648
    %v2040 = vsel %vm1919, %v2039, %v2038
    %v2041 = vsub.s32 4, %v2017
    %v2042 = vsel %vm1919, %v2041, %v2017
    %v2043 = vsel %vm1918, %v484, %v2040
    %v2044 = vsel %vm1918, 0, %v2042
    %v2045 = vmul.f32 %v2043, %v2043
    %v2046 = vmul.f32 %v2045, -0.001358992
    %v2047 = vadd.f32 %v2046, 0.041655596
    %v2048 = vmul.f32 %v2045, %v2047
    %v2049 = vadd.f32 %v2048, -0.4999988
    %v2050 = vmul.f32 %v2045, %v2049
    %v2051 = vadd.f32 1.0, %v2050
    %v2052 = vmul.f32 %v2043, %v2043
    %v2053 = vmul.f32 %v2052, -0.00019511016
    %v2054 = vadd.f32 %v2053, 0.008332121
    %v2055 = vmul.f32 %v2052, %v2054
    %v2056 = vadd.f32 %v2055, -0.16666654
    %v2057 = vmul.f32 %v2052, %v2056
    %v2058 = vadd.f32 %v2057, 1.0
    %v2059 = vmul.f32 %v2058, %v2043
    %vm2060 = vweird.f32 %v484
    %v2061 = vadd.s32 %v2044, 3
    %v2062 = vand.u32 %v2061, 3
    %vm2063 = vcmp.lt.s32.totalorder %v2062, 2
    %vm2064 = vcmp.eq.s32.totalorder %v2062, 0
    %v2065 = vxor.u32 %v2059, 2147483648
    %v2066 = vsel %vm2064, %v2051, %v2065
    %vm2067 = vcmp.eq.s32.totalorder %v2062, 2
    %v2068 = vxor.u32 %v2051, 2147483648
    %v2069 = vsel %vm2067, %v2068, %v2059
    %v2070 = vsel %vm2063, %v2066, %v2069
    %v2071 = vsel %vm2060, nan, %v2070
    %v2072 = vand.u32 2147483647, %v485
    %vm2073 = vcmp.le.f32.partialorder %v2072, 0.7853982
    %vm2074 = vcmp.lt.s32.totalorder %v485, 0
    %v2075 = vand.u32 %v485, 2139095040
    %v2076 = vshrl.u32 %v2075, 23
    %v2077 = vsub.s32 %v2076, 127
    %v2078 = vand.u32 2147483647, %v485
    %v2079 = vand.u32 %v2078, 8388607
    %v2080 = vor.u32 %v2079, 8388608
    %v2081 = vsub.s32 0, %v2080
    %v2082 = vadd.s32 %v2077, 1
    %vm2083 = vcmp.gt.s32.totalorder %v2082, 0
    %v2084 = vsel %vm2083, %v2082, 0
    %v2085 = vshrl.u32 %v2084, 5
    %v2086 = vand.u32 %v2084, 31
    %v2087 = vsub.s32 32, %v2086
    %v2088 = vshrl.u32 683565275, %v2087
    %v2089 = vshll.u32 683565275, %v2086
    %v2090 = vshrl.u32 2475754826, %v2087
    %v2091 = vor.u32 %v2089, %v2090
    %v2092 = vshll.u32 2475754826, %v2086
    %v2093 = vshrl.u32 2131351028, %v2087
    %v2094 = vor.u32 %v2092, %v2093
    %v2095 = vshll.u32 2131351028, %v2086
    %v2096 = vshrl.u32 2102212464, %v2087
    %v2097 = vor.u32 %v2095, %v2096
    %v2098 = vshll.u32 2102212464, %v2086
    %v2099 = vshrl.u32 920167782, %v2087
    %v2100 = vor.u32 %v2098, %v2099
    %v2101 = vshll.u32 920167782, %v2086
    %v2102 = vshrl.u32 1326507024, %v2087
    %v2103 = vor.u32 %v2101, %v2102
    %vm2104 = vcmp.lt.s32.totalorder %v2085, 1
    %vm2105 = vcmp.lt.s32.totalorder %v2085, 2
    %vm2106 = vcmp.lt.s32.totalorder %v2085, 3
    %vm2107 = vcmp.lt.s32.totalorder %v2085, 4
    %v2108 = vsel %vm2104, %v2088, %v2091
    %v2109 = vsel %vm2107, %v2097, 2102212464
    %v2110 = vsel %vm2106, %v2094, %v2109
    %v2111 = vsel %vm2105, %v2108, %v2110
    %v2112 = vsel %vm2104, %v2091, %v2094
    %v2113 = vsel %vm2107, %v2100, 920167782
    %v2114 = vsel %vm2106, %v2097, %v2113
    %v2115 = vsel %vm2105, %v2112, %v2114
    %v2116 = vsel %vm2104, %v2094, %v2097
    %v2117 = vsel %vm2107, %v2103, 1326507024
    %v2118 = vsel %vm2106, %v2100, %v2117
    %v2119 = vsel %vm2105, %v2116, %v2118
    %v2120 = vshll.u32 %v2080, 8
    %v2121 = vand.u32 %v2120, 65535
    %v2122 = vshrl.u32 %v2120, 16
    %v2123 = vand.u32 %v2119, 65535
    %v2124 = vshrl.u32 %v2119, 16
    %v2125 = vmul.u32 %v2121, %v2123
    %v2126 = vmul.u32 %v2121, %v2124
    %v2127 = vmul.u32 %v2122, %v2123
    %v2128 = vmul.u32 %v2122, %v2124
    %v2129 = vshll.u32 %v2126, 16
    %v2130 = vshrl.u32 %v2126, 16
    %v2131 = vshll.u32 %v2127, 16
    %v2132 = vshrl.u32 %v2127, 16
    %vm2133 = vc.u32 %v2125, %v2129
    %v2134 = vsel %vm2133, 1, 0
    %v2135 = vadd.s32 %v2125, %v2129
    %v2136 = vadd.s32 %v2128, %v2134
    %vm2137 = vc.u32 %v2135, %v2131
    %v2138 = vsel %vm2137, 1, 0
    %v2139 = vadd.s32 %v2135, %v2131
    %v2140 = vadd.s32 %v2136, %v2138
    %v2141 = vadd.s32 %v2140, %v2130
    %v2142 = vadd.s32 %v2141, %v2132
    %v2143 = vand.u32 %v2120, 65535
    %v2144 = vshrl.u32 %v2120, 16
    %v2145 = vand.u32 %v2115, 65535
    %v2146 = vshrl.u32 %v2115, 16
    %v2147 = vmul.u32 %v2143, %v2145
    %v2148 = vmul.u32 %v2143, %v2146
    %v2149 = vmul.u32 %v2144, %v2145
    %v2150 = vmul.u32 %v2144, %v2146
    %v2151 = vshll.u32 %v2148, 16
    %v2152 = vshrl.u32 %v2148, 16
    %v2153 = vshll.u32 %v2149, 16
    %v2154 = vshrl.u32 %v2149, 16
    %vm2155 = vc.u32 %v2147, %v2151
    %v2156 = vsel %vm2155, 1, 0
    %v2157 = vadd.s32 %v2147, %v2151
    %v2158 = vadd.s32 %v2150, %v2156
    %vm2159 = vc.u32 %v2157, %v2153
    %v2160 = vsel %vm2159, 1, 0
    %v2161 = vadd.s32 %v2157, %v2153
    %v2162 = vadd.s32 %v2158, %v2160
    %v2163 = vadd.s32 %v2162, %v2152
    %v2164 = vadd.s32 %v2163, %v2154
    %v2165 = vmul.u32 %v2120, %v2111
    %v2166 = vadd.s32 %v2142, %v2161
    %vm2167 = vc.u32 %v2142, %v2161
    %v2168 = vadd.s32 %v2164, 1
    %v2169 = vsel %vm2167, %v2168, %v2164
    %v2170 = vadd.s32 %v2165, %v2169
    %v2171 = vadd.s32 %v2170, 536870912
    %v2172 = vshrl.u32 %v2171, 30
    %v2173 = vshll.u32 %v2172, 30
    %v2174 = vsub.s32 %v2170, %v2173
    %vm2175 = vcmp.lt.s32.totalorder %v2174, 0
    %v2176 = vsub.s32 0, %v2174
    %v2177 = vsel %vm2175, %v2176, %v2174
    %v2178 = vclz %v2177
    %v2179 = vsub.s32 %v2178, 2
    %vm2180 = vcmp.gt.s32.totalorder 0, %v2179
    %v2181 = vsel %vm2180, 0, %v2179
    %v2182 = vsub.s32 32, %v2181
    %v2183 = vshll.u32 %v2174, %v2181
    %v2184 = vshrl.u32 %v2166, %v2182
    %v2185 = vor.u32 %v2183, %v2184
    %v2186 = vsub.s32 4294967266, %v2181
    %v2187 = vadd.s32 %v2186, 127
    %v2188 = vshll.u32 %v2187, 23
    %v2189 = vor.u32 4788187, %v2188
    %v2190 = vand.u32 2147483647, %v2189
    %v2192 = vcvt.s32.f32 %v2185
    %v2193 = vmul.f32 %v2192, %v2190
    %v2194 = vxor.u32 %v2193, 2147483648
    %v2195 = vsel %vm2074, %v2194, %v2193
    %v2196 = vsub.s32 4, %v2172
    %v2197 = vsel %vm2074, %v2196, %v2172
    %v2198 = vsel %vm2073, %v485, %v2195
    %v2199 = vsel %vm2073, 0, %v2197
    %v2200 = vmul.f32 %v2198, %v2198
    %v2201 = vmul.f32 %v2200, -0.001358992
    %v2202 = vadd.f32 %v2201, 0.041655596
    %v2203 = vmul.f32 %v2200, %v2202
    %v2204 = vadd.f32 %v2203, -0.4999988
    %v2205 = vmul.f32 %v2200, %v2204
    %v2206 = vadd.f32 1.0, %v2205
    %v2207 = vmul.f32 %v2198, %v2198
    %v2208 = vmul.f32 %v2207, -0.00019511016
    %v2209 = vadd.f32 %v2208, 0.008332121
    %v2210 = vmul.f32 %v2207, %v2209
    %v2211 = vadd.f32 %v2210, -0.16666654
    %v2212 = vmul.f32 %v2207, %v2211
    %v2213 = vadd.f32 %v2212, 1.0
    %v2214 = vmul.f32 %v2213, %v2198
    %vm2215 = vweird.f32 %v485
    %v2216 = vadd.s32 %v2199, 3
    %v2217 = vand.u32 %v2216, 3
    %vm2218 = vcmp.lt.s32.totalorder %v2217, 2
    %vm2219 = vcmp.eq.s32.totalorder %v2217, 0
    %v2220 = vxor.u32 %v2214, 2147483648
    %v2221 = vsel %vm2219, %v2206, %v2220
    %vm2222 = vcmp.eq.s32.totalorder %v2217, 2
    %v2223 = vxor.u32 %v2206, 2147483648
    %v2224 = vsel %vm2222, %v2223, %v2214
    %v2225 = vsel %vm2218, %v2221, %v2224
    %v2226 = vsel %vm2215, nan, %v2225
    %v2227 = vand.u32 2147483647, %v486
    %vm2228 = vcmp.le.f32.partialorder %v2227, 0.7853982
    %vm2229 = vcmp.lt.s32.totalorder %v486, 0
    %v2230 = vand.u32 %v486, 2139095040
    %v2231 = vshrl.u32 %v2230, 23
    %v2232 = vsub.s32 %v2231, 127
    %v2233 = vand.u32 2147483647, %v486
    %v2234 = vand.u32 %v2233, 8388607
    %v2235 = vor.u32 %v2234, 8388608
    %v2236 = vsub.s32 0, %v2235
    %v2237 = vadd.s32 %v2232, 1
    %vm2238 = vcmp.gt.s32.totalorder %v2237, 0
    %v2239 = vsel %vm2238, %v2237, 0
    %v2240 = vshrl.u32 %v2239, 5
    %v2241 = vand.u32 %v2239, 31
    %v2242 = vsub.s32 32, %v2241
    %v2243 = vshrl.u32 683565275, %v2242
    %v2244 = vshll.u32 683565275, %v2241
    %v2245 = vshrl.u32 2475754826, %v2242
    %v2246 = vor.u32 %v2244, %v2245
    %v2247 = vshll.u32 2475754826, %v2241
    %v2248 = vshrl.u32 2131351028, %v2242
    %v2249 = vor.u32 %v2247, %v2248
    %v2250 = vshll.u32 2131351028, %v2241
    %v2251 = vshrl.u32 2102212464, %v2242
    %v2252 = vor.u32 %v2250, %v2251
    %v2253 = vshll.u32 2102212464, %v2241
    %v2254 = vshrl.u32 920167782, %v2242
    %v2255 = vor.u32 %v2253, %v2254
    %v2256 = vshll.u32 920167782, %v2241
    %v2257 = vshrl.u32 1326507024, %v2242
    %v2258 = vor.u32 %v2256, %v2257
    %vm2259 = vcmp.lt.s32.totalorder %v2240, 1
    %vm2260 = vcmp.lt.s32.totalorder %v2240, 2
    %vm2261 = vcmp.lt.s32.totalorder %v2240, 3
    %vm2262 = vcmp.lt.s32.totalorder %v2240, 4
    %v2263 = vsel %vm2259, %v2243, %v2246
    %v2264 = vsel %vm2262, %v2252, 2102212464
    %v2265 = vsel %vm2261, %v2249, %v2264
    %v2266 = vsel %vm2260, %v2263, %v2265
    %v2267 = vsel %vm2259, %v2246, %v2249
    %v2268 = vsel %vm2262, %v2255, 920167782
    %v2269 = vsel %vm2261, %v2252, %v2268
    %v2270 = vsel %vm2260, %v2267, %v2269
    %v2271 = vsel %vm2259, %v2249, %v2252
    %v2272 = vsel %vm2262, %v2258, 1326507024
    %v2273 = vsel %vm2261, %v2255, %v2272
    %v2274 = vsel %vm2260, %v2271, %v2273
    %v2275 = vshll.u32 %v2235, 8
    %v2276 = vand.u32 %v2275, 65535
    %v2277 = vshrl.u32 %v2275, 16
    %v2278 = vand.u32 %v2274, 65535
    %v2279 = vshrl.u32 %v2274, 16
    %v2280 = vmul.u32 %v2276, %v2278
    %v2281 = vmul.u32 %v2276, %v2279
    %v2282 = vmul.u32 %v2277, %v2278
    %v2283 = vmul.u32 %v2277, %v2279
    %v2284 = vshll.u32 %v2281, 16
    %v2285 = vshrl.u32 %v2281, 16
    %v2286 = vshll.u32 %v2282, 16
    %v2287 = vshrl.u32 %v2282, 16
    %vm2288 = vc.u32 %v2280, %v2284
    %v2289 = vsel %vm2288, 1, 0
    %v2290 = vadd.s32 %v2280, %v2284
    %v2291 = vadd.s32 %v2283, %v2289
    %vm2292 = vc.u32 %v2290, %v2286
    %v2293 = vsel %vm2292, 1, 0
    %v2294 = vadd.s32 %v2290, %v2286
    %v2295 = vadd.s32 %v2291, %v2293
    %v2296 = vadd.s32 %v2295, %v2285
    %v2297 = vadd.s32 %v2296, %v2287
    %v2298 = vand.u32 %v2275, 65535
    %v2299 = vshrl.u32 %v2275, 16
    %v2300 = vand.u32 %v2270, 65535
    %v2301 = vshrl.u32 %v2270, 16
    %v2302 = vmul.u32 %v2298, %v2300
    %v2303 = vmul.u32 %v2298, %v2301
    %v2304 = vmul.u32 %v2299, %v2300
    %v2305 = vmul.u32 %v2299, %v2301
    %v2306 = vshll.u32 %v2303, 16
    %v2307 = vshrl.u32 %v2303, 16
    %v2308 = vshll.u32 %v2304, 16
    %v2309 = vshrl.u32 %v2304, 16
    %vm2310 = vc.u32 %v2302, %v2306
    %v2311 = vsel %vm2310, 1, 0
    %v2312 = vadd.s32 %v2302, %v2306
    %v2313 = vadd.s32 %v2305, %v2311
    %vm2314 = vc.u32 %v2312, %v2308
    %v2315 = vsel %vm2314, 1, 0
    %v2316 = vadd.s32 %v2312, %v2308
    %v2317 = vadd.s32 %v2313, %v2315
    %v2318 = vadd.s32 %v2317, %v2307
    %v2319 = vadd.s32 %v2318, %v2309
    %v2320 = vmul.u32 %v2275, %v2266
    %v2321 = vadd.s32 %v2297, %v2316
    %vm2322 = vc.u32 %v2297, %v2316
    %v2323 = vadd.s32 %v2319, 1
    %v2324 = vsel %vm2322, %v2323, %v2319
    %v2325 = vadd.s32 %v2320, %v2324
    %v2326 = vadd.s32 %v2325, 536870912
    %v2327 = vshrl.u32 %v2326, 30
    %v2328 = vshll.u32 %v2327, 30
    %v2329 = vsub.s32 %v2325, %v2328
    %vm2330 = vcmp.lt.s32.totalorder %v2329, 0
    %v2331 = vsub.s32 0, %v2329
    %v2332 = vsel %vm2330, %v2331, %v2329
    %v2333 = vclz %v2332
    %v2334 = vsub.s32 %v2333, 2
    %vm2335 = vcmp.gt.s32.totalorder 0, %v2334
    %v2336 = vsel %vm2335, 0, %v2334
    %v2337 = vsub.s32 32, %v2336
    %v2338 = vshll.u32 %v2329, %v2336
    %v2339 = vshrl.u32 %v2321, %v2337
    %v2340 = vor.u32 %v2338, %v2339
    %v2341 = vsub.s32 4294967266, %v2336
    %v2342 = vadd.s32 %v2341, 127
    %v2343 = vshll.u32 %v2342, 23
    %v2344 = vor.u32 4788187, %v2343
    %v2345 = vand.u32 2147483647, %v2344
    %v2347 = vcvt.s32.f32 %v2340
    %v2348 = vmul.f32 %v2347, %v2345
    %v2349 = vxor.u32 %v2348, 2147483648
    %v2350 = vsel %vm2229, %v2349, %v2348
    %v2351 = vsub.s32 4, %v2327
    %v2352 = vsel %vm2229, %v2351, %v2327
    %v2353 = vsel %vm2228, %v486, %v2350
    %v2354 = vsel %vm2228, 0, %v2352
    %v2355 = vmul.f32 %v2353, %v2353
    %v2356 = vmul.f32 %v2355, -0.001358992
    %v2357 = vadd.f32 %v2356, 0.041655596
    %v2358 = vmul.f32 %v2355, %v2357
    %v2359 = vadd.f32 %v2358, -0.4999988
    %v2360 = vmul.f32 %v2355, %v2359
    %v2361 = vadd.f32 1.0, %v2360
    %v2362 = vmul.f32 %v2353, %v2353
    %v2363 = vmul.f32 %v2362, -0.00019511016
    %v2364 = vadd.f32 %v2363, 0.008332121
    %v2365 = vmul.f32 %v2362, %v2364
    %v2366 = vadd.f32 %v2365, -0.16666654
    %v2367 = vmul.f32 %v2362, %v2366
    %v2368 = vadd.f32 %v2367, 1.0
    %v2369 = vmul.f32 %v2368, %v2353
    %vm2370 = vweird.f32 %v486
    %v2371 = vadd.s32 %v2354, 3
    %v2372 = vand.u32 %v2371, 3
    %vm2373 = vcmp.lt.s32.totalorder %v2372, 2
    %vm2374 = vcmp.eq.s32.totalorder %v2372, 0
    %v2375 = vxor.u32 %v2369, 2147483648
    %v2376 = vsel %vm2374, %v2361, %v2375
    %vm2377 = vcmp.eq.s32.totalorder %v2372, 2
    %v2378 = vxor.u32 %v2361, 2147483648
    %v2379 = vsel %vm2377, %v2378, %v2369
    %v2380 = vsel %vm2373, %v2376, %v2379
    %v2381 = vsel %vm2370, nan, %v2380
    %v2382 = vand.u32 2147483647, %v487
    %vm2383 = vcmp.le.f32.partialorder %v2382, 0.7853982
    %vm2384 = vcmp.lt.s32.totalorder %v487, 0
    %v2385 = vand.u32 %v487, 2139095040
    %v2386 = vshrl.u32 %v2385, 23
    %v2387 = vsub.s32 %v2386, 127
    %v2388 = vand.u32 2147483647, %v487
    %v2389 = vand.u32 %v2388, 8388607
    %v2390 = vor.u32 %v2389, 8388608
    %v2391 = vsub.s32 0, %v2390
    %v2392 = vadd.s32 %v2387, 1
    %vm2393 = vcmp.gt.s32.totalorder %v2392, 0
    %v2394 = vsel %vm2393, %v2392, 0
    %v2395 = vshrl.u32 %v2394, 5
    %v2396 = vand.u32 %v2394, 31
    %v2397 = vsub.s32 32, %v2396
    %v2398 = vshrl.u32 683565275, %v2397
    %v2399 = vshll.u32 683565275, %v2396
    %v2400 = vshrl.u32 2475754826, %v2397
    %v2401 = vor.u32 %v2399, %v2400
    %v2402 = vshll.u32 2475754826, %v2396
    %v2403 = vshrl.u32 2131351028, %v2397
    %v2404 = vor.u32 %v2402, %v2403
    %v2405 = vshll.u32 2131351028, %v2396
    %v2406 = vshrl.u32 2102212464, %v2397
    %v2407 = vor.u32 %v2405, %v2406
    %v2408 = vshll.u32 2102212464, %v2396
    %v2409 = vshrl.u32 920167782, %v2397
    %v2410 = vor.u32 %v2408, %v2409
    %v2411 = vshll.u32 920167782, %v2396
    %v2412 = vshrl.u32 1326507024, %v2397
    %v2413 = vor.u32 %v2411, %v2412
    %vm2414 = vcmp.lt.s32.totalorder %v2395, 1
    %vm2415 = vcmp.lt.s32.totalorder %v2395, 2
    %vm2416 = vcmp.lt.s32.totalorder %v2395, 3
    %vm2417 = vcmp.lt.s32.totalorder %v2395, 4
    %v2418 = vsel %vm2414, %v2398, %v2401
    %v2419 = vsel %vm2417, %v2407, 2102212464
    %v2420 = vsel %vm2416, %v2404, %v2419
    %v2421 = vsel %vm2415, %v2418, %v2420
    %v2422 = vsel %vm2414, %v2401, %v2404
    %v2423 = vsel %vm2417, %v2410, 920167782
    %v2424 = vsel %vm2416, %v2407, %v2423
    %v2425 = vsel %vm2415, %v2422, %v2424
    %v2426 = vsel %vm2414, %v2404, %v2407
    %v2427 = vsel %vm2417, %v2413, 1326507024
    %v2428 = vsel %vm2416, %v2410, %v2427
    %v2429 = vsel %vm2415, %v2426, %v2428
    %v2430 = vshll.u32 %v2390, 8
    %v2431 = vand.u32 %v2430, 65535
    %v2432 = vshrl.u32 %v2430, 16
    %v2433 = vand.u32 %v2429, 65535
    %v2434 = vshrl.u32 %v2429, 16
    %v2435 = vmul.u32 %v2431, %v2433
    %v2436 = vmul.u32 %v2431, %v2434
    %v2437 = vmul.u32 %v2432, %v2433
    %v2438 = vmul.u32 %v2432, %v2434
    %v2439 = vshll.u32 %v2436, 16
    %v2440 = vshrl.u32 %v2436, 16
    %v2441 = vshll.u32 %v2437, 16
    %v2442 = vshrl.u32 %v2437, 16
    %vm2443 = vc.u32 %v2435, %v2439
    %v2444 = vsel %vm2443, 1, 0
    %v2445 = vadd.s32 %v2435, %v2439
    %v2446 = vadd.s32 %v2438, %v2444
    %vm2447 = vc.u32 %v2445, %v2441
    %v2448 = vsel %vm2447, 1, 0
    %v2449 = vadd.s32 %v2445, %v2441
    %v2450 = vadd.s32 %v2446, %v2448
    %v2451 = vadd.s32 %v2450, %v2440
    %v2452 = vadd.s32 %v2451, %v2442
    %v2453 = vand.u32 %v2430, 65535
    %v2454 = vshrl.u32 %v2430, 16
    %v2455 = vand.u32 %v2425, 65535
    %v2456 = vshrl.u32 %v2425, 16
    %v2457 = vmul.u32 %v2453, %v2455
    %v2458 = vmul.u32 %v2453, %v2456
    %v2459 = vmul.u32 %v2454, %v2455
    %v2460 = vmul.u32 %v2454, %v2456
    %v2461 = vshll.u32 %v2458, 16
    %v2462 = vshrl.u32 %v2458, 16
    %v2463 = vshll.u32 %v2459, 16
    %v2464 = vshrl.u32 %v2459, 16
    %vm2465 = vc.u32 %v2457, %v2461
    %v2466 = vsel %vm2465, 1, 0
    %v2467 = vadd.s32 %v2457, %v2461
    %v2468 = vadd.s32 %v2460, %v2466
    %vm2469 = vc.u32 %v2467, %v2463
    %v2470 = vsel %vm2469, 1, 0
    %v2471 = vadd.s32 %v2467, %v2463
    %v2472 = vadd.s32 %v2468, %v2470
    %v2473 = vadd.s32 %v2472, %v2462
    %v2474 = vadd.s32 %v2473, %v2464
    %v2475 = vmul.u32 %v2430, %v2421
    %v2476 = vadd.s32 %v2452, %v2471
    %vm2477 = vc.u32 %v2452, %v2471
    %v2478 = vadd.s32 %v2474, 1
    %v2479 = vsel %vm2477, %v2478, %v2474
    %v2480 = vadd.s32 %v2475, %v2479
    %v2481 = vadd.s32 %v2480, 536870912
    %v2482 = vshrl.u32 %v2481, 30
    %v2483 = vshll.u32 %v2482, 30
    %v2484 = vsub.s32 %v2480, %v2483
    %vm2485 = vcmp.lt.s32.totalorder %v2484, 0
    %v2486 = vsub.s32 0, %v2484
    %v2487 = vsel %vm2485, %v2486, %v2484
    %v2488 = vclz %v2487
    %v2489 = vsub.s32 %v2488, 2
    %vm2490 = vcmp.gt.s32.totalorder 0, %v2489
    %v2491 = vsel %vm2490, 0, %v2489
    %v2492 = vsub.s32 32, %v2491
    %v2493 = vshll.u32 %v2484, %v2491
    %v2494 = vshrl.u32 %v2476, %v2492
    %v2495 = vor.u32 %v2493, %v2494
    %v2496 = vsub.s32 4294967266, %v2491
    %v2497 = vadd.s32 %v2496, 127
    %v2498 = vshll.u32 %v2497, 23
    %v2499 = vor.u32 4788187, %v2498
    %v2500 = vand.u32 2147483647, %v2499
    %v2502 = vcvt.s32.f32 %v2495
    %v2503 = vmul.f32 %v2502, %v2500
    %v2504 = vxor.u32 %v2503, 2147483648
    %v2505 = vsel %vm2384, %v2504, %v2503
    %v2506 = vsub.s32 4, %v2482
    %v2507 = vsel %vm2384, %v2506, %v2482
    %v2508 = vsel %vm2383, %v487, %v2505
    %v2509 = vsel %vm2383, 0, %v2507
    %v2510 = vmul.f32 %v2508, %v2508
    %v2511 = vmul.f32 %v2510, -0.001358992
    %v2512 = vadd.f32 %v2511, 0.041655596
    %v2513 = vmul.f32 %v2510, %v2512
    %v2514 = vadd.f32 %v2513, -0.4999988
    %v2515 = vmul.f32 %v2510, %v2514
    %v2516 = vadd.f32 1.0, %v2515
    %v2517 = vmul.f32 %v2508, %v2508
    %v2518 = vmul.f32 %v2517, -0.00019511016
    %v2519 = vadd.f32 %v2518, 0.008332121
    %v2520 = vmul.f32 %v2517, %v2519
    %v2521 = vadd.f32 %v2520, -0.16666654
    %v2522 = vmul.f32 %v2517, %v2521
    %v2523 = vadd.f32 %v2522, 1.0
    %v2524 = vmul.f32 %v2523, %v2508
    %vm2525 = vweird.f32 %v487
    %v2526 = vadd.s32 %v2509, 3
    %v2527 = vand.u32 %v2526, 3
    %vm2528 = vcmp.lt.s32.totalorder %v2527, 2
    %vm2529 = vcmp.eq.s32.totalorder %v2527, 0
    %v2530 = vxor.u32 %v2524, 2147483648
    %v2531 = vsel %vm2529, %v2516, %v2530
    %vm2532 = vcmp.eq.s32.totalorder %v2527, 2
    %v2533 = vxor.u32 %v2516, 2147483648
    %v2534 = vsel %vm2532, %v2533, %v2524
    %v2535 = vsel %vm2528, %v2531, %v2534
    %v2536 = vsel %vm2525, nan, %v2535
    %v2537 = vand.u32 2147483647, %v488
    %vm2538 = vcmp.le.f32.partialorder %v2537, 0.7853982
    %vm2539 = vcmp.lt.s32.totalorder %v488, 0
    %v2540 = vand.u32 %v488, 2139095040
    %v2541 = vshrl.u32 %v2540, 23
    %v2542 = vsub.s32 %v2541, 127
    %v2543 = vand.u32 2147483647, %v488
    %v2544 = vand.u32 %v2543, 8388607
    %v2545 = vor.u32 %v2544, 8388608
    %v2546 = vsub.s32 0, %v2545
    %v2547 = vadd.s32 %v2542, 1
    %vm2548 = vcmp.gt.s32.totalorder %v2547, 0
    %v2549 = vsel %vm2548, %v2547, 0
    %v2550 = vshrl.u32 %v2549, 5
    %v2551 = vand.u32 %v2549, 31
    %v2552 = vsub.s32 32, %v2551
    %v2553 = vshrl.u32 683565275, %v2552
    %v2554 = vshll.u32 683565275, %v2551
    %v2555 = vshrl.u32 2475754826, %v2552
    %v2556 = vor.u32 %v2554, %v2555
    %v2557 = vshll.u32 2475754826, %v2551
    %v2558 = vshrl.u32 2131351028, %v2552
    %v2559 = vor.u32 %v2557, %v2558
    %v2560 = vshll.u32 2131351028, %v2551
    %v2561 = vshrl.u32 2102212464, %v2552
    %v2562 = vor.u32 %v2560, %v2561
    %v2563 = vshll.u32 2102212464, %v2551
    %v2564 = vshrl.u32 920167782, %v2552
    %v2565 = vor.u32 %v2563, %v2564
    %v2566 = vshll.u32 920167782, %v2551
    %v2567 = vshrl.u32 1326507024, %v2552
    %v2568 = vor.u32 %v2566, %v2567
    %vm2569 = vcmp.lt.s32.totalorder %v2550, 1
    %vm2570 = vcmp.lt.s32.totalorder %v2550, 2
    %vm2571 = vcmp.lt.s32.totalorder %v2550, 3
    %vm2572 = vcmp.lt.s32.totalorder %v2550, 4
    %v2573 = vsel %vm2569, %v2553, %v2556
    %v2574 = vsel %vm2572, %v2562, 2102212464
    %v2575 = vsel %vm2571, %v2559, %v2574
    %v2576 = vsel %vm2570, %v2573, %v2575
    %v2577 = vsel %vm2569, %v2556, %v2559
    %v2578 = vsel %vm2572, %v2565, 920167782
    %v2579 = vsel %vm2571, %v2562, %v2578
    %v2580 = vsel %vm2570, %v2577, %v2579
    %v2581 = vsel %vm2569, %v2559, %v2562
    %v2582 = vsel %vm2572, %v2568, 1326507024
    %v2583 = vsel %vm2571, %v2565, %v2582
    %v2584 = vsel %vm2570, %v2581, %v2583
    %v2585 = vshll.u32 %v2545, 8
    %v2586 = vand.u32 %v2585, 65535
    %v2587 = vshrl.u32 %v2585, 16
    %v2588 = vand.u32 %v2584, 65535
    %v2589 = vshrl.u32 %v2584, 16
    %v2590 = vmul.u32 %v2586, %v2588
    %v2591 = vmul.u32 %v2586, %v2589
    %v2592 = vmul.u32 %v2587, %v2588
    %v2593 = vmul.u32 %v2587, %v2589
    %v2594 = vshll.u32 %v2591, 16
    %v2595 = vshrl.u32 %v2591, 16
    %v2596 = vshll.u32 %v2592, 16
    %v2597 = vshrl.u32 %v2592, 16
    %vm2598 = vc.u32 %v2590, %v2594
    %v2599 = vsel %vm2598, 1, 0
    %v2600 = vadd.s32 %v2590, %v2594
    %v2601 = vadd.s32 %v2593, %v2599
    %vm2602 = vc.u32 %v2600, %v2596
    %v2603 = vsel %vm2602, 1, 0
    %v2604 = vadd.s32 %v2600, %v2596
    %v2605 = vadd.s32 %v2601, %v2603
    %v2606 = vadd.s32 %v2605, %v2595
    %v2607 = vadd.s32 %v2606, %v2597
    %v2608 = vand.u32 %v2585, 65535
    %v2609 = vshrl.u32 %v2585, 16
    %v2610 = vand.u32 %v2580, 65535
    %v2611 = vshrl.u32 %v2580, 16
    %v2612 = vmul.u32 %v2608, %v2610
    %v2613 = vmul.u32 %v2608, %v2611
    %v2614 = vmul.u32 %v2609, %v2610
    %v2615 = vmul.u32 %v2609, %v2611
    %v2616 = vshll.u32 %v2613, 16
    %v2617 = vshrl.u32 %v2613, 16
    %v2618 = vshll.u32 %v2614, 16
    %v2619 = vshrl.u32 %v2614, 16
    %vm2620 = vc.u32 %v2612, %v2616
    %v2621 = vsel %vm2620, 1, 0
    %v2622 = vadd.s32 %v2612, %v2616
    %v2623 = vadd.s32 %v2615, %v2621
    %vm2624 = vc.u32 %v2622, %v2618
    %v2625 = vsel %vm2624, 1, 0
    %v2626 = vadd.s32 %v2622, %v2618
    %v2627 = vadd.s32 %v2623, %v2625
    %v2628 = vadd.s32 %v2627, %v2617
    %v2629 = vadd.s32 %v2628, %v2619
    %v2630 = vmul.u32 %v2585, %v2576
    %v2631 = vadd.s32 %v2607, %v2626
    %vm2632 = vc.u32 %v2607, %v2626
    %v2633 = vadd.s32 %v2629, 1
    %v2634 = vsel %vm2632, %v2633, %v2629
    %v2635 = vadd.s32 %v2630, %v2634
    %v2636 = vadd.s32 %v2635, 536870912
    %v2637 = vshrl.u32 %v2636, 30
    %v2638 = vshll.u32 %v2637, 30
    %v2639 = vsub.s32 %v2635, %v2638
    %vm2640 = vcmp.lt.s32.totalorder %v2639, 0
    %v2641 = vsub.s32 0, %v2639
    %v2642 = vsel %vm2640, %v2641, %v2639
    %v2643 = vclz %v2642
    %v2644 = vsub.s32 %v2643, 2
    %vm2645 = vcmp.gt.s32.totalorder 0, %v2644
    %v2646 = vsel %vm2645, 0, %v2644
    %v2647 = vsub.s32 32, %v2646
    %v2648 = vshll.u32 %v2639, %v2646
    %v2649 = vshrl.u32 %v2631, %v2647
    %v2650 = vor.u32 %v2648, %v2649
    %v2651 = vsub.s32 4294967266, %v2646
    %v2652 = vadd.s32 %v2651, 127
    %v2653 = vshll.u32 %v2652, 23
    %v2654 = vor.u32 4788187, %v2653
    %v2655 = vand.u32 2147483647, %v2654
    %v2657 = vcvt.s32.f32 %v2650
    %v2658 = vmul.f32 %v2657, %v2655
    %v2659 = vxor.u32 %v2658, 2147483648
    %v2660 = vsel %vm2539, %v2659, %v2658
    %v2661 = vsub.s32 4, %v2637
    %v2662 = vsel %vm2539, %v2661, %v2637
    %v2663 = vsel %vm2538, %v488, %v2660
    %v2664 = vsel %vm2538, 0, %v2662
    %v2665 = vmul.f32 %v2663, %v2663
    %v2666 = vmul.f32 %v2665, -0.001358992
    %v2667 = vadd.f32 %v2666, 0.041655596
    %v2668 = vmul.f32 %v2665, %v2667
    %v2669 = vadd.f32 %v2668, -0.4999988
    %v2670 = vmul.f32 %v2665, %v2669
    %v2671 = vadd.f32 1.0, %v2670
    %v2672 = vmul.f32 %v2663, %v2663
    %v2673 = vmul.f32 %v2672, -0.00019511016
    %v2674 = vadd.f32 %v2673, 0.008332121
    %v2675 = vmul.f32 %v2672, %v2674
    %v2676 = vadd.f32 %v2675, -0.16666654
    %v2677 = vmul.f32 %v2672, %v2676
    %v2678 = vadd.f32 %v2677, 1.0
    %v2679 = vmul.f32 %v2678, %v2663
    %vm2680 = vweird.f32 %v488
    %v2681 = vadd.s32 %v2664, 3
    %v2682 = vand.u32 %v2681, 3
    %vm2683 = vcmp.lt.s32.totalorder %v2682, 2
    %vm2684 = vcmp.eq.s32.totalorder %v2682, 0
    %v2685 = vxor.u32 %v2679, 2147483648
    %v2686 = vsel %vm2684, %v2671, %v2685
    %vm2687 = vcmp.eq.s32.totalorder %v2682, 2
    %v2688 = vxor.u32 %v2671, 2147483648
    %v2689 = vsel %vm2687, %v2688, %v2679
    %v2690 = vsel %vm2683, %v2686, %v2689
    %v2691 = vsel %vm2680, nan, %v2690
    %v2692 = vand.u32 2147483647, %v489
    %vm2693 = vcmp.le.f32.partialorder %v2692, 0.7853982
    %vm2694 = vcmp.lt.s32.totalorder %v489, 0
    %v2695 = vand.u32 %v489, 2139095040
    %v2696 = vshrl.u32 %v2695, 23
    %v2697 = vsub.s32 %v2696, 127
    %v2698 = vand.u32 2147483647, %v489
    %v2699 = vand.u32 %v2698, 8388607
    %v2700 = vor.u32 %v2699, 8388608
    %v2701 = vsub.s32 0, %v2700
    %v2702 = vadd.s32 %v2697, 1
    %vm2703 = vcmp.gt.s32.totalorder %v2702, 0
    %v2704 = vsel %vm2703, %v2702, 0
    %v2705 = vshrl.u32 %v2704, 5
    %v2706 = vand.u32 %v2704, 31
    %v2707 = vsub.s32 32, %v2706
    %v2708 = vshrl.u32 683565275, %v2707
    %v2709 = vshll.u32 683565275, %v2706
    %v2710 = vshrl.u32 2475754826, %v2707
    %v2711 = vor.u32 %v2709, %v2710
    %v2712 = vshll.u32 2475754826, %v2706
    %v2713 = vshrl.u32 2131351028, %v2707
    %v2714 = vor.u32 %v2712, %v2713
    %v2715 = vshll.u32 2131351028, %v2706
    %v2716 = vshrl.u32 2102212464, %v2707
    %v2717 = vor.u32 %v2715, %v2716
    %v2718 = vshll.u32 2102212464, %v2706
    %v2719 = vshrl.u32 920167782, %v2707
    %v2720 = vor.u32 %v2718, %v2719
    %v2721 = vshll.u32 920167782, %v2706
    %v2722 = vshrl.u32 1326507024, %v2707
    %v2723 = vor.u32 %v2721, %v2722
    %vm2724 = vcmp.lt.s32.totalorder %v2705, 1
    %vm2725 = vcmp.lt.s32.totalorder %v2705, 2
    %vm2726 = vcmp.lt.s32.totalorder %v2705, 3
    %vm2727 = vcmp.lt.s32.totalorder %v2705, 4
    %v2728 = vsel %vm2724, %v2708, %v2711
    %v2729 = vsel %vm2727, %v2717, 2102212464
    %v2730 = vsel %vm2726, %v2714, %v2729
    %v2731 = vsel %vm2725, %v2728, %v2730
    %v2732 = vsel %vm2724, %v2711, %v2714
    %v2733 = vsel %vm2727, %v2720, 920167782
    %v2734 = vsel %vm2726, %v2717, %v2733
    %v2735 = vsel %vm2725, %v2732, %v2734
    %v2736 = vsel %vm2724, %v2714, %v2717
    %v2737 = vsel %vm2727, %v2723, 1326507024
    %v2738 = vsel %vm2726, %v2720, %v2737
    %v2739 = vsel %vm2725, %v2736, %v2738
    %v2740 = vshll.u32 %v2700, 8
    %v2741 = vand.u32 %v2740, 65535
    %v2742 = vshrl.u32 %v2740, 16
    %v2743 = vand.u32 %v2739, 65535
    %v2744 = vshrl.u32 %v2739, 16
    %v2745 = vmul.u32 %v2741, %v2743
    %v2746 = vmul.u32 %v2741, %v2744
    %v2747 = vmul.u32 %v2742, %v2743
    %v2748 = vmul.u32 %v2742, %v2744
    %v2749 = vshll.u32 %v2746, 16
    %v2750 = vshrl.u32 %v2746, 16
    %v2751 = vshll.u32 %v2747, 16
    %v2752 = vshrl.u32 %v2747, 16
    %vm2753 = vc.u32 %v2745, %v2749
    %v2754 = vsel %vm2753, 1, 0
    %v2755 = vadd.s32 %v2745, %v2749
    %v2756 = vadd.s32 %v2748, %v2754
    %vm2757 = vc.u32 %v2755, %v2751
    %v2758 = vsel %vm2757, 1, 0
    %v2759 = vadd.s32 %v2755, %v2751
    %v2760 = vadd.s32 %v2756, %v2758
    %v2761 = vadd.s32 %v2760, %v2750
    %v2762 = vadd.s32 %v2761, %v2752
    %v2763 = vand.u32 %v2740, 65535
    %v2764 = vshrl.u32 %v2740, 16
    %v2765 = vand.u32 %v2735, 65535
    %v2766 = vshrl.u32 %v2735, 16
    %v2767 = vmul.u32 %v2763, %v2765
    %v2768 = vmul.u32 %v2763, %v2766
    %v2769 = vmul.u32 %v2764, %v2765
    %v2770 = vmul.u32 %v2764, %v2766
    %v2771 = vshll.u32 %v2768, 16
    %v2772 = vshrl.u32 %v2768, 16
    %v2773 = vshll.u32 %v2769, 16
    %v2774 = vshrl.u32 %v2769, 16
    %vm2775 = vc.u32 %v2767, %v2771
    %v2776 = vsel %vm2775, 1, 0
    %v2777 = vadd.s32 %v2767, %v2771
    %v2778 = vadd.s32 %v2770, %v2776
    %vm2779 = vc.u32 %v2777, %v2773
    %v2780 = vsel %vm2779, 1, 0
    %v2781 = vadd.s32 %v2777, %v2773
    %v2782 = vadd.s32 %v2778, %v2780
    %v2783 = vadd.s32 %v2782, %v2772
    %v2784 = vadd.s32 %v2783, %v2774
    %v2785 = vmul.u32 %v2740, %v2731
    %v2786 = vadd.s32 %v2762, %v2781
    %vm2787 = vc.u32 %v2762, %v2781
    %v2788 = vadd.s32 %v2784, 1
    %v2789 = vsel %vm2787, %v2788, %v2784
    %v2790 = vadd.s32 %v2785, %v2789
    %v2791 = vadd.s32 %v2790, 536870912
    %v2792 = vshrl.u32 %v2791, 30
    %v2793 = vshll.u32 %v2792, 30
    %v2794 = vsub.s32 %v2790, %v2793
    %vm2795 = vcmp.lt.s32.totalorder %v2794, 0
    %v2796 = vsub.s32 0, %v2794
    %v2797 = vsel %vm2795, %v2796, %v2794
    %v2798 = vclz %v2797
    %v2799 = vsub.s32 %v2798, 2
    %vm2800 = vcmp.gt.s32.totalorder 0, %v2799
    %v2801 = vsel %vm2800, 0, %v2799
    %v2802 = vsub.s32 32, %v2801
    %v2803 = vshll.u32 %v2794, %v2801
    %v2804 = vshrl.u32 %v2786, %v2802
    %v2805 = vor.u32 %v2803, %v2804
    %v2806 = vsub.s32 4294967266, %v2801
    %v2807 = vadd.s32 %v2806, 127
    %v2808 = vshll.u32 %v2807, 23
    %v2809 = vor.u32 4788187, %v2808
    %v2810 = vand.u32 2147483647, %v2809
    %v2812 = vcvt.s32.f32 %v2805
    %v2813 = vmul.f32 %v2812, %v2810
    %v2814 = vxor.u32 %v2813, 2147483648
    %v2815 = vsel %vm2694, %v2814, %v2813
    %v2816 = vsub.s32 4, %v2792
    %v2817 = vsel %vm2694, %v2816, %v2792
    %v2818 = vsel %vm2693, %v489, %v2815
    %v2819 = vsel %vm2693, 0, %v2817
    %v2820 = vmul.f32 %v2818, %v2818
    %v2821 = vmul.f32 %v2820, -0.001358992
    %v2822 = vadd.f32 %v2821, 0.041655596
    %v2823 = vmul.f32 %v2820, %v2822
    %v2824 = vadd.f32 %v2823, -0.4999988
    %v2825 = vmul.f32 %v2820, %v2824
    %v2826 = vadd.f32 1.0, %v2825
    %v2827 = vmul.f32 %v2818, %v2818
    %v2828 = vmul.f32 %v2827, -0.00019511016
    %v2829 = vadd.f32 %v2828, 0.008332121
    %v2830 = vmul.f32 %v2827, %v2829
    %v2831 = vadd.f32 %v2830, -0.16666654
    %v2832 = vmul.f32 %v2827, %v2831
    %v2833 = vadd.f32 %v2832, 1.0
    %v2834 = vmul.f32 %v2833, %v2818
    %vm2835 = vweird.f32 %v489
    %v2836 = vadd.s32 %v2819, 3
    %v2837 = vand.u32 %v2836, 3
    %vm2838 = vcmp.lt.s32.totalorder %v2837, 2
    %vm2839 = vcmp.eq.s32.totalorder %v2837, 0
    %v2840 = vxor.u32 %v2834, 2147483648
    %v2841 = vsel %vm2839, %v2826, %v2840
    %vm2842 = vcmp.eq.s32.totalorder %v2837, 2
    %v2843 = vxor.u32 %v2826, 2147483648
    %v2844 = vsel %vm2842, %v2843, %v2834
    %v2845 = vsel %vm2838, %v2841, %v2844
    %v2846 = vsel %vm2835, nan, %v2845
    %v2847 = vand.u32 2147483647, %v490
    %vm2848 = vcmp.le.f32.partialorder %v2847, 0.7853982
    %vm2849 = vcmp.lt.s32.totalorder %v490, 0
    %v2850 = vand.u32 %v490, 2139095040
    %v2851 = vshrl.u32 %v2850, 23
    %v2852 = vsub.s32 %v2851, 127
    %v2853 = vand.u32 2147483647, %v490
    %v2854 = vand.u32 %v2853, 8388607
    %v2855 = vor.u32 %v2854, 8388608
    %v2856 = vsub.s32 0, %v2855
    %v2857 = vadd.s32 %v2852, 1
    %vm2858 = vcmp.gt.s32.totalorder %v2857, 0
    %v2859 = vsel %vm2858, %v2857, 0
    %v2860 = vshrl.u32 %v2859, 5
    %v2861 = vand.u32 %v2859, 31
    %v2862 = vsub.s32 32, %v2861
    %v2863 = vshrl.u32 683565275, %v2862
    %v2864 = vshll.u32 683565275, %v2861
    %v2865 = vshrl.u32 2475754826, %v2862
    %v2866 = vor.u32 %v2864, %v2865
    %v2867 = vshll.u32 2475754826, %v2861
    %v2868 = vshrl.u32 2131351028, %v2862
    %v2869 = vor.u32 %v2867, %v2868
    %v2870 = vshll.u32 2131351028, %v2861
    %v2871 = vshrl.u32 2102212464, %v2862
    %v2872 = vor.u32 %v2870, %v2871
    %v2873 = vshll.u32 2102212464, %v2861
    %v2874 = vshrl.u32 920167782, %v2862
    %v2875 = vor.u32 %v2873, %v2874
    %v2876 = vshll.u32 920167782, %v2861
    %v2877 = vshrl.u32 1326507024, %v2862
    %v2878 = vor.u32 %v2876, %v2877
    %vm2879 = vcmp.lt.s32.totalorder %v2860, 1
    %vm2880 = vcmp.lt.s32.totalorder %v2860, 2
    %vm2881 = vcmp.lt.s32.totalorder %v2860, 3
    %vm2882 = vcmp.lt.s32.totalorder %v2860, 4
    %v2883 = vsel %vm2879, %v2863, %v2866
    %v2884 = vsel %vm2882, %v2872, 2102212464
    %v2885 = vsel %vm2881, %v2869, %v2884
    %v2886 = vsel %vm2880, %v2883, %v2885
    %v2887 = vsel %vm2879, %v2866, %v2869
    %v2888 = vsel %vm2882, %v2875, 920167782
    %v2889 = vsel %vm2881, %v2872, %v2888
    %v2890 = vsel %vm2880, %v2887, %v2889
    %v2891 = vsel %vm2879, %v2869, %v2872
    %v2892 = vsel %vm2882, %v2878, 1326507024
    %v2893 = vsel %vm2881, %v2875, %v2892
    %v2894 = vsel %vm2880, %v2891, %v2893
    %v2895 = vshll.u32 %v2855, 8
    %v2896 = vand.u32 %v2895, 65535
    %v2897 = vshrl.u32 %v2895, 16
    %v2898 = vand.u32 %v2894, 65535
    %v2899 = vshrl.u32 %v2894, 16
    %v2900 = vmul.u32 %v2896, %v2898
    %v2901 = vmul.u32 %v2896, %v2899
    %v2902 = vmul.u32 %v2897, %v2898
    %v2903 = vmul.u32 %v2897, %v2899
    %v2904 = vshll.u32 %v2901, 16
    %v2905 = vshrl.u32 %v2901, 16
    %v2906 = vshll.u32 %v2902, 16
    %v2907 = vshrl.u32 %v2902, 16
    %vm2908 = vc.u32 %v2900, %v2904
    %v2909 = vsel %vm2908, 1, 0
    %v2910 = vadd.s32 %v2900, %v2904
    %v2911 = vadd.s32 %v2903, %v2909
    %vm2912 = vc.u32 %v2910, %v2906
    %v2913 = vsel %vm2912, 1, 0
    %v2914 = vadd.s32 %v2910, %v2906
    %v2915 = vadd.s32 %v2911, %v2913
    %v2916 = vadd.s32 %v2915, %v2905
    %v2917 = vadd.s32 %v2916, %v2907
    %v2918 = vand.u32 %v2895, 65535
    %v2919 = vshrl.u32 %v2895, 16
    %v2920 = vand.u32 %v2890, 65535
    %v2921 = vshrl.u32 %v2890, 16
    %v2922 = vmul.u32 %v2918, %v2920
    %v2923 = vmul.u32 %v2918, %v2921
    %v2924 = vmul.u32 %v2919, %v2920
    %v2925 = vmul.u32 %v2919, %v2921
    %v2926 = vshll.u32 %v2923, 16
    %v2927 = vshrl.u32 %v2923, 16
    %v2928 = vshll.u32 %v2924, 16
    %v2929 = vshrl.u32 %v2924, 16
    %vm2930 = vc.u32 %v2922, %v2926
    %v2931 = vsel %vm2930, 1, 0
    %v2932 = vadd.s32 %v2922, %v2926
    %v2933 = vadd.s32 %v2925, %v2931
    %vm2934 = vc.u32 %v2932, %v2928
    %v2935 = vsel %vm2934, 1, 0
    %v2936 = vadd.s32 %v2932, %v2928
    %v2937 = vadd.s32 %v2933, %v2935
    %v2938 = vadd.s32 %v2937, %v2927
    %v2939 = vadd.s32 %v2938, %v2929
    %v2940 = vmul.u32 %v2895, %v2886
    %v2941 = vadd.s32 %v2917, %v2936
    %vm2942 = vc.u32 %v2917, %v2936
    %v2943 = vadd.s32 %v2939, 1
    %v2944 = vsel %vm2942, %v2943, %v2939
    %v2945 = vadd.s32 %v2940, %v2944
    %v2946 = vadd.s32 %v2945, 536870912
    %v2947 = vshrl.u32 %v2946, 30
    %v2948 = vshll.u32 %v2947, 30
    %v2949 = vsub.s32 %v2945, %v2948
    %vm2950 = vcmp.lt.s32.totalorder %v2949, 0
    %v2951 = vsub.s32 0, %v2949
    %v2952 = vsel %vm2950, %v2951, %v2949
    %v2953 = vclz %v2952
    %v2954 = vsub.s32 %v2953, 2
    %vm2955 = vcmp.gt.s32.totalorder 0, %v2954
    %v2956 = vsel %vm2955, 0, %v2954
    %v2957 = vsub.s32 32, %v2956
    %v2958 = vshll.u32 %v2949, %v2956
    %v2959 = vshrl.u32 %v2941, %v2957
    %v2960 = vor.u32 %v2958, %v2959
    %v2961 = vsub.s32 4294967266, %v2956
    %v2962 = vadd.s32 %v2961, 127
    %v2963 = vshll.u32 %v2962, 23
    %v2964 = vor.u32 4788187, %v2963
    %v2965 = vand.u32 2147483647, %v2964
    %v2967 = vcvt.s32.f32 %v2960
    %v2968 = vmul.f32 %v2967, %v2965
    %v2969 = vxor.u32 %v2968, 2147483648
    %v2970 = vsel %vm2849, %v2969, %v2968
    %v2971 = vsub.s32 4, %v2947
    %v2972 = vsel %vm2849, %v2971, %v2947
    %v2973 = vsel %vm2848, %v490, %v2970
    %v2974 = vsel %vm2848, 0, %v2972
    %v2975 = vmul.f32 %v2973, %v2973
    %v2976 = vmul.f32 %v2975, -0.001358992
    %v2977 = vadd.f32 %v2976, 0.041655596
    %v2978 = vmul.f32 %v2975, %v2977
    %v2979 = vadd.f32 %v2978, -0.4999988
    %v2980 = vmul.f32 %v2975, %v2979
    %v2981 = vadd.f32 1.0, %v2980
    %v2982 = vmul.f32 %v2973, %v2973
    %v2983 = vmul.f32 %v2982, -0.00019511016
    %v2984 = vadd.f32 %v2983, 0.008332121
    %v2985 = vmul.f32 %v2982, %v2984
    %v2986 = vadd.f32 %v2985, -0.16666654
    %v2987 = vmul.f32 %v2982, %v2986
    %v2988 = vadd.f32 %v2987, 1.0
    %v2989 = vmul.f32 %v2988, %v2973
    %vm2990 = vweird.f32 %v490
    %v2991 = vadd.s32 %v2974, 3
    %v2992 = vand.u32 %v2991, 3
    %vm2993 = vcmp.lt.s32.totalorder %v2992, 2
    %vm2994 = vcmp.eq.s32.totalorder %v2992, 0
    %v2995 = vxor.u32 %v2989, 2147483648
    %v2996 = vsel %vm2994, %v2981, %v2995
    %vm2997 = vcmp.eq.s32.totalorder %v2992, 2
    %v2998 = vxor.u32 %v2981, 2147483648
    %v2999 = vsel %vm2997, %v2998, %v2989
    %v3000 = vsel %vm2993, %v2996, %v2999
    %v3001 = vsel %vm2990, nan, %v3000
    %v3002 = vand.u32 2147483647, %v491
    %vm3003 = vcmp.le.f32.partialorder %v3002, 0.7853982
    %vm3004 = vcmp.lt.s32.totalorder %v491, 0
    %v3005 = vand.u32 %v491, 2139095040
    %v3006 = vshrl.u32 %v3005, 23
    %v3007 = vsub.s32 %v3006, 127
    %v3008 = vand.u32 2147483647, %v491
    %v3009 = vand.u32 %v3008, 8388607
    %v3010 = vor.u32 %v3009, 8388608
    %v3011 = vsub.s32 0, %v3010
    %v3012 = vadd.s32 %v3007, 1
    %vm3013 = vcmp.gt.s32.totalorder %v3012, 0
    %v3014 = vsel %vm3013, %v3012, 0
    %v3015 = vshrl.u32 %v3014, 5
    %v3016 = vand.u32 %v3014, 31
    %v3017 = vsub.s32 32, %v3016
    %v3018 = vshrl.u32 683565275, %v3017
    %v3019 = vshll.u32 683565275, %v3016
    %v3020 = vshrl.u32 2475754826, %v3017
    %v3021 = vor.u32 %v3019, %v3020
    %v3022 = vshll.u32 2475754826, %v3016
    %v3023 = vshrl.u32 2131351028, %v3017
    %v3024 = vor.u32 %v3022, %v3023
    %v3025 = vshll.u32 2131351028, %v3016
    %v3026 = vshrl.u32 2102212464, %v3017
    %v3027 = vor.u32 %v3025, %v3026
    %v3028 = vshll.u32 2102212464, %v3016
    %v3029 = vshrl.u32 920167782, %v3017
    %v3030 = vor.u32 %v3028, %v3029
    %v3031 = vshll.u32 920167782, %v3016
    %v3032 = vshrl.u32 1326507024, %v3017
    %v3033 = vor.u32 %v3031, %v3032
    %vm3034 = vcmp.lt.s32.totalorder %v3015, 1
    %vm3035 = vcmp.lt.s32.totalorder %v3015, 2
    %vm3036 = vcmp.lt.s32.totalorder %v3015, 3
    %vm3037 = vcmp.lt.s32.totalorder %v3015, 4
    %v3038 = vsel %vm3034, %v3018, %v3021
    %v3039 = vsel %vm3037, %v3027, 2102212464
    %v3040 = vsel %vm3036, %v3024, %v3039
    %v3041 = vsel %vm3035, %v3038, %v3040
    %v3042 = vsel %vm3034, %v3021, %v3024
    %v3043 = vsel %vm3037, %v3030, 920167782
    %v3044 = vsel %vm3036, %v3027, %v3043
    %v3045 = vsel %vm3035, %v3042, %v3044
    %v3046 = vsel %vm3034, %v3024, %v3027
    %v3047 = vsel %vm3037, %v3033, 1326507024
    %v3048 = vsel %vm3036, %v3030, %v3047
    %v3049 = vsel %vm3035, %v3046, %v3048
    %v3050 = vshll.u32 %v3010, 8
    %v3051 = vand.u32 %v3050, 65535
    %v3052 = vshrl.u32 %v3050, 16
    %v3053 = vand.u32 %v3049, 65535
    %v3054 = vshrl.u32 %v3049, 16
    %v3055 = vmul.u32 %v3051, %v3053
    %v3056 = vmul.u32 %v3051, %v3054
    %v3057 = vmul.u32 %v3052, %v3053
    %v3058 = vmul.u32 %v3052, %v3054
    %v3059 = vshll.u32 %v3056, 16
    %v3060 = vshrl.u32 %v3056, 16
    %v3061 = vshll.u32 %v3057, 16
    %v3062 = vshrl.u32 %v3057, 16
    %vm3063 = vc.u32 %v3055, %v3059
    %v3064 = vsel %vm3063, 1, 0
    %v3065 = vadd.s32 %v3055, %v3059
    %v3066 = vadd.s32 %v3058, %v3064
    %vm3067 = vc.u32 %v3065, %v3061
    %v3068 = vsel %vm3067, 1, 0
    %v3069 = vadd.s32 %v3065, %v3061
    %v3070 = vadd.s32 %v3066, %v3068
    %v3071 = vadd.s32 %v3070, %v3060
    %v3072 = vadd.s32 %v3071, %v3062
    %v3073 = vand.u32 %v3050, 65535
    %v3074 = vshrl.u32 %v3050, 16
    %v3075 = vand.u32 %v3045, 65535
    %v3076 = vshrl.u32 %v3045, 16
    %v3077 = vmul.u32 %v3073, %v3075
    %v3078 = vmul.u32 %v3073, %v3076
    %v3079 = vmul.u32 %v3074, %v3075
    %v3080 = vmul.u32 %v3074, %v3076
    %v3081 = vshll.u32 %v3078, 16
    %v3082 = vshrl.u32 %v3078, 16
    %v3083 = vshll.u32 %v3079, 16
    %v3084 = vshrl.u32 %v3079, 16
    %vm3085 = vc.u32 %v3077, %v3081
    %v3086 = vsel %vm3085, 1, 0
    %v3087 = vadd.s32 %v3077, %v3081
    %v3088 = vadd.s32 %v3080, %v3086
    %vm3089 = vc.u32 %v3087, %v3083
    %v3090 = vsel %vm3089, 1, 0
    %v3091 = vadd.s32 %v3087, %v3083
    %v3092 = vadd.s32 %v3088, %v3090
    %v3093 = vadd.s32 %v3092, %v3082
    %v3094 = vadd.s32 %v3093, %v3084
    %v3095 = vmul.u32 %v3050, %v3041
    %v3096 = vadd.s32 %v3072, %v3091
    %vm3097 = vc.u32 %v3072, %v3091
    %v3098 = vadd.s32 %v3094, 1
    %v3099 = vsel %vm3097, %v3098, %v3094
    %v3100 = vadd.s32 %v3095, %v3099
    %v3101 = vadd.s32 %v3100, 536870912
    %v3102 = vshrl.u32 %v3101, 30
    %v3103 = vshll.u32 %v3102, 30
    %v3104 = vsub.s32 %v3100, %v3103
    %vm3105 = vcmp.lt.s32.totalorder %v3104, 0
    %v3106 = vsub.s32 0, %v3104
    %v3107 = vsel %vm3105, %v3106, %v3104
    %v3108 = vclz %v3107
    %v3109 = vsub.s32 %v3108, 2
    %vm3110 = vcmp.gt.s32.totalorder 0, %v3109
    %v3111 = vsel %vm3110, 0, %v3109
    %v3112 = vsub.s32 32, %v3111
    %v3113 = vshll.u32 %v3104, %v3111
    %v3114 = vshrl.u32 %v3096, %v3112
    %v3115 = vor.u32 %v3113, %v3114
    %v3116 = vsub.s32 4294967266, %v3111
    %v3117 = vadd.s32 %v3116, 127
    %v3118 = vshll.u32 %v3117, 23
    %v3119 = vor.u32 4788187, %v3118
    %v3120 = vand.u32 2147483647, %v3119
    %v3122 = vcvt.s32.f32 %v3115
    %v3123 = vmul.f32 %v3122, %v3120
    %v3124 = vxor.u32 %v3123, 2147483648
    %v3125 = vsel %vm3004, %v3124, %v3123
    %v3126 = vsub.s32 4, %v3102
    %v3127 = vsel %vm3004, %v3126, %v3102
    %v3128 = vsel %vm3003, %v491, %v3125
    %v3129 = vsel %vm3003, 0, %v3127
    %v3130 = vmul.f32 %v3128, %v3128
    %v3131 = vmul.f32 %v3130, -0.001358992
    %v3132 = vadd.f32 %v3131, 0.041655596
    %v3133 = vmul.f32 %v3130, %v3132
    %v3134 = vadd.f32 %v3133, -0.4999988
    %v3135 = vmul.f32 %v3130, %v3134
    %v3136 = vadd.f32 1.0, %v3135
    %v3137 = vmul.f32 %v3128, %v3128
    %v3138 = vmul.f32 %v3137, -0.00019511016
    %v3139 = vadd.f32 %v3138, 0.008332121
    %v3140 = vmul.f32 %v3137, %v3139
    %v3141 = vadd.f32 %v3140, -0.16666654
    %v3142 = vmul.f32 %v3137, %v3141
    %v3143 = vadd.f32 %v3142, 1.0
    %v3144 = vmul.f32 %v3143, %v3128
    %vm3145 = vweird.f32 %v491
    %v3146 = vadd.s32 %v3129, 3
    %v3147 = vand.u32 %v3146, 3
    %vm3148 = vcmp.lt.s32.totalorder %v3147, 2
    %vm3149 = vcmp.eq.s32.totalorder %v3147, 0
    %v3150 = vxor.u32 %v3144, 2147483648
    %v3151 = vsel %vm3149, %v3136, %v3150
    %vm3152 = vcmp.eq.s32.totalorder %v3147, 2
    %v3153 = vxor.u32 %v3136, 2147483648
    %v3154 = vsel %vm3152, %v3153, %v3144
    %v3155 = vsel %vm3148, %v3151, %v3154
    %v3156 = vsel %vm3145, nan, %v3155
    %v3157 = vand.u32 2147483647, %v492
    %vm3158 = vcmp.le.f32.partialorder %v3157, 0.7853982
    %vm3159 = vcmp.lt.s32.totalorder %v492, 0
    %v3160 = vand.u32 %v492, 2139095040
    %v3161 = vshrl.u32 %v3160, 23
    %v3162 = vsub.s32 %v3161, 127
    %v3163 = vand.u32 2147483647, %v492
    %v3164 = vand.u32 %v3163, 8388607
    %v3165 = vor.u32 %v3164, 8388608
    %v3166 = vsub.s32 0, %v3165
    %v3167 = vadd.s32 %v3162, 1
    %vm3168 = vcmp.gt.s32.totalorder %v3167, 0
    %v3169 = vsel %vm3168, %v3167, 0
    %v3170 = vshrl.u32 %v3169, 5
    %v3171 = vand.u32 %v3169, 31
    %v3172 = vsub.s32 32, %v3171
    %v3173 = vshrl.u32 683565275, %v3172
    %v3174 = vshll.u32 683565275, %v3171
    %v3175 = vshrl.u32 2475754826, %v3172
    %v3176 = vor.u32 %v3174, %v3175
    %v3177 = vshll.u32 2475754826, %v3171
    %v3178 = vshrl.u32 2131351028, %v3172
    %v3179 = vor.u32 %v3177, %v3178
    %v3180 = vshll.u32 2131351028, %v3171
    %v3181 = vshrl.u32 2102212464, %v3172
    %v3182 = vor.u32 %v3180, %v3181
    %v3183 = vshll.u32 2102212464, %v3171
    %v3184 = vshrl.u32 920167782, %v3172
    %v3185 = vor.u32 %v3183, %v3184
    %v3186 = vshll.u32 920167782, %v3171
    %v3187 = vshrl.u32 1326507024, %v3172
    %v3188 = vor.u32 %v3186, %v3187
    %vm3189 = vcmp.lt.s32.totalorder %v3170, 1
    %vm3190 = vcmp.lt.s32.totalorder %v3170, 2
    %vm3191 = vcmp.lt.s32.totalorder %v3170, 3
    %vm3192 = vcmp.lt.s32.totalorder %v3170, 4
    %v3193 = vsel %vm3189, %v3173, %v3176
    %v3194 = vsel %vm3192, %v3182, 2102212464
    %v3195 = vsel %vm3191, %v3179, %v3194
    %v3196 = vsel %vm3190, %v3193, %v3195
    %v3197 = vsel %vm3189, %v3176, %v3179
    %v3198 = vsel %vm3192, %v3185, 920167782
    %v3199 = vsel %vm3191, %v3182, %v3198
    %v3200 = vsel %vm3190, %v3197, %v3199
    %v3201 = vsel %vm3189, %v3179, %v3182
    %v3202 = vsel %vm3192, %v3188, 1326507024
    %v3203 = vsel %vm3191, %v3185, %v3202
    %v3204 = vsel %vm3190, %v3201, %v3203
    %v3205 = vshll.u32 %v3165, 8
    %v3206 = vand.u32 %v3205, 65535
    %v3207 = vshrl.u32 %v3205, 16
    %v3208 = vand.u32 %v3204, 65535
    %v3209 = vshrl.u32 %v3204, 16
    %v3210 = vmul.u32 %v3206, %v3208
    %v3211 = vmul.u32 %v3206, %v3209
    %v3212 = vmul.u32 %v3207, %v3208
    %v3213 = vmul.u32 %v3207, %v3209
    %v3214 = vshll.u32 %v3211, 16
    %v3215 = vshrl.u32 %v3211, 16
    %v3216 = vshll.u32 %v3212, 16
    %v3217 = vshrl.u32 %v3212, 16
    %vm3218 = vc.u32 %v3210, %v3214
    %v3219 = vsel %vm3218, 1, 0
    %v3220 = vadd.s32 %v3210, %v3214
    %v3221 = vadd.s32 %v3213, %v3219
    %vm3222 = vc.u32 %v3220, %v3216
    %v3223 = vsel %vm3222, 1, 0
    %v3224 = vadd.s32 %v3220, %v3216
    %v3225 = vadd.s32 %v3221, %v3223
    %v3226 = vadd.s32 %v3225, %v3215
    %v3227 = vadd.s32 %v3226, %v3217
    %v3228 = vand.u32 %v3205, 65535
    %v3229 = vshrl.u32 %v3205, 16
    %v3230 = vand.u32 %v3200, 65535
    %v3231 = vshrl.u32 %v3200, 16
    %v3232 = vmul.u32 %v3228, %v3230
    %v3233 = vmul.u32 %v3228, %v3231
    %v3234 = vmul.u32 %v3229, %v3230
    %v3235 = vmul.u32 %v3229, %v3231
    %v3236 = vshll.u32 %v3233, 16
    %v3237 = vshrl.u32 %v3233, 16
    %v3238 = vshll.u32 %v3234, 16
    %v3239 = vshrl.u32 %v3234, 16
    %vm3240 = vc.u32 %v3232, %v3236
    %v3241 = vsel %vm3240, 1, 0
    %v3242 = vadd.s32 %v3232, %v3236
    %v3243 = vadd.s32 %v3235, %v3241
    %vm3244 = vc.u32 %v3242, %v3238
    %v3245 = vsel %vm3244, 1, 0
    %v3246 = vadd.s32 %v3242, %v3238
    %v3247 = vadd.s32 %v3243, %v3245
    %v3248 = vadd.s32 %v3247, %v3237
    %v3249 = vadd.s32 %v3248, %v3239
    %v3250 = vmul.u32 %v3205, %v3196
    %v3251 = vadd.s32 %v3227, %v3246
    %vm3252 = vc.u32 %v3227, %v3246
    %v3253 = vadd.s32 %v3249, 1
    %v3254 = vsel %vm3252, %v3253, %v3249
    %v3255 = vadd.s32 %v3250, %v3254
    %v3256 = vadd.s32 %v3255, 536870912
    %v3257 = vshrl.u32 %v3256, 30
    %v3258 = vshll.u32 %v3257, 30
    %v3259 = vsub.s32 %v3255, %v3258
    %vm3260 = vcmp.lt.s32.totalorder %v3259, 0
    %v3261 = vsub.s32 0, %v3259
    %v3262 = vsel %vm3260, %v3261, %v3259
    %v3263 = vclz %v3262
    %v3264 = vsub.s32 %v3263, 2
    %vm3265 = vcmp.gt.s32.totalorder 0, %v3264
    %v3266 = vsel %vm3265, 0, %v3264
    %v3267 = vsub.s32 32, %v3266
    %v3268 = vshll.u32 %v3259, %v3266
    %v3269 = vshrl.u32 %v3251, %v3267
    %v3270 = vor.u32 %v3268, %v3269
    %v3271 = vsub.s32 4294967266, %v3266
    %v3272 = vadd.s32 %v3271, 127
    %v3273 = vshll.u32 %v3272, 23
    %v3274 = vor.u32 4788187, %v3273
    %v3275 = vand.u32 2147483647, %v3274
    %v3277 = vcvt.s32.f32 %v3270
    %v3278 = vmul.f32 %v3277, %v3275
    %v3279 = vxor.u32 %v3278, 2147483648
    %v3280 = vsel %vm3159, %v3279, %v3278
    %v3281 = vsub.s32 4, %v3257
    %v3282 = vsel %vm3159, %v3281, %v3257
    %v3283 = vsel %vm3158, %v492, %v3280
    %v3284 = vsel %vm3158, 0, %v3282
    %v3285 = vmul.f32 %v3283, %v3283
    %v3286 = vmul.f32 %v3285, -0.001358992
    %v3287 = vadd.f32 %v3286, 0.041655596
    %v3288 = vmul.f32 %v3285, %v3287
    %v3289 = vadd.f32 %v3288, -0.4999988
    %v3290 = vmul.f32 %v3285, %v3289
    %v3291 = vadd.f32 1.0, %v3290
    %v3292 = vmul.f32 %v3283, %v3283
    %v3293 = vmul.f32 %v3292, -0.00019511016
    %v3294 = vadd.f32 %v3293, 0.008332121
    %v3295 = vmul.f32 %v3292, %v3294
    %v3296 = vadd.f32 %v3295, -0.16666654
    %v3297 = vmul.f32 %v3292, %v3296
    %v3298 = vadd.f32 %v3297, 1.0
    %v3299 = vmul.f32 %v3298, %v3283
    %vm3300 = vweird.f32 %v492
    %v3301 = vadd.s32 %v3284, 3
    %v3302 = vand.u32 %v3301, 3
    %vm3303 = vcmp.lt.s32.totalorder %v3302, 2
    %vm3304 = vcmp.eq.s32.totalorder %v3302, 0
    %v3305 = vxor.u32 %v3299, 2147483648
    %v3306 = vsel %vm3304, %v3291, %v3305
    %vm3307 = vcmp.eq.s32.totalorder %v3302, 2
    %v3308 = vxor.u32 %v3291, 2147483648
    %v3309 = vsel %vm3307, %v3308, %v3299
    %v3310 = vsel %vm3303, %v3306, %v3309
    %v3311 = vsel %vm3300, nan, %v3310
    %v3312 = vand.u32 2147483647, %v493
    %vm3313 = vcmp.le.f32.partialorder %v3312, 0.7853982
    %vm3314 = vcmp.lt.s32.totalorder %v493, 0
    %v3315 = vand.u32 %v493, 2139095040
    %v3316 = vshrl.u32 %v3315, 23
    %v3317 = vsub.s32 %v3316, 127
    %v3318 = vand.u32 2147483647, %v493
    %v3319 = vand.u32 %v3318, 8388607
    %v3320 = vor.u32 %v3319, 8388608
    %v3321 = vsub.s32 0, %v3320
    %v3322 = vadd.s32 %v3317, 1
    %vm3323 = vcmp.gt.s32.totalorder %v3322, 0
    %v3324 = vsel %vm3323, %v3322, 0
    %v3325 = vshrl.u32 %v3324, 5
    %v3326 = vand.u32 %v3324, 31
    %v3327 = vsub.s32 32, %v3326
    %v3328 = vshrl.u32 683565275, %v3327
    %v3329 = vshll.u32 683565275, %v3326
    %v3330 = vshrl.u32 2475754826, %v3327
    %v3331 = vor.u32 %v3329, %v3330
    %v3332 = vshll.u32 2475754826, %v3326
    %v3333 = vshrl.u32 2131351028, %v3327
    %v3334 = vor.u32 %v3332, %v3333
    %v3335 = vshll.u32 2131351028, %v3326
    %v3336 = vshrl.u32 2102212464, %v3327
    %v3337 = vor.u32 %v3335, %v3336
    %v3338 = vshll.u32 2102212464, %v3326
    %v3339 = vshrl.u32 920167782, %v3327
    %v3340 = vor.u32 %v3338, %v3339
    %v3341 = vshll.u32 920167782, %v3326
    %v3342 = vshrl.u32 1326507024, %v3327
    %v3343 = vor.u32 %v3341, %v3342
    %vm3344 = vcmp.lt.s32.totalorder %v3325, 1
    %vm3345 = vcmp.lt.s32.totalorder %v3325, 2
    %vm3346 = vcmp.lt.s32.totalorder %v3325, 3
    %vm3347 = vcmp.lt.s32.totalorder %v3325, 4
    %v3348 = vsel %vm3344, %v3328, %v3331
    %v3349 = vsel %vm3347, %v3337, 2102212464
    %v3350 = vsel %vm3346, %v3334, %v3349
    %v3351 = vsel %vm3345, %v3348, %v3350
    %v3352 = vsel %vm3344, %v3331, %v3334
    %v3353 = vsel %vm3347, %v3340, 920167782
    %v3354 = vsel %vm3346, %v3337, %v3353
    %v3355 = vsel %vm3345, %v3352, %v3354
    %v3356 = vsel %vm3344, %v3334, %v3337
    %v3357 = vsel %vm3347, %v3343, 1326507024
    %v3358 = vsel %vm3346, %v3340, %v3357
    %v3359 = vsel %vm3345, %v3356, %v3358
    %v3360 = vshll.u32 %v3320, 8
    %v3361 = vand.u32 %v3360, 65535
    %v3362 = vshrl.u32 %v3360, 16
    %v3363 = vand.u32 %v3359, 65535
    %v3364 = vshrl.u32 %v3359, 16
    %v3365 = vmul.u32 %v3361, %v3363
    %v3366 = vmul.u32 %v3361, %v3364
    %v3367 = vmul.u32 %v3362, %v3363
    %v3368 = vmul.u32 %v3362, %v3364
    %v3369 = vshll.u32 %v3366, 16
    %v3370 = vshrl.u32 %v3366, 16
    %v3371 = vshll.u32 %v3367, 16
    %v3372 = vshrl.u32 %v3367, 16
    %vm3373 = vc.u32 %v3365, %v3369
    %v3374 = vsel %vm3373, 1, 0
    %v3375 = vadd.s32 %v3365, %v3369
    %v3376 = vadd.s32 %v3368, %v3374
    %vm3377 = vc.u32 %v3375, %v3371
    %v3378 = vsel %vm3377, 1, 0
    %v3379 = vadd.s32 %v3375, %v3371
    %v3380 = vadd.s32 %v3376, %v3378
    %v3381 = vadd.s32 %v3380, %v3370
    %v3382 = vadd.s32 %v3381, %v3372
    %v3383 = vand.u32 %v3360, 65535
    %v3384 = vshrl.u32 %v3360, 16
    %v3385 = vand.u32 %v3355, 65535
    %v3386 = vshrl.u32 %v3355, 16
    %v3387 = vmul.u32 %v3383, %v3385
    %v3388 = vmul.u32 %v3383, %v3386
    %v3389 = vmul.u32 %v3384, %v3385
    %v3390 = vmul.u32 %v3384, %v3386
    %v3391 = vshll.u32 %v3388, 16
    %v3392 = vshrl.u32 %v3388, 16
    %v3393 = vshll.u32 %v3389, 16
    %v3394 = vshrl.u32 %v3389, 16
    %vm3395 = vc.u32 %v3387, %v3391
    %v3396 = vsel %vm3395, 1, 0
    %v3397 = vadd.s32 %v3387, %v3391
    %v3398 = vadd.s32 %v3390, %v3396
    %vm3399 = vc.u32 %v3397, %v3393
    %v3400 = vsel %vm3399, 1, 0
    %v3401 = vadd.s32 %v3397, %v3393
    %v3402 = vadd.s32 %v3398, %v3400
    %v3403 = vadd.s32 %v3402, %v3392
    %v3404 = vadd.s32 %v3403, %v3394
    %v3405 = vmul.u32 %v3360, %v3351
    %v3406 = vadd.s32 %v3382, %v3401
    %vm3407 = vc.u32 %v3382, %v3401
    %v3408 = vadd.s32 %v3404, 1
    %v3409 = vsel %vm3407, %v3408, %v3404
    %v3410 = vadd.s32 %v3405, %v3409
    %v3411 = vadd.s32 %v3410, 536870912
    %v3412 = vshrl.u32 %v3411, 30
    %v3413 = vshll.u32 %v3412, 30
    %v3414 = vsub.s32 %v3410, %v3413
    %vm3415 = vcmp.lt.s32.totalorder %v3414, 0
    %v3416 = vsub.s32 0, %v3414
    %v3417 = vsel %vm3415, %v3416, %v3414
    %v3418 = vclz %v3417
    %v3419 = vsub.s32 %v3418, 2
    %vm3420 = vcmp.gt.s32.totalorder 0, %v3419
    %v3421 = vsel %vm3420, 0, %v3419
    %v3422 = vsub.s32 32, %v3421
    %v3423 = vshll.u32 %v3414, %v3421
    %v3424 = vshrl.u32 %v3406, %v3422
    %v3425 = vor.u32 %v3423, %v3424
    %v3426 = vsub.s32 4294967266, %v3421
    %v3427 = vadd.s32 %v3426, 127
    %v3428 = vshll.u32 %v3427, 23
    %v3429 = vor.u32 4788187, %v3428
    %v3430 = vand.u32 2147483647, %v3429
    %v3432 = vcvt.s32.f32 %v3425
    %v3433 = vmul.f32 %v3432, %v3430
    %v3434 = vxor.u32 %v3433, 2147483648
    %v3435 = vsel %vm3314, %v3434, %v3433
    %v3436 = vsub.s32 4, %v3412
    %v3437 = vsel %vm3314, %v3436, %v3412
    %v3438 = vsel %vm3313, %v493, %v3435
    %v3439 = vsel %vm3313, 0, %v3437
    %v3440 = vmul.f32 %v3438, %v3438
    %v3441 = vmul.f32 %v3440, -0.001358992
    %v3442 = vadd.f32 %v3441, 0.041655596
    %v3443 = vmul.f32 %v3440, %v3442
    %v3444 = vadd.f32 %v3443, -0.4999988
    %v3445 = vmul.f32 %v3440, %v3444
    %v3446 = vadd.f32 1.0, %v3445
    %v3447 = vmul.f32 %v3438, %v3438
    %v3448 = vmul.f32 %v3447, -0.00019511016
    %v3449 = vadd.f32 %v3448, 0.008332121
    %v3450 = vmul.f32 %v3447, %v3449
    %v3451 = vadd.f32 %v3450, -0.16666654
    %v3452 = vmul.f32 %v3447, %v3451
    %v3453 = vadd.f32 %v3452, 1.0
    %v3454 = vmul.f32 %v3453, %v3438
    %vm3455 = vweird.f32 %v493
    %v3456 = vadd.s32 %v3439, 3
    %v3457 = vand.u32 %v3456, 3
    %vm3458 = vcmp.lt.s32.totalorder %v3457, 2
    %vm3459 = vcmp.eq.s32.totalorder %v3457, 0
    %v3460 = vxor.u32 %v3454, 2147483648
    %v3461 = vsel %vm3459, %v3446, %v3460
    %vm3462 = vcmp.eq.s32.totalorder %v3457, 2
    %v3463 = vxor.u32 %v3446, 2147483648
    %v3464 = vsel %vm3462, %v3463, %v3454
    %v3465 = vsel %vm3458, %v3461, %v3464
    %v3466 = vsel %vm3455, nan, %v3465
    %v3467 = vand.u32 2147483647, %v494
    %vm3468 = vcmp.le.f32.partialorder %v3467, 0.7853982
    %vm3469 = vcmp.lt.s32.totalorder %v494, 0
    %v3470 = vand.u32 %v494, 2139095040
    %v3471 = vshrl.u32 %v3470, 23
    %v3472 = vsub.s32 %v3471, 127
    %v3473 = vand.u32 2147483647, %v494
    %v3474 = vand.u32 %v3473, 8388607
    %v3475 = vor.u32 %v3474, 8388608
    %v3476 = vsub.s32 0, %v3475
    %v3477 = vadd.s32 %v3472, 1
    %vm3478 = vcmp.gt.s32.totalorder %v3477, 0
    %v3479 = vsel %vm3478, %v3477, 0
    %v3480 = vshrl.u32 %v3479, 5
    %v3481 = vand.u32 %v3479, 31
    %v3482 = vsub.s32 32, %v3481
    %v3483 = vshrl.u32 683565275, %v3482
    %v3484 = vshll.u32 683565275, %v3481
    %v3485 = vshrl.u32 2475754826, %v3482
    %v3486 = vor.u32 %v3484, %v3485
    %v3487 = vshll.u32 2475754826, %v3481
    %v3488 = vshrl.u32 2131351028, %v3482
    %v3489 = vor.u32 %v3487, %v3488
    %v3490 = vshll.u32 2131351028, %v3481
    %v3491 = vshrl.u32 2102212464, %v3482
    %v3492 = vor.u32 %v3490, %v3491
    %v3493 = vshll.u32 2102212464, %v3481
    %v3494 = vshrl.u32 920167782, %v3482
    %v3495 = vor.u32 %v3493, %v3494
    %v3496 = vshll.u32 920167782, %v3481
    %v3497 = vshrl.u32 1326507024, %v3482
    %v3498 = vor.u32 %v3496, %v3497
    %vm3499 = vcmp.lt.s32.totalorder %v3480, 1
    %vm3500 = vcmp.lt.s32.totalorder %v3480, 2
    %vm3501 = vcmp.lt.s32.totalorder %v3480, 3
    %vm3502 = vcmp.lt.s32.totalorder %v3480, 4
    %v3503 = vsel %vm3499, %v3483, %v3486
    %v3504 = vsel %vm3502, %v3492, 2102212464
    %v3505 = vsel %vm3501, %v3489, %v3504
    %v3506 = vsel %vm3500, %v3503, %v3505
    %v3507 = vsel %vm3499, %v3486, %v3489
    %v3508 = vsel %vm3502, %v3495, 920167782
    %v3509 = vsel %vm3501, %v3492, %v3508
    %v3510 = vsel %vm3500, %v3507, %v3509
    %v3511 = vsel %vm3499, %v3489, %v3492
    %v3512 = vsel %vm3502, %v3498, 1326507024
    %v3513 = vsel %vm3501, %v3495, %v3512
    %v3514 = vsel %vm3500, %v3511, %v3513
    %v3515 = vshll.u32 %v3475, 8
    %v3516 = vand.u32 %v3515, 65535
    %v3517 = vshrl.u32 %v3515, 16
    %v3518 = vand.u32 %v3514, 65535
    %v3519 = vshrl.u32 %v3514, 16
    %v3520 = vmul.u32 %v3516, %v3518
    %v3521 = vmul.u32 %v3516, %v3519
    %v3522 = vmul.u32 %v3517, %v3518
    %v3523 = vmul.u32 %v3517, %v3519
    %v3524 = vshll.u32 %v3521, 16
    %v3525 = vshrl.u32 %v3521, 16
    %v3526 = vshll.u32 %v3522, 16
    %v3527 = vshrl.u32 %v3522, 16
    %vm3528 = vc.u32 %v3520, %v3524
    %v3529 = vsel %vm3528, 1, 0
    %v3530 = vadd.s32 %v3520, %v3524
    %v3531 = vadd.s32 %v3523, %v3529
    %vm3532 = vc.u32 %v3530, %v3526
    %v3533 = vsel %vm3532, 1, 0
    %v3534 = vadd.s32 %v3530, %v3526
    %v3535 = vadd.s32 %v3531, %v3533
    %v3536 = vadd.s32 %v3535, %v3525
    %v3537 = vadd.s32 %v3536, %v3527
    %v3538 = vand.u32 %v3515, 65535
    %v3539 = vshrl.u32 %v3515, 16
    %v3540 = vand.u32 %v3510, 65535
    %v3541 = vshrl.u32 %v3510, 16
    %v3542 = vmul.u32 %v3538, %v3540
    %v3543 = vmul.u32 %v3538, %v3541
    %v3544 = vmul.u32 %v3539, %v3540
    %v3545 = vmul.u32 %v3539, %v3541
    %v3546 = vshll.u32 %v3543, 16
    %v3547 = vshrl.u32 %v3543, 16
    %v3548 = vshll.u32 %v3544, 16
    %v3549 = vshrl.u32 %v3544, 16
    %vm3550 = vc.u32 %v3542, %v3546
    %v3551 = vsel %vm3550, 1, 0
    %v3552 = vadd.s32 %v3542, %v3546
    %v3553 = vadd.s32 %v3545, %v3551
    %vm3554 = vc.u32 %v3552, %v3548
    %v3555 = vsel %vm3554, 1, 0
    %v3556 = vadd.s32 %v3552, %v3548
    %v3557 = vadd.s32 %v3553, %v3555
    %v3558 = vadd.s32 %v3557, %v3547
    %v3559 = vadd.s32 %v3558, %v3549
    %v3560 = vmul.u32 %v3515, %v3506
    %v3561 = vadd.s32 %v3537, %v3556
    %vm3562 = vc.u32 %v3537, %v3556
    %v3563 = vadd.s32 %v3559, 1
    %v3564 = vsel %vm3562, %v3563, %v3559
    %v3565 = vadd.s32 %v3560, %v3564
    %v3566 = vadd.s32 %v3565, 536870912
    %v3567 = vshrl.u32 %v3566, 30
    %v3568 = vshll.u32 %v3567, 30
    %v3569 = vsub.s32 %v3565, %v3568
    %vm3570 = vcmp.lt.s32.totalorder %v3569, 0
    %v3571 = vsub.s32 0, %v3569
    %v3572 = vsel %vm3570, %v3571, %v3569
    %v3573 = vclz %v3572
    %v3574 = vsub.s32 %v3573, 2
    %vm3575 = vcmp.gt.s32.totalorder 0, %v3574
    %v3576 = vsel %vm3575, 0, %v3574
    %v3577 = vsub.s32 32, %v3576
    %v3578 = vshll.u32 %v3569, %v3576
    %v3579 = vshrl.u32 %v3561, %v3577
    %v3580 = vor.u32 %v3578, %v3579
    %v3581 = vsub.s32 4294967266, %v3576
    %v3582 = vadd.s32 %v3581, 127
    %v3583 = vshll.u32 %v3582, 23
    %v3584 = vor.u32 4788187, %v3583
    %v3585 = vand.u32 2147483647, %v3584
    %v3587 = vcvt.s32.f32 %v3580
    %v3588 = vmul.f32 %v3587, %v3585
    %v3589 = vxor.u32 %v3588, 2147483648
    %v3590 = vsel %vm3469, %v3589, %v3588
    %v3591 = vsub.s32 4, %v3567
    %v3592 = vsel %vm3469, %v3591, %v3567
    %v3593 = vsel %vm3468, %v494, %v3590
    %v3594 = vsel %vm3468, 0, %v3592
    %v3595 = vmul.f32 %v3593, %v3593
    %v3596 = vmul.f32 %v3595, -0.001358992
    %v3597 = vadd.f32 %v3596, 0.041655596
    %v3598 = vmul.f32 %v3595, %v3597
    %v3599 = vadd.f32 %v3598, -0.4999988
    %v3600 = vmul.f32 %v3595, %v3599
    %v3601 = vadd.f32 1.0, %v3600
    %v3602 = vmul.f32 %v3593, %v3593
    %v3603 = vmul.f32 %v3602, -0.00019511016
    %v3604 = vadd.f32 %v3603, 0.008332121
    %v3605 = vmul.f32 %v3602, %v3604
    %v3606 = vadd.f32 %v3605, -0.16666654
    %v3607 = vmul.f32 %v3602, %v3606
    %v3608 = vadd.f32 %v3607, 1.0
    %v3609 = vmul.f32 %v3608, %v3593
    %vm3610 = vweird.f32 %v494
    %v3611 = vadd.s32 %v3594, 3
    %v3612 = vand.u32 %v3611, 3
    %vm3613 = vcmp.lt.s32.totalorder %v3612, 2
    %vm3614 = vcmp.eq.s32.totalorder %v3612, 0
    %v3615 = vxor.u32 %v3609, 2147483648
    %v3616 = vsel %vm3614, %v3601, %v3615
    %vm3617 = vcmp.eq.s32.totalorder %v3612, 2
    %v3618 = vxor.u32 %v3601, 2147483648
    %v3619 = vsel %vm3617, %v3618, %v3609
    %v3620 = vsel %vm3613, %v3616, %v3619
    %v3621 = vsel %vm3610, nan, %v3620
    %v3622 = vand.u32 2147483647, %v495
    %vm3623 = vcmp.le.f32.partialorder %v3622, 0.7853982
    %vm3624 = vcmp.lt.s32.totalorder %v495, 0
    %v3625 = vand.u32 %v495, 2139095040
    %v3626 = vshrl.u32 %v3625, 23
    %v3627 = vsub.s32 %v3626, 127
    %v3628 = vand.u32 2147483647, %v495
    %v3629 = vand.u32 %v3628, 8388607
    %v3630 = vor.u32 %v3629, 8388608
    %v3631 = vsub.s32 0, %v3630
    %v3632 = vadd.s32 %v3627, 1
    %vm3633 = vcmp.gt.s32.totalorder %v3632, 0
    %v3634 = vsel %vm3633, %v3632, 0
    %v3635 = vshrl.u32 %v3634, 5
    %v3636 = vand.u32 %v3634, 31
    %v3637 = vsub.s32 32, %v3636
    %v3638 = vshrl.u32 683565275, %v3637
    %v3639 = vshll.u32 683565275, %v3636
    %v3640 = vshrl.u32 2475754826, %v3637
    %v3641 = vor.u32 %v3639, %v3640
    %v3642 = vshll.u32 2475754826, %v3636
    %v3643 = vshrl.u32 2131351028, %v3637
    %v3644 = vor.u32 %v3642, %v3643
    %v3645 = vshll.u32 2131351028, %v3636
    %v3646 = vshrl.u32 2102212464, %v3637
    %v3647 = vor.u32 %v3645, %v3646
    %v3648 = vshll.u32 2102212464, %v3636
    %v3649 = vshrl.u32 920167782, %v3637
    %v3650 = vor.u32 %v3648, %v3649
    %v3651 = vshll.u32 920167782, %v3636
    %v3652 = vshrl.u32 1326507024, %v3637
    %v3653 = vor.u32 %v3651, %v3652
    %vm3654 = vcmp.lt.s32.totalorder %v3635, 1
    %vm3655 = vcmp.lt.s32.totalorder %v3635, 2
    %vm3656 = vcmp.lt.s32.totalorder %v3635, 3
    %vm3657 = vcmp.lt.s32.totalorder %v3635, 4
    %v3658 = vsel %vm3654, %v3638, %v3641
    %v3659 = vsel %vm3657, %v3647, 2102212464
    %v3660 = vsel %vm3656, %v3644, %v3659
    %v3661 = vsel %vm3655, %v3658, %v3660
    %v3662 = vsel %vm3654, %v3641, %v3644
    %v3663 = vsel %vm3657, %v3650, 920167782
    %v3664 = vsel %vm3656, %v3647, %v3663
    %v3665 = vsel %vm3655, %v3662, %v3664
    %v3666 = vsel %vm3654, %v3644, %v3647
    %v3667 = vsel %vm3657, %v3653, 1326507024
    %v3668 = vsel %vm3656, %v3650, %v3667
    %v3669 = vsel %vm3655, %v3666, %v3668
    %v3670 = vshll.u32 %v3630, 8
    %v3671 = vand.u32 %v3670, 65535
    %v3672 = vshrl.u32 %v3670, 16
    %v3673 = vand.u32 %v3669, 65535
    %v3674 = vshrl.u32 %v3669, 16
    %v3675 = vmul.u32 %v3671, %v3673
    %v3676 = vmul.u32 %v3671, %v3674
    %v3677 = vmul.u32 %v3672, %v3673
    %v3678 = vmul.u32 %v3672, %v3674
    %v3679 = vshll.u32 %v3676, 16
    %v3680 = vshrl.u32 %v3676, 16
    %v3681 = vshll.u32 %v3677, 16
    %v3682 = vshrl.u32 %v3677, 16
    %vm3683 = vc.u32 %v3675, %v3679
    %v3684 = vsel %vm3683, 1, 0
    %v3685 = vadd.s32 %v3675, %v3679
    %v3686 = vadd.s32 %v3678, %v3684
    %vm3687 = vc.u32 %v3685, %v3681
    %v3688 = vsel %vm3687, 1, 0
    %v3689 = vadd.s32 %v3685, %v3681
    %v3690 = vadd.s32 %v3686, %v3688
    %v3691 = vadd.s32 %v3690, %v3680
    %v3692 = vadd.s32 %v3691, %v3682
    %v3693 = vand.u32 %v3670, 65535
    %v3694 = vshrl.u32 %v3670, 16
    %v3695 = vand.u32 %v3665, 65535
    %v3696 = vshrl.u32 %v3665, 16
    %v3697 = vmul.u32 %v3693, %v3695
    %v3698 = vmul.u32 %v3693, %v3696
    %v3699 = vmul.u32 %v3694, %v3695
    %v3700 = vmul.u32 %v3694, %v3696
    %v3701 = vshll.u32 %v3698, 16
    %v3702 = vshrl.u32 %v3698, 16
    %v3703 = vshll.u32 %v3699, 16
    %v3704 = vshrl.u32 %v3699, 16
    %vm3705 = vc.u32 %v3697, %v3701
    %v3706 = vsel %vm3705, 1, 0
    %v3707 = vadd.s32 %v3697, %v3701
    %v3708 = vadd.s32 %v3700, %v3706
    %vm3709 = vc.u32 %v3707, %v3703
    %v3710 = vsel %vm3709, 1, 0
    %v3711 = vadd.s32 %v3707, %v3703
    %v3712 = vadd.s32 %v3708, %v3710
    %v3713 = vadd.s32 %v3712, %v3702
    %v3714 = vadd.s32 %v3713, %v3704
    %v3715 = vmul.u32 %v3670, %v3661
    %v3716 = vadd.s32 %v3692, %v3711
    %vm3717 = vc.u32 %v3692, %v3711
    %v3718 = vadd.s32 %v3714, 1
    %v3719 = vsel %vm3717, %v3718, %v3714
    %v3720 = vadd.s32 %v3715, %v3719
    %v3721 = vadd.s32 %v3720, 536870912
    %v3722 = vshrl.u32 %v3721, 30
    %v3723 = vshll.u32 %v3722, 30
    %v3724 = vsub.s32 %v3720, %v3723
    %vm3725 = vcmp.lt.s32.totalorder %v3724, 0
    %v3726 = vsub.s32 0, %v3724
    %v3727 = vsel %vm3725, %v3726, %v3724
    %v3728 = vclz %v3727
    %v3729 = vsub.s32 %v3728, 2
    %vm3730 = vcmp.gt.s32.totalorder 0, %v3729
    %v3731 = vsel %vm3730, 0, %v3729
    %v3732 = vsub.s32 32, %v3731
    %v3733 = vshll.u32 %v3724, %v3731
    %v3734 = vshrl.u32 %v3716, %v3732
    %v3735 = vor.u32 %v3733, %v3734
    %v3736 = vsub.s32 4294967266, %v3731
    %v3737 = vadd.s32 %v3736, 127
    %v3738 = vshll.u32 %v3737, 23
    %v3739 = vor.u32 4788187, %v3738
    %v3740 = vand.u32 2147483647, %v3739
    %v3742 = vcvt.s32.f32 %v3735
    %v3743 = vmul.f32 %v3742, %v3740
    %v3744 = vxor.u32 %v3743, 2147483648
    %v3745 = vsel %vm3624, %v3744, %v3743
    %v3746 = vsub.s32 4, %v3722
    %v3747 = vsel %vm3624, %v3746, %v3722
    %v3748 = vsel %vm3623, %v495, %v3745
    %v3749 = vsel %vm3623, 0, %v3747
    %v3750 = vmul.f32 %v3748, %v3748
    %v3751 = vmul.f32 %v3750, -0.001358992
    %v3752 = vadd.f32 %v3751, 0.041655596
    %v3753 = vmul.f32 %v3750, %v3752
    %v3754 = vadd.f32 %v3753, -0.4999988
    %v3755 = vmul.f32 %v3750, %v3754
    %v3756 = vadd.f32 1.0, %v3755
    %v3757 = vmul.f32 %v3748, %v3748
    %v3758 = vmul.f32 %v3757, -0.00019511016
    %v3759 = vadd.f32 %v3758, 0.008332121
    %v3760 = vmul.f32 %v3757, %v3759
    %v3761 = vadd.f32 %v3760, -0.16666654
    %v3762 = vmul.f32 %v3757, %v3761
    %v3763 = vadd.f32 %v3762, 1.0
    %v3764 = vmul.f32 %v3763, %v3748
    %vm3765 = vweird.f32 %v495
    %v3766 = vadd.s32 %v3749, 3
    %v3767 = vand.u32 %v3766, 3
    %vm3768 = vcmp.lt.s32.totalorder %v3767, 2
    %vm3769 = vcmp.eq.s32.totalorder %v3767, 0
    %v3770 = vxor.u32 %v3764, 2147483648
    %v3771 = vsel %vm3769, %v3756, %v3770
    %vm3772 = vcmp.eq.s32.totalorder %v3767, 2
    %v3773 = vxor.u32 %v3756, 2147483648
    %v3774 = vsel %vm3772, %v3773, %v3764
    %v3775 = vsel %vm3768, %v3771, %v3774
    %v3776 = vsel %vm3765, nan, %v3775
    %v3777 = vand.u32 2147483647, %v496
    %vm3778 = vcmp.le.f32.partialorder %v3777, 0.7853982
    %vm3779 = vcmp.lt.s32.totalorder %v496, 0
    %v3780 = vand.u32 %v496, 2139095040
    %v3781 = vshrl.u32 %v3780, 23
    %v3782 = vsub.s32 %v3781, 127
    %v3783 = vand.u32 2147483647, %v496
    %v3784 = vand.u32 %v3783, 8388607
    %v3785 = vor.u32 %v3784, 8388608
    %v3786 = vsub.s32 0, %v3785
    %v3787 = vadd.s32 %v3782, 1
    %vm3788 = vcmp.gt.s32.totalorder %v3787, 0
    %v3789 = vsel %vm3788, %v3787, 0
    %v3790 = vshrl.u32 %v3789, 5
    %v3791 = vand.u32 %v3789, 31
    %v3792 = vsub.s32 32, %v3791
    %v3793 = vshrl.u32 683565275, %v3792
    %v3794 = vshll.u32 683565275, %v3791
    %v3795 = vshrl.u32 2475754826, %v3792
    %v3796 = vor.u32 %v3794, %v3795
    %v3797 = vshll.u32 2475754826, %v3791
    %v3798 = vshrl.u32 2131351028, %v3792
    %v3799 = vor.u32 %v3797, %v3798
    %v3800 = vshll.u32 2131351028, %v3791
    %v3801 = vshrl.u32 2102212464, %v3792
    %v3802 = vor.u32 %v3800, %v3801
    %v3803 = vshll.u32 2102212464, %v3791
    %v3804 = vshrl.u32 920167782, %v3792
    %v3805 = vor.u32 %v3803, %v3804
    %v3806 = vshll.u32 920167782, %v3791
    %v3807 = vshrl.u32 1326507024, %v3792
    %v3808 = vor.u32 %v3806, %v3807
    %vm3809 = vcmp.lt.s32.totalorder %v3790, 1
    %vm3810 = vcmp.lt.s32.totalorder %v3790, 2
    %vm3811 = vcmp.lt.s32.totalorder %v3790, 3
    %vm3812 = vcmp.lt.s32.totalorder %v3790, 4
    %v3813 = vsel %vm3809, %v3793, %v3796
    %v3814 = vsel %vm3812, %v3802, 2102212464
    %v3815 = vsel %vm3811, %v3799, %v3814
    %v3816 = vsel %vm3810, %v3813, %v3815
    %v3817 = vsel %vm3809, %v3796, %v3799
    %v3818 = vsel %vm3812, %v3805, 920167782
    %v3819 = vsel %vm3811, %v3802, %v3818
    %v3820 = vsel %vm3810, %v3817, %v3819
    %v3821 = vsel %vm3809, %v3799, %v3802
    %v3822 = vsel %vm3812, %v3808, 1326507024
    %v3823 = vsel %vm3811, %v3805, %v3822
    %v3824 = vsel %vm3810, %v3821, %v3823
    %v3825 = vshll.u32 %v3785, 8
    %v3826 = vand.u32 %v3825, 65535
    %v3827 = vshrl.u32 %v3825, 16
    %v3828 = vand.u32 %v3824, 65535
    %v3829 = vshrl.u32 %v3824, 16
    %v3830 = vmul.u32 %v3826, %v3828
    %v3831 = vmul.u32 %v3826, %v3829
    %v3832 = vmul.u32 %v3827, %v3828
    %v3833 = vmul.u32 %v3827, %v3829
    %v3834 = vshll.u32 %v3831, 16
    %v3835 = vshrl.u32 %v3831, 16
    %v3836 = vshll.u32 %v3832, 16
    %v3837 = vshrl.u32 %v3832, 16
    %vm3838 = vc.u32 %v3830, %v3834
    %v3839 = vsel %vm3838, 1, 0
    %v3840 = vadd.s32 %v3830, %v3834
    %v3841 = vadd.s32 %v3833, %v3839
    %vm3842 = vc.u32 %v3840, %v3836
    %v3843 = vsel %vm3842, 1, 0
    %v3844 = vadd.s32 %v3840, %v3836
    %v3845 = vadd.s32 %v3841, %v3843
    %v3846 = vadd.s32 %v3845, %v3835
    %v3847 = vadd.s32 %v3846, %v3837
    %v3848 = vand.u32 %v3825, 65535
    %v3849 = vshrl.u32 %v3825, 16
    %v3850 = vand.u32 %v3820, 65535
    %v3851 = vshrl.u32 %v3820, 16
    %v3852 = vmul.u32 %v3848, %v3850
    %v3853 = vmul.u32 %v3848, %v3851
    %v3854 = vmul.u32 %v3849, %v3850
    %v3855 = vmul.u32 %v3849, %v3851
    %v3856 = vshll.u32 %v3853, 16
    %v3857 = vshrl.u32 %v3853, 16
    %v3858 = vshll.u32 %v3854, 16
    %v3859 = vshrl.u32 %v3854, 16
    %vm3860 = vc.u32 %v3852, %v3856
    %v3861 = vsel %vm3860, 1, 0
    %v3862 = vadd.s32 %v3852, %v3856
    %v3863 = vadd.s32 %v3855, %v3861
    %vm3864 = vc.u32 %v3862, %v3858
    %v3865 = vsel %vm3864, 1, 0
    %v3866 = vadd.s32 %v3862, %v3858
    %v3867 = vadd.s32 %v3863, %v3865
    %v3868 = vadd.s32 %v3867, %v3857
    %v3869 = vadd.s32 %v3868, %v3859
    %v3870 = vmul.u32 %v3825, %v3816
    %v3871 = vadd.s32 %v3847, %v3866
    %vm3872 = vc.u32 %v3847, %v3866
    %v3873 = vadd.s32 %v3869, 1
    %v3874 = vsel %vm3872, %v3873, %v3869
    %v3875 = vadd.s32 %v3870, %v3874
    %v3876 = vadd.s32 %v3875, 536870912
    %v3877 = vshrl.u32 %v3876, 30
    %v3878 = vshll.u32 %v3877, 30
    %v3879 = vsub.s32 %v3875, %v3878
    %vm3880 = vcmp.lt.s32.totalorder %v3879, 0
    %v3881 = vsub.s32 0, %v3879
    %v3882 = vsel %vm3880, %v3881, %v3879
    %v3883 = vclz %v3882
    %v3884 = vsub.s32 %v3883, 2
    %vm3885 = vcmp.gt.s32.totalorder 0, %v3884
    %v3886 = vsel %vm3885, 0, %v3884
    %v3887 = vsub.s32 32, %v3886
    %v3888 = vshll.u32 %v3879, %v3886
    %v3889 = vshrl.u32 %v3871, %v3887
    %v3890 = vor.u32 %v3888, %v3889
    %v3891 = vsub.s32 4294967266, %v3886
    %v3892 = vadd.s32 %v3891, 127
    %v3893 = vshll.u32 %v3892, 23
    %v3894 = vor.u32 4788187, %v3893
    %v3895 = vand.u32 2147483647, %v3894
    %v3897 = vcvt.s32.f32 %v3890
    %v3898 = vmul.f32 %v3897, %v3895
    %v3899 = vxor.u32 %v3898, 2147483648
    %v3900 = vsel %vm3779, %v3899, %v3898
    %v3901 = vsub.s32 4, %v3877
    %v3902 = vsel %vm3779, %v3901, %v3877
    %v3903 = vsel %vm3778, %v496, %v3900
    %v3904 = vsel %vm3778, 0, %v3902
    %v3905 = vmul.f32 %v3903, %v3903
    %v3906 = vmul.f32 %v3905, -0.001358992
    %v3907 = vadd.f32 %v3906, 0.041655596
    %v3908 = vmul.f32 %v3905, %v3907
    %v3909 = vadd.f32 %v3908, -0.4999988
    %v3910 = vmul.f32 %v3905, %v3909
    %v3911 = vadd.f32 1.0, %v3910
    %v3912 = vmul.f32 %v3903, %v3903
    %v3913 = vmul.f32 %v3912, -0.00019511016
    %v3914 = vadd.f32 %v3913, 0.008332121
    %v3915 = vmul.f32 %v3912, %v3914
    %v3916 = vadd.f32 %v3915, -0.16666654
    %v3917 = vmul.f32 %v3912, %v3916
    %v3918 = vadd.f32 %v3917, 1.0
    %v3919 = vmul.f32 %v3918, %v3903
    %vm3920 = vweird.f32 %v496
    %v3921 = vadd.s32 %v3904, 3
    %v3922 = vand.u32 %v3921, 3
    %vm3923 = vcmp.lt.s32.totalorder %v3922, 2
    %vm3924 = vcmp.eq.s32.totalorder %v3922, 0
    %v3925 = vxor.u32 %v3919, 2147483648
    %v3926 = vsel %vm3924, %v3911, %v3925
    %vm3927 = vcmp.eq.s32.totalorder %v3922, 2
    %v3928 = vxor.u32 %v3911, 2147483648
    %v3929 = vsel %vm3927, %v3928, %v3919
    %v3930 = vsel %vm3923, %v3926, %v3929
    %v3931 = vsel %vm3920, nan, %v3930
    %v3932 = vand.u32 2147483647, %v497
    %vm3933 = vcmp.le.f32.partialorder %v3932, 0.7853982
    %vm3934 = vcmp.lt.s32.totalorder %v497, 0
    %v3935 = vand.u32 %v497, 2139095040
    %v3936 = vshrl.u32 %v3935, 23
    %v3937 = vsub.s32 %v3936, 127
    %v3938 = vand.u32 2147483647, %v497
    %v3939 = vand.u32 %v3938, 8388607
    %v3940 = vor.u32 %v3939, 8388608
    %v3941 = vsub.s32 0, %v3940
    %v3942 = vadd.s32 %v3937, 1
    %vm3943 = vcmp.gt.s32.totalorder %v3942, 0
    %v3944 = vsel %vm3943, %v3942, 0
    %v3945 = vshrl.u32 %v3944, 5
    %v3946 = vand.u32 %v3944, 31
    %v3947 = vsub.s32 32, %v3946
    %v3948 = vshrl.u32 683565275, %v3947
    %v3949 = vshll.u32 683565275, %v3946
    %v3950 = vshrl.u32 2475754826, %v3947
    %v3951 = vor.u32 %v3949, %v3950
    %v3952 = vshll.u32 2475754826, %v3946
    %v3953 = vshrl.u32 2131351028, %v3947
    %v3954 = vor.u32 %v3952, %v3953
    %v3955 = vshll.u32 2131351028, %v3946
    %v3956 = vshrl.u32 2102212464, %v3947
    %v3957 = vor.u32 %v3955, %v3956
    %v3958 = vshll.u32 2102212464, %v3946
    %v3959 = vshrl.u32 920167782, %v3947
    %v3960 = vor.u32 %v3958, %v3959
    %v3961 = vshll.u32 920167782, %v3946
    %v3962 = vshrl.u32 1326507024, %v3947
    %v3963 = vor.u32 %v3961, %v3962
    %vm3964 = vcmp.lt.s32.totalorder %v3945, 1
    %vm3965 = vcmp.lt.s32.totalorder %v3945, 2
    %vm3966 = vcmp.lt.s32.totalorder %v3945, 3
    %vm3967 = vcmp.lt.s32.totalorder %v3945, 4
    %v3968 = vsel %vm3964, %v3948, %v3951
    %v3969 = vsel %vm3967, %v3957, 2102212464
    %v3970 = vsel %vm3966, %v3954, %v3969
    %v3971 = vsel %vm3965, %v3968, %v3970
    %v3972 = vsel %vm3964, %v3951, %v3954
    %v3973 = vsel %vm3967, %v3960, 920167782
    %v3974 = vsel %vm3966, %v3957, %v3973
    %v3975 = vsel %vm3965, %v3972, %v3974
    %v3976 = vsel %vm3964, %v3954, %v3957
    %v3977 = vsel %vm3967, %v3963, 1326507024
    %v3978 = vsel %vm3966, %v3960, %v3977
    %v3979 = vsel %vm3965, %v3976, %v3978
    %v3980 = vshll.u32 %v3940, 8
    %v3981 = vand.u32 %v3980, 65535
    %v3982 = vshrl.u32 %v3980, 16
    %v3983 = vand.u32 %v3979, 65535
    %v3984 = vshrl.u32 %v3979, 16
    %v3985 = vmul.u32 %v3981, %v3983
    %v3986 = vmul.u32 %v3981, %v3984
    %v3987 = vmul.u32 %v3982, %v3983
    %v3988 = vmul.u32 %v3982, %v3984
    %v3989 = vshll.u32 %v3986, 16
    %v3990 = vshrl.u32 %v3986, 16
    %v3991 = vshll.u32 %v3987, 16
    %v3992 = vshrl.u32 %v3987, 16
    %vm3993 = vc.u32 %v3985, %v3989
    %v3994 = vsel %vm3993, 1, 0
    %v3995 = vadd.s32 %v3985, %v3989
    %v3996 = vadd.s32 %v3988, %v3994
    %vm3997 = vc.u32 %v3995, %v3991
    %v3998 = vsel %vm3997, 1, 0
    %v3999 = vadd.s32 %v3995, %v3991
    %v4000 = vadd.s32 %v3996, %v3998
    %v4001 = vadd.s32 %v4000, %v3990
    %v4002 = vadd.s32 %v4001, %v3992
    %v4003 = vand.u32 %v3980, 65535
    %v4004 = vshrl.u32 %v3980, 16
    %v4005 = vand.u32 %v3975, 65535
    %v4006 = vshrl.u32 %v3975, 16
    %v4007 = vmul.u32 %v4003, %v4005
    %v4008 = vmul.u32 %v4003, %v4006
    %v4009 = vmul.u32 %v4004, %v4005
    %v4010 = vmul.u32 %v4004, %v4006
    %v4011 = vshll.u32 %v4008, 16
    %v4012 = vshrl.u32 %v4008, 16
    %v4013 = vshll.u32 %v4009, 16
    %v4014 = vshrl.u32 %v4009, 16
    %vm4015 = vc.u32 %v4007, %v4011
    %v4016 = vsel %vm4015, 1, 0
    %v4017 = vadd.s32 %v4007, %v4011
    %v4018 = vadd.s32 %v4010, %v4016
    %vm4019 = vc.u32 %v4017, %v4013
    %v4020 = vsel %vm4019, 1, 0
    %v4021 = vadd.s32 %v4017, %v4013
    %v4022 = vadd.s32 %v4018, %v4020
    %v4023 = vadd.s32 %v4022, %v4012
    %v4024 = vadd.s32 %v4023, %v4014
    %v4025 = vmul.u32 %v3980, %v3971
    %v4026 = vadd.s32 %v4002, %v4021
    %vm4027 = vc.u32 %v4002, %v4021
    %v4028 = vadd.s32 %v4024, 1
    %v4029 = vsel %vm4027, %v4028, %v4024
    %v4030 = vadd.s32 %v4025, %v4029
    %v4031 = vadd.s32 %v4030, 536870912
    %v4032 = vshrl.u32 %v4031, 30
    %v4033 = vshll.u32 %v4032, 30
    %v4034 = vsub.s32 %v4030, %v4033
    %vm4035 = vcmp.lt.s32.totalorder %v4034, 0
    %v4036 = vsub.s32 0, %v4034
    %v4037 = vsel %vm4035, %v4036, %v4034
    %v4038 = vclz %v4037
    %v4039 = vsub.s32 %v4038, 2
    %vm4040 = vcmp.gt.s32.totalorder 0, %v4039
    %v4041 = vsel %vm4040, 0, %v4039
    %v4042 = vsub.s32 32, %v4041
    %v4043 = vshll.u32 %v4034, %v4041
    %v4044 = vshrl.u32 %v4026, %v4042
    %v4045 = vor.u32 %v4043, %v4044
    %v4046 = vsub.s32 4294967266, %v4041
    %v4047 = vadd.s32 %v4046, 127
    %v4048 = vshll.u32 %v4047, 23
    %v4049 = vor.u32 4788187, %v4048
    %v4050 = vand.u32 2147483647, %v4049
    %v4052 = vcvt.s32.f32 %v4045
    %v4053 = vmul.f32 %v4052, %v4050
    %v4054 = vxor.u32 %v4053, 2147483648
    %v4055 = vsel %vm3934, %v4054, %v4053
    %v4056 = vsub.s32 4, %v4032
    %v4057 = vsel %vm3934, %v4056, %v4032
    %v4058 = vsel %vm3933, %v497, %v4055
    %v4059 = vsel %vm3933, 0, %v4057
    %v4060 = vmul.f32 %v4058, %v4058
    %v4061 = vmul.f32 %v4060, -0.001358992
    %v4062 = vadd.f32 %v4061, 0.041655596
    %v4063 = vmul.f32 %v4060, %v4062
    %v4064 = vadd.f32 %v4063, -0.4999988
    %v4065 = vmul.f32 %v4060, %v4064
    %v4066 = vadd.f32 1.0, %v4065
    %v4067 = vmul.f32 %v4058, %v4058
    %v4068 = vmul.f32 %v4067, -0.00019511016
    %v4069 = vadd.f32 %v4068, 0.008332121
    %v4070 = vmul.f32 %v4067, %v4069
    %v4071 = vadd.f32 %v4070, -0.16666654
    %v4072 = vmul.f32 %v4067, %v4071
    %v4073 = vadd.f32 %v4072, 1.0
    %v4074 = vmul.f32 %v4073, %v4058
    %vm4075 = vweird.f32 %v497
    %v4076 = vadd.s32 %v4059, 3
    %v4077 = vand.u32 %v4076, 3
    %vm4078 = vcmp.lt.s32.totalorder %v4077, 2
    %vm4079 = vcmp.eq.s32.totalorder %v4077, 0
    %v4080 = vxor.u32 %v4074, 2147483648
    %v4081 = vsel %vm4079, %v4066, %v4080
    %vm4082 = vcmp.eq.s32.totalorder %v4077, 2
    %v4083 = vxor.u32 %v4066, 2147483648
    %v4084 = vsel %vm4082, %v4083, %v4074
    %v4085 = vsel %vm4078, %v4081, %v4084
    %v4086 = vsel %vm4075, nan, %v4085
    %v4087 = vand.u32 2147483647, %v498
    %vm4088 = vcmp.le.f32.partialorder %v4087, 0.7853982
    %vm4089 = vcmp.lt.s32.totalorder %v498, 0
    %v4090 = vand.u32 %v498, 2139095040
    %v4091 = vshrl.u32 %v4090, 23
    %v4092 = vsub.s32 %v4091, 127
    %v4093 = vand.u32 2147483647, %v498
    %v4094 = vand.u32 %v4093, 8388607
    %v4095 = vor.u32 %v4094, 8388608
    %v4096 = vsub.s32 0, %v4095
    %v4097 = vadd.s32 %v4092, 1
    %vm4098 = vcmp.gt.s32.totalorder %v4097, 0
    %v4099 = vsel %vm4098, %v4097, 0
    %v4100 = vshrl.u32 %v4099, 5
    %v4101 = vand.u32 %v4099, 31
    %v4102 = vsub.s32 32, %v4101
    %v4103 = vshrl.u32 683565275, %v4102
    %v4104 = vshll.u32 683565275, %v4101
    %v4105 = vshrl.u32 2475754826, %v4102
    %v4106 = vor.u32 %v4104, %v4105
    %v4107 = vshll.u32 2475754826, %v4101
    %v4108 = vshrl.u32 2131351028, %v4102
    %v4109 = vor.u32 %v4107, %v4108
    %v4110 = vshll.u32 2131351028, %v4101
    %v4111 = vshrl.u32 2102212464, %v4102
    %v4112 = vor.u32 %v4110, %v4111
    %v4113 = vshll.u32 2102212464, %v4101
    %v4114 = vshrl.u32 920167782, %v4102
    %v4115 = vor.u32 %v4113, %v4114
    %v4116 = vshll.u32 920167782, %v4101
    %v4117 = vshrl.u32 1326507024, %v4102
    %v4118 = vor.u32 %v4116, %v4117
    %vm4119 = vcmp.lt.s32.totalorder %v4100, 1
    %vm4120 = vcmp.lt.s32.totalorder %v4100, 2
    %vm4121 = vcmp.lt.s32.totalorder %v4100, 3
    %vm4122 = vcmp.lt.s32.totalorder %v4100, 4
    %v4123 = vsel %vm4119, %v4103, %v4106
    %v4124 = vsel %vm4122, %v4112, 2102212464
    %v4125 = vsel %vm4121, %v4109, %v4124
    %v4126 = vsel %vm4120, %v4123, %v4125
    %v4127 = vsel %vm4119, %v4106, %v4109
    %v4128 = vsel %vm4122, %v4115, 920167782
    %v4129 = vsel %vm4121, %v4112, %v4128
    %v4130 = vsel %vm4120, %v4127, %v4129
    %v4131 = vsel %vm4119, %v4109, %v4112
    %v4132 = vsel %vm4122, %v4118, 1326507024
    %v4133 = vsel %vm4121, %v4115, %v4132
    %v4134 = vsel %vm4120, %v4131, %v4133
    %v4135 = vshll.u32 %v4095, 8
    %v4136 = vand.u32 %v4135, 65535
    %v4137 = vshrl.u32 %v4135, 16
    %v4138 = vand.u32 %v4134, 65535
    %v4139 = vshrl.u32 %v4134, 16
    %v4140 = vmul.u32 %v4136, %v4138
    %v4141 = vmul.u32 %v4136, %v4139
    %v4142 = vmul.u32 %v4137, %v4138
    %v4143 = vmul.u32 %v4137, %v4139
    %v4144 = vshll.u32 %v4141, 16
    %v4145 = vshrl.u32 %v4141, 16
    %v4146 = vshll.u32 %v4142, 16
    %v4147 = vshrl.u32 %v4142, 16
    %vm4148 = vc.u32 %v4140, %v4144
    %v4149 = vsel %vm4148, 1, 0
    %v4150 = vadd.s32 %v4140, %v4144
    %v4151 = vadd.s32 %v4143, %v4149
    %vm4152 = vc.u32 %v4150, %v4146
    %v4153 = vsel %vm4152, 1, 0
    %v4154 = vadd.s32 %v4150, %v4146
    %v4155 = vadd.s32 %v4151, %v4153
    %v4156 = vadd.s32 %v4155, %v4145
    %v4157 = vadd.s32 %v4156, %v4147
    %v4158 = vand.u32 %v4135, 65535
    %v4159 = vshrl.u32 %v4135, 16
    %v4160 = vand.u32 %v4130, 65535
    %v4161 = vshrl.u32 %v4130, 16
    %v4162 = vmul.u32 %v4158, %v4160
    %v4163 = vmul.u32 %v4158, %v4161
    %v4164 = vmul.u32 %v4159, %v4160
    %v4165 = vmul.u32 %v4159, %v4161
    %v4166 = vshll.u32 %v4163, 16
    %v4167 = vshrl.u32 %v4163, 16
    %v4168 = vshll.u32 %v4164, 16
    %v4169 = vshrl.u32 %v4164, 16
    %vm4170 = vc.u32 %v4162, %v4166
    %v4171 = vsel %vm4170, 1, 0
    %v4172 = vadd.s32 %v4162, %v4166
    %v4173 = vadd.s32 %v4165, %v4171
    %vm4174 = vc.u32 %v4172, %v4168
    %v4175 = vsel %vm4174, 1, 0
    %v4176 = vadd.s32 %v4172, %v4168
    %v4177 = vadd.s32 %v4173, %v4175
    %v4178 = vadd.s32 %v4177, %v4167
    %v4179 = vadd.s32 %v4178, %v4169
    %v4180 = vmul.u32 %v4135, %v4126
    %v4181 = vadd.s32 %v4157, %v4176
    %vm4182 = vc.u32 %v4157, %v4176
    %v4183 = vadd.s32 %v4179, 1
    %v4184 = vsel %vm4182, %v4183, %v4179
    %v4185 = vadd.s32 %v4180, %v4184
    %v4186 = vadd.s32 %v4185, 536870912
    %v4187 = vshrl.u32 %v4186, 30
    %v4188 = vshll.u32 %v4187, 30
    %v4189 = vsub.s32 %v4185, %v4188
    %vm4190 = vcmp.lt.s32.totalorder %v4189, 0
    %v4191 = vsub.s32 0, %v4189
    %v4192 = vsel %vm4190, %v4191, %v4189
    %v4193 = vclz %v4192
    %v4194 = vsub.s32 %v4193, 2
    %vm4195 = vcmp.gt.s32.totalorder 0, %v4194
    %v4196 = vsel %vm4195, 0, %v4194
    %v4197 = vsub.s32 32, %v4196
    %v4198 = vshll.u32 %v4189, %v4196
    %v4199 = vshrl.u32 %v4181, %v4197
    %v4200 = vor.u32 %v4198, %v4199
    %v4201 = vsub.s32 4294967266, %v4196
    %v4202 = vadd.s32 %v4201, 127
    %v4203 = vshll.u32 %v4202, 23
    %v4204 = vor.u32 4788187, %v4203
    %v4205 = vand.u32 2147483647, %v4204
    %v4207 = vcvt.s32.f32 %v4200
    %v4208 = vmul.f32 %v4207, %v4205
    %v4209 = vxor.u32 %v4208, 2147483648
    %v4210 = vsel %vm4089, %v4209, %v4208
    %v4211 = vsub.s32 4, %v4187
    %v4212 = vsel %vm4089, %v4211, %v4187
    %v4213 = vsel %vm4088, %v498, %v4210
    %v4214 = vsel %vm4088, 0, %v4212
    %v4215 = vmul.f32 %v4213, %v4213
    %v4216 = vmul.f32 %v4215, -0.001358992
    %v4217 = vadd.f32 %v4216, 0.041655596
    %v4218 = vmul.f32 %v4215, %v4217
    %v4219 = vadd.f32 %v4218, -0.4999988
    %v4220 = vmul.f32 %v4215, %v4219
    %v4221 = vadd.f32 1.0, %v4220
    %v4222 = vmul.f32 %v4213, %v4213
    %v4223 = vmul.f32 %v4222, -0.00019511016
    %v4224 = vadd.f32 %v4223, 0.008332121
    %v4225 = vmul.f32 %v4222, %v4224
    %v4226 = vadd.f32 %v4225, -0.16666654
    %v4227 = vmul.f32 %v4222, %v4226
    %v4228 = vadd.f32 %v4227, 1.0
    %v4229 = vmul.f32 %v4228, %v4213
    %vm4230 = vweird.f32 %v498
    %v4231 = vadd.s32 %v4214, 3
    %v4232 = vand.u32 %v4231, 3
    %vm4233 = vcmp.lt.s32.totalorder %v4232, 2
    %vm4234 = vcmp.eq.s32.totalorder %v4232, 0
    %v4235 = vxor.u32 %v4229, 2147483648
    %v4236 = vsel %vm4234, %v4221, %v4235
    %vm4237 = vcmp.eq.s32.totalorder %v4232, 2
    %v4238 = vxor.u32 %v4221, 2147483648
    %v4239 = vsel %vm4237, %v4238, %v4229
    %v4240 = vsel %vm4233, %v4236, %v4239
    %v4241 = vsel %vm4230, nan, %v4240
    %v4242 = vand.u32 2147483647, %v499
    %vm4243 = vcmp.le.f32.partialorder %v4242, 0.7853982
    %vm4244 = vcmp.lt.s32.totalorder %v499, 0
    %v4245 = vand.u32 %v499, 2139095040
    %v4246 = vshrl.u32 %v4245, 23
    %v4247 = vsub.s32 %v4246, 127
    %v4248 = vand.u32 2147483647, %v499
    %v4249 = vand.u32 %v4248, 8388607
    %v4250 = vor.u32 %v4249, 8388608
    %v4251 = vsub.s32 0, %v4250
    %v4252 = vadd.s32 %v4247, 1
    %vm4253 = vcmp.gt.s32.totalorder %v4252, 0
    %v4254 = vsel %vm4253, %v4252, 0
    %v4255 = vshrl.u32 %v4254, 5
    %v4256 = vand.u32 %v4254, 31
    %v4257 = vsub.s32 32, %v4256
    %v4258 = vshrl.u32 683565275, %v4257
    %v4259 = vshll.u32 683565275, %v4256
    %v4260 = vshrl.u32 2475754826, %v4257
    %v4261 = vor.u32 %v4259, %v4260
    %v4262 = vshll.u32 2475754826, %v4256
    %v4263 = vshrl.u32 2131351028, %v4257
    %v4264 = vor.u32 %v4262, %v4263
    %v4265 = vshll.u32 2131351028, %v4256
    %v4266 = vshrl.u32 2102212464, %v4257
    %v4267 = vor.u32 %v4265, %v4266
    %v4268 = vshll.u32 2102212464, %v4256
    %v4269 = vshrl.u32 920167782, %v4257
    %v4270 = vor.u32 %v4268, %v4269
    %v4271 = vshll.u32 920167782, %v4256
    %v4272 = vshrl.u32 1326507024, %v4257
    %v4273 = vor.u32 %v4271, %v4272
    %vm4274 = vcmp.lt.s32.totalorder %v4255, 1
    %vm4275 = vcmp.lt.s32.totalorder %v4255, 2
    %vm4276 = vcmp.lt.s32.totalorder %v4255, 3
    %vm4277 = vcmp.lt.s32.totalorder %v4255, 4
    %v4278 = vsel %vm4274, %v4258, %v4261
    %v4279 = vsel %vm4277, %v4267, 2102212464
    %v4280 = vsel %vm4276, %v4264, %v4279
    %v4281 = vsel %vm4275, %v4278, %v4280
    %v4282 = vsel %vm4274, %v4261, %v4264
    %v4283 = vsel %vm4277, %v4270, 920167782
    %v4284 = vsel %vm4276, %v4267, %v4283
    %v4285 = vsel %vm4275, %v4282, %v4284
    %v4286 = vsel %vm4274, %v4264, %v4267
    %v4287 = vsel %vm4277, %v4273, 1326507024
    %v4288 = vsel %vm4276, %v4270, %v4287
    %v4289 = vsel %vm4275, %v4286, %v4288
    %v4290 = vshll.u32 %v4250, 8
    %v4291 = vand.u32 %v4290, 65535
    %v4292 = vshrl.u32 %v4290, 16
    %v4293 = vand.u32 %v4289, 65535
    %v4294 = vshrl.u32 %v4289, 16
    %v4295 = vmul.u32 %v4291, %v4293
    %v4296 = vmul.u32 %v4291, %v4294
    %v4297 = vmul.u32 %v4292, %v4293
    %v4298 = vmul.u32 %v4292, %v4294
    %v4299 = vshll.u32 %v4296, 16
    %v4300 = vshrl.u32 %v4296, 16
    %v4301 = vshll.u32 %v4297, 16
    %v4302 = vshrl.u32 %v4297, 16
    %vm4303 = vc.u32 %v4295, %v4299
    %v4304 = vsel %vm4303, 1, 0
    %v4305 = vadd.s32 %v4295, %v4299
    %v4306 = vadd.s32 %v4298, %v4304
    %vm4307 = vc.u32 %v4305, %v4301
    %v4308 = vsel %vm4307, 1, 0
    %v4309 = vadd.s32 %v4305, %v4301
    %v4310 = vadd.s32 %v4306, %v4308
    %v4311 = vadd.s32 %v4310, %v4300
    %v4312 = vadd.s32 %v4311, %v4302
    %v4313 = vand.u32 %v4290, 65535
    %v4314 = vshrl.u32 %v4290, 16
    %v4315 = vand.u32 %v4285, 65535
    %v4316 = vshrl.u32 %v4285, 16
    %v4317 = vmul.u32 %v4313, %v4315
    %v4318 = vmul.u32 %v4313, %v4316
    %v4319 = vmul.u32 %v4314, %v4315
    %v4320 = vmul.u32 %v4314, %v4316
    %v4321 = vshll.u32 %v4318, 16
    %v4322 = vshrl.u32 %v4318, 16
    %v4323 = vshll.u32 %v4319, 16
    %v4324 = vshrl.u32 %v4319, 16
    %vm4325 = vc.u32 %v4317, %v4321
    %v4326 = vsel %vm4325, 1, 0
    %v4327 = vadd.s32 %v4317, %v4321
    %v4328 = vadd.s32 %v4320, %v4326
    %vm4329 = vc.u32 %v4327, %v4323
    %v4330 = vsel %vm4329, 1, 0
    %v4331 = vadd.s32 %v4327, %v4323
    %v4332 = vadd.s32 %v4328, %v4330
    %v4333 = vadd.s32 %v4332, %v4322
    %v4334 = vadd.s32 %v4333, %v4324
    %v4335 = vmul.u32 %v4290, %v4281
    %v4336 = vadd.s32 %v4312, %v4331
    %vm4337 = vc.u32 %v4312, %v4331
    %v4338 = vadd.s32 %v4334, 1
    %v4339 = vsel %vm4337, %v4338, %v4334
    %v4340 = vadd.s32 %v4335, %v4339
    %v4341 = vadd.s32 %v4340, 536870912
    %v4342 = vshrl.u32 %v4341, 30
    %v4343 = vshll.u32 %v4342, 30
    %v4344 = vsub.s32 %v4340, %v4343
    %vm4345 = vcmp.lt.s32.totalorder %v4344, 0
    %v4346 = vsub.s32 0, %v4344
    %v4347 = vsel %vm4345, %v4346, %v4344
    %v4348 = vclz %v4347
    %v4349 = vsub.s32 %v4348, 2
    %vm4350 = vcmp.gt.s32.totalorder 0, %v4349
    %v4351 = vsel %vm4350, 0, %v4349
    %v4352 = vsub.s32 32, %v4351
    %v4353 = vshll.u32 %v4344, %v4351
    %v4354 = vshrl.u32 %v4336, %v4352
    %v4355 = vor.u32 %v4353, %v4354
    %v4356 = vsub.s32 4294967266, %v4351
    %v4357 = vadd.s32 %v4356, 127
    %v4358 = vshll.u32 %v4357, 23
    %v4359 = vor.u32 4788187, %v4358
    %v4360 = vand.u32 2147483647, %v4359
    %v4362 = vcvt.s32.f32 %v4355
    %v4363 = vmul.f32 %v4362, %v4360
    %v4364 = vxor.u32 %v4363, 2147483648
    %v4365 = vsel %vm4244, %v4364, %v4363
    %v4366 = vsub.s32 4, %v4342
    %v4367 = vsel %vm4244, %v4366, %v4342
    %v4368 = vsel %vm4243, %v499, %v4365
    %v4369 = vsel %vm4243, 0, %v4367
    %v4370 = vmul.f32 %v4368, %v4368
    %v4371 = vmul.f32 %v4370, -0.001358992
    %v4372 = vadd.f32 %v4371, 0.041655596
    %v4373 = vmul.f32 %v4370, %v4372
    %v4374 = vadd.f32 %v4373, -0.4999988
    %v4375 = vmul.f32 %v4370, %v4374
    %v4376 = vadd.f32 1.0, %v4375
    %v4377 = vmul.f32 %v4368, %v4368
    %v4378 = vmul.f32 %v4377, -0.00019511016
    %v4379 = vadd.f32 %v4378, 0.008332121
    %v4380 = vmul.f32 %v4377, %v4379
    %v4381 = vadd.f32 %v4380, -0.16666654
    %v4382 = vmul.f32 %v4377, %v4381
    %v4383 = vadd.f32 %v4382, 1.0
    %v4384 = vmul.f32 %v4383, %v4368
    %vm4385 = vweird.f32 %v499
    %v4386 = vadd.s32 %v4369, 3
    %v4387 = vand.u32 %v4386, 3
    %vm4388 = vcmp.lt.s32.totalorder %v4387, 2
    %vm4389 = vcmp.eq.s32.totalorder %v4387, 0
    %v4390 = vxor.u32 %v4384, 2147483648
    %v4391 = vsel %vm4389, %v4376, %v4390
    %vm4392 = vcmp.eq.s32.totalorder %v4387, 2
    %v4393 = vxor.u32 %v4376, 2147483648
    %v4394 = vsel %vm4392, %v4393, %v4384
    %v4395 = vsel %vm4388, %v4391, %v4394
    %v4396 = vsel %vm4385, nan, %v4395
    %v4397 = vand.u32 2147483647, %v500
    %vm4398 = vcmp.le.f32.partialorder %v4397, 0.7853982
    %vm4399 = vcmp.lt.s32.totalorder %v500, 0
    %v4400 = vand.u32 %v500, 2139095040
    %v4401 = vshrl.u32 %v4400, 23
    %v4402 = vsub.s32 %v4401, 127
    %v4403 = vand.u32 2147483647, %v500
    %v4404 = vand.u32 %v4403, 8388607
    %v4405 = vor.u32 %v4404, 8388608
    %v4406 = vsub.s32 0, %v4405
    %v4407 = vadd.s32 %v4402, 1
    %vm4408 = vcmp.gt.s32.totalorder %v4407, 0
    %v4409 = vsel %vm4408, %v4407, 0
    %v4410 = vshrl.u32 %v4409, 5
    %v4411 = vand.u32 %v4409, 31
    %v4412 = vsub.s32 32, %v4411
    %v4413 = vshrl.u32 683565275, %v4412
    %v4414 = vshll.u32 683565275, %v4411
    %v4415 = vshrl.u32 2475754826, %v4412
    %v4416 = vor.u32 %v4414, %v4415
    %v4417 = vshll.u32 2475754826, %v4411
    %v4418 = vshrl.u32 2131351028, %v4412
    %v4419 = vor.u32 %v4417, %v4418
    %v4420 = vshll.u32 2131351028, %v4411
    %v4421 = vshrl.u32 2102212464, %v4412
    %v4422 = vor.u32 %v4420, %v4421
    %v4423 = vshll.u32 2102212464, %v4411
    %v4424 = vshrl.u32 920167782, %v4412
    %v4425 = vor.u32 %v4423, %v4424
    %v4426 = vshll.u32 920167782, %v4411
    %v4427 = vshrl.u32 1326507024, %v4412
    %v4428 = vor.u32 %v4426, %v4427
    %vm4429 = vcmp.lt.s32.totalorder %v4410, 1
    %vm4430 = vcmp.lt.s32.totalorder %v4410, 2
    %vm4431 = vcmp.lt.s32.totalorder %v4410, 3
    %vm4432 = vcmp.lt.s32.totalorder %v4410, 4
    %v4433 = vsel %vm4429, %v4413, %v4416
    %v4434 = vsel %vm4432, %v4422, 2102212464
    %v4435 = vsel %vm4431, %v4419, %v4434
    %v4436 = vsel %vm4430, %v4433, %v4435
    %v4437 = vsel %vm4429, %v4416, %v4419
    %v4438 = vsel %vm4432, %v4425, 920167782
    %v4439 = vsel %vm4431, %v4422, %v4438
    %v4440 = vsel %vm4430, %v4437, %v4439
    %v4441 = vsel %vm4429, %v4419, %v4422
    %v4442 = vsel %vm4432, %v4428, 1326507024
    %v4443 = vsel %vm4431, %v4425, %v4442
    %v4444 = vsel %vm4430, %v4441, %v4443
    %v4445 = vshll.u32 %v4405, 8
    %v4446 = vand.u32 %v4445, 65535
    %v4447 = vshrl.u32 %v4445, 16
    %v4448 = vand.u32 %v4444, 65535
    %v4449 = vshrl.u32 %v4444, 16
    %v4450 = vmul.u32 %v4446, %v4448
    %v4451 = vmul.u32 %v4446, %v4449
    %v4452 = vmul.u32 %v4447, %v4448
    %v4453 = vmul.u32 %v4447, %v4449
    %v4454 = vshll.u32 %v4451, 16
    %v4455 = vshrl.u32 %v4451, 16
    %v4456 = vshll.u32 %v4452, 16
    %v4457 = vshrl.u32 %v4452, 16
    %vm4458 = vc.u32 %v4450, %v4454
    %v4459 = vsel %vm4458, 1, 0
    %v4460 = vadd.s32 %v4450, %v4454
    %v4461 = vadd.s32 %v4453, %v4459
    %vm4462 = vc.u32 %v4460, %v4456
    %v4463 = vsel %vm4462, 1, 0
    %v4464 = vadd.s32 %v4460, %v4456
    %v4465 = vadd.s32 %v4461, %v4463
    %v4466 = vadd.s32 %v4465, %v4455
    %v4467 = vadd.s32 %v4466, %v4457
    %v4468 = vand.u32 %v4445, 65535
    %v4469 = vshrl.u32 %v4445, 16
    %v4470 = vand.u32 %v4440, 65535
    %v4471 = vshrl.u32 %v4440, 16
    %v4472 = vmul.u32 %v4468, %v4470
    %v4473 = vmul.u32 %v4468, %v4471
    %v4474 = vmul.u32 %v4469, %v4470
    %v4475 = vmul.u32 %v4469, %v4471
    %v4476 = vshll.u32 %v4473, 16
    %v4477 = vshrl.u32 %v4473, 16
    %v4478 = vshll.u32 %v4474, 16
    %v4479 = vshrl.u32 %v4474, 16
    %vm4480 = vc.u32 %v4472, %v4476
    %v4481 = vsel %vm4480, 1, 0
    %v4482 = vadd.s32 %v4472, %v4476
    %v4483 = vadd.s32 %v4475, %v4481
    %vm4484 = vc.u32 %v4482, %v4478
    %v4485 = vsel %vm4484, 1, 0
    %v4486 = vadd.s32 %v4482, %v4478
    %v4487 = vadd.s32 %v4483, %v4485
    %v4488 = vadd.s32 %v4487, %v4477
    %v4489 = vadd.s32 %v4488, %v4479
    %v4490 = vmul.u32 %v4445, %v4436
    %v4491 = vadd.s32 %v4467, %v4486
    %vm4492 = vc.u32 %v4467, %v4486
    %v4493 = vadd.s32 %v4489, 1
    %v4494 = vsel %vm4492, %v4493, %v4489
    %v4495 = vadd.s32 %v4490, %v4494
    %v4496 = vadd.s32 %v4495, 536870912
    %v4497 = vshrl.u32 %v4496, 30
    %v4498 = vshll.u32 %v4497, 30
    %v4499 = vsub.s32 %v4495, %v4498
    %vm4500 = vcmp.lt.s32.totalorder %v4499, 0
    %v4501 = vsub.s32 0, %v4499
    %v4502 = vsel %vm4500, %v4501, %v4499
    %v4503 = vclz %v4502
    %v4504 = vsub.s32 %v4503, 2
    %vm4505 = vcmp.gt.s32.totalorder 0, %v4504
    %v4506 = vsel %vm4505, 0, %v4504
    %v4507 = vsub.s32 32, %v4506
    %v4508 = vshll.u32 %v4499, %v4506
    %v4509 = vshrl.u32 %v4491, %v4507
    %v4510 = vor.u32 %v4508, %v4509
    %v4511 = vsub.s32 4294967266, %v4506
    %v4512 = vadd.s32 %v4511, 127
    %v4513 = vshll.u32 %v4512, 23
    %v4514 = vor.u32 4788187, %v4513
    %v4515 = vand.u32 2147483647, %v4514
    %v4517 = vcvt.s32.f32 %v4510
    %v4518 = vmul.f32 %v4517, %v4515
    %v4519 = vxor.u32 %v4518, 2147483648
    %v4520 = vsel %vm4399, %v4519, %v4518
    %v4521 = vsub.s32 4, %v4497
    %v4522 = vsel %vm4399, %v4521, %v4497
    %v4523 = vsel %vm4398, %v500, %v4520
    %v4524 = vsel %vm4398, 0, %v4522
    %v4525 = vmul.f32 %v4523, %v4523
    %v4526 = vmul.f32 %v4525, -0.001358992
    %v4527 = vadd.f32 %v4526, 0.041655596
    %v4528 = vmul.f32 %v4525, %v4527
    %v4529 = vadd.f32 %v4528, -0.4999988
    %v4530 = vmul.f32 %v4525, %v4529
    %v4531 = vadd.f32 1.0, %v4530
    %v4532 = vmul.f32 %v4523, %v4523
    %v4533 = vmul.f32 %v4532, -0.00019511016
    %v4534 = vadd.f32 %v4533, 0.008332121
    %v4535 = vmul.f32 %v4532, %v4534
    %v4536 = vadd.f32 %v4535, -0.16666654
    %v4537 = vmul.f32 %v4532, %v4536
    %v4538 = vadd.f32 %v4537, 1.0
    %v4539 = vmul.f32 %v4538, %v4523
    %vm4540 = vweird.f32 %v500
    %v4541 = vadd.s32 %v4524, 3
    %v4542 = vand.u32 %v4541, 3
    %vm4543 = vcmp.lt.s32.totalorder %v4542, 2
    %vm4544 = vcmp.eq.s32.totalorder %v4542, 0
    %v4545 = vxor.u32 %v4539, 2147483648
    %v4546 = vsel %vm4544, %v4531, %v4545
    %vm4547 = vcmp.eq.s32.totalorder %v4542, 2
    %v4548 = vxor.u32 %v4531, 2147483648
    %v4549 = vsel %vm4547, %v4548, %v4539
    %v4550 = vsel %vm4543, %v4546, %v4549
    %v4551 = vsel %vm4540, nan, %v4550
    %v4552 = vand.u32 2147483647, %v501
    %vm4553 = vcmp.le.f32.partialorder %v4552, 0.7853982
    %vm4554 = vcmp.lt.s32.totalorder %v501, 0
    %v4555 = vand.u32 %v501, 2139095040
    %v4556 = vshrl.u32 %v4555, 23
    %v4557 = vsub.s32 %v4556, 127
    %v4558 = vand.u32 2147483647, %v501
    %v4559 = vand.u32 %v4558, 8388607
    %v4560 = vor.u32 %v4559, 8388608
    %v4561 = vsub.s32 0, %v4560
    %v4562 = vadd.s32 %v4557, 1
    %vm4563 = vcmp.gt.s32.totalorder %v4562, 0
    %v4564 = vsel %vm4563, %v4562, 0
    %v4565 = vshrl.u32 %v4564, 5
    %v4566 = vand.u32 %v4564, 31
    %v4567 = vsub.s32 32, %v4566
    %v4568 = vshrl.u32 683565275, %v4567
    %v4569 = vshll.u32 683565275, %v4566
    %v4570 = vshrl.u32 2475754826, %v4567
    %v4571 = vor.u32 %v4569, %v4570
    %v4572 = vshll.u32 2475754826, %v4566
    %v4573 = vshrl.u32 2131351028, %v4567
    %v4574 = vor.u32 %v4572, %v4573
    %v4575 = vshll.u32 2131351028, %v4566
    %v4576 = vshrl.u32 2102212464, %v4567
    %v4577 = vor.u32 %v4575, %v4576
    %v4578 = vshll.u32 2102212464, %v4566
    %v4579 = vshrl.u32 920167782, %v4567
    %v4580 = vor.u32 %v4578, %v4579
    %v4581 = vshll.u32 920167782, %v4566
    %v4582 = vshrl.u32 1326507024, %v4567
    %v4583 = vor.u32 %v4581, %v4582
    %vm4584 = vcmp.lt.s32.totalorder %v4565, 1
    %vm4585 = vcmp.lt.s32.totalorder %v4565, 2
    %vm4586 = vcmp.lt.s32.totalorder %v4565, 3
    %vm4587 = vcmp.lt.s32.totalorder %v4565, 4
    %v4588 = vsel %vm4584, %v4568, %v4571
    %v4589 = vsel %vm4587, %v4577, 2102212464
    %v4590 = vsel %vm4586, %v4574, %v4589
    %v4591 = vsel %vm4585, %v4588, %v4590
    %v4592 = vsel %vm4584, %v4571, %v4574
    %v4593 = vsel %vm4587, %v4580, 920167782
    %v4594 = vsel %vm4586, %v4577, %v4593
    %v4595 = vsel %vm4585, %v4592, %v4594
    %v4596 = vsel %vm4584, %v4574, %v4577
    %v4597 = vsel %vm4587, %v4583, 1326507024
    %v4598 = vsel %vm4586, %v4580, %v4597
    %v4599 = vsel %vm4585, %v4596, %v4598
    %v4600 = vshll.u32 %v4560, 8
    %v4601 = vand.u32 %v4600, 65535
    %v4602 = vshrl.u32 %v4600, 16
    %v4603 = vand.u32 %v4599, 65535
    %v4604 = vshrl.u32 %v4599, 16
    %v4605 = vmul.u32 %v4601, %v4603
    %v4606 = vmul.u32 %v4601, %v4604
    %v4607 = vmul.u32 %v4602, %v4603
    %v4608 = vmul.u32 %v4602, %v4604
    %v4609 = vshll.u32 %v4606, 16
    %v4610 = vshrl.u32 %v4606, 16
    %v4611 = vshll.u32 %v4607, 16
    %v4612 = vshrl.u32 %v4607, 16
    %vm4613 = vc.u32 %v4605, %v4609
    %v4614 = vsel %vm4613, 1, 0
    %v4615 = vadd.s32 %v4605, %v4609
    %v4616 = vadd.s32 %v4608, %v4614
    %vm4617 = vc.u32 %v4615, %v4611
    %v4618 = vsel %vm4617, 1, 0
    %v4619 = vadd.s32 %v4615, %v4611
    %v4620 = vadd.s32 %v4616, %v4618
    %v4621 = vadd.s32 %v4620, %v4610
    %v4622 = vadd.s32 %v4621, %v4612
    %v4623 = vand.u32 %v4600, 65535
    %v4624 = vshrl.u32 %v4600, 16
    %v4625 = vand.u32 %v4595, 65535
    %v4626 = vshrl.u32 %v4595, 16
    %v4627 = vmul.u32 %v4623, %v4625
    %v4628 = vmul.u32 %v4623, %v4626
    %v4629 = vmul.u32 %v4624, %v4625
    %v4630 = vmul.u32 %v4624, %v4626
    %v4631 = vshll.u32 %v4628, 16
    %v4632 = vshrl.u32 %v4628, 16
    %v4633 = vshll.u32 %v4629, 16
    %v4634 = vshrl.u32 %v4629, 16
    %vm4635 = vc.u32 %v4627, %v4631
    %v4636 = vsel %vm4635, 1, 0
    %v4637 = vadd.s32 %v4627, %v4631
    %v4638 = vadd.s32 %v4630, %v4636
    %vm4639 = vc.u32 %v4637, %v4633
    %v4640 = vsel %vm4639, 1, 0
    %v4641 = vadd.s32 %v4637, %v4633
    %v4642 = vadd.s32 %v4638, %v4640
    %v4643 = vadd.s32 %v4642, %v4632
    %v4644 = vadd.s32 %v4643, %v4634
    %v4645 = vmul.u32 %v4600, %v4591
    %v4646 = vadd.s32 %v4622, %v4641
    %vm4647 = vc.u32 %v4622, %v4641
    %v4648 = vadd.s32 %v4644, 1
    %v4649 = vsel %vm4647, %v4648, %v4644
    %v4650 = vadd.s32 %v4645, %v4649
    %v4651 = vadd.s32 %v4650, 536870912
    %v4652 = vshrl.u32 %v4651, 30
    %v4653 = vshll.u32 %v4652, 30
    %v4654 = vsub.s32 %v4650, %v4653
    %vm4655 = vcmp.lt.s32.totalorder %v4654, 0
    %v4656 = vsub.s32 0, %v4654
    %v4657 = vsel %vm4655, %v4656, %v4654
    %v4658 = vclz %v4657
    %v4659 = vsub.s32 %v4658, 2
    %vm4660 = vcmp.gt.s32.totalorder 0, %v4659
    %v4661 = vsel %vm4660, 0, %v4659
    %v4662 = vsub.s32 32, %v4661
    %v4663 = vshll.u32 %v4654, %v4661
    %v4664 = vshrl.u32 %v4646, %v4662
    %v4665 = vor.u32 %v4663, %v4664
    %v4666 = vsub.s32 4294967266, %v4661
    %v4667 = vadd.s32 %v4666, 127
    %v4668 = vshll.u32 %v4667, 23
    %v4669 = vor.u32 4788187, %v4668
    %v4670 = vand.u32 2147483647, %v4669
    %v4672 = vcvt.s32.f32 %v4665
    %v4673 = vmul.f32 %v4672, %v4670
    %v4674 = vxor.u32 %v4673, 2147483648
    %v4675 = vsel %vm4554, %v4674, %v4673
    %v4676 = vsub.s32 4, %v4652
    %v4677 = vsel %vm4554, %v4676, %v4652
    %v4678 = vsel %vm4553, %v501, %v4675
    %v4679 = vsel %vm4553, 0, %v4677
    %v4680 = vmul.f32 %v4678, %v4678
    %v4681 = vmul.f32 %v4680, -0.001358992
    %v4682 = vadd.f32 %v4681, 0.041655596
    %v4683 = vmul.f32 %v4680, %v4682
    %v4684 = vadd.f32 %v4683, -0.4999988
    %v4685 = vmul.f32 %v4680, %v4684
    %v4686 = vadd.f32 1.0, %v4685
    %v4687 = vmul.f32 %v4678, %v4678
    %v4688 = vmul.f32 %v4687, -0.00019511016
    %v4689 = vadd.f32 %v4688, 0.008332121
    %v4690 = vmul.f32 %v4687, %v4689
    %v4691 = vadd.f32 %v4690, -0.16666654
    %v4692 = vmul.f32 %v4687, %v4691
    %v4693 = vadd.f32 %v4692, 1.0
    %v4694 = vmul.f32 %v4693, %v4678
    %vm4695 = vweird.f32 %v501
    %v4696 = vadd.s32 %v4679, 3
    %v4697 = vand.u32 %v4696, 3
    %vm4698 = vcmp.lt.s32.totalorder %v4697, 2
    %vm4699 = vcmp.eq.s32.totalorder %v4697, 0
    %v4700 = vxor.u32 %v4694, 2147483648
    %v4701 = vsel %vm4699, %v4686, %v4700
    %vm4702 = vcmp.eq.s32.totalorder %v4697, 2
    %v4703 = vxor.u32 %v4686, 2147483648
    %v4704 = vsel %vm4702, %v4703, %v4694
    %v4705 = vsel %vm4698, %v4701, %v4704
    %v4706 = vsel %vm4695, nan, %v4705
    %v4707 = vand.u32 2147483647, %v502
    %vm4708 = vcmp.le.f32.partialorder %v4707, 0.7853982
    %vm4709 = vcmp.lt.s32.totalorder %v502, 0
    %v4710 = vand.u32 %v502, 2139095040
    %v4711 = vshrl.u32 %v4710, 23
    %v4712 = vsub.s32 %v4711, 127
    %v4713 = vand.u32 2147483647, %v502
    %v4714 = vand.u32 %v4713, 8388607
    %v4715 = vor.u32 %v4714, 8388608
    %v4716 = vsub.s32 0, %v4715
    %v4717 = vadd.s32 %v4712, 1
    %vm4718 = vcmp.gt.s32.totalorder %v4717, 0
    %v4719 = vsel %vm4718, %v4717, 0
    %v4720 = vshrl.u32 %v4719, 5
    %v4721 = vand.u32 %v4719, 31
    %v4722 = vsub.s32 32, %v4721
    %v4723 = vshrl.u32 683565275, %v4722
    %v4724 = vshll.u32 683565275, %v4721
    %v4725 = vshrl.u32 2475754826, %v4722
    %v4726 = vor.u32 %v4724, %v4725
    %v4727 = vshll.u32 2475754826, %v4721
    %v4728 = vshrl.u32 2131351028, %v4722
    %v4729 = vor.u32 %v4727, %v4728
    %v4730 = vshll.u32 2131351028, %v4721
    %v4731 = vshrl.u32 2102212464, %v4722
    %v4732 = vor.u32 %v4730, %v4731
    %v4733 = vshll.u32 2102212464, %v4721
    %v4734 = vshrl.u32 920167782, %v4722
    %v4735 = vor.u32 %v4733, %v4734
    %v4736 = vshll.u32 920167782, %v4721
    %v4737 = vshrl.u32 1326507024, %v4722
    %v4738 = vor.u32 %v4736, %v4737
    %vm4739 = vcmp.lt.s32.totalorder %v4720, 1
    %vm4740 = vcmp.lt.s32.totalorder %v4720, 2
    %vm4741 = vcmp.lt.s32.totalorder %v4720, 3
    %vm4742 = vcmp.lt.s32.totalorder %v4720, 4
    %v4743 = vsel %vm4739, %v4723, %v4726
    %v4744 = vsel %vm4742, %v4732, 2102212464
    %v4745 = vsel %vm4741, %v4729, %v4744
    %v4746 = vsel %vm4740, %v4743, %v4745
    %v4747 = vsel %vm4739, %v4726, %v4729
    %v4748 = vsel %vm4742, %v4735, 920167782
    %v4749 = vsel %vm4741, %v4732, %v4748
    %v4750 = vsel %vm4740, %v4747, %v4749
    %v4751 = vsel %vm4739, %v4729, %v4732
    %v4752 = vsel %vm4742, %v4738, 1326507024
    %v4753 = vsel %vm4741, %v4735, %v4752
    %v4754 = vsel %vm4740, %v4751, %v4753
    %v4755 = vshll.u32 %v4715, 8
    %v4756 = vand.u32 %v4755, 65535
    %v4757 = vshrl.u32 %v4755, 16
    %v4758 = vand.u32 %v4754, 65535
    %v4759 = vshrl.u32 %v4754, 16
    %v4760 = vmul.u32 %v4756, %v4758
    %v4761 = vmul.u32 %v4756, %v4759
    %v4762 = vmul.u32 %v4757, %v4758
    %v4763 = vmul.u32 %v4757, %v4759
    %v4764 = vshll.u32 %v4761, 16
    %v4765 = vshrl.u32 %v4761, 16
    %v4766 = vshll.u32 %v4762, 16
    %v4767 = vshrl.u32 %v4762, 16
    %vm4768 = vc.u32 %v4760, %v4764
    %v4769 = vsel %vm4768, 1, 0
    %v4770 = vadd.s32 %v4760, %v4764
    %v4771 = vadd.s32 %v4763, %v4769
    %vm4772 = vc.u32 %v4770, %v4766
    %v4773 = vsel %vm4772, 1, 0
    %v4774 = vadd.s32 %v4770, %v4766
    %v4775 = vadd.s32 %v4771, %v4773
    %v4776 = vadd.s32 %v4775, %v4765
    %v4777 = vadd.s32 %v4776, %v4767
    %v4778 = vand.u32 %v4755, 65535
    %v4779 = vshrl.u32 %v4755, 16
    %v4780 = vand.u32 %v4750, 65535
    %v4781 = vshrl.u32 %v4750, 16
    %v4782 = vmul.u32 %v4778, %v4780
    %v4783 = vmul.u32 %v4778, %v4781
    %v4784 = vmul.u32 %v4779, %v4780
    %v4785 = vmul.u32 %v4779, %v4781
    %v4786 = vshll.u32 %v4783, 16
    %v4787 = vshrl.u32 %v4783, 16
    %v4788 = vshll.u32 %v4784, 16
    %v4789 = vshrl.u32 %v4784, 16
    %vm4790 = vc.u32 %v4782, %v4786
    %v4791 = vsel %vm4790, 1, 0
    %v4792 = vadd.s32 %v4782, %v4786
    %v4793 = vadd.s32 %v4785, %v4791
    %vm4794 = vc.u32 %v4792, %v4788
    %v4795 = vsel %vm4794, 1, 0
    %v4796 = vadd.s32 %v4792, %v4788
    %v4797 = vadd.s32 %v4793, %v4795
    %v4798 = vadd.s32 %v4797, %v4787
    %v4799 = vadd.s32 %v4798, %v4789
    %v4800 = vmul.u32 %v4755, %v4746
    %v4801 = vadd.s32 %v4777, %v4796
    %vm4802 = vc.u32 %v4777, %v4796
    %v4803 = vadd.s32 %v4799, 1
    %v4804 = vsel %vm4802, %v4803, %v4799
    %v4805 = vadd.s32 %v4800, %v4804
    %v4806 = vadd.s32 %v4805, 536870912
    %v4807 = vshrl.u32 %v4806, 30
    %v4808 = vshll.u32 %v4807, 30
    %v4809 = vsub.s32 %v4805, %v4808
    %vm4810 = vcmp.lt.s32.totalorder %v4809, 0
    %v4811 = vsub.s32 0, %v4809
    %v4812 = vsel %vm4810, %v4811, %v4809
    %v4813 = vclz %v4812
    %v4814 = vsub.s32 %v4813, 2
    %vm4815 = vcmp.gt.s32.totalorder 0, %v4814
    %v4816 = vsel %vm4815, 0, %v4814
    %v4817 = vsub.s32 32, %v4816
    %v4818 = vshll.u32 %v4809, %v4816
    %v4819 = vshrl.u32 %v4801, %v4817
    %v4820 = vor.u32 %v4818, %v4819
    %v4821 = vsub.s32 4294967266, %v4816
    %v4822 = vadd.s32 %v4821, 127
    %v4823 = vshll.u32 %v4822, 23
    %v4824 = vor.u32 4788187, %v4823
    %v4825 = vand.u32 2147483647, %v4824
    %v4827 = vcvt.s32.f32 %v4820
    %v4828 = vmul.f32 %v4827, %v4825
    %v4829 = vxor.u32 %v4828, 2147483648
    %v4830 = vsel %vm4709, %v4829, %v4828
    %v4831 = vsub.s32 4, %v4807
    %v4832 = vsel %vm4709, %v4831, %v4807
    %v4833 = vsel %vm4708, %v502, %v4830
    %v4834 = vsel %vm4708, 0, %v4832
    %v4835 = vmul.f32 %v4833, %v4833
    %v4836 = vmul.f32 %v4835, -0.001358992
    %v4837 = vadd.f32 %v4836, 0.041655596
    %v4838 = vmul.f32 %v4835, %v4837
    %v4839 = vadd.f32 %v4838, -0.4999988
    %v4840 = vmul.f32 %v4835, %v4839
    %v4841 = vadd.f32 1.0, %v4840
    %v4842 = vmul.f32 %v4833, %v4833
    %v4843 = vmul.f32 %v4842, -0.00019511016
    %v4844 = vadd.f32 %v4843, 0.008332121
    %v4845 = vmul.f32 %v4842, %v4844
    %v4846 = vadd.f32 %v4845, -0.16666654
    %v4847 = vmul.f32 %v4842, %v4846
    %v4848 = vadd.f32 %v4847, 1.0
    %v4849 = vmul.f32 %v4848, %v4833
    %vm4850 = vweird.f32 %v502
    %v4851 = vadd.s32 %v4834, 3
    %v4852 = vand.u32 %v4851, 3
    %vm4853 = vcmp.lt.s32.totalorder %v4852, 2
    %vm4854 = vcmp.eq.s32.totalorder %v4852, 0
    %v4855 = vxor.u32 %v4849, 2147483648
    %v4856 = vsel %vm4854, %v4841, %v4855
    %vm4857 = vcmp.eq.s32.totalorder %v4852, 2
    %v4858 = vxor.u32 %v4841, 2147483648
    %v4859 = vsel %vm4857, %v4858, %v4849
    %v4860 = vsel %vm4853, %v4856, %v4859
    %v4861 = vsel %vm4850, nan, %v4860
    %v4862 = vand.u32 2147483647, %v503
    %vm4863 = vcmp.le.f32.partialorder %v4862, 0.7853982
    %vm4864 = vcmp.lt.s32.totalorder %v503, 0
    %v4865 = vand.u32 %v503, 2139095040
    %v4866 = vshrl.u32 %v4865, 23
    %v4867 = vsub.s32 %v4866, 127
    %v4868 = vand.u32 2147483647, %v503
    %v4869 = vand.u32 %v4868, 8388607
    %v4870 = vor.u32 %v4869, 8388608
    %v4871 = vsub.s32 0, %v4870
    %v4872 = vadd.s32 %v4867, 1
    %vm4873 = vcmp.gt.s32.totalorder %v4872, 0
    %v4874 = vsel %vm4873, %v4872, 0
    %v4875 = vshrl.u32 %v4874, 5
    %v4876 = vand.u32 %v4874, 31
    %v4877 = vsub.s32 32, %v4876
    %v4878 = vshrl.u32 683565275, %v4877
    %v4879 = vshll.u32 683565275, %v4876
    %v4880 = vshrl.u32 2475754826, %v4877
    %v4881 = vor.u32 %v4879, %v4880
    %v4882 = vshll.u32 2475754826, %v4876
    %v4883 = vshrl.u32 2131351028, %v4877
    %v4884 = vor.u32 %v4882, %v4883
    %v4885 = vshll.u32 2131351028, %v4876
    %v4886 = vshrl.u32 2102212464, %v4877
    %v4887 = vor.u32 %v4885, %v4886
    %v4888 = vshll.u32 2102212464, %v4876
    %v4889 = vshrl.u32 920167782, %v4877
    %v4890 = vor.u32 %v4888, %v4889
    %v4891 = vshll.u32 920167782, %v4876
    %v4892 = vshrl.u32 1326507024, %v4877
    %v4893 = vor.u32 %v4891, %v4892
    %vm4894 = vcmp.lt.s32.totalorder %v4875, 1
    %vm4895 = vcmp.lt.s32.totalorder %v4875, 2
    %vm4896 = vcmp.lt.s32.totalorder %v4875, 3
    %vm4897 = vcmp.lt.s32.totalorder %v4875, 4
    %v4898 = vsel %vm4894, %v4878, %v4881
    %v4899 = vsel %vm4897, %v4887, 2102212464
    %v4900 = vsel %vm4896, %v4884, %v4899
    %v4901 = vsel %vm4895, %v4898, %v4900
    %v4902 = vsel %vm4894, %v4881, %v4884
    %v4903 = vsel %vm4897, %v4890, 920167782
    %v4904 = vsel %vm4896, %v4887, %v4903
    %v4905 = vsel %vm4895, %v4902, %v4904
    %v4906 = vsel %vm4894, %v4884, %v4887
    %v4907 = vsel %vm4897, %v4893, 1326507024
    %v4908 = vsel %vm4896, %v4890, %v4907
    %v4909 = vsel %vm4895, %v4906, %v4908
    %v4910 = vshll.u32 %v4870, 8
    %v4911 = vand.u32 %v4910, 65535
    %v4912 = vshrl.u32 %v4910, 16
    %v4913 = vand.u32 %v4909, 65535
    %v4914 = vshrl.u32 %v4909, 16
    %v4915 = vmul.u32 %v4911, %v4913
    %v4916 = vmul.u32 %v4911, %v4914
    %v4917 = vmul.u32 %v4912, %v4913
    %v4918 = vmul.u32 %v4912, %v4914
    %v4919 = vshll.u32 %v4916, 16
    %v4920 = vshrl.u32 %v4916, 16
    %v4921 = vshll.u32 %v4917, 16
    %v4922 = vshrl.u32 %v4917, 16
    %vm4923 = vc.u32 %v4915, %v4919
    %v4924 = vsel %vm4923, 1, 0
    %v4925 = vadd.s32 %v4915, %v4919
    %v4926 = vadd.s32 %v4918, %v4924
    %vm4927 = vc.u32 %v4925, %v4921
    %v4928 = vsel %vm4927, 1, 0
    %v4929 = vadd.s32 %v4925, %v4921
    %v4930 = vadd.s32 %v4926, %v4928
    %v4931 = vadd.s32 %v4930, %v4920
    %v4932 = vadd.s32 %v4931, %v4922
    %v4933 = vand.u32 %v4910, 65535
    %v4934 = vshrl.u32 %v4910, 16
    %v4935 = vand.u32 %v4905, 65535
    %v4936 = vshrl.u32 %v4905, 16
    %v4937 = vmul.u32 %v4933, %v4935
    %v4938 = vmul.u32 %v4933, %v4936
    %v4939 = vmul.u32 %v4934, %v4935
    %v4940 = vmul.u32 %v4934, %v4936
    %v4941 = vshll.u32 %v4938, 16
    %v4942 = vshrl.u32 %v4938, 16
    %v4943 = vshll.u32 %v4939, 16
    %v4944 = vshrl.u32 %v4939, 16
    %vm4945 = vc.u32 %v4937, %v4941
    %v4946 = vsel %vm4945, 1, 0
    %v4947 = vadd.s32 %v4937, %v4941
    %v4948 = vadd.s32 %v4940, %v4946
    %vm4949 = vc.u32 %v4947, %v4943
    %v4950 = vsel %vm4949, 1, 0
    %v4951 = vadd.s32 %v4947, %v4943
    %v4952 = vadd.s32 %v4948, %v4950
    %v4953 = vadd.s32 %v4952, %v4942
    %v4954 = vadd.s32 %v4953, %v4944
    %v4955 = vmul.u32 %v4910, %v4901
    %v4956 = vadd.s32 %v4932, %v4951
    %vm4957 = vc.u32 %v4932, %v4951
    %v4958 = vadd.s32 %v4954, 1
    %v4959 = vsel %vm4957, %v4958, %v4954
    %v4960 = vadd.s32 %v4955, %v4959
    %v4961 = vadd.s32 %v4960, 536870912
    %v4962 = vshrl.u32 %v4961, 30
    %v4963 = vshll.u32 %v4962, 30
    %v4964 = vsub.s32 %v4960, %v4963
    %vm4965 = vcmp.lt.s32.totalorder %v4964, 0
    %v4966 = vsub.s32 0, %v4964
    %v4967 = vsel %vm4965, %v4966, %v4964
    %v4968 = vclz %v4967
    %v4969 = vsub.s32 %v4968, 2
    %vm4970 = vcmp.gt.s32.totalorder 0, %v4969
    %v4971 = vsel %vm4970, 0, %v4969
    %v4972 = vsub.s32 32, %v4971
    %v4973 = vshll.u32 %v4964, %v4971
    %v4974 = vshrl.u32 %v4956, %v4972
    %v4975 = vor.u32 %v4973, %v4974
    %v4976 = vsub.s32 4294967266, %v4971
    %v4977 = vadd.s32 %v4976, 127
    %v4978 = vshll.u32 %v4977, 23
    %v4979 = vor.u32 4788187, %v4978
    %v4980 = vand.u32 2147483647, %v4979
    %v4982 = vcvt.s32.f32 %v4975
    %v4983 = vmul.f32 %v4982, %v4980
    %v4984 = vxor.u32 %v4983, 2147483648
    %v4985 = vsel %vm4864, %v4984, %v4983
    %v4986 = vsub.s32 4, %v4962
    %v4987 = vsel %vm4864, %v4986, %v4962
    %v4988 = vsel %vm4863, %v503, %v4985
    %v4989 = vsel %vm4863, 0, %v4987
    %v4990 = vmul.f32 %v4988, %v4988
    %v4991 = vmul.f32 %v4990, -0.001358992
    %v4992 = vadd.f32 %v4991, 0.041655596
    %v4993 = vmul.f32 %v4990, %v4992
    %v4994 = vadd.f32 %v4993, -0.4999988
    %v4995 = vmul.f32 %v4990, %v4994
    %v4996 = vadd.f32 1.0, %v4995
    %v4997 = vmul.f32 %v4988, %v4988
    %v4998 = vmul.f32 %v4997, -0.00019511016
    %v4999 = vadd.f32 %v4998, 0.008332121
    %v5000 = vmul.f32 %v4997, %v4999
    %v5001 = vadd.f32 %v5000, -0.16666654
    %v5002 = vmul.f32 %v4997, %v5001
    %v5003 = vadd.f32 %v5002, 1.0
    %v5004 = vmul.f32 %v5003, %v4988
    %vm5005 = vweird.f32 %v503
    %v5006 = vadd.s32 %v4989, 3
    %v5007 = vand.u32 %v5006, 3
    %vm5008 = vcmp.lt.s32.totalorder %v5007, 2
    %vm5009 = vcmp.eq.s32.totalorder %v5007, 0
    %v5010 = vxor.u32 %v5004, 2147483648
    %v5011 = vsel %vm5009, %v4996, %v5010
    %vm5012 = vcmp.eq.s32.totalorder %v5007, 2
    %v5013 = vxor.u32 %v4996, 2147483648
    %v5014 = vsel %vm5012, %v5013, %v5004
    %v5015 = vsel %vm5008, %v5011, %v5014
    %v5016 = vsel %vm5005, nan, %v5015
    %v5017 = vand.u32 2147483647, %v504
    %vm5018 = vcmp.le.f32.partialorder %v5017, 0.7853982
    %vm5019 = vcmp.lt.s32.totalorder %v504, 0
    %v5020 = vand.u32 %v504, 2139095040
    %v5021 = vshrl.u32 %v5020, 23
    %v5022 = vsub.s32 %v5021, 127
    %v5023 = vand.u32 2147483647, %v504
    %v5024 = vand.u32 %v5023, 8388607
    %v5025 = vor.u32 %v5024, 8388608
    %v5026 = vsub.s32 0, %v5025
    %v5027 = vadd.s32 %v5022, 1
    %vm5028 = vcmp.gt.s32.totalorder %v5027, 0
    %v5029 = vsel %vm5028, %v5027, 0
    %v5030 = vshrl.u32 %v5029, 5
    %v5031 = vand.u32 %v5029, 31
    %v5032 = vsub.s32 32, %v5031
    %v5033 = vshrl.u32 683565275, %v5032
    %v5034 = vshll.u32 683565275, %v5031
    %v5035 = vshrl.u32 2475754826, %v5032
    %v5036 = vor.u32 %v5034, %v5035
    %v5037 = vshll.u32 2475754826, %v5031
    %v5038 = vshrl.u32 2131351028, %v5032
    %v5039 = vor.u32 %v5037, %v5038
    %v5040 = vshll.u32 2131351028, %v5031
    %v5041 = vshrl.u32 2102212464, %v5032
    %v5042 = vor.u32 %v5040, %v5041
    %v5043 = vshll.u32 2102212464, %v5031
    %v5044 = vshrl.u32 920167782, %v5032
    %v5045 = vor.u32 %v5043, %v5044
    %v5046 = vshll.u32 920167782, %v5031
    %v5047 = vshrl.u32 1326507024, %v5032
    %v5048 = vor.u32 %v5046, %v5047
    %vm5049 = vcmp.lt.s32.totalorder %v5030, 1
    %vm5050 = vcmp.lt.s32.totalorder %v5030, 2
    %vm5051 = vcmp.lt.s32.totalorder %v5030, 3
    %vm5052 = vcmp.lt.s32.totalorder %v5030, 4
    %v5053 = vsel %vm5049, %v5033, %v5036
    %v5054 = vsel %vm5052, %v5042, 2102212464
    %v5055 = vsel %vm5051, %v5039, %v5054
    %v5056 = vsel %vm5050, %v5053, %v5055
    %v5057 = vsel %vm5049, %v5036, %v5039
    %v5058 = vsel %vm5052, %v5045, 920167782
    %v5059 = vsel %vm5051, %v5042, %v5058
    %v5060 = vsel %vm5050, %v5057, %v5059
    %v5061 = vsel %vm5049, %v5039, %v5042
    %v5062 = vsel %vm5052, %v5048, 1326507024
    %v5063 = vsel %vm5051, %v5045, %v5062
    %v5064 = vsel %vm5050, %v5061, %v5063
    %v5065 = vshll.u32 %v5025, 8
    %v5066 = vand.u32 %v5065, 65535
    %v5067 = vshrl.u32 %v5065, 16
    %v5068 = vand.u32 %v5064, 65535
    %v5069 = vshrl.u32 %v5064, 16
    %v5070 = vmul.u32 %v5066, %v5068
    %v5071 = vmul.u32 %v5066, %v5069
    %v5072 = vmul.u32 %v5067, %v5068
    %v5073 = vmul.u32 %v5067, %v5069
    %v5074 = vshll.u32 %v5071, 16
    %v5075 = vshrl.u32 %v5071, 16
    %v5076 = vshll.u32 %v5072, 16
    %v5077 = vshrl.u32 %v5072, 16
    %vm5078 = vc.u32 %v5070, %v5074
    %v5079 = vsel %vm5078, 1, 0
    %v5080 = vadd.s32 %v5070, %v5074
    %v5081 = vadd.s32 %v5073, %v5079
    %vm5082 = vc.u32 %v5080, %v5076
    %v5083 = vsel %vm5082, 1, 0
    %v5084 = vadd.s32 %v5080, %v5076
    %v5085 = vadd.s32 %v5081, %v5083
    %v5086 = vadd.s32 %v5085, %v5075
    %v5087 = vadd.s32 %v5086, %v5077
    %v5088 = vand.u32 %v5065, 65535
    %v5089 = vshrl.u32 %v5065, 16
    %v5090 = vand.u32 %v5060, 65535
    %v5091 = vshrl.u32 %v5060, 16
    %v5092 = vmul.u32 %v5088, %v5090
    %v5093 = vmul.u32 %v5088, %v5091
    %v5094 = vmul.u32 %v5089, %v5090
    %v5095 = vmul.u32 %v5089, %v5091
    %v5096 = vshll.u32 %v5093, 16
    %v5097 = vshrl.u32 %v5093, 16
    %v5098 = vshll.u32 %v5094, 16
    %v5099 = vshrl.u32 %v5094, 16
    %vm5100 = vc.u32 %v5092, %v5096
    %v5101 = vsel %vm5100, 1, 0
    %v5102 = vadd.s32 %v5092, %v5096
    %v5103 = vadd.s32 %v5095, %v5101
    %vm5104 = vc.u32 %v5102, %v5098
    %v5105 = vsel %vm5104, 1, 0
    %v5106 = vadd.s32 %v5102, %v5098
    %v5107 = vadd.s32 %v5103, %v5105
    %v5108 = vadd.s32 %v5107, %v5097
    %v5109 = vadd.s32 %v5108, %v5099
    %v5110 = vmul.u32 %v5065, %v5056
    %v5111 = vadd.s32 %v5087, %v5106
    %vm5112 = vc.u32 %v5087, %v5106
    %v5113 = vadd.s32 %v5109, 1
    %v5114 = vsel %vm5112, %v5113, %v5109
    %v5115 = vadd.s32 %v5110, %v5114
    %v5116 = vadd.s32 %v5115, 536870912
    %v5117 = vshrl.u32 %v5116, 30
    %v5118 = vshll.u32 %v5117, 30
    %v5119 = vsub.s32 %v5115, %v5118
    %vm5120 = vcmp.lt.s32.totalorder %v5119, 0
    %v5121 = vsub.s32 0, %v5119
    %v5122 = vsel %vm5120, %v5121, %v5119
    %v5123 = vclz %v5122
    %v5124 = vsub.s32 %v5123, 2
    %vm5125 = vcmp.gt.s32.totalorder 0, %v5124
    %v5126 = vsel %vm5125, 0, %v5124
    %v5127 = vsub.s32 32, %v5126
    %v5128 = vshll.u32 %v5119, %v5126
    %v5129 = vshrl.u32 %v5111, %v5127
    %v5130 = vor.u32 %v5128, %v5129
    %v5131 = vsub.s32 4294967266, %v5126
    %v5132 = vadd.s32 %v5131, 127
    %v5133 = vshll.u32 %v5132, 23
    %v5134 = vor.u32 4788187, %v5133
    %v5135 = vand.u32 2147483647, %v5134
    %v5137 = vcvt.s32.f32 %v5130
    %v5138 = vmul.f32 %v5137, %v5135
    %v5139 = vxor.u32 %v5138, 2147483648
    %v5140 = vsel %vm5019, %v5139, %v5138
    %v5141 = vsub.s32 4, %v5117
    %v5142 = vsel %vm5019, %v5141, %v5117
    %v5143 = vsel %vm5018, %v504, %v5140
    %v5144 = vsel %vm5018, 0, %v5142
    %v5145 = vmul.f32 %v5143, %v5143
    %v5146 = vmul.f32 %v5145, -0.001358992
    %v5147 = vadd.f32 %v5146, 0.041655596
    %v5148 = vmul.f32 %v5145, %v5147
    %v5149 = vadd.f32 %v5148, -0.4999988
    %v5150 = vmul.f32 %v5145, %v5149
    %v5151 = vadd.f32 1.0, %v5150
    %v5152 = vmul.f32 %v5143, %v5143
    %v5153 = vmul.f32 %v5152, -0.00019511016
    %v5154 = vadd.f32 %v5153, 0.008332121
    %v5155 = vmul.f32 %v5152, %v5154
    %v5156 = vadd.f32 %v5155, -0.16666654
    %v5157 = vmul.f32 %v5152, %v5156
    %v5158 = vadd.f32 %v5157, 1.0
    %v5159 = vmul.f32 %v5158, %v5143
    %vm5160 = vweird.f32 %v504
    %v5161 = vadd.s32 %v5144, 3
    %v5162 = vand.u32 %v5161, 3
    %vm5163 = vcmp.lt.s32.totalorder %v5162, 2
    %vm5164 = vcmp.eq.s32.totalorder %v5162, 0
    %v5165 = vxor.u32 %v5159, 2147483648
    %v5166 = vsel %vm5164, %v5151, %v5165
    %vm5167 = vcmp.eq.s32.totalorder %v5162, 2
    %v5168 = vxor.u32 %v5151, 2147483648
    %v5169 = vsel %vm5167, %v5168, %v5159
    %v5170 = vsel %vm5163, %v5166, %v5169
    %v5171 = vsel %vm5160, nan, %v5170
    %v5172 = vand.u32 2147483647, %v505
    %vm5173 = vcmp.le.f32.partialorder %v5172, 0.7853982
    %vm5174 = vcmp.lt.s32.totalorder %v505, 0
    %v5175 = vand.u32 %v505, 2139095040
    %v5176 = vshrl.u32 %v5175, 23
    %v5177 = vsub.s32 %v5176, 127
    %v5178 = vand.u32 2147483647, %v505
    %v5179 = vand.u32 %v5178, 8388607
    %v5180 = vor.u32 %v5179, 8388608
    %v5181 = vsub.s32 0, %v5180
    %v5182 = vadd.s32 %v5177, 1
    %vm5183 = vcmp.gt.s32.totalorder %v5182, 0
    %v5184 = vsel %vm5183, %v5182, 0
    %v5185 = vshrl.u32 %v5184, 5
    %v5186 = vand.u32 %v5184, 31
    %v5187 = vsub.s32 32, %v5186
    %v5188 = vshrl.u32 683565275, %v5187
    %v5189 = vshll.u32 683565275, %v5186
    %v5190 = vshrl.u32 2475754826, %v5187
    %v5191 = vor.u32 %v5189, %v5190
    %v5192 = vshll.u32 2475754826, %v5186
    %v5193 = vshrl.u32 2131351028, %v5187
    %v5194 = vor.u32 %v5192, %v5193
    %v5195 = vshll.u32 2131351028, %v5186
    %v5196 = vshrl.u32 2102212464, %v5187
    %v5197 = vor.u32 %v5195, %v5196
    %v5198 = vshll.u32 2102212464, %v5186
    %v5199 = vshrl.u32 920167782, %v5187
    %v5200 = vor.u32 %v5198, %v5199
    %v5201 = vshll.u32 920167782, %v5186
    %v5202 = vshrl.u32 1326507024, %v5187
    %v5203 = vor.u32 %v5201, %v5202
    %vm5204 = vcmp.lt.s32.totalorder %v5185, 1
    %vm5205 = vcmp.lt.s32.totalorder %v5185, 2
    %vm5206 = vcmp.lt.s32.totalorder %v5185, 3
    %vm5207 = vcmp.lt.s32.totalorder %v5185, 4
    %v5208 = vsel %vm5204, %v5188, %v5191
    %v5209 = vsel %vm5207, %v5197, 2102212464
    %v5210 = vsel %vm5206, %v5194, %v5209
    %v5211 = vsel %vm5205, %v5208, %v5210
    %v5212 = vsel %vm5204, %v5191, %v5194
    %v5213 = vsel %vm5207, %v5200, 920167782
    %v5214 = vsel %vm5206, %v5197, %v5213
    %v5215 = vsel %vm5205, %v5212, %v5214
    %v5216 = vsel %vm5204, %v5194, %v5197
    %v5217 = vsel %vm5207, %v5203, 1326507024
    %v5218 = vsel %vm5206, %v5200, %v5217
    %v5219 = vsel %vm5205, %v5216, %v5218
    %v5220 = vshll.u32 %v5180, 8
    %v5221 = vand.u32 %v5220, 65535
    %v5222 = vshrl.u32 %v5220, 16
    %v5223 = vand.u32 %v5219, 65535
    %v5224 = vshrl.u32 %v5219, 16
    %v5225 = vmul.u32 %v5221, %v5223
    %v5226 = vmul.u32 %v5221, %v5224
    %v5227 = vmul.u32 %v5222, %v5223
    %v5228 = vmul.u32 %v5222, %v5224
    %v5229 = vshll.u32 %v5226, 16
    %v5230 = vshrl.u32 %v5226, 16
    %v5231 = vshll.u32 %v5227, 16
    %v5232 = vshrl.u32 %v5227, 16
    %vm5233 = vc.u32 %v5225, %v5229
    %v5234 = vsel %vm5233, 1, 0
    %v5235 = vadd.s32 %v5225, %v5229
    %v5236 = vadd.s32 %v5228, %v5234
    %vm5237 = vc.u32 %v5235, %v5231
    %v5238 = vsel %vm5237, 1, 0
    %v5239 = vadd.s32 %v5235, %v5231
    %v5240 = vadd.s32 %v5236, %v5238
    %v5241 = vadd.s32 %v5240, %v5230
    %v5242 = vadd.s32 %v5241, %v5232
    %v5243 = vand.u32 %v5220, 65535
    %v5244 = vshrl.u32 %v5220, 16
    %v5245 = vand.u32 %v5215, 65535
    %v5246 = vshrl.u32 %v5215, 16
    %v5247 = vmul.u32 %v5243, %v5245
    %v5248 = vmul.u32 %v5243, %v5246
    %v5249 = vmul.u32 %v5244, %v5245
    %v5250 = vmul.u32 %v5244, %v5246
    %v5251 = vshll.u32 %v5248, 16
    %v5252 = vshrl.u32 %v5248, 16
    %v5253 = vshll.u32 %v5249, 16
    %v5254 = vshrl.u32 %v5249, 16
    %vm5255 = vc.u32 %v5247, %v5251
    %v5256 = vsel %vm5255, 1, 0
    %v5257 = vadd.s32 %v5247, %v5251
    %v5258 = vadd.s32 %v5250, %v5256
    %vm5259 = vc.u32 %v5257, %v5253
    %v5260 = vsel %vm5259, 1, 0
    %v5261 = vadd.s32 %v5257, %v5253
    %v5262 = vadd.s32 %v5258, %v5260
    %v5263 = vadd.s32 %v5262, %v5252
    %v5264 = vadd.s32 %v5263, %v5254
    %v5265 = vmul.u32 %v5220, %v5211
    %v5266 = vadd.s32 %v5242, %v5261
    %vm5267 = vc.u32 %v5242, %v5261
    %v5268 = vadd.s32 %v5264, 1
    %v5269 = vsel %vm5267, %v5268, %v5264
    %v5270 = vadd.s32 %v5265, %v5269
    %v5271 = vadd.s32 %v5270, 536870912
    %v5272 = vshrl.u32 %v5271, 30
    %v5273 = vshll.u32 %v5272, 30
    %v5274 = vsub.s32 %v5270, %v5273
    %vm5275 = vcmp.lt.s32.totalorder %v5274, 0
    %v5276 = vsub.s32 0, %v5274
    %v5277 = vsel %vm5275, %v5276, %v5274
    %v5278 = vclz %v5277
    %v5279 = vsub.s32 %v5278, 2
    %vm5280 = vcmp.gt.s32.totalorder 0, %v5279
    %v5281 = vsel %vm5280, 0, %v5279
    %v5282 = vsub.s32 32, %v5281
    %v5283 = vshll.u32 %v5274, %v5281
    %v5284 = vshrl.u32 %v5266, %v5282
    %v5285 = vor.u32 %v5283, %v5284
    %v5286 = vsub.s32 4294967266, %v5281
    %v5287 = vadd.s32 %v5286, 127
    %v5288 = vshll.u32 %v5287, 23
    %v5289 = vor.u32 4788187, %v5288
    %v5290 = vand.u32 2147483647, %v5289
    %v5292 = vcvt.s32.f32 %v5285
    %v5293 = vmul.f32 %v5292, %v5290
    %v5294 = vxor.u32 %v5293, 2147483648
    %v5295 = vsel %vm5174, %v5294, %v5293
    %v5296 = vsub.s32 4, %v5272
    %v5297 = vsel %vm5174, %v5296, %v5272
    %v5298 = vsel %vm5173, %v505, %v5295
    %v5299 = vsel %vm5173, 0, %v5297
    %v5300 = vmul.f32 %v5298, %v5298
    %v5301 = vmul.f32 %v5300, -0.001358992
    %v5302 = vadd.f32 %v5301, 0.041655596
    %v5303 = vmul.f32 %v5300, %v5302
    %v5304 = vadd.f32 %v5303, -0.4999988
    %v5305 = vmul.f32 %v5300, %v5304
    %v5306 = vadd.f32 1.0, %v5305
    %v5307 = vmul.f32 %v5298, %v5298
    %v5308 = vmul.f32 %v5307, -0.00019511016
    %v5309 = vadd.f32 %v5308, 0.008332121
    %v5310 = vmul.f32 %v5307, %v5309
    %v5311 = vadd.f32 %v5310, -0.16666654
    %v5312 = vmul.f32 %v5307, %v5311
    %v5313 = vadd.f32 %v5312, 1.0
    %v5314 = vmul.f32 %v5313, %v5298
    %vm5315 = vweird.f32 %v505
    %v5316 = vadd.s32 %v5299, 3
    %v5317 = vand.u32 %v5316, 3
    %vm5318 = vcmp.lt.s32.totalorder %v5317, 2
    %vm5319 = vcmp.eq.s32.totalorder %v5317, 0
    %v5320 = vxor.u32 %v5314, 2147483648
    %v5321 = vsel %vm5319, %v5306, %v5320
    %vm5322 = vcmp.eq.s32.totalorder %v5317, 2
    %v5323 = vxor.u32 %v5306, 2147483648
    %v5324 = vsel %vm5322, %v5323, %v5314
    %v5325 = vsel %vm5318, %v5321, %v5324
    %v5326 = vsel %vm5315, nan, %v5325
    %v5327 = vand.u32 2147483647, %v506
    %vm5328 = vcmp.le.f32.partialorder %v5327, 0.7853982
    %vm5329 = vcmp.lt.s32.totalorder %v506, 0
    %v5330 = vand.u32 %v506, 2139095040
    %v5331 = vshrl.u32 %v5330, 23
    %v5332 = vsub.s32 %v5331, 127
    %v5333 = vand.u32 2147483647, %v506
    %v5334 = vand.u32 %v5333, 8388607
    %v5335 = vor.u32 %v5334, 8388608
    %v5336 = vsub.s32 0, %v5335
    %v5337 = vadd.s32 %v5332, 1
    %vm5338 = vcmp.gt.s32.totalorder %v5337, 0
    %v5339 = vsel %vm5338, %v5337, 0
    %v5340 = vshrl.u32 %v5339, 5
    %v5341 = vand.u32 %v5339, 31
    %v5342 = vsub.s32 32, %v5341
    %v5343 = vshrl.u32 683565275, %v5342
    %v5344 = vshll.u32 683565275, %v5341
    %v5345 = vshrl.u32 2475754826, %v5342
    %v5346 = vor.u32 %v5344, %v5345
    %v5347 = vshll.u32 2475754826, %v5341
    %v5348 = vshrl.u32 2131351028, %v5342
    %v5349 = vor.u32 %v5347, %v5348
    %v5350 = vshll.u32 2131351028, %v5341
    %v5351 = vshrl.u32 2102212464, %v5342
    %v5352 = vor.u32 %v5350, %v5351
    %v5353 = vshll.u32 2102212464, %v5341
    %v5354 = vshrl.u32 920167782, %v5342
    %v5355 = vor.u32 %v5353, %v5354
    %v5356 = vshll.u32 920167782, %v5341
    %v5357 = vshrl.u32 1326507024, %v5342
    %v5358 = vor.u32 %v5356, %v5357
    %vm5359 = vcmp.lt.s32.totalorder %v5340, 1
    %vm5360 = vcmp.lt.s32.totalorder %v5340, 2
    %vm5361 = vcmp.lt.s32.totalorder %v5340, 3
    %vm5362 = vcmp.lt.s32.totalorder %v5340, 4
    %v5363 = vsel %vm5359, %v5343, %v5346
    %v5364 = vsel %vm5362, %v5352, 2102212464
    %v5365 = vsel %vm5361, %v5349, %v5364
    %v5366 = vsel %vm5360, %v5363, %v5365
    %v5367 = vsel %vm5359, %v5346, %v5349
    %v5368 = vsel %vm5362, %v5355, 920167782
    %v5369 = vsel %vm5361, %v5352, %v5368
    %v5370 = vsel %vm5360, %v5367, %v5369
    %v5371 = vsel %vm5359, %v5349, %v5352
    %v5372 = vsel %vm5362, %v5358, 1326507024
    %v5373 = vsel %vm5361, %v5355, %v5372
    %v5374 = vsel %vm5360, %v5371, %v5373
    %v5375 = vshll.u32 %v5335, 8
    %v5376 = vand.u32 %v5375, 65535
    %v5377 = vshrl.u32 %v5375, 16
    %v5378 = vand.u32 %v5374, 65535
    %v5379 = vshrl.u32 %v5374, 16
    %v5380 = vmul.u32 %v5376, %v5378
    %v5381 = vmul.u32 %v5376, %v5379
    %v5382 = vmul.u32 %v5377, %v5378
    %v5383 = vmul.u32 %v5377, %v5379
    %v5384 = vshll.u32 %v5381, 16
    %v5385 = vshrl.u32 %v5381, 16
    %v5386 = vshll.u32 %v5382, 16
    %v5387 = vshrl.u32 %v5382, 16
    %vm5388 = vc.u32 %v5380, %v5384
    %v5389 = vsel %vm5388, 1, 0
    %v5390 = vadd.s32 %v5380, %v5384
    %v5391 = vadd.s32 %v5383, %v5389
    %vm5392 = vc.u32 %v5390, %v5386
    %v5393 = vsel %vm5392, 1, 0
    %v5394 = vadd.s32 %v5390, %v5386
    %v5395 = vadd.s32 %v5391, %v5393
    %v5396 = vadd.s32 %v5395, %v5385
    %v5397 = vadd.s32 %v5396, %v5387
    %v5398 = vand.u32 %v5375, 65535
    %v5399 = vshrl.u32 %v5375, 16
    %v5400 = vand.u32 %v5370, 65535
    %v5401 = vshrl.u32 %v5370, 16
    %v5402 = vmul.u32 %v5398, %v5400
    %v5403 = vmul.u32 %v5398, %v5401
    %v5404 = vmul.u32 %v5399, %v5400
    %v5405 = vmul.u32 %v5399, %v5401
    %v5406 = vshll.u32 %v5403, 16
    %v5407 = vshrl.u32 %v5403, 16
    %v5408 = vshll.u32 %v5404, 16
    %v5409 = vshrl.u32 %v5404, 16
    %vm5410 = vc.u32 %v5402, %v5406
    %v5411 = vsel %vm5410, 1, 0
    %v5412 = vadd.s32 %v5402, %v5406
    %v5413 = vadd.s32 %v5405, %v5411
    %vm5414 = vc.u32 %v5412, %v5408
    %v5415 = vsel %vm5414, 1, 0
    %v5416 = vadd.s32 %v5412, %v5408
    %v5417 = vadd.s32 %v5413, %v5415
    %v5418 = vadd.s32 %v5417, %v5407
    %v5419 = vadd.s32 %v5418, %v5409
    %v5420 = vmul.u32 %v5375, %v5366
    %v5421 = vadd.s32 %v5397, %v5416
    %vm5422 = vc.u32 %v5397, %v5416
    %v5423 = vadd.s32 %v5419, 1
    %v5424 = vsel %vm5422, %v5423, %v5419
    %v5425 = vadd.s32 %v5420, %v5424
    %v5426 = vadd.s32 %v5425, 536870912
    %v5427 = vshrl.u32 %v5426, 30
    %v5428 = vshll.u32 %v5427, 30
    %v5429 = vsub.s32 %v5425, %v5428
    %vm5430 = vcmp.lt.s32.totalorder %v5429, 0
    %v5431 = vsub.s32 0, %v5429
    %v5432 = vsel %vm5430, %v5431, %v5429
    %v5433 = vclz %v5432
    %v5434 = vsub.s32 %v5433, 2
    %vm5435 = vcmp.gt.s32.totalorder 0, %v5434
    %v5436 = vsel %vm5435, 0, %v5434
    %v5437 = vsub.s32 32, %v5436
    %v5438 = vshll.u32 %v5429, %v5436
    %v5439 = vshrl.u32 %v5421, %v5437
    %v5440 = vor.u32 %v5438, %v5439
    %v5441 = vsub.s32 4294967266, %v5436
    %v5442 = vadd.s32 %v5441, 127
    %v5443 = vshll.u32 %v5442, 23
    %v5444 = vor.u32 4788187, %v5443
    %v5445 = vand.u32 2147483647, %v5444
    %v5447 = vcvt.s32.f32 %v5440
    %v5448 = vmul.f32 %v5447, %v5445
    %v5449 = vxor.u32 %v5448, 2147483648
    %v5450 = vsel %vm5329, %v5449, %v5448
    %v5451 = vsub.s32 4, %v5427
    %v5452 = vsel %vm5329, %v5451, %v5427
    %v5453 = vsel %vm5328, %v506, %v5450
    %v5454 = vsel %vm5328, 0, %v5452
    %v5455 = vmul.f32 %v5453, %v5453
    %v5456 = vmul.f32 %v5455, -0.001358992
    %v5457 = vadd.f32 %v5456, 0.041655596
    %v5458 = vmul.f32 %v5455, %v5457
    %v5459 = vadd.f32 %v5458, -0.4999988
    %v5460 = vmul.f32 %v5455, %v5459
    %v5461 = vadd.f32 1.0, %v5460
    %v5462 = vmul.f32 %v5453, %v5453
    %v5463 = vmul.f32 %v5462, -0.00019511016
    %v5464 = vadd.f32 %v5463, 0.008332121
    %v5465 = vmul.f32 %v5462, %v5464
    %v5466 = vadd.f32 %v5465, -0.16666654
    %v5467 = vmul.f32 %v5462, %v5466
    %v5468 = vadd.f32 %v5467, 1.0
    %v5469 = vmul.f32 %v5468, %v5453
    %vm5470 = vweird.f32 %v506
    %v5471 = vadd.s32 %v5454, 3
    %v5472 = vand.u32 %v5471, 3
    %vm5473 = vcmp.lt.s32.totalorder %v5472, 2
    %vm5474 = vcmp.eq.s32.totalorder %v5472, 0
    %v5475 = vxor.u32 %v5469, 2147483648
    %v5476 = vsel %vm5474, %v5461, %v5475
    %vm5477 = vcmp.eq.s32.totalorder %v5472, 2
    %v5478 = vxor.u32 %v5461, 2147483648
    %v5479 = vsel %vm5477, %v5478, %v5469
    %v5480 = vsel %vm5473, %v5476, %v5479
    %v5481 = vsel %vm5470, nan, %v5480
    %v5482 = vand.u32 2147483647, %v475
    %vm5483 = vcmp.le.f32.partialorder %v5482, 0.7853982
    %vm5484 = vcmp.lt.s32.totalorder %v475, 0
    %v5485 = vand.u32 %v475, 2139095040
    %v5486 = vshrl.u32 %v5485, 23
    %v5487 = vsub.s32 %v5486, 127
    %v5488 = vand.u32 2147483647, %v475
    %v5489 = vand.u32 %v5488, 8388607
    %v5490 = vor.u32 %v5489, 8388608
    %v5491 = vsub.s32 0, %v5490
    %v5492 = vadd.s32 %v5487, 1
    %vm5493 = vcmp.gt.s32.totalorder %v5492, 0
    %v5494 = vsel %vm5493, %v5492, 0
    %v5495 = vshrl.u32 %v5494, 5
    %v5496 = vand.u32 %v5494, 31
    %v5497 = vsub.s32 32, %v5496
    %v5498 = vshrl.u32 683565275, %v5497
    %v5499 = vshll.u32 683565275, %v5496
    %v5500 = vshrl.u32 2475754826, %v5497
    %v5501 = vor.u32 %v5499, %v5500
    %v5502 = vshll.u32 2475754826, %v5496
    %v5503 = vshrl.u32 2131351028, %v5497
    %v5504 = vor.u32 %v5502, %v5503
    %v5505 = vshll.u32 2131351028, %v5496
    %v5506 = vshrl.u32 2102212464, %v5497
    %v5507 = vor.u32 %v5505, %v5506
    %v5508 = vshll.u32 2102212464, %v5496
    %v5509 = vshrl.u32 920167782, %v5497
    %v5510 = vor.u32 %v5508, %v5509
    %v5511 = vshll.u32 920167782, %v5496
    %v5512 = vshrl.u32 1326507024, %v5497
    %v5513 = vor.u32 %v5511, %v5512
    %vm5514 = vcmp.lt.s32.totalorder %v5495, 1
    %vm5515 = vcmp.lt.s32.totalorder %v5495, 2
    %vm5516 = vcmp.lt.s32.totalorder %v5495, 3
    %vm5517 = vcmp.lt.s32.totalorder %v5495, 4
    %v5518 = vsel %vm5514, %v5498, %v5501
    %v5519 = vsel %vm5517, %v5507, 2102212464
    %v5520 = vsel %vm5516, %v5504, %v5519
    %v5521 = vsel %vm5515, %v5518, %v5520
    %v5522 = vsel %vm5514, %v5501, %v5504
    %v5523 = vsel %vm5517, %v5510, 920167782
    %v5524 = vsel %vm5516, %v5507, %v5523
    %v5525 = vsel %vm5515, %v5522, %v5524
    %v5526 = vsel %vm5514, %v5504, %v5507
    %v5527 = vsel %vm5517, %v5513, 1326507024
    %v5528 = vsel %vm5516, %v5510, %v5527
    %v5529 = vsel %vm5515, %v5526, %v5528
    %v5530 = vshll.u32 %v5490, 8
    %v5531 = vand.u32 %v5530, 65535
    %v5532 = vshrl.u32 %v5530, 16
    %v5533 = vand.u32 %v5529, 65535
    %v5534 = vshrl.u32 %v5529, 16
    %v5535 = vmul.u32 %v5531, %v5533
    %v5536 = vmul.u32 %v5531, %v5534
    %v5537 = vmul.u32 %v5532, %v5533
    %v5538 = vmul.u32 %v5532, %v5534
    %v5539 = vshll.u32 %v5536, 16
    %v5540 = vshrl.u32 %v5536, 16
    %v5541 = vshll.u32 %v5537, 16
    %v5542 = vshrl.u32 %v5537, 16
    %vm5543 = vc.u32 %v5535, %v5539
    %v5544 = vsel %vm5543, 1, 0
    %v5545 = vadd.s32 %v5535, %v5539
    %v5546 = vadd.s32 %v5538, %v5544
    %vm5547 = vc.u32 %v5545, %v5541
    %v5548 = vsel %vm5547, 1, 0
    %v5549 = vadd.s32 %v5545, %v5541
    %v5550 = vadd.s32 %v5546, %v5548
    %v5551 = vadd.s32 %v5550, %v5540
    %v5552 = vadd.s32 %v5551, %v5542
    %v5553 = vand.u32 %v5530, 65535
    %v5554 = vshrl.u32 %v5530, 16
    %v5555 = vand.u32 %v5525, 65535
    %v5556 = vshrl.u32 %v5525, 16
    %v5557 = vmul.u32 %v5553, %v5555
    %v5558 = vmul.u32 %v5553, %v5556
    %v5559 = vmul.u32 %v5554, %v5555
    %v5560 = vmul.u32 %v5554, %v5556
    %v5561 = vshll.u32 %v5558, 16
    %v5562 = vshrl.u32 %v5558, 16
    %v5563 = vshll.u32 %v5559, 16
    %v5564 = vshrl.u32 %v5559, 16
    %vm5565 = vc.u32 %v5557, %v5561
    %v5566 = vsel %vm5565, 1, 0
    %v5567 = vadd.s32 %v5557, %v5561
    %v5568 = vadd.s32 %v5560, %v5566
    %vm5569 = vc.u32 %v5567, %v5563
    %v5570 = vsel %vm5569, 1, 0
    %v5571 = vadd.s32 %v5567, %v5563
    %v5572 = vadd.s32 %v5568, %v5570
    %v5573 = vadd.s32 %v5572, %v5562
    %v5574 = vadd.s32 %v5573, %v5564
    %v5575 = vmul.u32 %v5530, %v5521
    %v5576 = vadd.s32 %v5552, %v5571
    %vm5577 = vc.u32 %v5552, %v5571
    %v5578 = vadd.s32 %v5574, 1
    %v5579 = vsel %vm5577, %v5578, %v5574
    %v5580 = vadd.s32 %v5575, %v5579
    %v5581 = vadd.s32 %v5580, 536870912
    %v5582 = vshrl.u32 %v5581, 30
    %v5583 = vshll.u32 %v5582, 30
    %v5584 = vsub.s32 %v5580, %v5583
    %vm5585 = vcmp.lt.s32.totalorder %v5584, 0
    %v5586 = vsub.s32 0, %v5584
    %v5587 = vsel %vm5585, %v5586, %v5584
    %v5588 = vclz %v5587
    %v5589 = vsub.s32 %v5588, 2
    %vm5590 = vcmp.gt.s32.totalorder 0, %v5589
    %v5591 = vsel %vm5590, 0, %v5589
    %v5592 = vsub.s32 32, %v5591
    %v5593 = vshll.u32 %v5584, %v5591
    %v5594 = vshrl.u32 %v5576, %v5592
    %v5595 = vor.u32 %v5593, %v5594
    %v5596 = vsub.s32 4294967266, %v5591
    %v5597 = vadd.s32 %v5596, 127
    %v5598 = vshll.u32 %v5597, 23
    %v5599 = vor.u32 4788187, %v5598
    %v5600 = vand.u32 2147483647, %v5599
    %v5602 = vcvt.s32.f32 %v5595
    %v5603 = vmul.f32 %v5602, %v5600
    %v5604 = vxor.u32 %v5603, 2147483648
    %v5605 = vsel %vm5484, %v5604, %v5603
    %v5606 = vsub.s32 4, %v5582
    %v5607 = vsel %vm5484, %v5606, %v5582
    %v5608 = vsel %vm5483, %v475, %v5605
    %v5609 = vsel %vm5483, 0, %v5607
    %v5610 = vmul.f32 %v5608, %v5608
    %v5611 = vmul.f32 %v5610, -0.001358992
    %v5612 = vadd.f32 %v5611, 0.041655596
    %v5613 = vmul.f32 %v5610, %v5612
    %v5614 = vadd.f32 %v5613, -0.4999988
    %v5615 = vmul.f32 %v5610, %v5614
    %v5616 = vadd.f32 1.0, %v5615
    %v5617 = vmul.f32 %v5608, %v5608
    %v5618 = vmul.f32 %v5617, -0.00019511016
    %v5619 = vadd.f32 %v5618, 0.008332121
    %v5620 = vmul.f32 %v5617, %v5619
    %v5621 = vadd.f32 %v5620, -0.16666654
    %v5622 = vmul.f32 %v5617, %v5621
    %v5623 = vadd.f32 %v5622, 1.0
    %v5624 = vmul.f32 %v5623, %v5608
    %vm5625 = vweird.f32 %v475
    %v5626 = vand.u32 %v5609, 3
    %vm5627 = vcmp.lt.s32.totalorder %v5626, 2
    %vm5628 = vcmp.eq.s32.totalorder %v5626, 0
    %v5629 = vxor.u32 %v5624, 2147483648
    %v5630 = vsel %vm5628, %v5616, %v5629
    %vm5631 = vcmp.eq.s32.totalorder %v5626, 2
    %v5632 = vxor.u32 %v5616, 2147483648
    %v5633 = vsel %vm5631, %v5632, %v5624
    %v5634 = vsel %vm5627, %v5630, %v5633
    %v5635 = vsel %vm5625, nan, %v5634
    %v5636 = vand.u32 2147483647, %v476
    %vm5637 = vcmp.le.f32.partialorder %v5636, 0.7853982
    %vm5638 = vcmp.lt.s32.totalorder %v476, 0
    %v5639 = vand.u32 %v476, 2139095040
    %v5640 = vshrl.u32 %v5639, 23
    %v5641 = vsub.s32 %v5640, 127
    %v5642 = vand.u32 2147483647, %v476
    %v5643 = vand.u32 %v5642, 8388607
    %v5644 = vor.u32 %v5643, 8388608
    %v5645 = vsub.s32 0, %v5644
    %v5646 = vadd.s32 %v5641, 1
    %vm5647 = vcmp.gt.s32.totalorder %v5646, 0
    %v5648 = vsel %vm5647, %v5646, 0
    %v5649 = vshrl.u32 %v5648, 5
    %v5650 = vand.u32 %v5648, 31
    %v5651 = vsub.s32 32, %v5650
    %v5652 = vshrl.u32 683565275, %v5651
    %v5653 = vshll.u32 683565275, %v5650
    %v5654 = vshrl.u32 2475754826, %v5651
    %v5655 = vor.u32 %v5653, %v5654
    %v5656 = vshll.u32 2475754826, %v5650
    %v5657 = vshrl.u32 2131351028, %v5651
    %v5658 = vor.u32 %v5656, %v5657
    %v5659 = vshll.u32 2131351028, %v5650
    %v5660 = vshrl.u32 2102212464, %v5651
    %v5661 = vor.u32 %v5659, %v5660
    %v5662 = vshll.u32 2102212464, %v5650
    %v5663 = vshrl.u32 920167782, %v5651
    %v5664 = vor.u32 %v5662, %v5663
    %v5665 = vshll.u32 920167782, %v5650
    %v5666 = vshrl.u32 1326507024, %v5651
    %v5667 = vor.u32 %v5665, %v5666
    %vm5668 = vcmp.lt.s32.totalorder %v5649, 1
    %vm5669 = vcmp.lt.s32.totalorder %v5649, 2
    %vm5670 = vcmp.lt.s32.totalorder %v5649, 3
    %vm5671 = vcmp.lt.s32.totalorder %v5649, 4
    %v5672 = vsel %vm5668, %v5652, %v5655
    %v5673 = vsel %vm5671, %v5661, 2102212464
    %v5674 = vsel %vm5670, %v5658, %v5673
    %v5675 = vsel %vm5669, %v5672, %v5674
    %v5676 = vsel %vm5668, %v5655, %v5658
    %v5677 = vsel %vm5671, %v5664, 920167782
    %v5678 = vsel %vm5670, %v5661, %v5677
    %v5679 = vsel %vm5669, %v5676, %v5678
    %v5680 = vsel %vm5668, %v5658, %v5661
    %v5681 = vsel %vm5671, %v5667, 1326507024
    %v5682 = vsel %vm5670, %v5664, %v5681
    %v5683 = vsel %vm5669, %v5680, %v5682
    %v5684 = vshll.u32 %v5644, 8
    %v5685 = vand.u32 %v5684, 65535
    %v5686 = vshrl.u32 %v5684, 16
    %v5687 = vand.u32 %v5683, 65535
    %v5688 = vshrl.u32 %v5683, 16
    %v5689 = vmul.u32 %v5685, %v5687
    %v5690 = vmul.u32 %v5685, %v5688
    %v5691 = vmul.u32 %v5686, %v5687
    %v5692 = vmul.u32 %v5686, %v5688
    %v5693 = vshll.u32 %v5690, 16
    %v5694 = vshrl.u32 %v5690, 16
    %v5695 = vshll.u32 %v5691, 16
    %v5696 = vshrl.u32 %v5691, 16
    %vm5697 = vc.u32 %v5689, %v5693
    %v5698 = vsel %vm5697, 1, 0
    %v5699 = vadd.s32 %v5689, %v5693
    %v5700 = vadd.s32 %v5692, %v5698
    %vm5701 = vc.u32 %v5699, %v5695
    %v5702 = vsel %vm5701, 1, 0
    %v5703 = vadd.s32 %v5699, %v5695
    %v5704 = vadd.s32 %v5700, %v5702
    %v5705 = vadd.s32 %v5704, %v5694
    %v5706 = vadd.s32 %v5705, %v5696
    %v5707 = vand.u32 %v5684, 65535
    %v5708 = vshrl.u32 %v5684, 16
    %v5709 = vand.u32 %v5679, 65535
    %v5710 = vshrl.u32 %v5679, 16
    %v5711 = vmul.u32 %v5707, %v5709
    %v5712 = vmul.u32 %v5707, %v5710
    %v5713 = vmul.u32 %v5708, %v5709
    %v5714 = vmul.u32 %v5708, %v5710
    %v5715 = vshll.u32 %v5712, 16
    %v5716 = vshrl.u32 %v5712, 16
    %v5717 = vshll.u32 %v5713, 16
    %v5718 = vshrl.u32 %v5713, 16
    %vm5719 = vc.u32 %v5711, %v5715
    %v5720 = vsel %vm5719, 1, 0
    %v5721 = vadd.s32 %v5711, %v5715
    %v5722 = vadd.s32 %v5714, %v5720
    %vm5723 = vc.u32 %v5721, %v5717
    %v5724 = vsel %vm5723, 1, 0
    %v5725 = vadd.s32 %v5721, %v5717
    %v5726 = vadd.s32 %v5722, %v5724
    %v5727 = vadd.s32 %v5726, %v5716
    %v5728 = vadd.s32 %v5727, %v5718
    %v5729 = vmul.u32 %v5684, %v5675
    %v5730 = vadd.s32 %v5706, %v5725
    %vm5731 = vc.u32 %v5706, %v5725
    %v5732 = vadd.s32 %v5728, 1
    %v5733 = vsel %vm5731, %v5732, %v5728
    %v5734 = vadd.s32 %v5729, %v5733
    %v5735 = vadd.s32 %v5734, 536870912
    %v5736 = vshrl.u32 %v5735, 30
    %v5737 = vshll.u32 %v5736, 30
    %v5738 = vsub.s32 %v5734, %v5737
    %vm5739 = vcmp.lt.s32.totalorder %v5738, 0
    %v5740 = vsub.s32 0, %v5738
    %v5741 = vsel %vm5739, %v5740, %v5738
    %v5742 = vclz %v5741
    %v5743 = vsub.s32 %v5742, 2
    %vm5744 = vcmp.gt.s32.totalorder 0, %v5743
    %v5745 = vsel %vm5744, 0, %v5743
    %v5746 = vsub.s32 32, %v5745
    %v5747 = vshll.u32 %v5738, %v5745
    %v5748 = vshrl.u32 %v5730, %v5746
    %v5749 = vor.u32 %v5747, %v5748
    %v5750 = vsub.s32 4294967266, %v5745
    %v5751 = vadd.s32 %v5750, 127
    %v5752 = vshll.u32 %v5751, 23
    %v5753 = vor.u32 4788187, %v5752
    %v5754 = vand.u32 2147483647, %v5753
    %v5756 = vcvt.s32.f32 %v5749
    %v5757 = vmul.f32 %v5756, %v5754
    %v5758 = vxor.u32 %v5757, 2147483648
    %v5759 = vsel %vm5638, %v5758, %v5757
    %v5760 = vsub.s32 4, %v5736
    %v5761 = vsel %vm5638, %v5760, %v5736
    %v5762 = vsel %vm5637, %v476, %v5759
    %v5763 = vsel %vm5637, 0, %v5761
    %v5764 = vmul.f32 %v5762, %v5762
    %v5765 = vmul.f32 %v5764, -0.001358992
    %v5766 = vadd.f32 %v5765, 0.041655596
    %v5767 = vmul.f32 %v5764, %v5766
    %v5768 = vadd.f32 %v5767, -0.4999988
    %v5769 = vmul.f32 %v5764, %v5768
    %v5770 = vadd.f32 1.0, %v5769
    %v5771 = vmul.f32 %v5762, %v5762
    %v5772 = vmul.f32 %v5771, -0.00019511016
    %v5773 = vadd.f32 %v5772, 0.008332121
    %v5774 = vmul.f32 %v5771, %v5773
    %v5775 = vadd.f32 %v5774, -0.16666654
    %v5776 = vmul.f32 %v5771, %v5775
    %v5777 = vadd.f32 %v5776, 1.0
    %v5778 = vmul.f32 %v5777, %v5762
    %vm5779 = vweird.f32 %v476
    %v5780 = vand.u32 %v5763, 3
    %vm5781 = vcmp.lt.s32.totalorder %v5780, 2
    %vm5782 = vcmp.eq.s32.totalorder %v5780, 0
    %v5783 = vxor.u32 %v5778, 2147483648
    %v5784 = vsel %vm5782, %v5770, %v5783
    %vm5785 = vcmp.eq.s32.totalorder %v5780, 2
    %v5786 = vxor.u32 %v5770, 2147483648
    %v5787 = vsel %vm5785, %v5786, %v5778
    %v5788 = vsel %vm5781, %v5784, %v5787
    %v5789 = vsel %vm5779, nan, %v5788
    %v5790 = vand.u32 2147483647, %v477
    %vm5791 = vcmp.le.f32.partialorder %v5790, 0.7853982
    %vm5792 = vcmp.lt.s32.totalorder %v477, 0
    %v5793 = vand.u32 %v477, 2139095040
    %v5794 = vshrl.u32 %v5793, 23
    %v5795 = vsub.s32 %v5794, 127
    %v5796 = vand.u32 2147483647, %v477
    %v5797 = vand.u32 %v5796, 8388607
    %v5798 = vor.u32 %v5797, 8388608
    %v5799 = vsub.s32 0, %v5798
    %v5800 = vadd.s32 %v5795, 1
    %vm5801 = vcmp.gt.s32.totalorder %v5800, 0
    %v5802 = vsel %vm5801, %v5800, 0
    %v5803 = vshrl.u32 %v5802, 5
    %v5804 = vand.u32 %v5802, 31
    %v5805 = vsub.s32 32, %v5804
    %v5806 = vshrl.u32 683565275, %v5805
    %v5807 = vshll.u32 683565275, %v5804
    %v5808 = vshrl.u32 2475754826, %v5805
    %v5809 = vor.u32 %v5807, %v5808
    %v5810 = vshll.u32 2475754826, %v5804
    %v5811 = vshrl.u32 2131351028, %v5805
    %v5812 = vor.u32 %v5810, %v5811
    %v5813 = vshll.u32 2131351028, %v5804
    %v5814 = vshrl.u32 2102212464, %v5805
    %v5815 = vor.u32 %v5813, %v5814
    %v5816 = vshll.u32 2102212464, %v5804
    %v5817 = vshrl.u32 920167782, %v5805
    %v5818 = vor.u32 %v5816, %v5817
    %v5819 = vshll.u32 920167782, %v5804
    %v5820 = vshrl.u32 1326507024, %v5805
    %v5821 = vor.u32 %v5819, %v5820
    %vm5822 = vcmp.lt.s32.totalorder %v5803, 1
    %vm5823 = vcmp.lt.s32.totalorder %v5803, 2
    %vm5824 = vcmp.lt.s32.totalorder %v5803, 3
    %vm5825 = vcmp.lt.s32.totalorder %v5803, 4
    %v5826 = vsel %vm5822, %v5806, %v5809
    %v5827 = vsel %vm5825, %v5815, 2102212464
    %v5828 = vsel %vm5824, %v5812, %v5827
    %v5829 = vsel %vm5823, %v5826, %v5828
    %v5830 = vsel %vm5822, %v5809, %v5812
    %v5831 = vsel %vm5825, %v5818, 920167782
    %v5832 = vsel %vm5824, %v5815, %v5831
    %v5833 = vsel %vm5823, %v5830, %v5832
    %v5834 = vsel %vm5822, %v5812, %v5815
    %v5835 = vsel %vm5825, %v5821, 1326507024
    %v5836 = vsel %vm5824, %v5818, %v5835
    %v5837 = vsel %vm5823, %v5834, %v5836
    %v5838 = vshll.u32 %v5798, 8
    %v5839 = vand.u32 %v5838, 65535
    %v5840 = vshrl.u32 %v5838, 16
    %v5841 = vand.u32 %v5837, 65535
    %v5842 = vshrl.u32 %v5837, 16
    %v5843 = vmul.u32 %v5839, %v5841
    %v5844 = vmul.u32 %v5839, %v5842
    %v5845 = vmul.u32 %v5840, %v5841
    %v5846 = vmul.u32 %v5840, %v5842
    %v5847 = vshll.u32 %v5844, 16
    %v5848 = vshrl.u32 %v5844, 16
    %v5849 = vshll.u32 %v5845, 16
    %v5850 = vshrl.u32 %v5845, 16
    %vm5851 = vc.u32 %v5843, %v5847
    %v5852 = vsel %vm5851, 1, 0
    %v5853 = vadd.s32 %v5843, %v5847
    %v5854 = vadd.s32 %v5846, %v5852
    %vm5855 = vc.u32 %v5853, %v5849
    %v5856 = vsel %vm5855, 1, 0
    %v5857 = vadd.s32 %v5853, %v5849
    %v5858 = vadd.s32 %v5854, %v5856
    %v5859 = vadd.s32 %v5858, %v5848
    %v5860 = vadd.s32 %v5859, %v5850
    %v5861 = vand.u32 %v5838, 65535
    %v5862 = vshrl.u32 %v5838, 16
    %v5863 = vand.u32 %v5833, 65535
    %v5864 = vshrl.u32 %v5833, 16
    %v5865 = vmul.u32 %v5861, %v5863
    %v5866 = vmul.u32 %v5861, %v5864
    %v5867 = vmul.u32 %v5862, %v5863
    %v5868 = vmul.u32 %v5862, %v5864
    %v5869 = vshll.u32 %v5866, 16
    %v5870 = vshrl.u32 %v5866, 16
    %v5871 = vshll.u32 %v5867, 16
    %v5872 = vshrl.u32 %v5867, 16
    %vm5873 = vc.u32 %v5865, %v5869
    %v5874 = vsel %vm5873, 1, 0
    %v5875 = vadd.s32 %v5865, %v5869
    %v5876 = vadd.s32 %v5868, %v5874
    %vm5877 = vc.u32 %v5875, %v5871
    %v5878 = vsel %vm5877, 1, 0
    %v5879 = vadd.s32 %v5875, %v5871
    %v5880 = vadd.s32 %v5876, %v5878
    %v5881 = vadd.s32 %v5880, %v5870
    %v5882 = vadd.s32 %v5881, %v5872
    %v5883 = vmul.u32 %v5838, %v5829
    %v5884 = vadd.s32 %v5860, %v5879
    %vm5885 = vc.u32 %v5860, %v5879
    %v5886 = vadd.s32 %v5882, 1
    %v5887 = vsel %vm5885, %v5886, %v5882
    %v5888 = vadd.s32 %v5883, %v5887
    %v5889 = vadd.s32 %v5888, 536870912
    %v5890 = vshrl.u32 %v5889, 30
    %v5891 = vshll.u32 %v5890, 30
    %v5892 = vsub.s32 %v5888, %v5891
    %vm5893 = vcmp.lt.s32.totalorder %v5892, 0
    %v5894 = vsub.s32 0, %v5892
    %v5895 = vsel %vm5893, %v5894, %v5892
    %v5896 = vclz %v5895
    %v5897 = vsub.s32 %v5896, 2
    %vm5898 = vcmp.gt.s32.totalorder 0, %v5897
    %v5899 = vsel %vm5898, 0, %v5897
    %v5900 = vsub.s32 32, %v5899
    %v5901 = vshll.u32 %v5892, %v5899
    %v5902 = vshrl.u32 %v5884, %v5900
    %v5903 = vor.u32 %v5901, %v5902
    %v5904 = vsub.s32 4294967266, %v5899
    %v5905 = vadd.s32 %v5904, 127
    %v5906 = vshll.u32 %v5905, 23
    %v5907 = vor.u32 4788187, %v5906
    %v5908 = vand.u32 2147483647, %v5907
    %v5910 = vcvt.s32.f32 %v5903
    %v5911 = vmul.f32 %v5910, %v5908
    %v5912 = vxor.u32 %v5911, 2147483648
    %v5913 = vsel %vm5792, %v5912, %v5911
    %v5914 = vsub.s32 4, %v5890
    %v5915 = vsel %vm5792, %v5914, %v5890
    %v5916 = vsel %vm5791, %v477, %v5913
    %v5917 = vsel %vm5791, 0, %v5915
    %v5918 = vmul.f32 %v5916, %v5916
    %v5919 = vmul.f32 %v5918, -0.001358992
    %v5920 = vadd.f32 %v5919, 0.041655596
    %v5921 = vmul.f32 %v5918, %v5920
    %v5922 = vadd.f32 %v5921, -0.4999988
    %v5923 = vmul.f32 %v5918, %v5922
    %v5924 = vadd.f32 1.0, %v5923
    %v5925 = vmul.f32 %v5916, %v5916
    %v5926 = vmul.f32 %v5925, -0.00019511016
    %v5927 = vadd.f32 %v5926, 0.008332121
    %v5928 = vmul.f32 %v5925, %v5927
    %v5929 = vadd.f32 %v5928, -0.16666654
    %v5930 = vmul.f32 %v5925, %v5929
    %v5931 = vadd.f32 %v5930, 1.0
    %v5932 = vmul.f32 %v5931, %v5916
    %vm5933 = vweird.f32 %v477
    %v5934 = vand.u32 %v5917, 3
    %vm5935 = vcmp.lt.s32.totalorder %v5934, 2
    %vm5936 = vcmp.eq.s32.totalorder %v5934, 0
    %v5937 = vxor.u32 %v5932, 2147483648
    %v5938 = vsel %vm5936, %v5924, %v5937
    %vm5939 = vcmp.eq.s32.totalorder %v5934, 2
    %v5940 = vxor.u32 %v5924, 2147483648
    %v5941 = vsel %vm5939, %v5940, %v5932
    %v5942 = vsel %vm5935, %v5938, %v5941
    %v5943 = vsel %vm5933, nan, %v5942
    %v5944 = vand.u32 2147483647, %v478
    %vm5945 = vcmp.le.f32.partialorder %v5944, 0.7853982
    %vm5946 = vcmp.lt.s32.totalorder %v478, 0
    %v5947 = vand.u32 %v478, 2139095040
    %v5948 = vshrl.u32 %v5947, 23
    %v5949 = vsub.s32 %v5948, 127
    %v5950 = vand.u32 2147483647, %v478
    %v5951 = vand.u32 %v5950, 8388607
    %v5952 = vor.u32 %v5951, 8388608
    %v5953 = vsub.s32 0, %v5952
    %v5954 = vadd.s32 %v5949, 1
    %vm5955 = vcmp.gt.s32.totalorder %v5954, 0
    %v5956 = vsel %vm5955, %v5954, 0
    %v5957 = vshrl.u32 %v5956, 5
    %v5958 = vand.u32 %v5956, 31
    %v5959 = vsub.s32 32, %v5958
    %v5960 = vshrl.u32 683565275, %v5959
    %v5961 = vshll.u32 683565275, %v5958
    %v5962 = vshrl.u32 2475754826, %v5959
    %v5963 = vor.u32 %v5961, %v5962
    %v5964 = vshll.u32 2475754826, %v5958
    %v5965 = vshrl.u32 2131351028, %v5959
    %v5966 = vor.u32 %v5964, %v5965
    %v5967 = vshll.u32 2131351028, %v5958
    %v5968 = vshrl.u32 2102212464, %v5959
    %v5969 = vor.u32 %v5967, %v5968
    %v5970 = vshll.u32 2102212464, %v5958
    %v5971 = vshrl.u32 920167782, %v5959
    %v5972 = vor.u32 %v5970, %v5971
    %v5973 = vshll.u32 920167782, %v5958
    %v5974 = vshrl.u32 1326507024, %v5959
    %v5975 = vor.u32 %v5973, %v5974
    %vm5976 = vcmp.lt.s32.totalorder %v5957, 1
    %vm5977 = vcmp.lt.s32.totalorder %v5957, 2
    %vm5978 = vcmp.lt.s32.totalorder %v5957, 3
    %vm5979 = vcmp.lt.s32.totalorder %v5957, 4
    %v5980 = vsel %vm5976, %v5960, %v5963
    %v5981 = vsel %vm5979, %v5969, 2102212464
    %v5982 = vsel %vm5978, %v5966, %v5981
    %v5983 = vsel %vm5977, %v5980, %v5982
    %v5984 = vsel %vm5976, %v5963, %v5966
    %v5985 = vsel %vm5979, %v5972, 920167782
    %v5986 = vsel %vm5978, %v5969, %v5985
    %v5987 = vsel %vm5977, %v5984, %v5986
    %v5988 = vsel %vm5976, %v5966, %v5969
    %v5989 = vsel %vm5979, %v5975, 1326507024
    %v5990 = vsel %vm5978, %v5972, %v5989
    %v5991 = vsel %vm5977, %v5988, %v5990
    %v5992 = vshll.u32 %v5952, 8
    %v5993 = vand.u32 %v5992, 65535
    %v5994 = vshrl.u32 %v5992, 16
    %v5995 = vand.u32 %v5991, 65535
    %v5996 = vshrl.u32 %v5991, 16
    %v5997 = vmul.u32 %v5993, %v5995
    %v5998 = vmul.u32 %v5993, %v5996
    %v5999 = vmul.u32 %v5994, %v5995
    %v6000 = vmul.u32 %v5994, %v5996
    %v6001 = vshll.u32 %v5998, 16
    %v6002 = vshrl.u32 %v5998, 16
    %v6003 = vshll.u32 %v5999, 16
    %v6004 = vshrl.u32 %v5999, 16
    %vm6005 = vc.u32 %v5997, %v6001
    %v6006 = vsel %vm6005, 1, 0
    %v6007 = vadd.s32 %v5997, %v6001
    %v6008 = vadd.s32 %v6000, %v6006
    %vm6009 = vc.u32 %v6007, %v6003
    %v6010 = vsel %vm6009, 1, 0
    %v6011 = vadd.s32 %v6007, %v6003
    %v6012 = vadd.s32 %v6008, %v6010
    %v6013 = vadd.s32 %v6012, %v6002
    %v6014 = vadd.s32 %v6013, %v6004
    %v6015 = vand.u32 %v5992, 65535
    %v6016 = vshrl.u32 %v5992, 16
    %v6017 = vand.u32 %v5987, 65535
    %v6018 = vshrl.u32 %v5987, 16
    %v6019 = vmul.u32 %v6015, %v6017
    %v6020 = vmul.u32 %v6015, %v6018
    %v6021 = vmul.u32 %v6016, %v6017
    %v6022 = vmul.u32 %v6016, %v6018
    %v6023 = vshll.u32 %v6020, 16
    %v6024 = vshrl.u32 %v6020, 16
    %v6025 = vshll.u32 %v6021, 16
    %v6026 = vshrl.u32 %v6021, 16
    %vm6027 = vc.u32 %v6019, %v6023
    %v6028 = vsel %vm6027, 1, 0
    %v6029 = vadd.s32 %v6019, %v6023
    %v6030 = vadd.s32 %v6022, %v6028
    %vm6031 = vc.u32 %v6029, %v6025
    %v6032 = vsel %vm6031, 1, 0
    %v6033 = vadd.s32 %v6029, %v6025
    %v6034 = vadd.s32 %v6030, %v6032
    %v6035 = vadd.s32 %v6034, %v6024
    %v6036 = vadd.s32 %v6035, %v6026
    %v6037 = vmul.u32 %v5992, %v5983
    %v6038 = vadd.s32 %v6014, %v6033
    %vm6039 = vc.u32 %v6014, %v6033
    %v6040 = vadd.s32 %v6036, 1
    %v6041 = vsel %vm6039, %v6040, %v6036
    %v6042 = vadd.s32 %v6037, %v6041
    %v6043 = vadd.s32 %v6042, 536870912
    %v6044 = vshrl.u32 %v6043, 30
    %v6045 = vshll.u32 %v6044, 30
    %v6046 = vsub.s32 %v6042, %v6045
    %vm6047 = vcmp.lt.s32.totalorder %v6046, 0
    %v6048 = vsub.s32 0, %v6046
    %v6049 = vsel %vm6047, %v6048, %v6046
    %v6050 = vclz %v6049
    %v6051 = vsub.s32 %v6050, 2
    %vm6052 = vcmp.gt.s32.totalorder 0, %v6051
    %v6053 = vsel %vm6052, 0, %v6051
    %v6054 = vsub.s32 32, %v6053
    %v6055 = vshll.u32 %v6046, %v6053
    %v6056 = vshrl.u32 %v6038, %v6054
    %v6057 = vor.u32 %v6055, %v6056
    %v6058 = vsub.s32 4294967266, %v6053
    %v6059 = vadd.s32 %v6058, 127
    %v6060 = vshll.u32 %v6059, 23
    %v6061 = vor.u32 4788187, %v6060
    %v6062 = vand.u32 2147483647, %v6061
    %v6064 = vcvt.s32.f32 %v6057
    %v6065 = vmul.f32 %v6064, %v6062
    %v6066 = vxor.u32 %v6065, 2147483648
    %v6067 = vsel %vm5946, %v6066, %v6065
    %v6068 = vsub.s32 4, %v6044
    %v6069 = vsel %vm5946, %v6068, %v6044
    %v6070 = vsel %vm5945, %v478, %v6067
    %v6071 = vsel %vm5945, 0, %v6069
    %v6072 = vmul.f32 %v6070, %v6070
    %v6073 = vmul.f32 %v6072, -0.001358992
    %v6074 = vadd.f32 %v6073, 0.041655596
    %v6075 = vmul.f32 %v6072, %v6074
    %v6076 = vadd.f32 %v6075, -0.4999988
    %v6077 = vmul.f32 %v6072, %v6076
    %v6078 = vadd.f32 1.0, %v6077
    %v6079 = vmul.f32 %v6070, %v6070
    %v6080 = vmul.f32 %v6079, -0.00019511016
    %v6081 = vadd.f32 %v6080, 0.008332121
    %v6082 = vmul.f32 %v6079, %v6081
    %v6083 = vadd.f32 %v6082, -0.16666654
    %v6084 = vmul.f32 %v6079, %v6083
    %v6085 = vadd.f32 %v6084, 1.0
    %v6086 = vmul.f32 %v6085, %v6070
    %vm6087 = vweird.f32 %v478
    %v6088 = vand.u32 %v6071, 3
    %vm6089 = vcmp.lt.s32.totalorder %v6088, 2
    %vm6090 = vcmp.eq.s32.totalorder %v6088, 0
    %v6091 = vxor.u32 %v6086, 2147483648
    %v6092 = vsel %vm6090, %v6078, %v6091
    %vm6093 = vcmp.eq.s32.totalorder %v6088, 2
    %v6094 = vxor.u32 %v6078, 2147483648
    %v6095 = vsel %vm6093, %v6094, %v6086
    %v6096 = vsel %vm6089, %v6092, %v6095
    %v6097 = vsel %vm6087, nan, %v6096
    %v6098 = vand.u32 2147483647, %v479
    %vm6099 = vcmp.le.f32.partialorder %v6098, 0.7853982
    %vm6100 = vcmp.lt.s32.totalorder %v479, 0
    %v6101 = vand.u32 %v479, 2139095040
    %v6102 = vshrl.u32 %v6101, 23
    %v6103 = vsub.s32 %v6102, 127
    %v6104 = vand.u32 2147483647, %v479
    %v6105 = vand.u32 %v6104, 8388607
    %v6106 = vor.u32 %v6105, 8388608
    %v6107 = vsub.s32 0, %v6106
    %v6108 = vadd.s32 %v6103, 1
    %vm6109 = vcmp.gt.s32.totalorder %v6108, 0
    %v6110 = vsel %vm6109, %v6108, 0
    %v6111 = vshrl.u32 %v6110, 5
    %v6112 = vand.u32 %v6110, 31
    %v6113 = vsub.s32 32, %v6112
    %v6114 = vshrl.u32 683565275, %v6113
    %v6115 = vshll.u32 683565275, %v6112
    %v6116 = vshrl.u32 2475754826, %v6113
    %v6117 = vor.u32 %v6115, %v6116
    %v6118 = vshll.u32 2475754826, %v6112
    %v6119 = vshrl.u32 2131351028, %v6113
    %v6120 = vor.u32 %v6118, %v6119
    %v6121 = vshll.u32 2131351028, %v6112
    %v6122 = vshrl.u32 2102212464, %v6113
    %v6123 = vor.u32 %v6121, %v6122
    %v6124 = vshll.u32 2102212464, %v6112
    %v6125 = vshrl.u32 920167782, %v6113
    %v6126 = vor.u32 %v6124, %v6125
    %v6127 = vshll.u32 920167782, %v6112
    %v6128 = vshrl.u32 1326507024, %v6113
    %v6129 = vor.u32 %v6127, %v6128
    %vm6130 = vcmp.lt.s32.totalorder %v6111, 1
    %vm6131 = vcmp.lt.s32.totalorder %v6111, 2
    %vm6132 = vcmp.lt.s32.totalorder %v6111, 3
    %vm6133 = vcmp.lt.s32.totalorder %v6111, 4
    %v6134 = vsel %vm6130, %v6114, %v6117
    %v6135 = vsel %vm6133, %v6123, 2102212464
    %v6136 = vsel %vm6132, %v6120, %v6135
    %v6137 = vsel %vm6131, %v6134, %v6136
    %v6138 = vsel %vm6130, %v6117, %v6120
    %v6139 = vsel %vm6133, %v6126, 920167782
    %v6140 = vsel %vm6132, %v6123, %v6139
    %v6141 = vsel %vm6131, %v6138, %v6140
    %v6142 = vsel %vm6130, %v6120, %v6123
    %v6143 = vsel %vm6133, %v6129, 1326507024
    %v6144 = vsel %vm6132, %v6126, %v6143
    %v6145 = vsel %vm6131, %v6142, %v6144
    %v6146 = vshll.u32 %v6106, 8
    %v6147 = vand.u32 %v6146, 65535
    %v6148 = vshrl.u32 %v6146, 16
    %v6149 = vand.u32 %v6145, 65535
    %v6150 = vshrl.u32 %v6145, 16
    %v6151 = vmul.u32 %v6147, %v6149
    %v6152 = vmul.u32 %v6147, %v6150
    %v6153 = vmul.u32 %v6148, %v6149
    %v6154 = vmul.u32 %v6148, %v6150
    %v6155 = vshll.u32 %v6152, 16
    %v6156 = vshrl.u32 %v6152, 16
    %v6157 = vshll.u32 %v6153, 16
    %v6158 = vshrl.u32 %v6153, 16
    %vm6159 = vc.u32 %v6151, %v6155
    %v6160 = vsel %vm6159, 1, 0
    %v6161 = vadd.s32 %v6151, %v6155
    %v6162 = vadd.s32 %v6154, %v6160
    %vm6163 = vc.u32 %v6161, %v6157
    %v6164 = vsel %vm6163, 1, 0
    %v6165 = vadd.s32 %v6161, %v6157
    %v6166 = vadd.s32 %v6162, %v6164
    %v6167 = vadd.s32 %v6166, %v6156
    %v6168 = vadd.s32 %v6167, %v6158
    %v6169 = vand.u32 %v6146, 65535
    %v6170 = vshrl.u32 %v6146, 16
    %v6171 = vand.u32 %v6141, 65535
    %v6172 = vshrl.u32 %v6141, 16
    %v6173 = vmul.u32 %v6169, %v6171
    %v6174 = vmul.u32 %v6169, %v6172
    %v6175 = vmul.u32 %v6170, %v6171
    %v6176 = vmul.u32 %v6170, %v6172
    %v6177 = vshll.u32 %v6174, 16
    %v6178 = vshrl.u32 %v6174, 16
    %v6179 = vshll.u32 %v6175, 16
    %v6180 = vshrl.u32 %v6175, 16
    %vm6181 = vc.u32 %v6173, %v6177
    %v6182 = vsel %vm6181, 1, 0
    %v6183 = vadd.s32 %v6173, %v6177
    %v6184 = vadd.s32 %v6176, %v6182
    %vm6185 = vc.u32 %v6183, %v6179
    %v6186 = vsel %vm6185, 1, 0
    %v6187 = vadd.s32 %v6183, %v6179
    %v6188 = vadd.s32 %v6184, %v6186
    %v6189 = vadd.s32 %v6188, %v6178
    %v6190 = vadd.s32 %v6189, %v6180
    %v6191 = vmul.u32 %v6146, %v6137
    %v6192 = vadd.s32 %v6168, %v6187
    %vm6193 = vc.u32 %v6168, %v6187
    %v6194 = vadd.s32 %v6190, 1
    %v6195 = vsel %vm6193, %v6194, %v6190
    %v6196 = vadd.s32 %v6191, %v6195
    %v6197 = vadd.s32 %v6196, 536870912
    %v6198 = vshrl.u32 %v6197, 30
    %v6199 = vshll.u32 %v6198, 30
    %v6200 = vsub.s32 %v6196, %v6199
    %vm6201 = vcmp.lt.s32.totalorder %v6200, 0
    %v6202 = vsub.s32 0, %v6200
    %v6203 = vsel %vm6201, %v6202, %v6200
    %v6204 = vclz %v6203
    %v6205 = vsub.s32 %v6204, 2
    %vm6206 = vcmp.gt.s32.totalorder 0, %v6205
    %v6207 = vsel %vm6206, 0, %v6205
    %v6208 = vsub.s32 32, %v6207
    %v6209 = vshll.u32 %v6200, %v6207
    %v6210 = vshrl.u32 %v6192, %v6208
    %v6211 = vor.u32 %v6209, %v6210
    %v6212 = vsub.s32 4294967266, %v6207
    %v6213 = vadd.s32 %v6212, 127
    %v6214 = vshll.u32 %v6213, 23
    %v6215 = vor.u32 4788187, %v6214
    %v6216 = vand.u32 2147483647, %v6215
    %v6218 = vcvt.s32.f32 %v6211
    %v6219 = vmul.f32 %v6218, %v6216
    %v6220 = vxor.u32 %v6219, 2147483648
    %v6221 = vsel %vm6100, %v6220, %v6219
    %v6222 = vsub.s32 4, %v6198
    %v6223 = vsel %vm6100, %v6222, %v6198
    %v6224 = vsel %vm6099, %v479, %v6221
    %v6225 = vsel %vm6099, 0, %v6223
    %v6226 = vmul.f32 %v6224, %v6224
    %v6227 = vmul.f32 %v6226, -0.001358992
    %v6228 = vadd.f32 %v6227, 0.041655596
    %v6229 = vmul.f32 %v6226, %v6228
    %v6230 = vadd.f32 %v6229, -0.4999988
    %v6231 = vmul.f32 %v6226, %v6230
    %v6232 = vadd.f32 1.0, %v6231
    %v6233 = vmul.f32 %v6224, %v6224
    %v6234 = vmul.f32 %v6233, -0.00019511016
    %v6235 = vadd.f32 %v6234, 0.008332121
    %v6236 = vmul.f32 %v6233, %v6235
    %v6237 = vadd.f32 %v6236, -0.16666654
    %v6238 = vmul.f32 %v6233, %v6237
    %v6239 = vadd.f32 %v6238, 1.0
    %v6240 = vmul.f32 %v6239, %v6224
    %vm6241 = vweird.f32 %v479
    %v6242 = vand.u32 %v6225, 3
    %vm6243 = vcmp.lt.s32.totalorder %v6242, 2
    %vm6244 = vcmp.eq.s32.totalorder %v6242, 0
    %v6245 = vxor.u32 %v6240, 2147483648
    %v6246 = vsel %vm6244, %v6232, %v6245
    %vm6247 = vcmp.eq.s32.totalorder %v6242, 2
    %v6248 = vxor.u32 %v6232, 2147483648
    %v6249 = vsel %vm6247, %v6248, %v6240
    %v6250 = vsel %vm6243, %v6246, %v6249
    %v6251 = vsel %vm6241, nan, %v6250
    %v6252 = vand.u32 2147483647, %v480
    %vm6253 = vcmp.le.f32.partialorder %v6252, 0.7853982
    %vm6254 = vcmp.lt.s32.totalorder %v480, 0
    %v6255 = vand.u32 %v480, 2139095040
    %v6256 = vshrl.u32 %v6255, 23
    %v6257 = vsub.s32 %v6256, 127
    %v6258 = vand.u32 2147483647, %v480
    %v6259 = vand.u32 %v6258, 8388607
    %v6260 = vor.u32 %v6259, 8388608
    %v6261 = vsub.s32 0, %v6260
    %v6262 = vadd.s32 %v6257, 1
    %vm6263 = vcmp.gt.s32.totalorder %v6262, 0
    %v6264 = vsel %vm6263, %v6262, 0
    %v6265 = vshrl.u32 %v6264, 5
    %v6266 = vand.u32 %v6264, 31
    %v6267 = vsub.s32 32, %v6266
    %v6268 = vshrl.u32 683565275, %v6267
    %v6269 = vshll.u32 683565275, %v6266
    %v6270 = vshrl.u32 2475754826, %v6267
    %v6271 = vor.u32 %v6269, %v6270
    %v6272 = vshll.u32 2475754826, %v6266
    %v6273 = vshrl.u32 2131351028, %v6267
    %v6274 = vor.u32 %v6272, %v6273
    %v6275 = vshll.u32 2131351028, %v6266
    %v6276 = vshrl.u32 2102212464, %v6267
    %v6277 = vor.u32 %v6275, %v6276
    %v6278 = vshll.u32 2102212464, %v6266
    %v6279 = vshrl.u32 920167782, %v6267
    %v6280 = vor.u32 %v6278, %v6279
    %v6281 = vshll.u32 920167782, %v6266
    %v6282 = vshrl.u32 1326507024, %v6267
    %v6283 = vor.u32 %v6281, %v6282
    %vm6284 = vcmp.lt.s32.totalorder %v6265, 1
    %vm6285 = vcmp.lt.s32.totalorder %v6265, 2
    %vm6286 = vcmp.lt.s32.totalorder %v6265, 3
    %vm6287 = vcmp.lt.s32.totalorder %v6265, 4
    %v6288 = vsel %vm6284, %v6268, %v6271
    %v6289 = vsel %vm6287, %v6277, 2102212464
    %v6290 = vsel %vm6286, %v6274, %v6289
    %v6291 = vsel %vm6285, %v6288, %v6290
    %v6292 = vsel %vm6284, %v6271, %v6274
    %v6293 = vsel %vm6287, %v6280, 920167782
    %v6294 = vsel %vm6286, %v6277, %v6293
    %v6295 = vsel %vm6285, %v6292, %v6294
    %v6296 = vsel %vm6284, %v6274, %v6277
    %v6297 = vsel %vm6287, %v6283, 1326507024
    %v6298 = vsel %vm6286, %v6280, %v6297
    %v6299 = vsel %vm6285, %v6296, %v6298
    %v6300 = vshll.u32 %v6260, 8
    %v6301 = vand.u32 %v6300, 65535
    %v6302 = vshrl.u32 %v6300, 16
    %v6303 = vand.u32 %v6299, 65535
    %v6304 = vshrl.u32 %v6299, 16
    %v6305 = vmul.u32 %v6301, %v6303
    %v6306 = vmul.u32 %v6301, %v6304
    %v6307 = vmul.u32 %v6302, %v6303
    %v6308 = vmul.u32 %v6302, %v6304
    %v6309 = vshll.u32 %v6306, 16
    %v6310 = vshrl.u32 %v6306, 16
    %v6311 = vshll.u32 %v6307, 16
    %v6312 = vshrl.u32 %v6307, 16
    %vm6313 = vc.u32 %v6305, %v6309
    %v6314 = vsel %vm6313, 1, 0
    %v6315 = vadd.s32 %v6305, %v6309
    %v6316 = vadd.s32 %v6308, %v6314
    %vm6317 = vc.u32 %v6315, %v6311
    %v6318 = vsel %vm6317, 1, 0
    %v6319 = vadd.s32 %v6315, %v6311
    %v6320 = vadd.s32 %v6316, %v6318
    %v6321 = vadd.s32 %v6320, %v6310
    %v6322 = vadd.s32 %v6321, %v6312
    %v6323 = vand.u32 %v6300, 65535
    %v6324 = vshrl.u32 %v6300, 16
    %v6325 = vand.u32 %v6295, 65535
    %v6326 = vshrl.u32 %v6295, 16
    %v6327 = vmul.u32 %v6323, %v6325
    %v6328 = vmul.u32 %v6323, %v6326
    %v6329 = vmul.u32 %v6324, %v6325
    %v6330 = vmul.u32 %v6324, %v6326
    %v6331 = vshll.u32 %v6328, 16
    %v6332 = vshrl.u32 %v6328, 16
    %v6333 = vshll.u32 %v6329, 16
    %v6334 = vshrl.u32 %v6329, 16
    %vm6335 = vc.u32 %v6327, %v6331
    %v6336 = vsel %vm6335, 1, 0
    %v6337 = vadd.s32 %v6327, %v6331
    %v6338 = vadd.s32 %v6330, %v6336
    %vm6339 = vc.u32 %v6337, %v6333
    %v6340 = vsel %vm6339, 1, 0
    %v6341 = vadd.s32 %v6337, %v6333
    %v6342 = vadd.s32 %v6338, %v6340
    %v6343 = vadd.s32 %v6342, %v6332
    %v6344 = vadd.s32 %v6343, %v6334
    %v6345 = vmul.u32 %v6300, %v6291
    %v6346 = vadd.s32 %v6322, %v6341
    %vm6347 = vc.u32 %v6322, %v6341
    %v6348 = vadd.s32 %v6344, 1
    %v6349 = vsel %vm6347, %v6348, %v6344
    %v6350 = vadd.s32 %v6345, %v6349
    %v6351 = vadd.s32 %v6350, 536870912
    %v6352 = vshrl.u32 %v6351, 30
    %v6353 = vshll.u32 %v6352, 30
    %v6354 = vsub.s32 %v6350, %v6353
    %vm6355 = vcmp.lt.s32.totalorder %v6354, 0
    %v6356 = vsub.s32 0, %v6354
    %v6357 = vsel %vm6355, %v6356, %v6354
    %v6358 = vclz %v6357
    %v6359 = vsub.s32 %v6358, 2
    %vm6360 = vcmp.gt.s32.totalorder 0, %v6359
    %v6361 = vsel %vm6360, 0, %v6359
    %v6362 = vsub.s32 32, %v6361
    %v6363 = vshll.u32 %v6354, %v6361
    %v6364 = vshrl.u32 %v6346, %v6362
    %v6365 = vor.u32 %v6363, %v6364
    %v6366 = vsub.s32 4294967266, %v6361
    %v6367 = vadd.s32 %v6366, 127
    %v6368 = vshll.u32 %v6367, 23
    %v6369 = vor.u32 4788187, %v6368
    %v6370 = vand.u32 2147483647, %v6369
    %v6372 = vcvt.s32.f32 %v6365
    %v6373 = vmul.f32 %v6372, %v6370
    %v6374 = vxor.u32 %v6373, 2147483648
    %v6375 = vsel %vm6254, %v6374, %v6373
    %v6376 = vsub.s32 4, %v6352
    %v6377 = vsel %vm6254, %v6376, %v6352
    %v6378 = vsel %vm6253, %v480, %v6375
    %v6379 = vsel %vm6253, 0, %v6377
    %v6380 = vmul.f32 %v6378, %v6378
    %v6381 = vmul.f32 %v6380, -0.001358992
    %v6382 = vadd.f32 %v6381, 0.041655596
    %v6383 = vmul.f32 %v6380, %v6382
    %v6384 = vadd.f32 %v6383, -0.4999988
    %v6385 = vmul.f32 %v6380, %v6384
    %v6386 = vadd.f32 1.0, %v6385
    %v6387 = vmul.f32 %v6378, %v6378
    %v6388 = vmul.f32 %v6387, -0.00019511016
    %v6389 = vadd.f32 %v6388, 0.008332121
    %v6390 = vmul.f32 %v6387, %v6389
    %v6391 = vadd.f32 %v6390, -0.16666654
    %v6392 = vmul.f32 %v6387, %v6391
    %v6393 = vadd.f32 %v6392, 1.0
    %v6394 = vmul.f32 %v6393, %v6378
    %vm6395 = vweird.f32 %v480
    %v6396 = vand.u32 %v6379, 3
    %vm6397 = vcmp.lt.s32.totalorder %v6396, 2
    %vm6398 = vcmp.eq.s32.totalorder %v6396, 0
    %v6399 = vxor.u32 %v6394, 2147483648
    %v6400 = vsel %vm6398, %v6386, %v6399
    %vm6401 = vcmp.eq.s32.totalorder %v6396, 2
    %v6402 = vxor.u32 %v6386, 2147483648
    %v6403 = vsel %vm6401, %v6402, %v6394
    %v6404 = vsel %vm6397, %v6400, %v6403
    %v6405 = vsel %vm6395, nan, %v6404
    %v6406 = vand.u32 2147483647, %v481
    %vm6407 = vcmp.le.f32.partialorder %v6406, 0.7853982
    %vm6408 = vcmp.lt.s32.totalorder %v481, 0
    %v6409 = vand.u32 %v481, 2139095040
    %v6410 = vshrl.u32 %v6409, 23
    %v6411 = vsub.s32 %v6410, 127
    %v6412 = vand.u32 2147483647, %v481
    %v6413 = vand.u32 %v6412, 8388607
    %v6414 = vor.u32 %v6413, 8388608
    %v6415 = vsub.s32 0, %v6414
    %v6416 = vadd.s32 %v6411, 1
    %vm6417 = vcmp.gt.s32.totalorder %v6416, 0
    %v6418 = vsel %vm6417, %v6416, 0
    %v6419 = vshrl.u32 %v6418, 5
    %v6420 = vand.u32 %v6418, 31
    %v6421 = vsub.s32 32, %v6420
    %v6422 = vshrl.u32 683565275, %v6421
    %v6423 = vshll.u32 683565275, %v6420
    %v6424 = vshrl.u32 2475754826, %v6421
    %v6425 = vor.u32 %v6423, %v6424
    %v6426 = vshll.u32 2475754826, %v6420
    %v6427 = vshrl.u32 2131351028, %v6421
    %v6428 = vor.u32 %v6426, %v6427
    %v6429 = vshll.u32 2131351028, %v6420
    %v6430 = vshrl.u32 2102212464, %v6421
    %v6431 = vor.u32 %v6429, %v6430
    %v6432 = vshll.u32 2102212464, %v6420
    %v6433 = vshrl.u32 920167782, %v6421
    %v6434 = vor.u32 %v6432, %v6433
    %v6435 = vshll.u32 920167782, %v6420
    %v6436 = vshrl.u32 1326507024, %v6421
    %v6437 = vor.u32 %v6435, %v6436
    %vm6438 = vcmp.lt.s32.totalorder %v6419, 1
    %vm6439 = vcmp.lt.s32.totalorder %v6419, 2
    %vm6440 = vcmp.lt.s32.totalorder %v6419, 3
    %vm6441 = vcmp.lt.s32.totalorder %v6419, 4
    %v6442 = vsel %vm6438, %v6422, %v6425
    %v6443 = vsel %vm6441, %v6431, 2102212464
    %v6444 = vsel %vm6440, %v6428, %v6443
    %v6445 = vsel %vm6439, %v6442, %v6444
    %v6446 = vsel %vm6438, %v6425, %v6428
    %v6447 = vsel %vm6441, %v6434, 920167782
    %v6448 = vsel %vm6440, %v6431, %v6447
    %v6449 = vsel %vm6439, %v6446, %v6448
    %v6450 = vsel %vm6438, %v6428, %v6431
    %v6451 = vsel %vm6441, %v6437, 1326507024
    %v6452 = vsel %vm6440, %v6434, %v6451
    %v6453 = vsel %vm6439, %v6450, %v6452
    %v6454 = vshll.u32 %v6414, 8
    %v6455 = vand.u32 %v6454, 65535
    %v6456 = vshrl.u32 %v6454, 16
    %v6457 = vand.u32 %v6453, 65535
    %v6458 = vshrl.u32 %v6453, 16
    %v6459 = vmul.u32 %v6455, %v6457
    %v6460 = vmul.u32 %v6455, %v6458
    %v6461 = vmul.u32 %v6456, %v6457
    %v6462 = vmul.u32 %v6456, %v6458
    %v6463 = vshll.u32 %v6460, 16
    %v6464 = vshrl.u32 %v6460, 16
    %v6465 = vshll.u32 %v6461, 16
    %v6466 = vshrl.u32 %v6461, 16
    %vm6467 = vc.u32 %v6459, %v6463
    %v6468 = vsel %vm6467, 1, 0
    %v6469 = vadd.s32 %v6459, %v6463
    %v6470 = vadd.s32 %v6462, %v6468
    %vm6471 = vc.u32 %v6469, %v6465
    %v6472 = vsel %vm6471, 1, 0
    %v6473 = vadd.s32 %v6469, %v6465
    %v6474 = vadd.s32 %v6470, %v6472
    %v6475 = vadd.s32 %v6474, %v6464
    %v6476 = vadd.s32 %v6475, %v6466
    %v6477 = vand.u32 %v6454, 65535
    %v6478 = vshrl.u32 %v6454, 16
    %v6479 = vand.u32 %v6449, 65535
    %v6480 = vshrl.u32 %v6449, 16
    %v6481 = vmul.u32 %v6477, %v6479
    %v6482 = vmul.u32 %v6477, %v6480
    %v6483 = vmul.u32 %v6478, %v6479
    %v6484 = vmul.u32 %v6478, %v6480
    %v6485 = vshll.u32 %v6482, 16
    %v6486 = vshrl.u32 %v6482, 16
    %v6487 = vshll.u32 %v6483, 16
    %v6488 = vshrl.u32 %v6483, 16
    %vm6489 = vc.u32 %v6481, %v6485
    %v6490 = vsel %vm6489, 1, 0
    %v6491 = vadd.s32 %v6481, %v6485
    %v6492 = vadd.s32 %v6484, %v6490
    %vm6493 = vc.u32 %v6491, %v6487
    %v6494 = vsel %vm6493, 1, 0
    %v6495 = vadd.s32 %v6491, %v6487
    %v6496 = vadd.s32 %v6492, %v6494
    %v6497 = vadd.s32 %v6496, %v6486
    %v6498 = vadd.s32 %v6497, %v6488
    %v6499 = vmul.u32 %v6454, %v6445
    %v6500 = vadd.s32 %v6476, %v6495
    %vm6501 = vc.u32 %v6476, %v6495
    %v6502 = vadd.s32 %v6498, 1
    %v6503 = vsel %vm6501, %v6502, %v6498
    %v6504 = vadd.s32 %v6499, %v6503
    %v6505 = vadd.s32 %v6504, 536870912
    %v6506 = vshrl.u32 %v6505, 30
    %v6507 = vshll.u32 %v6506, 30
    %v6508 = vsub.s32 %v6504, %v6507
    %vm6509 = vcmp.lt.s32.totalorder %v6508, 0
    %v6510 = vsub.s32 0, %v6508
    %v6511 = vsel %vm6509, %v6510, %v6508
    %v6512 = vclz %v6511
    %v6513 = vsub.s32 %v6512, 2
    %vm6514 = vcmp.gt.s32.totalorder 0, %v6513
    %v6515 = vsel %vm6514, 0, %v6513
    %v6516 = vsub.s32 32, %v6515
    %v6517 = vshll.u32 %v6508, %v6515
    %v6518 = vshrl.u32 %v6500, %v6516
    %v6519 = vor.u32 %v6517, %v6518
    %v6520 = vsub.s32 4294967266, %v6515
    %v6521 = vadd.s32 %v6520, 127
    %v6522 = vshll.u32 %v6521, 23
    %v6523 = vor.u32 4788187, %v6522
    %v6524 = vand.u32 2147483647, %v6523
    %v6526 = vcvt.s32.f32 %v6519
    %v6527 = vmul.f32 %v6526, %v6524
    %v6528 = vxor.u32 %v6527, 2147483648
    %v6529 = vsel %vm6408, %v6528, %v6527
    %v6530 = vsub.s32 4, %v6506
    %v6531 = vsel %vm6408, %v6530, %v6506
    %v6532 = vsel %vm6407, %v481, %v6529
    %v6533 = vsel %vm6407, 0, %v6531
    %v6534 = vmul.f32 %v6532, %v6532
    %v6535 = vmul.f32 %v6534, -0.001358992
    %v6536 = vadd.f32 %v6535, 0.041655596
    %v6537 = vmul.f32 %v6534, %v6536
    %v6538 = vadd.f32 %v6537, -0.4999988
    %v6539 = vmul.f32 %v6534, %v6538
    %v6540 = vadd.f32 1.0, %v6539
    %v6541 = vmul.f32 %v6532, %v6532
    %v6542 = vmul.f32 %v6541, -0.00019511016
    %v6543 = vadd.f32 %v6542, 0.008332121
    %v6544 = vmul.f32 %v6541, %v6543
    %v6545 = vadd.f32 %v6544, -0.16666654
    %v6546 = vmul.f32 %v6541, %v6545
    %v6547 = vadd.f32 %v6546, 1.0
    %v6548 = vmul.f32 %v6547, %v6532
    %vm6549 = vweird.f32 %v481
    %v6550 = vand.u32 %v6533, 3
    %vm6551 = vcmp.lt.s32.totalorder %v6550, 2
    %vm6552 = vcmp.eq.s32.totalorder %v6550, 0
    %v6553 = vxor.u32 %v6548, 2147483648
    %v6554 = vsel %vm6552, %v6540, %v6553
    %vm6555 = vcmp.eq.s32.totalorder %v6550, 2
    %v6556 = vxor.u32 %v6540, 2147483648
    %v6557 = vsel %vm6555, %v6556, %v6548
    %v6558 = vsel %vm6551, %v6554, %v6557
    %v6559 = vsel %vm6549, nan, %v6558
    %v6560 = vand.u32 2147483647, %v482
    %vm6561 = vcmp.le.f32.partialorder %v6560, 0.7853982
    %vm6562 = vcmp.lt.s32.totalorder %v482, 0
    %v6563 = vand.u32 %v482, 2139095040
    %v6564 = vshrl.u32 %v6563, 23
    %v6565 = vsub.s32 %v6564, 127
    %v6566 = vand.u32 2147483647, %v482
    %v6567 = vand.u32 %v6566, 8388607
    %v6568 = vor.u32 %v6567, 8388608
    %v6569 = vsub.s32 0, %v6568
    %v6570 = vadd.s32 %v6565, 1
    %vm6571 = vcmp.gt.s32.totalorder %v6570, 0
    %v6572 = vsel %vm6571, %v6570, 0
    %v6573 = vshrl.u32 %v6572, 5
    %v6574 = vand.u32 %v6572, 31
    %v6575 = vsub.s32 32, %v6574
    %v6576 = vshrl.u32 683565275, %v6575
    %v6577 = vshll.u32 683565275, %v6574
    %v6578 = vshrl.u32 2475754826, %v6575
    %v6579 = vor.u32 %v6577, %v6578
    %v6580 = vshll.u32 2475754826, %v6574
    %v6581 = vshrl.u32 2131351028, %v6575
    %v6582 = vor.u32 %v6580, %v6581
    %v6583 = vshll.u32 2131351028, %v6574
    %v6584 = vshrl.u32 2102212464, %v6575
    %v6585 = vor.u32 %v6583, %v6584
    %v6586 = vshll.u32 2102212464, %v6574
    %v6587 = vshrl.u32 920167782, %v6575
    %v6588 = vor.u32 %v6586, %v6587
    %v6589 = vshll.u32 920167782, %v6574
    %v6590 = vshrl.u32 1326507024, %v6575
    %v6591 = vor.u32 %v6589, %v6590
    %vm6592 = vcmp.lt.s32.totalorder %v6573, 1
    %vm6593 = vcmp.lt.s32.totalorder %v6573, 2
    %vm6594 = vcmp.lt.s32.totalorder %v6573, 3
    %vm6595 = vcmp.lt.s32.totalorder %v6573, 4
    %v6596 = vsel %vm6592, %v6576, %v6579
    %v6597 = vsel %vm6595, %v6585, 2102212464
    %v6598 = vsel %vm6594, %v6582, %v6597
    %v6599 = vsel %vm6593, %v6596, %v6598
    %v6600 = vsel %vm6592, %v6579, %v6582
    %v6601 = vsel %vm6595, %v6588, 920167782
    %v6602 = vsel %vm6594, %v6585, %v6601
    %v6603 = vsel %vm6593, %v6600, %v6602
    %v6604 = vsel %vm6592, %v6582, %v6585
    %v6605 = vsel %vm6595, %v6591, 1326507024
    %v6606 = vsel %vm6594, %v6588, %v6605
    %v6607 = vsel %vm6593, %v6604, %v6606
    %v6608 = vshll.u32 %v6568, 8
    %v6609 = vand.u32 %v6608, 65535
    %v6610 = vshrl.u32 %v6608, 16
    %v6611 = vand.u32 %v6607, 65535
    %v6612 = vshrl.u32 %v6607, 16
    %v6613 = vmul.u32 %v6609, %v6611
    %v6614 = vmul.u32 %v6609, %v6612
    %v6615 = vmul.u32 %v6610, %v6611
    %v6616 = vmul.u32 %v6610, %v6612
    %v6617 = vshll.u32 %v6614, 16
    %v6618 = vshrl.u32 %v6614, 16
    %v6619 = vshll.u32 %v6615, 16
    %v6620 = vshrl.u32 %v6615, 16
    %vm6621 = vc.u32 %v6613, %v6617
    %v6622 = vsel %vm6621, 1, 0
    %v6623 = vadd.s32 %v6613, %v6617
    %v6624 = vadd.s32 %v6616, %v6622
    %vm6625 = vc.u32 %v6623, %v6619
    %v6626 = vsel %vm6625, 1, 0
    %v6627 = vadd.s32 %v6623, %v6619
    %v6628 = vadd.s32 %v6624, %v6626
    %v6629 = vadd.s32 %v6628, %v6618
    %v6630 = vadd.s32 %v6629, %v6620
    %v6631 = vand.u32 %v6608, 65535
    %v6632 = vshrl.u32 %v6608, 16
    %v6633 = vand.u32 %v6603, 65535
    %v6634 = vshrl.u32 %v6603, 16
    %v6635 = vmul.u32 %v6631, %v6633
    %v6636 = vmul.u32 %v6631, %v6634
    %v6637 = vmul.u32 %v6632, %v6633
    %v6638 = vmul.u32 %v6632, %v6634
    %v6639 = vshll.u32 %v6636, 16
    %v6640 = vshrl.u32 %v6636, 16
    %v6641 = vshll.u32 %v6637, 16
    %v6642 = vshrl.u32 %v6637, 16
    %vm6643 = vc.u32 %v6635, %v6639
    %v6644 = vsel %vm6643, 1, 0
    %v6645 = vadd.s32 %v6635, %v6639
    %v6646 = vadd.s32 %v6638, %v6644
    %vm6647 = vc.u32 %v6645, %v6641
    %v6648 = vsel %vm6647, 1, 0
    %v6649 = vadd.s32 %v6645, %v6641
    %v6650 = vadd.s32 %v6646, %v6648
    %v6651 = vadd.s32 %v6650, %v6640
    %v6652 = vadd.s32 %v6651, %v6642
    %v6653 = vmul.u32 %v6608, %v6599
    %v6654 = vadd.s32 %v6630, %v6649
    %vm6655 = vc.u32 %v6630, %v6649
    %v6656 = vadd.s32 %v6652, 1
    %v6657 = vsel %vm6655, %v6656, %v6652
    %v6658 = vadd.s32 %v6653, %v6657
    %v6659 = vadd.s32 %v6658, 536870912
    %v6660 = vshrl.u32 %v6659, 30
    %v6661 = vshll.u32 %v6660, 30
    %v6662 = vsub.s32 %v6658, %v6661
    %vm6663 = vcmp.lt.s32.totalorder %v6662, 0
    %v6664 = vsub.s32 0, %v6662
    %v6665 = vsel %vm6663, %v6664, %v6662
    %v6666 = vclz %v6665
    %v6667 = vsub.s32 %v6666, 2
    %vm6668 = vcmp.gt.s32.totalorder 0, %v6667
    %v6669 = vsel %vm6668, 0, %v6667
    %v6670 = vsub.s32 32, %v6669
    %v6671 = vshll.u32 %v6662, %v6669
    %v6672 = vshrl.u32 %v6654, %v6670
    %v6673 = vor.u32 %v6671, %v6672
    %v6674 = vsub.s32 4294967266, %v6669
    %v6675 = vadd.s32 %v6674, 127
    %v6676 = vshll.u32 %v6675, 23
    %v6677 = vor.u32 4788187, %v6676
    %v6678 = vand.u32 2147483647, %v6677
    %v6680 = vcvt.s32.f32 %v6673
    %v6681 = vmul.f32 %v6680, %v6678
    %v6682 = vxor.u32 %v6681, 2147483648
    %v6683 = vsel %vm6562, %v6682, %v6681
    %v6684 = vsub.s32 4, %v6660
    %v6685 = vsel %vm6562, %v6684, %v6660
    %v6686 = vsel %vm6561, %v482, %v6683
    %v6687 = vsel %vm6561, 0, %v6685
    %v6688 = vmul.f32 %v6686, %v6686
    %v6689 = vmul.f32 %v6688, -0.001358992
    %v6690 = vadd.f32 %v6689, 0.041655596
    %v6691 = vmul.f32 %v6688, %v6690
    %v6692 = vadd.f32 %v6691, -0.4999988
    %v6693 = vmul.f32 %v6688, %v6692
    %v6694 = vadd.f32 1.0, %v6693
    %v6695 = vmul.f32 %v6686, %v6686
    %v6696 = vmul.f32 %v6695, -0.00019511016
    %v6697 = vadd.f32 %v6696, 0.008332121
    %v6698 = vmul.f32 %v6695, %v6697
    %v6699 = vadd.f32 %v6698, -0.16666654
    %v6700 = vmul.f32 %v6695, %v6699
    %v6701 = vadd.f32 %v6700, 1.0
    %v6702 = vmul.f32 %v6701, %v6686
    %vm6703 = vweird.f32 %v482
    %v6704 = vand.u32 %v6687, 3
    %vm6705 = vcmp.lt.s32.totalorder %v6704, 2
    %vm6706 = vcmp.eq.s32.totalorder %v6704, 0
    %v6707 = vxor.u32 %v6702, 2147483648
    %v6708 = vsel %vm6706, %v6694, %v6707
    %vm6709 = vcmp.eq.s32.totalorder %v6704, 2
    %v6710 = vxor.u32 %v6694, 2147483648
    %v6711 = vsel %vm6709, %v6710, %v6702
    %v6712 = vsel %vm6705, %v6708, %v6711
    %v6713 = vsel %vm6703, nan, %v6712
    %v6714 = vand.u32 2147483647, %v483
    %vm6715 = vcmp.le.f32.partialorder %v6714, 0.7853982
    %vm6716 = vcmp.lt.s32.totalorder %v483, 0
    %v6717 = vand.u32 %v483, 2139095040
    %v6718 = vshrl.u32 %v6717, 23
    %v6719 = vsub.s32 %v6718, 127
    %v6720 = vand.u32 2147483647, %v483
    %v6721 = vand.u32 %v6720, 8388607
    %v6722 = vor.u32 %v6721, 8388608
    %v6723 = vsub.s32 0, %v6722
    %v6724 = vadd.s32 %v6719, 1
    %vm6725 = vcmp.gt.s32.totalorder %v6724, 0
    %v6726 = vsel %vm6725, %v6724, 0
    %v6727 = vshrl.u32 %v6726, 5
    %v6728 = vand.u32 %v6726, 31
    %v6729 = vsub.s32 32, %v6728
    %v6730 = vshrl.u32 683565275, %v6729
    %v6731 = vshll.u32 683565275, %v6728
    %v6732 = vshrl.u32 2475754826, %v6729
    %v6733 = vor.u32 %v6731, %v6732
    %v6734 = vshll.u32 2475754826, %v6728
    %v6735 = vshrl.u32 2131351028, %v6729
    %v6736 = vor.u32 %v6734, %v6735
    %v6737 = vshll.u32 2131351028, %v6728
    %v6738 = vshrl.u32 2102212464, %v6729
    %v6739 = vor.u32 %v6737, %v6738
    %v6740 = vshll.u32 2102212464, %v6728
    %v6741 = vshrl.u32 920167782, %v6729
    %v6742 = vor.u32 %v6740, %v6741
    %v6743 = vshll.u32 920167782, %v6728
    %v6744 = vshrl.u32 1326507024, %v6729
    %v6745 = vor.u32 %v6743, %v6744
    %vm6746 = vcmp.lt.s32.totalorder %v6727, 1
    %vm6747 = vcmp.lt.s32.totalorder %v6727, 2
    %vm6748 = vcmp.lt.s32.totalorder %v6727, 3
    %vm6749 = vcmp.lt.s32.totalorder %v6727, 4
    %v6750 = vsel %vm6746, %v6730, %v6733
    %v6751 = vsel %vm6749, %v6739, 2102212464
    %v6752 = vsel %vm6748, %v6736, %v6751
    %v6753 = vsel %vm6747, %v6750, %v6752
    %v6754 = vsel %vm6746, %v6733, %v6736
    %v6755 = vsel %vm6749, %v6742, 920167782
    %v6756 = vsel %vm6748, %v6739, %v6755
    %v6757 = vsel %vm6747, %v6754, %v6756
    %v6758 = vsel %vm6746, %v6736, %v6739
    %v6759 = vsel %vm6749, %v6745, 1326507024
    %v6760 = vsel %vm6748, %v6742, %v6759
    %v6761 = vsel %vm6747, %v6758, %v6760
    %v6762 = vshll.u32 %v6722, 8
    %v6763 = vand.u32 %v6762, 65535
    %v6764 = vshrl.u32 %v6762, 16
    %v6765 = vand.u32 %v6761, 65535
    %v6766 = vshrl.u32 %v6761, 16
    %v6767 = vmul.u32 %v6763, %v6765
    %v6768 = vmul.u32 %v6763, %v6766
    %v6769 = vmul.u32 %v6764, %v6765
    %v6770 = vmul.u32 %v6764, %v6766
    %v6771 = vshll.u32 %v6768, 16
    %v6772 = vshrl.u32 %v6768, 16
    %v6773 = vshll.u32 %v6769, 16
    %v6774 = vshrl.u32 %v6769, 16
    %vm6775 = vc.u32 %v6767, %v6771
    %v6776 = vsel %vm6775, 1, 0
    %v6777 = vadd.s32 %v6767, %v6771
    %v6778 = vadd.s32 %v6770, %v6776
    %vm6779 = vc.u32 %v6777, %v6773
    %v6780 = vsel %vm6779, 1, 0
    %v6781 = vadd.s32 %v6777, %v6773
    %v6782 = vadd.s32 %v6778, %v6780
    %v6783 = vadd.s32 %v6782, %v6772
    %v6784 = vadd.s32 %v6783, %v6774
    %v6785 = vand.u32 %v6762, 65535
    %v6786 = vshrl.u32 %v6762, 16
    %v6787 = vand.u32 %v6757, 65535
    %v6788 = vshrl.u32 %v6757, 16
    %v6789 = vmul.u32 %v6785, %v6787
    %v6790 = vmul.u32 %v6785, %v6788
    %v6791 = vmul.u32 %v6786, %v6787
    %v6792 = vmul.u32 %v6786, %v6788
    %v6793 = vshll.u32 %v6790, 16
    %v6794 = vshrl.u32 %v6790, 16
    %v6795 = vshll.u32 %v6791, 16
    %v6796 = vshrl.u32 %v6791, 16
    %vm6797 = vc.u32 %v6789, %v6793
    %v6798 = vsel %vm6797, 1, 0
    %v6799 = vadd.s32 %v6789, %v6793
    %v6800 = vadd.s32 %v6792, %v6798
    %vm6801 = vc.u32 %v6799, %v6795
    %v6802 = vsel %vm6801, 1, 0
    %v6803 = vadd.s32 %v6799, %v6795
    %v6804 = vadd.s32 %v6800, %v6802
    %v6805 = vadd.s32 %v6804, %v6794
    %v6806 = vadd.s32 %v6805, %v6796
    %v6807 = vmul.u32 %v6762, %v6753
    %v6808 = vadd.s32 %v6784, %v6803
    %vm6809 = vc.u32 %v6784, %v6803
    %v6810 = vadd.s32 %v6806, 1
    %v6811 = vsel %vm6809, %v6810, %v6806
    %v6812 = vadd.s32 %v6807, %v6811
    %v6813 = vadd.s32 %v6812, 536870912
    %v6814 = vshrl.u32 %v6813, 30
    %v6815 = vshll.u32 %v6814, 30
    %v6816 = vsub.s32 %v6812, %v6815
    %vm6817 = vcmp.lt.s32.totalorder %v6816, 0
    %v6818 = vsub.s32 0, %v6816
    %v6819 = vsel %vm6817, %v6818, %v6816
    %v6820 = vclz %v6819
    %v6821 = vsub.s32 %v6820, 2
    %vm6822 = vcmp.gt.s32.totalorder 0, %v6821
    %v6823 = vsel %vm6822, 0, %v6821
    %v6824 = vsub.s32 32, %v6823
    %v6825 = vshll.u32 %v6816, %v6823
    %v6826 = vshrl.u32 %v6808, %v6824
    %v6827 = vor.u32 %v6825, %v6826
    %v6828 = vsub.s32 4294967266, %v6823
    %v6829 = vadd.s32 %v6828, 127
    %v6830 = vshll.u32 %v6829, 23
    %v6831 = vor.u32 4788187, %v6830
    %v6832 = vand.u32 2147483647, %v6831
    %v6834 = vcvt.s32.f32 %v6827
    %v6835 = vmul.f32 %v6834, %v6832
    %v6836 = vxor.u32 %v6835, 2147483648
    %v6837 = vsel %vm6716, %v6836, %v6835
    %v6838 = vsub.s32 4, %v6814
    %v6839 = vsel %vm6716, %v6838, %v6814
    %v6840 = vsel %vm6715, %v483, %v6837
    %v6841 = vsel %vm6715, 0, %v6839
    %v6842 = vmul.f32 %v6840, %v6840
    %v6843 = vmul.f32 %v6842, -0.001358992
    %v6844 = vadd.f32 %v6843, 0.041655596
    %v6845 = vmul.f32 %v6842, %v6844
    %v6846 = vadd.f32 %v6845, -0.4999988
    %v6847 = vmul.f32 %v6842, %v6846
    %v6848 = vadd.f32 1.0, %v6847
    %v6849 = vmul.f32 %v6840, %v6840
    %v6850 = vmul.f32 %v6849, -0.00019511016
    %v6851 = vadd.f32 %v6850, 0.008332121
    %v6852 = vmul.f32 %v6849, %v6851
    %v6853 = vadd.f32 %v6852, -0.16666654
    %v6854 = vmul.f32 %v6849, %v6853
    %v6855 = vadd.f32 %v6854, 1.0
    %v6856 = vmul.f32 %v6855, %v6840
    %vm6857 = vweird.f32 %v483
    %v6858 = vand.u32 %v6841, 3
    %vm6859 = vcmp.lt.s32.totalorder %v6858, 2
    %vm6860 = vcmp.eq.s32.totalorder %v6858, 0
    %v6861 = vxor.u32 %v6856, 2147483648
    %v6862 = vsel %vm6860, %v6848, %v6861
    %vm6863 = vcmp.eq.s32.totalorder %v6858, 2
    %v6864 = vxor.u32 %v6848, 2147483648
    %v6865 = vsel %vm6863, %v6864, %v6856
    %v6866 = vsel %vm6859, %v6862, %v6865
    %v6867 = vsel %vm6857, nan, %v6866
    %v6868 = vand.u32 2147483647, %v484
    %vm6869 = vcmp.le.f32.partialorder %v6868, 0.7853982
    %vm6870 = vcmp.lt.s32.totalorder %v484, 0
    %v6871 = vand.u32 %v484, 2139095040
    %v6872 = vshrl.u32 %v6871, 23
    %v6873 = vsub.s32 %v6872, 127
    %v6874 = vand.u32 2147483647, %v484
    %v6875 = vand.u32 %v6874, 8388607
    %v6876 = vor.u32 %v6875, 8388608
    %v6877 = vsub.s32 0, %v6876
    %v6878 = vadd.s32 %v6873, 1
    %vm6879 = vcmp.gt.s32.totalorder %v6878, 0
    %v6880 = vsel %vm6879, %v6878, 0
    %v6881 = vshrl.u32 %v6880, 5
    %v6882 = vand.u32 %v6880, 31
    %v6883 = vsub.s32 32, %v6882
    %v6884 = vshrl.u32 683565275, %v6883
    %v6885 = vshll.u32 683565275, %v6882
    %v6886 = vshrl.u32 2475754826, %v6883
    %v6887 = vor.u32 %v6885, %v6886
    %v6888 = vshll.u32 2475754826, %v6882
    %v6889 = vshrl.u32 2131351028, %v6883
    %v6890 = vor.u32 %v6888, %v6889
    %v6891 = vshll.u32 2131351028, %v6882
    %v6892 = vshrl.u32 2102212464, %v6883
    %v6893 = vor.u32 %v6891, %v6892
    %v6894 = vshll.u32 2102212464, %v6882
    %v6895 = vshrl.u32 920167782, %v6883
    %v6896 = vor.u32 %v6894, %v6895
    %v6897 = vshll.u32 920167782, %v6882
    %v6898 = vshrl.u32 1326507024, %v6883
    %v6899 = vor.u32 %v6897, %v6898
    %vm6900 = vcmp.lt.s32.totalorder %v6881, 1
    %vm6901 = vcmp.lt.s32.totalorder %v6881, 2
    %vm6902 = vcmp.lt.s32.totalorder %v6881, 3
    %vm6903 = vcmp.lt.s32.totalorder %v6881, 4
    %v6904 = vsel %vm6900, %v6884, %v6887
    %v6905 = vsel %vm6903, %v6893, 2102212464
    %v6906 = vsel %vm6902, %v6890, %v6905
    %v6907 = vsel %vm6901, %v6904, %v6906
    %v6908 = vsel %vm6900, %v6887, %v6890
    %v6909 = vsel %vm6903, %v6896, 920167782
    %v6910 = vsel %vm6902, %v6893, %v6909
    %v6911 = vsel %vm6901, %v6908, %v6910
    %v6912 = vsel %vm6900, %v6890, %v6893
    %v6913 = vsel %vm6903, %v6899, 1326507024
    %v6914 = vsel %vm6902, %v6896, %v6913
    %v6915 = vsel %vm6901, %v6912, %v6914
    %v6916 = vshll.u32 %v6876, 8
    %v6917 = vand.u32 %v6916, 65535
    %v6918 = vshrl.u32 %v6916, 16
    %v6919 = vand.u32 %v6915, 65535
    %v6920 = vshrl.u32 %v6915, 16
    %v6921 = vmul.u32 %v6917, %v6919
    %v6922 = vmul.u32 %v6917, %v6920
    %v6923 = vmul.u32 %v6918, %v6919
    %v6924 = vmul.u32 %v6918, %v6920
    %v6925 = vshll.u32 %v6922, 16
    %v6926 = vshrl.u32 %v6922, 16
    %v6927 = vshll.u32 %v6923, 16
    %v6928 = vshrl.u32 %v6923, 16
    %vm6929 = vc.u32 %v6921, %v6925
    %v6930 = vsel %vm6929, 1, 0
    %v6931 = vadd.s32 %v6921, %v6925
    %v6932 = vadd.s32 %v6924, %v6930
    %vm6933 = vc.u32 %v6931, %v6927
    %v6934 = vsel %vm6933, 1, 0
    %v6935 = vadd.s32 %v6931, %v6927
    %v6936 = vadd.s32 %v6932, %v6934
    %v6937 = vadd.s32 %v6936, %v6926
    %v6938 = vadd.s32 %v6937, %v6928
    %v6939 = vand.u32 %v6916, 65535
    %v6940 = vshrl.u32 %v6916, 16
    %v6941 = vand.u32 %v6911, 65535
    %v6942 = vshrl.u32 %v6911, 16
    %v6943 = vmul.u32 %v6939, %v6941
    %v6944 = vmul.u32 %v6939, %v6942
    %v6945 = vmul.u32 %v6940, %v6941
    %v6946 = vmul.u32 %v6940, %v6942
    %v6947 = vshll.u32 %v6944, 16
    %v6948 = vshrl.u32 %v6944, 16
    %v6949 = vshll.u32 %v6945, 16
    %v6950 = vshrl.u32 %v6945, 16
    %vm6951 = vc.u32 %v6943, %v6947
    %v6952 = vsel %vm6951, 1, 0
    %v6953 = vadd.s32 %v6943, %v6947
    %v6954 = vadd.s32 %v6946, %v6952
    %vm6955 = vc.u32 %v6953, %v6949
    %v6956 = vsel %vm6955, 1, 0
    %v6957 = vadd.s32 %v6953, %v6949
    %v6958 = vadd.s32 %v6954, %v6956
    %v6959 = vadd.s32 %v6958, %v6948
    %v6960 = vadd.s32 %v6959, %v6950
    %v6961 = vmul.u32 %v6916, %v6907
    %v6962 = vadd.s32 %v6938, %v6957
    %vm6963 = vc.u32 %v6938, %v6957
    %v6964 = vadd.s32 %v6960, 1
    %v6965 = vsel %vm6963, %v6964, %v6960
    %v6966 = vadd.s32 %v6961, %v6965
    %v6967 = vadd.s32 %v6966, 536870912
    %v6968 = vshrl.u32 %v6967, 30
    %v6969 = vshll.u32 %v6968, 30
    %v6970 = vsub.s32 %v6966, %v6969
    %vm6971 = vcmp.lt.s32.totalorder %v6970, 0
    %v6972 = vsub.s32 0, %v6970
    %v6973 = vsel %vm6971, %v6972, %v6970
    %v6974 = vclz %v6973
    %v6975 = vsub.s32 %v6974, 2
    %vm6976 = vcmp.gt.s32.totalorder 0, %v6975
    %v6977 = vsel %vm6976, 0, %v6975
    %v6978 = vsub.s32 32, %v6977
    %v6979 = vshll.u32 %v6970, %v6977
    %v6980 = vshrl.u32 %v6962, %v6978
    %v6981 = vor.u32 %v6979, %v6980
    %v6982 = vsub.s32 4294967266, %v6977
    %v6983 = vadd.s32 %v6982, 127
    %v6984 = vshll.u32 %v6983, 23
    %v6985 = vor.u32 4788187, %v6984
    %v6986 = vand.u32 2147483647, %v6985
    %v6988 = vcvt.s32.f32 %v6981
    %v6989 = vmul.f32 %v6988, %v6986
    %v6990 = vxor.u32 %v6989, 2147483648
    %v6991 = vsel %vm6870, %v6990, %v6989
    %v6992 = vsub.s32 4, %v6968
    %v6993 = vsel %vm6870, %v6992, %v6968
    %v6994 = vsel %vm6869, %v484, %v6991
    %v6995 = vsel %vm6869, 0, %v6993
    %v6996 = vmul.f32 %v6994, %v6994
    %v6997 = vmul.f32 %v6996, -0.001358992
    %v6998 = vadd.f32 %v6997, 0.041655596
    %v6999 = vmul.f32 %v6996, %v6998
    %v7000 = vadd.f32 %v6999, -0.4999988
    %v7001 = vmul.f32 %v6996, %v7000
    %v7002 = vadd.f32 1.0, %v7001
    %v7003 = vmul.f32 %v6994, %v6994
    %v7004 = vmul.f32 %v7003, -0.00019511016
    %v7005 = vadd.f32 %v7004, 0.008332121
    %v7006 = vmul.f32 %v7003, %v7005
    %v7007 = vadd.f32 %v7006, -0.16666654
    %v7008 = vmul.f32 %v7003, %v7007
    %v7009 = vadd.f32 %v7008, 1.0
    %v7010 = vmul.f32 %v7009, %v6994
    %vm7011 = vweird.f32 %v484
    %v7012 = vand.u32 %v6995, 3
    %vm7013 = vcmp.lt.s32.totalorder %v7012, 2
    %vm7014 = vcmp.eq.s32.totalorder %v7012, 0
    %v7015 = vxor.u32 %v7010, 2147483648
    %v7016 = vsel %vm7014, %v7002, %v7015
    %vm7017 = vcmp.eq.s32.totalorder %v7012, 2
    %v7018 = vxor.u32 %v7002, 2147483648
    %v7019 = vsel %vm7017, %v7018, %v7010
    %v7020 = vsel %vm7013, %v7016, %v7019
    %v7021 = vsel %vm7011, nan, %v7020
    %v7022 = vand.u32 2147483647, %v485
    %vm7023 = vcmp.le.f32.partialorder %v7022, 0.7853982
    %vm7024 = vcmp.lt.s32.totalorder %v485, 0
    %v7025 = vand.u32 %v485, 2139095040
    %v7026 = vshrl.u32 %v7025, 23
    %v7027 = vsub.s32 %v7026, 127
    %v7028 = vand.u32 2147483647, %v485
    %v7029 = vand.u32 %v7028, 8388607
    %v7030 = vor.u32 %v7029, 8388608
    %v7031 = vsub.s32 0, %v7030
    %v7032 = vadd.s32 %v7027, 1
    %vm7033 = vcmp.gt.s32.totalorder %v7032, 0
    %v7034 = vsel %vm7033, %v7032, 0
    %v7035 = vshrl.u32 %v7034, 5
    %v7036 = vand.u32 %v7034, 31
    %v7037 = vsub.s32 32, %v7036
    %v7038 = vshrl.u32 683565275, %v7037
    %v7039 = vshll.u32 683565275, %v7036
    %v7040 = vshrl.u32 2475754826, %v7037
    %v7041 = vor.u32 %v7039, %v7040
    %v7042 = vshll.u32 2475754826, %v7036
    %v7043 = vshrl.u32 2131351028, %v7037
    %v7044 = vor.u32 %v7042, %v7043
    %v7045 = vshll.u32 2131351028, %v7036
    %v7046 = vshrl.u32 2102212464, %v7037
    %v7047 = vor.u32 %v7045, %v7046
    %v7048 = vshll.u32 2102212464, %v7036
    %v7049 = vshrl.u32 920167782, %v7037
    %v7050 = vor.u32 %v7048, %v7049
    %v7051 = vshll.u32 920167782, %v7036
    %v7052 = vshrl.u32 1326507024, %v7037
    %v7053 = vor.u32 %v7051, %v7052
    %vm7054 = vcmp.lt.s32.totalorder %v7035, 1
    %vm7055 = vcmp.lt.s32.totalorder %v7035, 2
    %vm7056 = vcmp.lt.s32.totalorder %v7035, 3
    %vm7057 = vcmp.lt.s32.totalorder %v7035, 4
    %v7058 = vsel %vm7054, %v7038, %v7041
    %v7059 = vsel %vm7057, %v7047, 2102212464
    %v7060 = vsel %vm7056, %v7044, %v7059
    %v7061 = vsel %vm7055, %v7058, %v7060
    %v7062 = vsel %vm7054, %v7041, %v7044
    %v7063 = vsel %vm7057, %v7050, 920167782
    %v7064 = vsel %vm7056, %v7047, %v7063
    %v7065 = vsel %vm7055, %v7062, %v7064
    %v7066 = vsel %vm7054, %v7044, %v7047
    %v7067 = vsel %vm7057, %v7053, 1326507024
    %v7068 = vsel %vm7056, %v7050, %v7067
    %v7069 = vsel %vm7055, %v7066, %v7068
    %v7070 = vshll.u32 %v7030, 8
    %v7071 = vand.u32 %v7070, 65535
    %v7072 = vshrl.u32 %v7070, 16
    %v7073 = vand.u32 %v7069, 65535
    %v7074 = vshrl.u32 %v7069, 16
    %v7075 = vmul.u32 %v7071, %v7073
    %v7076 = vmul.u32 %v7071, %v7074
    %v7077 = vmul.u32 %v7072, %v7073
    %v7078 = vmul.u32 %v7072, %v7074
    %v7079 = vshll.u32 %v7076, 16
    %v7080 = vshrl.u32 %v7076, 16
    %v7081 = vshll.u32 %v7077, 16
    %v7082 = vshrl.u32 %v7077, 16
    %vm7083 = vc.u32 %v7075, %v7079
    %v7084 = vsel %vm7083, 1, 0
    %v7085 = vadd.s32 %v7075, %v7079
    %v7086 = vadd.s32 %v7078, %v7084
    %vm7087 = vc.u32 %v7085, %v7081
    %v7088 = vsel %vm7087, 1, 0
    %v7089 = vadd.s32 %v7085, %v7081
    %v7090 = vadd.s32 %v7086, %v7088
    %v7091 = vadd.s32 %v7090, %v7080
    %v7092 = vadd.s32 %v7091, %v7082
    %v7093 = vand.u32 %v7070, 65535
    %v7094 = vshrl.u32 %v7070, 16
    %v7095 = vand.u32 %v7065, 65535
    %v7096 = vshrl.u32 %v7065, 16
    %v7097 = vmul.u32 %v7093, %v7095
    %v7098 = vmul.u32 %v7093, %v7096
    %v7099 = vmul.u32 %v7094, %v7095
    %v7100 = vmul.u32 %v7094, %v7096
    %v7101 = vshll.u32 %v7098, 16
    %v7102 = vshrl.u32 %v7098, 16
    %v7103 = vshll.u32 %v7099, 16
    %v7104 = vshrl.u32 %v7099, 16
    %vm7105 = vc.u32 %v7097, %v7101
    %v7106 = vsel %vm7105, 1, 0
    %v7107 = vadd.s32 %v7097, %v7101
    %v7108 = vadd.s32 %v7100, %v7106
    %vm7109 = vc.u32 %v7107, %v7103
    %v7110 = vsel %vm7109, 1, 0
    %v7111 = vadd.s32 %v7107, %v7103
    %v7112 = vadd.s32 %v7108, %v7110
    %v7113 = vadd.s32 %v7112, %v7102
    %v7114 = vadd.s32 %v7113, %v7104
    %v7115 = vmul.u32 %v7070, %v7061
    %v7116 = vadd.s32 %v7092, %v7111
    %vm7117 = vc.u32 %v7092, %v7111
    %v7118 = vadd.s32 %v7114, 1
    %v7119 = vsel %vm7117, %v7118, %v7114
    %v7120 = vadd.s32 %v7115, %v7119
    %v7121 = vadd.s32 %v7120, 536870912
    %v7122 = vshrl.u32 %v7121, 30
    %v7123 = vshll.u32 %v7122, 30
    %v7124 = vsub.s32 %v7120, %v7123
    %vm7125 = vcmp.lt.s32.totalorder %v7124, 0
    %v7126 = vsub.s32 0, %v7124
    %v7127 = vsel %vm7125, %v7126, %v7124
    %v7128 = vclz %v7127
    %v7129 = vsub.s32 %v7128, 2
    %vm7130 = vcmp.gt.s32.totalorder 0, %v7129
    %v7131 = vsel %vm7130, 0, %v7129
    %v7132 = vsub.s32 32, %v7131
    %v7133 = vshll.u32 %v7124, %v7131
    %v7134 = vshrl.u32 %v7116, %v7132
    %v7135 = vor.u32 %v7133, %v7134
    %v7136 = vsub.s32 4294967266, %v7131
    %v7137 = vadd.s32 %v7136, 127
    %v7138 = vshll.u32 %v7137, 23
    %v7139 = vor.u32 4788187, %v7138
    %v7140 = vand.u32 2147483647, %v7139
    %v7142 = vcvt.s32.f32 %v7135
    %v7143 = vmul.f32 %v7142, %v7140
    %v7144 = vxor.u32 %v7143, 2147483648
    %v7145 = vsel %vm7024, %v7144, %v7143
    %v7146 = vsub.s32 4, %v7122
    %v7147 = vsel %vm7024, %v7146, %v7122
    %v7148 = vsel %vm7023, %v485, %v7145
    %v7149 = vsel %vm7023, 0, %v7147
    %v7150 = vmul.f32 %v7148, %v7148
    %v7151 = vmul.f32 %v7150, -0.001358992
    %v7152 = vadd.f32 %v7151, 0.041655596
    %v7153 = vmul.f32 %v7150, %v7152
    %v7154 = vadd.f32 %v7153, -0.4999988
    %v7155 = vmul.f32 %v7150, %v7154
    %v7156 = vadd.f32 1.0, %v7155
    %v7157 = vmul.f32 %v7148, %v7148
    %v7158 = vmul.f32 %v7157, -0.00019511016
    %v7159 = vadd.f32 %v7158, 0.008332121
    %v7160 = vmul.f32 %v7157, %v7159
    %v7161 = vadd.f32 %v7160, -0.16666654
    %v7162 = vmul.f32 %v7157, %v7161
    %v7163 = vadd.f32 %v7162, 1.0
    %v7164 = vmul.f32 %v7163, %v7148
    %vm7165 = vweird.f32 %v485
    %v7166 = vand.u32 %v7149, 3
    %vm7167 = vcmp.lt.s32.totalorder %v7166, 2
    %vm7168 = vcmp.eq.s32.totalorder %v7166, 0
    %v7169 = vxor.u32 %v7164, 2147483648
    %v7170 = vsel %vm7168, %v7156, %v7169
    %vm7171 = vcmp.eq.s32.totalorder %v7166, 2
    %v7172 = vxor.u32 %v7156, 2147483648
    %v7173 = vsel %vm7171, %v7172, %v7164
    %v7174 = vsel %vm7167, %v7170, %v7173
    %v7175 = vsel %vm7165, nan, %v7174
    %v7176 = vand.u32 2147483647, %v486
    %vm7177 = vcmp.le.f32.partialorder %v7176, 0.7853982
    %vm7178 = vcmp.lt.s32.totalorder %v486, 0
    %v7179 = vand.u32 %v486, 2139095040
    %v7180 = vshrl.u32 %v7179, 23
    %v7181 = vsub.s32 %v7180, 127
    %v7182 = vand.u32 2147483647, %v486
    %v7183 = vand.u32 %v7182, 8388607
    %v7184 = vor.u32 %v7183, 8388608
    %v7185 = vsub.s32 0, %v7184
    %v7186 = vadd.s32 %v7181, 1
    %vm7187 = vcmp.gt.s32.totalorder %v7186, 0
    %v7188 = vsel %vm7187, %v7186, 0
    %v7189 = vshrl.u32 %v7188, 5
    %v7190 = vand.u32 %v7188, 31
    %v7191 = vsub.s32 32, %v7190
    %v7192 = vshrl.u32 683565275, %v7191
    %v7193 = vshll.u32 683565275, %v7190
    %v7194 = vshrl.u32 2475754826, %v7191
    %v7195 = vor.u32 %v7193, %v7194
    %v7196 = vshll.u32 2475754826, %v7190
    %v7197 = vshrl.u32 2131351028, %v7191
    %v7198 = vor.u32 %v7196, %v7197
    %v7199 = vshll.u32 2131351028, %v7190
    %v7200 = vshrl.u32 2102212464, %v7191
    %v7201 = vor.u32 %v7199, %v7200
    %v7202 = vshll.u32 2102212464, %v7190
    %v7203 = vshrl.u32 920167782, %v7191
    %v7204 = vor.u32 %v7202, %v7203
    %v7205 = vshll.u32 920167782, %v7190
    %v7206 = vshrl.u32 1326507024, %v7191
    %v7207 = vor.u32 %v7205, %v7206
    %vm7208 = vcmp.lt.s32.totalorder %v7189, 1
    %vm7209 = vcmp.lt.s32.totalorder %v7189, 2
    %vm7210 = vcmp.lt.s32.totalorder %v7189, 3
    %vm7211 = vcmp.lt.s32.totalorder %v7189, 4
    %v7212 = vsel %vm7208, %v7192, %v7195
    %v7213 = vsel %vm7211, %v7201, 2102212464
    %v7214 = vsel %vm7210, %v7198, %v7213
    %v7215 = vsel %vm7209, %v7212, %v7214
    %v7216 = vsel %vm7208, %v7195, %v7198
    %v7217 = vsel %vm7211, %v7204, 920167782
    %v7218 = vsel %vm7210, %v7201, %v7217
    %v7219 = vsel %vm7209, %v7216, %v7218
    %v7220 = vsel %vm7208, %v7198, %v7201
    %v7221 = vsel %vm7211, %v7207, 1326507024
    %v7222 = vsel %vm7210, %v7204, %v7221
    %v7223 = vsel %vm7209, %v7220, %v7222
    %v7224 = vshll.u32 %v7184, 8
    %v7225 = vand.u32 %v7224, 65535
    %v7226 = vshrl.u32 %v7224, 16
    %v7227 = vand.u32 %v7223, 65535
    %v7228 = vshrl.u32 %v7223, 16
    %v7229 = vmul.u32 %v7225, %v7227
    %v7230 = vmul.u32 %v7225, %v7228
    %v7231 = vmul.u32 %v7226, %v7227
    %v7232 = vmul.u32 %v7226, %v7228
    %v7233 = vshll.u32 %v7230, 16
    %v7234 = vshrl.u32 %v7230, 16
    %v7235 = vshll.u32 %v7231, 16
    %v7236 = vshrl.u32 %v7231, 16
    %vm7237 = vc.u32 %v7229, %v7233
    %v7238 = vsel %vm7237, 1, 0
    %v7239 = vadd.s32 %v7229, %v7233
    %v7240 = vadd.s32 %v7232, %v7238
    %vm7241 = vc.u32 %v7239, %v7235
    %v7242 = vsel %vm7241, 1, 0
    %v7243 = vadd.s32 %v7239, %v7235
    %v7244 = vadd.s32 %v7240, %v7242
    %v7245 = vadd.s32 %v7244, %v7234
    %v7246 = vadd.s32 %v7245, %v7236
    %v7247 = vand.u32 %v7224, 65535
    %v7248 = vshrl.u32 %v7224, 16
    %v7249 = vand.u32 %v7219, 65535
    %v7250 = vshrl.u32 %v7219, 16
    %v7251 = vmul.u32 %v7247, %v7249
    %v7252 = vmul.u32 %v7247, %v7250
    %v7253 = vmul.u32 %v7248, %v7249
    %v7254 = vmul.u32 %v7248, %v7250
    %v7255 = vshll.u32 %v7252, 16
    %v7256 = vshrl.u32 %v7252, 16
    %v7257 = vshll.u32 %v7253, 16
    %v7258 = vshrl.u32 %v7253, 16
    %vm7259 = vc.u32 %v7251, %v7255
    %v7260 = vsel %vm7259, 1, 0
    %v7261 = vadd.s32 %v7251, %v7255
    %v7262 = vadd.s32 %v7254, %v7260
    %vm7263 = vc.u32 %v7261, %v7257
    %v7264 = vsel %vm7263, 1, 0
    %v7265 = vadd.s32 %v7261, %v7257
    %v7266 = vadd.s32 %v7262, %v7264
    %v7267 = vadd.s32 %v7266, %v7256
    %v7268 = vadd.s32 %v7267, %v7258
    %v7269 = vmul.u32 %v7224, %v7215
    %v7270 = vadd.s32 %v7246, %v7265
    %vm7271 = vc.u32 %v7246, %v7265
    %v7272 = vadd.s32 %v7268, 1
    %v7273 = vsel %vm7271, %v7272, %v7268
    %v7274 = vadd.s32 %v7269, %v7273
    %v7275 = vadd.s32 %v7274, 536870912
    %v7276 = vshrl.u32 %v7275, 30
    %v7277 = vshll.u32 %v7276, 30
    %v7278 = vsub.s32 %v7274, %v7277
    %vm7279 = vcmp.lt.s32.totalorder %v7278, 0
    %v7280 = vsub.s32 0, %v7278
    %v7281 = vsel %vm7279, %v7280, %v7278
    %v7282 = vclz %v7281
    %v7283 = vsub.s32 %v7282, 2
    %vm7284 = vcmp.gt.s32.totalorder 0, %v7283
    %v7285 = vsel %vm7284, 0, %v7283
    %v7286 = vsub.s32 32, %v7285
    %v7287 = vshll.u32 %v7278, %v7285
    %v7288 = vshrl.u32 %v7270, %v7286
    %v7289 = vor.u32 %v7287, %v7288
    %v7290 = vsub.s32 4294967266, %v7285
    %v7291 = vadd.s32 %v7290, 127
    %v7292 = vshll.u32 %v7291, 23
    %v7293 = vor.u32 4788187, %v7292
    %v7294 = vand.u32 2147483647, %v7293
    %v7296 = vcvt.s32.f32 %v7289
    %v7297 = vmul.f32 %v7296, %v7294
    %v7298 = vxor.u32 %v7297, 2147483648
    %v7299 = vsel %vm7178, %v7298, %v7297
    %v7300 = vsub.s32 4, %v7276
    %v7301 = vsel %vm7178, %v7300, %v7276
    %v7302 = vsel %vm7177, %v486, %v7299
    %v7303 = vsel %vm7177, 0, %v7301
    %v7304 = vmul.f32 %v7302, %v7302
    %v7305 = vmul.f32 %v7304, -0.001358992
    %v7306 = vadd.f32 %v7305, 0.041655596
    %v7307 = vmul.f32 %v7304, %v7306
    %v7308 = vadd.f32 %v7307, -0.4999988
    %v7309 = vmul.f32 %v7304, %v7308
    %v7310 = vadd.f32 1.0, %v7309
    %v7311 = vmul.f32 %v7302, %v7302
    %v7312 = vmul.f32 %v7311, -0.00019511016
    %v7313 = vadd.f32 %v7312, 0.008332121
    %v7314 = vmul.f32 %v7311, %v7313
    %v7315 = vadd.f32 %v7314, -0.16666654
    %v7316 = vmul.f32 %v7311, %v7315
    %v7317 = vadd.f32 %v7316, 1.0
    %v7318 = vmul.f32 %v7317, %v7302
    %vm7319 = vweird.f32 %v486
    %v7320 = vand.u32 %v7303, 3
    %vm7321 = vcmp.lt.s32.totalorder %v7320, 2
    %vm7322 = vcmp.eq.s32.totalorder %v7320, 0
    %v7323 = vxor.u32 %v7318, 2147483648
    %v7324 = vsel %vm7322, %v7310, %v7323
    %vm7325 = vcmp.eq.s32.totalorder %v7320, 2
    %v7326 = vxor.u32 %v7310, 2147483648
    %v7327 = vsel %vm7325, %v7326, %v7318
    %v7328 = vsel %vm7321, %v7324, %v7327
    %v7329 = vsel %vm7319, nan, %v7328
    %v7330 = vand.u32 2147483647, %v487
    %vm7331 = vcmp.le.f32.partialorder %v7330, 0.7853982
    %vm7332 = vcmp.lt.s32.totalorder %v487, 0
    %v7333 = vand.u32 %v487, 2139095040
    %v7334 = vshrl.u32 %v7333, 23
    %v7335 = vsub.s32 %v7334, 127
    %v7336 = vand.u32 2147483647, %v487
    %v7337 = vand.u32 %v7336, 8388607
    %v7338 = vor.u32 %v7337, 8388608
    %v7339 = vsub.s32 0, %v7338
    %v7340 = vadd.s32 %v7335, 1
    %vm7341 = vcmp.gt.s32.totalorder %v7340, 0
    %v7342 = vsel %vm7341, %v7340, 0
    %v7343 = vshrl.u32 %v7342, 5
    %v7344 = vand.u32 %v7342, 31
    %v7345 = vsub.s32 32, %v7344
    %v7346 = vshrl.u32 683565275, %v7345
    %v7347 = vshll.u32 683565275, %v7344
    %v7348 = vshrl.u32 2475754826, %v7345
    %v7349 = vor.u32 %v7347, %v7348
    %v7350 = vshll.u32 2475754826, %v7344
    %v7351 = vshrl.u32 2131351028, %v7345
    %v7352 = vor.u32 %v7350, %v7351
    %v7353 = vshll.u32 2131351028, %v7344
    %v7354 = vshrl.u32 2102212464, %v7345
    %v7355 = vor.u32 %v7353, %v7354
    %v7356 = vshll.u32 2102212464, %v7344
    %v7357 = vshrl.u32 920167782, %v7345
    %v7358 = vor.u32 %v7356, %v7357
    %v7359 = vshll.u32 920167782, %v7344
    %v7360 = vshrl.u32 1326507024, %v7345
    %v7361 = vor.u32 %v7359, %v7360
    %vm7362 = vcmp.lt.s32.totalorder %v7343, 1
    %vm7363 = vcmp.lt.s32.totalorder %v7343, 2
    %vm7364 = vcmp.lt.s32.totalorder %v7343, 3
    %vm7365 = vcmp.lt.s32.totalorder %v7343, 4
    %v7366 = vsel %vm7362, %v7346, %v7349
    %v7367 = vsel %vm7365, %v7355, 2102212464
    %v7368 = vsel %vm7364, %v7352, %v7367
    %v7369 = vsel %vm7363, %v7366, %v7368
    %v7370 = vsel %vm7362, %v7349, %v7352
    %v7371 = vsel %vm7365, %v7358, 920167782
    %v7372 = vsel %vm7364, %v7355, %v7371
    %v7373 = vsel %vm7363, %v7370, %v7372
    %v7374 = vsel %vm7362, %v7352, %v7355
    %v7375 = vsel %vm7365, %v7361, 1326507024
    %v7376 = vsel %vm7364, %v7358, %v7375
    %v7377 = vsel %vm7363, %v7374, %v7376
    %v7378 = vshll.u32 %v7338, 8
    %v7379 = vand.u32 %v7378, 65535
    %v7380 = vshrl.u32 %v7378, 16
    %v7381 = vand.u32 %v7377, 65535
    %v7382 = vshrl.u32 %v7377, 16
    %v7383 = vmul.u32 %v7379, %v7381
    %v7384 = vmul.u32 %v7379, %v7382
    %v7385 = vmul.u32 %v7380, %v7381
    %v7386 = vmul.u32 %v7380, %v7382
    %v7387 = vshll.u32 %v7384, 16
    %v7388 = vshrl.u32 %v7384, 16
    %v7389 = vshll.u32 %v7385, 16
    %v7390 = vshrl.u32 %v7385, 16
    %vm7391 = vc.u32 %v7383, %v7387
    %v7392 = vsel %vm7391, 1, 0
    %v7393 = vadd.s32 %v7383, %v7387
    %v7394 = vadd.s32 %v7386, %v7392
    %vm7395 = vc.u32 %v7393, %v7389
    %v7396 = vsel %vm7395, 1, 0
    %v7397 = vadd.s32 %v7393, %v7389
    %v7398 = vadd.s32 %v7394, %v7396
    %v7399 = vadd.s32 %v7398, %v7388
    %v7400 = vadd.s32 %v7399, %v7390
    %v7401 = vand.u32 %v7378, 65535
    %v7402 = vshrl.u32 %v7378, 16
    %v7403 = vand.u32 %v7373, 65535
    %v7404 = vshrl.u32 %v7373, 16
    %v7405 = vmul.u32 %v7401, %v7403
    %v7406 = vmul.u32 %v7401, %v7404
    %v7407 = vmul.u32 %v7402, %v7403
    %v7408 = vmul.u32 %v7402, %v7404
    %v7409 = vshll.u32 %v7406, 16
    %v7410 = vshrl.u32 %v7406, 16
    %v7411 = vshll.u32 %v7407, 16
    %v7412 = vshrl.u32 %v7407, 16
    %vm7413 = vc.u32 %v7405, %v7409
    %v7414 = vsel %vm7413, 1, 0
    %v7415 = vadd.s32 %v7405, %v7409
    %v7416 = vadd.s32 %v7408, %v7414
    %vm7417 = vc.u32 %v7415, %v7411
    %v7418 = vsel %vm7417, 1, 0
    %v7419 = vadd.s32 %v7415, %v7411
    %v7420 = vadd.s32 %v7416, %v7418
    %v7421 = vadd.s32 %v7420, %v7410
    %v7422 = vadd.s32 %v7421, %v7412
    %v7423 = vmul.u32 %v7378, %v7369
    %v7424 = vadd.s32 %v7400, %v7419
    %vm7425 = vc.u32 %v7400, %v7419
    %v7426 = vadd.s32 %v7422, 1
    %v7427 = vsel %vm7425, %v7426, %v7422
    %v7428 = vadd.s32 %v7423, %v7427
    %v7429 = vadd.s32 %v7428, 536870912
    %v7430 = vshrl.u32 %v7429, 30
    %v7431 = vshll.u32 %v7430, 30
    %v7432 = vsub.s32 %v7428, %v7431
    %vm7433 = vcmp.lt.s32.totalorder %v7432, 0
    %v7434 = vsub.s32 0, %v7432
    %v7435 = vsel %vm7433, %v7434, %v7432
    %v7436 = vclz %v7435
    %v7437 = vsub.s32 %v7436, 2
    %vm7438 = vcmp.gt.s32.totalorder 0, %v7437
    %v7439 = vsel %vm7438, 0, %v7437
    %v7440 = vsub.s32 32, %v7439
    %v7441 = vshll.u32 %v7432, %v7439
    %v7442 = vshrl.u32 %v7424, %v7440
    %v7443 = vor.u32 %v7441, %v7442
    %v7444 = vsub.s32 4294967266, %v7439
    %v7445 = vadd.s32 %v7444, 127
    %v7446 = vshll.u32 %v7445, 23
    %v7447 = vor.u32 4788187, %v7446
    %v7448 = vand.u32 2147483647, %v7447
    %v7450 = vcvt.s32.f32 %v7443
    %v7451 = vmul.f32 %v7450, %v7448
    %v7452 = vxor.u32 %v7451, 2147483648
    %v7453 = vsel %vm7332, %v7452, %v7451
    %v7454 = vsub.s32 4, %v7430
    %v7455 = vsel %vm7332, %v7454, %v7430
    %v7456 = vsel %vm7331, %v487, %v7453
    %v7457 = vsel %vm7331, 0, %v7455
    %v7458 = vmul.f32 %v7456, %v7456
    %v7459 = vmul.f32 %v7458, -0.001358992
    %v7460 = vadd.f32 %v7459, 0.041655596
    %v7461 = vmul.f32 %v7458, %v7460
    %v7462 = vadd.f32 %v7461, -0.4999988
    %v7463 = vmul.f32 %v7458, %v7462
    %v7464 = vadd.f32 1.0, %v7463
    %v7465 = vmul.f32 %v7456, %v7456
    %v7466 = vmul.f32 %v7465, -0.00019511016
    %v7467 = vadd.f32 %v7466, 0.008332121
    %v7468 = vmul.f32 %v7465, %v7467
    %v7469 = vadd.f32 %v7468, -0.16666654
    %v7470 = vmul.f32 %v7465, %v7469
    %v7471 = vadd.f32 %v7470, 1.0
    %v7472 = vmul.f32 %v7471, %v7456
    %vm7473 = vweird.f32 %v487
    %v7474 = vand.u32 %v7457, 3
    %vm7475 = vcmp.lt.s32.totalorder %v7474, 2
    %vm7476 = vcmp.eq.s32.totalorder %v7474, 0
    %v7477 = vxor.u32 %v7472, 2147483648
    %v7478 = vsel %vm7476, %v7464, %v7477
    %vm7479 = vcmp.eq.s32.totalorder %v7474, 2
    %v7480 = vxor.u32 %v7464, 2147483648
    %v7481 = vsel %vm7479, %v7480, %v7472
    %v7482 = vsel %vm7475, %v7478, %v7481
    %v7483 = vsel %vm7473, nan, %v7482
    %v7484 = vand.u32 2147483647, %v488
    %vm7485 = vcmp.le.f32.partialorder %v7484, 0.7853982
    %vm7486 = vcmp.lt.s32.totalorder %v488, 0
    %v7487 = vand.u32 %v488, 2139095040
    %v7488 = vshrl.u32 %v7487, 23
    %v7489 = vsub.s32 %v7488, 127
    %v7490 = vand.u32 2147483647, %v488
    %v7491 = vand.u32 %v7490, 8388607
    %v7492 = vor.u32 %v7491, 8388608
    %v7493 = vsub.s32 0, %v7492
    %v7494 = vadd.s32 %v7489, 1
    %vm7495 = vcmp.gt.s32.totalorder %v7494, 0
    %v7496 = vsel %vm7495, %v7494, 0
    %v7497 = vshrl.u32 %v7496, 5
    %v7498 = vand.u32 %v7496, 31
    %v7499 = vsub.s32 32, %v7498
    %v7500 = vshrl.u32 683565275, %v7499
    %v7501 = vshll.u32 683565275, %v7498
    %v7502 = vshrl.u32 2475754826, %v7499
    %v7503 = vor.u32 %v7501, %v7502
    %v7504 = vshll.u32 2475754826, %v7498
    %v7505 = vshrl.u32 2131351028, %v7499
    %v7506 = vor.u32 %v7504, %v7505
    %v7507 = vshll.u32 2131351028, %v7498
    %v7508 = vshrl.u32 2102212464, %v7499
    %v7509 = vor.u32 %v7507, %v7508
    %v7510 = vshll.u32 2102212464, %v7498
    %v7511 = vshrl.u32 920167782, %v7499
    %v7512 = vor.u32 %v7510, %v7511
    %v7513 = vshll.u32 920167782, %v7498
    %v7514 = vshrl.u32 1326507024, %v7499
    %v7515 = vor.u32 %v7513, %v7514
    %vm7516 = vcmp.lt.s32.totalorder %v7497, 1
    %vm7517 = vcmp.lt.s32.totalorder %v7497, 2
    %vm7518 = vcmp.lt.s32.totalorder %v7497, 3
    %vm7519 = vcmp.lt.s32.totalorder %v7497, 4
    %v7520 = vsel %vm7516, %v7500, %v7503
    %v7521 = vsel %vm7519, %v7509, 2102212464
    %v7522 = vsel %vm7518, %v7506, %v7521
    %v7523 = vsel %vm7517, %v7520, %v7522
    %v7524 = vsel %vm7516, %v7503, %v7506
    %v7525 = vsel %vm7519, %v7512, 920167782
    %v7526 = vsel %vm7518, %v7509, %v7525
    %v7527 = vsel %vm7517, %v7524, %v7526
    %v7528 = vsel %vm7516, %v7506, %v7509
    %v7529 = vsel %vm7519, %v7515, 1326507024
    %v7530 = vsel %vm7518, %v7512, %v7529
    %v7531 = vsel %vm7517, %v7528, %v7530
    %v7532 = vshll.u32 %v7492, 8
    %v7533 = vand.u32 %v7532, 65535
    %v7534 = vshrl.u32 %v7532, 16
    %v7535 = vand.u32 %v7531, 65535
    %v7536 = vshrl.u32 %v7531, 16
    %v7537 = vmul.u32 %v7533, %v7535
    %v7538 = vmul.u32 %v7533, %v7536
    %v7539 = vmul.u32 %v7534, %v7535
    %v7540 = vmul.u32 %v7534, %v7536
    %v7541 = vshll.u32 %v7538, 16
    %v7542 = vshrl.u32 %v7538, 16
    %v7543 = vshll.u32 %v7539, 16
    %v7544 = vshrl.u32 %v7539, 16
    %vm7545 = vc.u32 %v7537, %v7541
    %v7546 = vsel %vm7545, 1, 0
    %v7547 = vadd.s32 %v7537, %v7541
    %v7548 = vadd.s32 %v7540, %v7546
    %vm7549 = vc.u32 %v7547, %v7543
    %v7550 = vsel %vm7549, 1, 0
    %v7551 = vadd.s32 %v7547, %v7543
    %v7552 = vadd.s32 %v7548, %v7550
    %v7553 = vadd.s32 %v7552, %v7542
    %v7554 = vadd.s32 %v7553, %v7544
    %v7555 = vand.u32 %v7532, 65535
    %v7556 = vshrl.u32 %v7532, 16
    %v7557 = vand.u32 %v7527, 65535
    %v7558 = vshrl.u32 %v7527, 16
    %v7559 = vmul.u32 %v7555, %v7557
    %v7560 = vmul.u32 %v7555, %v7558
    %v7561 = vmul.u32 %v7556, %v7557
    %v7562 = vmul.u32 %v7556, %v7558
    %v7563 = vshll.u32 %v7560, 16
    %v7564 = vshrl.u32 %v7560, 16
    %v7565 = vshll.u32 %v7561, 16
    %v7566 = vshrl.u32 %v7561, 16
    %vm7567 = vc.u32 %v7559, %v7563
    %v7568 = vsel %vm7567, 1, 0
    %v7569 = vadd.s32 %v7559, %v7563
    %v7570 = vadd.s32 %v7562, %v7568
    %vm7571 = vc.u32 %v7569, %v7565
    %v7572 = vsel %vm7571, 1, 0
    %v7573 = vadd.s32 %v7569, %v7565
    %v7574 = vadd.s32 %v7570, %v7572
    %v7575 = vadd.s32 %v7574, %v7564
    %v7576 = vadd.s32 %v7575, %v7566
    %v7577 = vmul.u32 %v7532, %v7523
    %v7578 = vadd.s32 %v7554, %v7573
    %vm7579 = vc.u32 %v7554, %v7573
    %v7580 = vadd.s32 %v7576, 1
    %v7581 = vsel %vm7579, %v7580, %v7576
    %v7582 = vadd.s32 %v7577, %v7581
    %v7583 = vadd.s32 %v7582, 536870912
    %v7584 = vshrl.u32 %v7583, 30
    %v7585 = vshll.u32 %v7584, 30
    %v7586 = vsub.s32 %v7582, %v7585
    %vm7587 = vcmp.lt.s32.totalorder %v7586, 0
    %v7588 = vsub.s32 0, %v7586
    %v7589 = vsel %vm7587, %v7588, %v7586
    %v7590 = vclz %v7589
    %v7591 = vsub.s32 %v7590, 2
    %vm7592 = vcmp.gt.s32.totalorder 0, %v7591
    %v7593 = vsel %vm7592, 0, %v7591
    %v7594 = vsub.s32 32, %v7593
    %v7595 = vshll.u32 %v7586, %v7593
    %v7596 = vshrl.u32 %v7578, %v7594
    %v7597 = vor.u32 %v7595, %v7596
    %v7598 = vsub.s32 4294967266, %v7593
    %v7599 = vadd.s32 %v7598, 127
    %v7600 = vshll.u32 %v7599, 23
    %v7601 = vor.u32 4788187, %v7600
    %v7602 = vand.u32 2147483647, %v7601
    %v7604 = vcvt.s32.f32 %v7597
    %v7605 = vmul.f32 %v7604, %v7602
    %v7606 = vxor.u32 %v7605, 2147483648
    %v7607 = vsel %vm7486, %v7606, %v7605
    %v7608 = vsub.s32 4, %v7584
    %v7609 = vsel %vm7486, %v7608, %v7584
    %v7610 = vsel %vm7485, %v488, %v7607
    %v7611 = vsel %vm7485, 0, %v7609
    %v7612 = vmul.f32 %v7610, %v7610
    %v7613 = vmul.f32 %v7612, -0.001358992
    %v7614 = vadd.f32 %v7613, 0.041655596
    %v7615 = vmul.f32 %v7612, %v7614
    %v7616 = vadd.f32 %v7615, -0.4999988
    %v7617 = vmul.f32 %v7612, %v7616
    %v7618 = vadd.f32 1.0, %v7617
    %v7619 = vmul.f32 %v7610, %v7610
    %v7620 = vmul.f32 %v7619, -0.00019511016
    %v7621 = vadd.f32 %v7620, 0.008332121
    %v7622 = vmul.f32 %v7619, %v7621
    %v7623 = vadd.f32 %v7622, -0.16666654
    %v7624 = vmul.f32 %v7619, %v7623
    %v7625 = vadd.f32 %v7624, 1.0
    %v7626 = vmul.f32 %v7625, %v7610
    %vm7627 = vweird.f32 %v488
    %v7628 = vand.u32 %v7611, 3
    %vm7629 = vcmp.lt.s32.totalorder %v7628, 2
    %vm7630 = vcmp.eq.s32.totalorder %v7628, 0
    %v7631 = vxor.u32 %v7626, 2147483648
    %v7632 = vsel %vm7630, %v7618, %v7631
    %vm7633 = vcmp.eq.s32.totalorder %v7628, 2
    %v7634 = vxor.u32 %v7618, 2147483648
    %v7635 = vsel %vm7633, %v7634, %v7626
    %v7636 = vsel %vm7629, %v7632, %v7635
    %v7637 = vsel %vm7627, nan, %v7636
    %v7638 = vand.u32 2147483647, %v489
    %vm7639 = vcmp.le.f32.partialorder %v7638, 0.7853982
    %vm7640 = vcmp.lt.s32.totalorder %v489, 0
    %v7641 = vand.u32 %v489, 2139095040
    %v7642 = vshrl.u32 %v7641, 23
    %v7643 = vsub.s32 %v7642, 127
    %v7644 = vand.u32 2147483647, %v489
    %v7645 = vand.u32 %v7644, 8388607
    %v7646 = vor.u32 %v7645, 8388608
    %v7647 = vsub.s32 0, %v7646
    %v7648 = vadd.s32 %v7643, 1
    %vm7649 = vcmp.gt.s32.totalorder %v7648, 0
    %v7650 = vsel %vm7649, %v7648, 0
    %v7651 = vshrl.u32 %v7650, 5
    %v7652 = vand.u32 %v7650, 31
    %v7653 = vsub.s32 32, %v7652
    %v7654 = vshrl.u32 683565275, %v7653
    %v7655 = vshll.u32 683565275, %v7652
    %v7656 = vshrl.u32 2475754826, %v7653
    %v7657 = vor.u32 %v7655, %v7656
    %v7658 = vshll.u32 2475754826, %v7652
    %v7659 = vshrl.u32 2131351028, %v7653
    %v7660 = vor.u32 %v7658, %v7659
    %v7661 = vshll.u32 2131351028, %v7652
    %v7662 = vshrl.u32 2102212464, %v7653
    %v7663 = vor.u32 %v7661, %v7662
    %v7664 = vshll.u32 2102212464, %v7652
    %v7665 = vshrl.u32 920167782, %v7653
    %v7666 = vor.u32 %v7664, %v7665
    %v7667 = vshll.u32 920167782, %v7652
    %v7668 = vshrl.u32 1326507024, %v7653
    %v7669 = vor.u32 %v7667, %v7668
    %vm7670 = vcmp.lt.s32.totalorder %v7651, 1
    %vm7671 = vcmp.lt.s32.totalorder %v7651, 2
    %vm7672 = vcmp.lt.s32.totalorder %v7651, 3
    %vm7673 = vcmp.lt.s32.totalorder %v7651, 4
    %v7674 = vsel %vm7670, %v7654, %v7657
    %v7675 = vsel %vm7673, %v7663, 2102212464
    %v7676 = vsel %vm7672, %v7660, %v7675
    %v7677 = vsel %vm7671, %v7674, %v7676
    %v7678 = vsel %vm7670, %v7657, %v7660
    %v7679 = vsel %vm7673, %v7666, 920167782
    %v7680 = vsel %vm7672, %v7663, %v7679
    %v7681 = vsel %vm7671, %v7678, %v7680
    %v7682 = vsel %vm7670, %v7660, %v7663
    %v7683 = vsel %vm7673, %v7669, 1326507024
    %v7684 = vsel %vm7672, %v7666, %v7683
    %v7685 = vsel %vm7671, %v7682, %v7684
    %v7686 = vshll.u32 %v7646, 8
    %v7687 = vand.u32 %v7686, 65535
    %v7688 = vshrl.u32 %v7686, 16
    %v7689 = vand.u32 %v7685, 65535
    %v7690 = vshrl.u32 %v7685, 16
    %v7691 = vmul.u32 %v7687, %v7689
    %v7692 = vmul.u32 %v7687, %v7690
    %v7693 = vmul.u32 %v7688, %v7689
    %v7694 = vmul.u32 %v7688, %v7690
    %v7695 = vshll.u32 %v7692, 16
    %v7696 = vshrl.u32 %v7692, 16
    %v7697 = vshll.u32 %v7693, 16
    %v7698 = vshrl.u32 %v7693, 16
    %vm7699 = vc.u32 %v7691, %v7695
    %v7700 = vsel %vm7699, 1, 0
    %v7701 = vadd.s32 %v7691, %v7695
    %v7702 = vadd.s32 %v7694, %v7700
    %vm7703 = vc.u32 %v7701, %v7697
    %v7704 = vsel %vm7703, 1, 0
    %v7705 = vadd.s32 %v7701, %v7697
    %v7706 = vadd.s32 %v7702, %v7704
    %v7707 = vadd.s32 %v7706, %v7696
    %v7708 = vadd.s32 %v7707, %v7698
    %v7709 = vand.u32 %v7686, 65535
    %v7710 = vshrl.u32 %v7686, 16
    %v7711 = vand.u32 %v7681, 65535
    %v7712 = vshrl.u32 %v7681, 16
    %v7713 = vmul.u32 %v7709, %v7711
    %v7714 = vmul.u32 %v7709, %v7712
    %v7715 = vmul.u32 %v7710, %v7711
    %v7716 = vmul.u32 %v7710, %v7712
    %v7717 = vshll.u32 %v7714, 16
    %v7718 = vshrl.u32 %v7714, 16
    %v7719 = vshll.u32 %v7715, 16
    %v7720 = vshrl.u32 %v7715, 16
    %vm7721 = vc.u32 %v7713, %v7717
    %v7722 = vsel %vm7721, 1, 0
    %v7723 = vadd.s32 %v7713, %v7717
    %v7724 = vadd.s32 %v7716, %v7722
    %vm7725 = vc.u32 %v7723, %v7719
    %v7726 = vsel %vm7725, 1, 0
    %v7727 = vadd.s32 %v7723, %v7719
    %v7728 = vadd.s32 %v7724, %v7726
    %v7729 = vadd.s32 %v7728, %v7718
    %v7730 = vadd.s32 %v7729, %v7720
    %v7731 = vmul.u32 %v7686, %v7677
    %v7732 = vadd.s32 %v7708, %v7727
    %vm7733 = vc.u32 %v7708, %v7727
    %v7734 = vadd.s32 %v7730, 1
    %v7735 = vsel %vm7733, %v7734, %v7730
    %v7736 = vadd.s32 %v7731, %v7735
    %v7737 = vadd.s32 %v7736, 536870912
    %v7738 = vshrl.u32 %v7737, 30
    %v7739 = vshll.u32 %v7738, 30
    %v7740 = vsub.s32 %v7736, %v7739
    %vm7741 = vcmp.lt.s32.totalorder %v7740, 0
    %v7742 = vsub.s32 0, %v7740
    %v7743 = vsel %vm7741, %v7742, %v7740
    %v7744 = vclz %v7743
    %v7745 = vsub.s32 %v7744, 2
    %vm7746 = vcmp.gt.s32.totalorder 0, %v7745
    %v7747 = vsel %vm7746, 0, %v7745
    %v7748 = vsub.s32 32, %v7747
    %v7749 = vshll.u32 %v7740, %v7747
    %v7750 = vshrl.u32 %v7732, %v7748
    %v7751 = vor.u32 %v7749, %v7750
    %v7752 = vsub.s32 4294967266, %v7747
    %v7753 = vadd.s32 %v7752, 127
    %v7754 = vshll.u32 %v7753, 23
    %v7755 = vor.u32 4788187, %v7754
    %v7756 = vand.u32 2147483647, %v7755
    %v7758 = vcvt.s32.f32 %v7751
    %v7759 = vmul.f32 %v7758, %v7756
    %v7760 = vxor.u32 %v7759, 2147483648
    %v7761 = vsel %vm7640, %v7760, %v7759
    %v7762 = vsub.s32 4, %v7738
    %v7763 = vsel %vm7640, %v7762, %v7738
    %v7764 = vsel %vm7639, %v489, %v7761
    %v7765 = vsel %vm7639, 0, %v7763
    %v7766 = vmul.f32 %v7764, %v7764
    %v7767 = vmul.f32 %v7766, -0.001358992
    %v7768 = vadd.f32 %v7767, 0.041655596
    %v7769 = vmul.f32 %v7766, %v7768
    %v7770 = vadd.f32 %v7769, -0.4999988
    %v7771 = vmul.f32 %v7766, %v7770
    %v7772 = vadd.f32 1.0, %v7771
    %v7773 = vmul.f32 %v7764, %v7764
    %v7774 = vmul.f32 %v7773, -0.00019511016
    %v7775 = vadd.f32 %v7774, 0.008332121
    %v7776 = vmul.f32 %v7773, %v7775
    %v7777 = vadd.f32 %v7776, -0.16666654
    %v7778 = vmul.f32 %v7773, %v7777
    %v7779 = vadd.f32 %v7778, 1.0
    %v7780 = vmul.f32 %v7779, %v7764
    %vm7781 = vweird.f32 %v489
    %v7782 = vand.u32 %v7765, 3
    %vm7783 = vcmp.lt.s32.totalorder %v7782, 2
    %vm7784 = vcmp.eq.s32.totalorder %v7782, 0
    %v7785 = vxor.u32 %v7780, 2147483648
    %v7786 = vsel %vm7784, %v7772, %v7785
    %vm7787 = vcmp.eq.s32.totalorder %v7782, 2
    %v7788 = vxor.u32 %v7772, 2147483648
    %v7789 = vsel %vm7787, %v7788, %v7780
    %v7790 = vsel %vm7783, %v7786, %v7789
    %v7791 = vsel %vm7781, nan, %v7790
    %v7792 = vand.u32 2147483647, %v490
    %vm7793 = vcmp.le.f32.partialorder %v7792, 0.7853982
    %vm7794 = vcmp.lt.s32.totalorder %v490, 0
    %v7795 = vand.u32 %v490, 2139095040
    %v7796 = vshrl.u32 %v7795, 23
    %v7797 = vsub.s32 %v7796, 127
    %v7798 = vand.u32 2147483647, %v490
    %v7799 = vand.u32 %v7798, 8388607
    %v7800 = vor.u32 %v7799, 8388608
    %v7801 = vsub.s32 0, %v7800
    %v7802 = vadd.s32 %v7797, 1
    %vm7803 = vcmp.gt.s32.totalorder %v7802, 0
    %v7804 = vsel %vm7803, %v7802, 0
    %v7805 = vshrl.u32 %v7804, 5
    %v7806 = vand.u32 %v7804, 31
    %v7807 = vsub.s32 32, %v7806
    %v7808 = vshrl.u32 683565275, %v7807
    %v7809 = vshll.u32 683565275, %v7806
    %v7810 = vshrl.u32 2475754826, %v7807
    %v7811 = vor.u32 %v7809, %v7810
    %v7812 = vshll.u32 2475754826, %v7806
    %v7813 = vshrl.u32 2131351028, %v7807
    %v7814 = vor.u32 %v7812, %v7813
    %v7815 = vshll.u32 2131351028, %v7806
    %v7816 = vshrl.u32 2102212464, %v7807
    %v7817 = vor.u32 %v7815, %v7816
    %v7818 = vshll.u32 2102212464, %v7806
    %v7819 = vshrl.u32 920167782, %v7807
    %v7820 = vor.u32 %v7818, %v7819
    %v7821 = vshll.u32 920167782, %v7806
    %v7822 = vshrl.u32 1326507024, %v7807
    %v7823 = vor.u32 %v7821, %v7822
    %vm7824 = vcmp.lt.s32.totalorder %v7805, 1
    %vm7825 = vcmp.lt.s32.totalorder %v7805, 2
    %vm7826 = vcmp.lt.s32.totalorder %v7805, 3
    %vm7827 = vcmp.lt.s32.totalorder %v7805, 4
    %v7828 = vsel %vm7824, %v7808, %v7811
    %v7829 = vsel %vm7827, %v7817, 2102212464
    %v7830 = vsel %vm7826, %v7814, %v7829
    %v7831 = vsel %vm7825, %v7828, %v7830
    %v7832 = vsel %vm7824, %v7811, %v7814
    %v7833 = vsel %vm7827, %v7820, 920167782
    %v7834 = vsel %vm7826, %v7817, %v7833
    %v7835 = vsel %vm7825, %v7832, %v7834
    %v7836 = vsel %vm7824, %v7814, %v7817
    %v7837 = vsel %vm7827, %v7823, 1326507024
    %v7838 = vsel %vm7826, %v7820, %v7837
    %v7839 = vsel %vm7825, %v7836, %v7838
    %v7840 = vshll.u32 %v7800, 8
    %v7841 = vand.u32 %v7840, 65535
    %v7842 = vshrl.u32 %v7840, 16
    %v7843 = vand.u32 %v7839, 65535
    %v7844 = vshrl.u32 %v7839, 16
    %v7845 = vmul.u32 %v7841, %v7843
    %v7846 = vmul.u32 %v7841, %v7844
    %v7847 = vmul.u32 %v7842, %v7843
    %v7848 = vmul.u32 %v7842, %v7844
    %v7849 = vshll.u32 %v7846, 16
    %v7850 = vshrl.u32 %v7846, 16
    %v7851 = vshll.u32 %v7847, 16
    %v7852 = vshrl.u32 %v7847, 16
    %vm7853 = vc.u32 %v7845, %v7849
    %v7854 = vsel %vm7853, 1, 0
    %v7855 = vadd.s32 %v7845, %v7849
    %v7856 = vadd.s32 %v7848, %v7854
    %vm7857 = vc.u32 %v7855, %v7851
    %v7858 = vsel %vm7857, 1, 0
    %v7859 = vadd.s32 %v7855, %v7851
    %v7860 = vadd.s32 %v7856, %v7858
    %v7861 = vadd.s32 %v7860, %v7850
    %v7862 = vadd.s32 %v7861, %v7852
    %v7863 = vand.u32 %v7840, 65535
    %v7864 = vshrl.u32 %v7840, 16
    %v7865 = vand.u32 %v7835, 65535
    %v7866 = vshrl.u32 %v7835, 16
    %v7867 = vmul.u32 %v7863, %v7865
    %v7868 = vmul.u32 %v7863, %v7866
    %v7869 = vmul.u32 %v7864, %v7865
    %v7870 = vmul.u32 %v7864, %v7866
    %v7871 = vshll.u32 %v7868, 16
    %v7872 = vshrl.u32 %v7868, 16
    %v7873 = vshll.u32 %v7869, 16
    %v7874 = vshrl.u32 %v7869, 16
    %vm7875 = vc.u32 %v7867, %v7871
    %v7876 = vsel %vm7875, 1, 0
    %v7877 = vadd.s32 %v7867, %v7871
    %v7878 = vadd.s32 %v7870, %v7876
    %vm7879 = vc.u32 %v7877, %v7873
    %v7880 = vsel %vm7879, 1, 0
    %v7881 = vadd.s32 %v7877, %v7873
    %v7882 = vadd.s32 %v7878, %v7880
    %v7883 = vadd.s32 %v7882, %v7872
    %v7884 = vadd.s32 %v7883, %v7874
    %v7885 = vmul.u32 %v7840, %v7831
    %v7886 = vadd.s32 %v7862, %v7881
    %vm7887 = vc.u32 %v7862, %v7881
    %v7888 = vadd.s32 %v7884, 1
    %v7889 = vsel %vm7887, %v7888, %v7884
    %v7890 = vadd.s32 %v7885, %v7889
    %v7891 = vadd.s32 %v7890, 536870912
    %v7892 = vshrl.u32 %v7891, 30
    %v7893 = vshll.u32 %v7892, 30
    %v7894 = vsub.s32 %v7890, %v7893
    %vm7895 = vcmp.lt.s32.totalorder %v7894, 0
    %v7896 = vsub.s32 0, %v7894
    %v7897 = vsel %vm7895, %v7896, %v7894
    %v7898 = vclz %v7897
    %v7899 = vsub.s32 %v7898, 2
    %vm7900 = vcmp.gt.s32.totalorder 0, %v7899
    %v7901 = vsel %vm7900, 0, %v7899
    %v7902 = vsub.s32 32, %v7901
    %v7903 = vshll.u32 %v7894, %v7901
    %v7904 = vshrl.u32 %v7886, %v7902
    %v7905 = vor.u32 %v7903, %v7904
    %v7906 = vsub.s32 4294967266, %v7901
    %v7907 = vadd.s32 %v7906, 127
    %v7908 = vshll.u32 %v7907, 23
    %v7909 = vor.u32 4788187, %v7908
    %v7910 = vand.u32 2147483647, %v7909
    %v7912 = vcvt.s32.f32 %v7905
    %v7913 = vmul.f32 %v7912, %v7910
    %v7914 = vxor.u32 %v7913, 2147483648
    %v7915 = vsel %vm7794, %v7914, %v7913
    %v7916 = vsub.s32 4, %v7892
    %v7917 = vsel %vm7794, %v7916, %v7892
    %v7918 = vsel %vm7793, %v490, %v7915
    %v7919 = vsel %vm7793, 0, %v7917
    %v7920 = vmul.f32 %v7918, %v7918
    %v7921 = vmul.f32 %v7920, -0.001358992
    %v7922 = vadd.f32 %v7921, 0.041655596
    %v7923 = vmul.f32 %v7920, %v7922
    %v7924 = vadd.f32 %v7923, -0.4999988
    %v7925 = vmul.f32 %v7920, %v7924
    %v7926 = vadd.f32 1.0, %v7925
    %v7927 = vmul.f32 %v7918, %v7918
    %v7928 = vmul.f32 %v7927, -0.00019511016
    %v7929 = vadd.f32 %v7928, 0.008332121
    %v7930 = vmul.f32 %v7927, %v7929
    %v7931 = vadd.f32 %v7930, -0.16666654
    %v7932 = vmul.f32 %v7927, %v7931
    %v7933 = vadd.f32 %v7932, 1.0
    %v7934 = vmul.f32 %v7933, %v7918
    %vm7935 = vweird.f32 %v490
    %v7936 = vand.u32 %v7919, 3
    %vm7937 = vcmp.lt.s32.totalorder %v7936, 2
    %vm7938 = vcmp.eq.s32.totalorder %v7936, 0
    %v7939 = vxor.u32 %v7934, 2147483648
    %v7940 = vsel %vm7938, %v7926, %v7939
    %vm7941 = vcmp.eq.s32.totalorder %v7936, 2
    %v7942 = vxor.u32 %v7926, 2147483648
    %v7943 = vsel %vm7941, %v7942, %v7934
    %v7944 = vsel %vm7937, %v7940, %v7943
    %v7945 = vsel %vm7935, nan, %v7944
    %v7946 = vand.u32 2147483647, %v491
    %vm7947 = vcmp.le.f32.partialorder %v7946, 0.7853982
    %vm7948 = vcmp.lt.s32.totalorder %v491, 0
    %v7949 = vand.u32 %v491, 2139095040
    %v7950 = vshrl.u32 %v7949, 23
    %v7951 = vsub.s32 %v7950, 127
    %v7952 = vand.u32 2147483647, %v491
    %v7953 = vand.u32 %v7952, 8388607
    %v7954 = vor.u32 %v7953, 8388608
    %v7955 = vsub.s32 0, %v7954
    %v7956 = vadd.s32 %v7951, 1
    %vm7957 = vcmp.gt.s32.totalorder %v7956, 0
    %v7958 = vsel %vm7957, %v7956, 0
    %v7959 = vshrl.u32 %v7958, 5
    %v7960 = vand.u32 %v7958, 31
    %v7961 = vsub.s32 32, %v7960
    %v7962 = vshrl.u32 683565275, %v7961
    %v7963 = vshll.u32 683565275, %v7960
    %v7964 = vshrl.u32 2475754826, %v7961
    %v7965 = vor.u32 %v7963, %v7964
    %v7966 = vshll.u32 2475754826, %v7960
    %v7967 = vshrl.u32 2131351028, %v7961
    %v7968 = vor.u32 %v7966, %v7967
    %v7969 = vshll.u32 2131351028, %v7960
    %v7970 = vshrl.u32 2102212464, %v7961
    %v7971 = vor.u32 %v7969, %v7970
    %v7972 = vshll.u32 2102212464, %v7960
    %v7973 = vshrl.u32 920167782, %v7961
    %v7974 = vor.u32 %v7972, %v7973
    %v7975 = vshll.u32 920167782, %v7960
    %v7976 = vshrl.u32 1326507024, %v7961
    %v7977 = vor.u32 %v7975, %v7976
    %vm7978 = vcmp.lt.s32.totalorder %v7959, 1
    %vm7979 = vcmp.lt.s32.totalorder %v7959, 2
    %vm7980 = vcmp.lt.s32.totalorder %v7959, 3
    %vm7981 = vcmp.lt.s32.totalorder %v7959, 4
    %v7982 = vsel %vm7978, %v7962, %v7965
    %v7983 = vsel %vm7981, %v7971, 2102212464
    %v7984 = vsel %vm7980, %v7968, %v7983
    %v7985 = vsel %vm7979, %v7982, %v7984
    %v7986 = vsel %vm7978, %v7965, %v7968
    %v7987 = vsel %vm7981, %v7974, 920167782
    %v7988 = vsel %vm7980, %v7971, %v7987
    %v7989 = vsel %vm7979, %v7986, %v7988
    %v7990 = vsel %vm7978, %v7968, %v7971
    %v7991 = vsel %vm7981, %v7977, 1326507024
    %v7992 = vsel %vm7980, %v7974, %v7991
    %v7993 = vsel %vm7979, %v7990, %v7992
    %v7994 = vshll.u32 %v7954, 8
    %v7995 = vand.u32 %v7994, 65535
    %v7996 = vshrl.u32 %v7994, 16
    %v7997 = vand.u32 %v7993, 65535
    %v7998 = vshrl.u32 %v7993, 16
    %v7999 = vmul.u32 %v7995, %v7997
    %v8000 = vmul.u32 %v7995, %v7998
    %v8001 = vmul.u32 %v7996, %v7997
    %v8002 = vmul.u32 %v7996, %v7998
    %v8003 = vshll.u32 %v8000, 16
    %v8004 = vshrl.u32 %v8000, 16
    %v8005 = vshll.u32 %v8001, 16
    %v8006 = vshrl.u32 %v8001, 16
    %vm8007 = vc.u32 %v7999, %v8003
    %v8008 = vsel %vm8007, 1, 0
    %v8009 = vadd.s32 %v7999, %v8003
    %v8010 = vadd.s32 %v8002, %v8008
    %vm8011 = vc.u32 %v8009, %v8005
    %v8012 = vsel %vm8011, 1, 0
    %v8013 = vadd.s32 %v8009, %v8005
    %v8014 = vadd.s32 %v8010, %v8012
    %v8015 = vadd.s32 %v8014, %v8004
    %v8016 = vadd.s32 %v8015, %v8006
    %v8017 = vand.u32 %v7994, 65535
    %v8018 = vshrl.u32 %v7994, 16
    %v8019 = vand.u32 %v7989, 65535
    %v8020 = vshrl.u32 %v7989, 16
    %v8021 = vmul.u32 %v8017, %v8019
    %v8022 = vmul.u32 %v8017, %v8020
    %v8023 = vmul.u32 %v8018, %v8019
    %v8024 = vmul.u32 %v8018, %v8020
    %v8025 = vshll.u32 %v8022, 16
    %v8026 = vshrl.u32 %v8022, 16
    %v8027 = vshll.u32 %v8023, 16
    %v8028 = vshrl.u32 %v8023, 16
    %vm8029 = vc.u32 %v8021, %v8025
    %v8030 = vsel %vm8029, 1, 0
    %v8031 = vadd.s32 %v8021, %v8025
    %v8032 = vadd.s32 %v8024, %v8030
    %vm8033 = vc.u32 %v8031, %v8027
    %v8034 = vsel %vm8033, 1, 0
    %v8035 = vadd.s32 %v8031, %v8027
    %v8036 = vadd.s32 %v8032, %v8034
    %v8037 = vadd.s32 %v8036, %v8026
    %v8038 = vadd.s32 %v8037, %v8028
    %v8039 = vmul.u32 %v7994, %v7985
    %v8040 = vadd.s32 %v8016, %v8035
    %vm8041 = vc.u32 %v8016, %v8035
    %v8042 = vadd.s32 %v8038, 1
    %v8043 = vsel %vm8041, %v8042, %v8038
    %v8044 = vadd.s32 %v8039, %v8043
    %v8045 = vadd.s32 %v8044, 536870912
    %v8046 = vshrl.u32 %v8045, 30
    %v8047 = vshll.u32 %v8046, 30
    %v8048 = vsub.s32 %v8044, %v8047
    %vm8049 = vcmp.lt.s32.totalorder %v8048, 0
    %v8050 = vsub.s32 0, %v8048
    %v8051 = vsel %vm8049, %v8050, %v8048
    %v8052 = vclz %v8051
    %v8053 = vsub.s32 %v8052, 2
    %vm8054 = vcmp.gt.s32.totalorder 0, %v8053
    %v8055 = vsel %vm8054, 0, %v8053
    %v8056 = vsub.s32 32, %v8055
    %v8057 = vshll.u32 %v8048, %v8055
    %v8058 = vshrl.u32 %v8040, %v8056
    %v8059 = vor.u32 %v8057, %v8058
    %v8060 = vsub.s32 4294967266, %v8055
    %v8061 = vadd.s32 %v8060, 127
    %v8062 = vshll.u32 %v8061, 23
    %v8063 = vor.u32 4788187, %v8062
    %v8064 = vand.u32 2147483647, %v8063
    %v8066 = vcvt.s32.f32 %v8059
    %v8067 = vmul.f32 %v8066, %v8064
    %v8068 = vxor.u32 %v8067, 2147483648
    %v8069 = vsel %vm7948, %v8068, %v8067
    %v8070 = vsub.s32 4, %v8046
    %v8071 = vsel %vm7948, %v8070, %v8046
    %v8072 = vsel %vm7947, %v491, %v8069
    %v8073 = vsel %vm7947, 0, %v8071
    %v8074 = vmul.f32 %v8072, %v8072
    %v8075 = vmul.f32 %v8074, -0.001358992
    %v8076 = vadd.f32 %v8075, 0.041655596
    %v8077 = vmul.f32 %v8074, %v8076
    %v8078 = vadd.f32 %v8077, -0.4999988
    %v8079 = vmul.f32 %v8074, %v8078
    %v8080 = vadd.f32 1.0, %v8079
    %v8081 = vmul.f32 %v8072, %v8072
    %v8082 = vmul.f32 %v8081, -0.00019511016
    %v8083 = vadd.f32 %v8082, 0.008332121
    %v8084 = vmul.f32 %v8081, %v8083
    %v8085 = vadd.f32 %v8084, -0.16666654
    %v8086 = vmul.f32 %v8081, %v8085
    %v8087 = vadd.f32 %v8086, 1.0
    %v8088 = vmul.f32 %v8087, %v8072
    %vm8089 = vweird.f32 %v491
    %v8090 = vand.u32 %v8073, 3
    %vm8091 = vcmp.lt.s32.totalorder %v8090, 2
    %vm8092 = vcmp.eq.s32.totalorder %v8090, 0
    %v8093 = vxor.u32 %v8088, 2147483648
    %v8094 = vsel %vm8092, %v8080, %v8093
    %vm8095 = vcmp.eq.s32.totalorder %v8090, 2
    %v8096 = vxor.u32 %v8080, 2147483648
    %v8097 = vsel %vm8095, %v8096, %v8088
    %v8098 = vsel %vm8091, %v8094, %v8097
    %v8099 = vsel %vm8089, nan, %v8098
    %v8100 = vand.u32 2147483647, %v492
    %vm8101 = vcmp.le.f32.partialorder %v8100, 0.7853982
    %vm8102 = vcmp.lt.s32.totalorder %v492, 0
    %v8103 = vand.u32 %v492, 2139095040
    %v8104 = vshrl.u32 %v8103, 23
    %v8105 = vsub.s32 %v8104, 127
    %v8106 = vand.u32 2147483647, %v492
    %v8107 = vand.u32 %v8106, 8388607
    %v8108 = vor.u32 %v8107, 8388608
    %v8109 = vsub.s32 0, %v8108
    %v8110 = vadd.s32 %v8105, 1
    %vm8111 = vcmp.gt.s32.totalorder %v8110, 0
    %v8112 = vsel %vm8111, %v8110, 0
    %v8113 = vshrl.u32 %v8112, 5
    %v8114 = vand.u32 %v8112, 31
    %v8115 = vsub.s32 32, %v8114
    %v8116 = vshrl.u32 683565275, %v8115
    %v8117 = vshll.u32 683565275, %v8114
    %v8118 = vshrl.u32 2475754826, %v8115
    %v8119 = vor.u32 %v8117, %v8118
    %v8120 = vshll.u32 2475754826, %v8114
    %v8121 = vshrl.u32 2131351028, %v8115
    %v8122 = vor.u32 %v8120, %v8121
    %v8123 = vshll.u32 2131351028, %v8114
    %v8124 = vshrl.u32 2102212464, %v8115
    %v8125 = vor.u32 %v8123, %v8124
    %v8126 = vshll.u32 2102212464, %v8114
    %v8127 = vshrl.u32 920167782, %v8115
    %v8128 = vor.u32 %v8126, %v8127
    %v8129 = vshll.u32 920167782, %v8114
    %v8130 = vshrl.u32 1326507024, %v8115
    %v8131 = vor.u32 %v8129, %v8130
    %vm8132 = vcmp.lt.s32.totalorder %v8113, 1
    %vm8133 = vcmp.lt.s32.totalorder %v8113, 2
    %vm8134 = vcmp.lt.s32.totalorder %v8113, 3
    %vm8135 = vcmp.lt.s32.totalorder %v8113, 4
    %v8136 = vsel %vm8132, %v8116, %v8119
    %v8137 = vsel %vm8135, %v8125, 2102212464
    %v8138 = vsel %vm8134, %v8122, %v8137
    %v8139 = vsel %vm8133, %v8136, %v8138
    %v8140 = vsel %vm8132, %v8119, %v8122
    %v8141 = vsel %vm8135, %v8128, 920167782
    %v8142 = vsel %vm8134, %v8125, %v8141
    %v8143 = vsel %vm8133, %v8140, %v8142
    %v8144 = vsel %vm8132, %v8122, %v8125
    %v8145 = vsel %vm8135, %v8131, 1326507024
    %v8146 = vsel %vm8134, %v8128, %v8145
    %v8147 = vsel %vm8133, %v8144, %v8146
    %v8148 = vshll.u32 %v8108, 8
    %v8149 = vand.u32 %v8148, 65535
    %v8150 = vshrl.u32 %v8148, 16
    %v8151 = vand.u32 %v8147, 65535
    %v8152 = vshrl.u32 %v8147, 16
    %v8153 = vmul.u32 %v8149, %v8151
    %v8154 = vmul.u32 %v8149, %v8152
    %v8155 = vmul.u32 %v8150, %v8151
    %v8156 = vmul.u32 %v8150, %v8152
    %v8157 = vshll.u32 %v8154, 16
    %v8158 = vshrl.u32 %v8154, 16
    %v8159 = vshll.u32 %v8155, 16
    %v8160 = vshrl.u32 %v8155, 16
    %vm8161 = vc.u32 %v8153, %v8157
    %v8162 = vsel %vm8161, 1, 0
    %v8163 = vadd.s32 %v8153, %v8157
    %v8164 = vadd.s32 %v8156, %v8162
    %vm8165 = vc.u32 %v8163, %v8159
    %v8166 = vsel %vm8165, 1, 0
    %v8167 = vadd.s32 %v8163, %v8159
    %v8168 = vadd.s32 %v8164, %v8166
    %v8169 = vadd.s32 %v8168, %v8158
    %v8170 = vadd.s32 %v8169, %v8160
    %v8171 = vand.u32 %v8148, 65535
    %v8172 = vshrl.u32 %v8148, 16
    %v8173 = vand.u32 %v8143, 65535
    %v8174 = vshrl.u32 %v8143, 16
    %v8175 = vmul.u32 %v8171, %v8173
    %v8176 = vmul.u32 %v8171, %v8174
    %v8177 = vmul.u32 %v8172, %v8173
    %v8178 = vmul.u32 %v8172, %v8174
    %v8179 = vshll.u32 %v8176, 16
    %v8180 = vshrl.u32 %v8176, 16
    %v8181 = vshll.u32 %v8177, 16
    %v8182 = vshrl.u32 %v8177, 16
    %vm8183 = vc.u32 %v8175, %v8179
    %v8184 = vsel %vm8183, 1, 0
    %v8185 = vadd.s32 %v8175, %v8179
    %v8186 = vadd.s32 %v8178, %v8184
    %vm8187 = vc.u32 %v8185, %v8181
    %v8188 = vsel %vm8187, 1, 0
    %v8189 = vadd.s32 %v8185, %v8181
    %v8190 = vadd.s32 %v8186, %v8188
    %v8191 = vadd.s32 %v8190, %v8180
    %v8192 = vadd.s32 %v8191, %v8182
    %v8193 = vmul.u32 %v8148, %v8139
    %v8194 = vadd.s32 %v8170, %v8189
    %vm8195 = vc.u32 %v8170, %v8189
    %v8196 = vadd.s32 %v8192, 1
    %v8197 = vsel %vm8195, %v8196, %v8192
    %v8198 = vadd.s32 %v8193, %v8197
    %v8199 = vadd.s32 %v8198, 536870912
    %v8200 = vshrl.u32 %v8199, 30
    %v8201 = vshll.u32 %v8200, 30
    %v8202 = vsub.s32 %v8198, %v8201
    %vm8203 = vcmp.lt.s32.totalorder %v8202, 0
    %v8204 = vsub.s32 0, %v8202
    %v8205 = vsel %vm8203, %v8204, %v8202
    %v8206 = vclz %v8205
    %v8207 = vsub.s32 %v8206, 2
    %vm8208 = vcmp.gt.s32.totalorder 0, %v8207
    %v8209 = vsel %vm8208, 0, %v8207
    %v8210 = vsub.s32 32, %v8209
    %v8211 = vshll.u32 %v8202, %v8209
    %v8212 = vshrl.u32 %v8194, %v8210
    %v8213 = vor.u32 %v8211, %v8212
    %v8214 = vsub.s32 4294967266, %v8209
    %v8215 = vadd.s32 %v8214, 127
    %v8216 = vshll.u32 %v8215, 23
    %v8217 = vor.u32 4788187, %v8216
    %v8218 = vand.u32 2147483647, %v8217
    %v8220 = vcvt.s32.f32 %v8213
    %v8221 = vmul.f32 %v8220, %v8218
    %v8222 = vxor.u32 %v8221, 2147483648
    %v8223 = vsel %vm8102, %v8222, %v8221
    %v8224 = vsub.s32 4, %v8200
    %v8225 = vsel %vm8102, %v8224, %v8200
    %v8226 = vsel %vm8101, %v492, %v8223
    %v8227 = vsel %vm8101, 0, %v8225
    %v8228 = vmul.f32 %v8226, %v8226
    %v8229 = vmul.f32 %v8228, -0.001358992
    %v8230 = vadd.f32 %v8229, 0.041655596
    %v8231 = vmul.f32 %v8228, %v8230
    %v8232 = vadd.f32 %v8231, -0.4999988
    %v8233 = vmul.f32 %v8228, %v8232
    %v8234 = vadd.f32 1.0, %v8233
    %v8235 = vmul.f32 %v8226, %v8226
    %v8236 = vmul.f32 %v8235, -0.00019511016
    %v8237 = vadd.f32 %v8236, 0.008332121
    %v8238 = vmul.f32 %v8235, %v8237
    %v8239 = vadd.f32 %v8238, -0.16666654
    %v8240 = vmul.f32 %v8235, %v8239
    %v8241 = vadd.f32 %v8240, 1.0
    %v8242 = vmul.f32 %v8241, %v8226
    %vm8243 = vweird.f32 %v492
    %v8244 = vand.u32 %v8227, 3
    %vm8245 = vcmp.lt.s32.totalorder %v8244, 2
    %vm8246 = vcmp.eq.s32.totalorder %v8244, 0
    %v8247 = vxor.u32 %v8242, 2147483648
    %v8248 = vsel %vm8246, %v8234, %v8247
    %vm8249 = vcmp.eq.s32.totalorder %v8244, 2
    %v8250 = vxor.u32 %v8234, 2147483648
    %v8251 = vsel %vm8249, %v8250, %v8242
    %v8252 = vsel %vm8245, %v8248, %v8251
    %v8253 = vsel %vm8243, nan, %v8252
    %v8254 = vand.u32 2147483647, %v493
    %vm8255 = vcmp.le.f32.partialorder %v8254, 0.7853982
    %vm8256 = vcmp.lt.s32.totalorder %v493, 0
    %v8257 = vand.u32 %v493, 2139095040
    %v8258 = vshrl.u32 %v8257, 23
    %v8259 = vsub.s32 %v8258, 127
    %v8260 = vand.u32 2147483647, %v493
    %v8261 = vand.u32 %v8260, 8388607
    %v8262 = vor.u32 %v8261, 8388608
    %v8263 = vsub.s32 0, %v8262
    %v8264 = vadd.s32 %v8259, 1
    %vm8265 = vcmp.gt.s32.totalorder %v8264, 0
    %v8266 = vsel %vm8265, %v8264, 0
    %v8267 = vshrl.u32 %v8266, 5
    %v8268 = vand.u32 %v8266, 31
    %v8269 = vsub.s32 32, %v8268
    %v8270 = vshrl.u32 683565275, %v8269
    %v8271 = vshll.u32 683565275, %v8268
    %v8272 = vshrl.u32 2475754826, %v8269
    %v8273 = vor.u32 %v8271, %v8272
    %v8274 = vshll.u32 2475754826, %v8268
    %v8275 = vshrl.u32 2131351028, %v8269
    %v8276 = vor.u32 %v8274, %v8275
    %v8277 = vshll.u32 2131351028, %v8268
    %v8278 = vshrl.u32 2102212464, %v8269
    %v8279 = vor.u32 %v8277, %v8278
    %v8280 = vshll.u32 2102212464, %v8268
    %v8281 = vshrl.u32 920167782, %v8269
    %v8282 = vor.u32 %v8280, %v8281
    %v8283 = vshll.u32 920167782, %v8268
    %v8284 = vshrl.u32 1326507024, %v8269
    %v8285 = vor.u32 %v8283, %v8284
    %vm8286 = vcmp.lt.s32.totalorder %v8267, 1
    %vm8287 = vcmp.lt.s32.totalorder %v8267, 2
    %vm8288 = vcmp.lt.s32.totalorder %v8267, 3
    %vm8289 = vcmp.lt.s32.totalorder %v8267, 4
    %v8290 = vsel %vm8286, %v8270, %v8273
    %v8291 = vsel %vm8289, %v8279, 2102212464
    %v8292 = vsel %vm8288, %v8276, %v8291
    %v8293 = vsel %vm8287, %v8290, %v8292
    %v8294 = vsel %vm8286, %v8273, %v8276
    %v8295 = vsel %vm8289, %v8282, 920167782
    %v8296 = vsel %vm8288, %v8279, %v8295
    %v8297 = vsel %vm8287, %v8294, %v8296
    %v8298 = vsel %vm8286, %v8276, %v8279
    %v8299 = vsel %vm8289, %v8285, 1326507024
    %v8300 = vsel %vm8288, %v8282, %v8299
    %v8301 = vsel %vm8287, %v8298, %v8300
    %v8302 = vshll.u32 %v8262, 8
    %v8303 = vand.u32 %v8302, 65535
    %v8304 = vshrl.u32 %v8302, 16
    %v8305 = vand.u32 %v8301, 65535
    %v8306 = vshrl.u32 %v8301, 16
    %v8307 = vmul.u32 %v8303, %v8305
    %v8308 = vmul.u32 %v8303, %v8306
    %v8309 = vmul.u32 %v8304, %v8305
    %v8310 = vmul.u32 %v8304, %v8306
    %v8311 = vshll.u32 %v8308, 16
    %v8312 = vshrl.u32 %v8308, 16
    %v8313 = vshll.u32 %v8309, 16
    %v8314 = vshrl.u32 %v8309, 16
    %vm8315 = vc.u32 %v8307, %v8311
    %v8316 = vsel %vm8315, 1, 0
    %v8317 = vadd.s32 %v8307, %v8311
    %v8318 = vadd.s32 %v8310, %v8316
    %vm8319 = vc.u32 %v8317, %v8313
    %v8320 = vsel %vm8319, 1, 0
    %v8321 = vadd.s32 %v8317, %v8313
    %v8322 = vadd.s32 %v8318, %v8320
    %v8323 = vadd.s32 %v8322, %v8312
    %v8324 = vadd.s32 %v8323, %v8314
    %v8325 = vand.u32 %v8302, 65535
    %v8326 = vshrl.u32 %v8302, 16
    %v8327 = vand.u32 %v8297, 65535
    %v8328 = vshrl.u32 %v8297, 16
    %v8329 = vmul.u32 %v8325, %v8327
    %v8330 = vmul.u32 %v8325, %v8328
    %v8331 = vmul.u32 %v8326, %v8327
    %v8332 = vmul.u32 %v8326, %v8328
    %v8333 = vshll.u32 %v8330, 16
    %v8334 = vshrl.u32 %v8330, 16
    %v8335 = vshll.u32 %v8331, 16
    %v8336 = vshrl.u32 %v8331, 16
    %vm8337 = vc.u32 %v8329, %v8333
    %v8338 = vsel %vm8337, 1, 0
    %v8339 = vadd.s32 %v8329, %v8333
    %v8340 = vadd.s32 %v8332, %v8338
    %vm8341 = vc.u32 %v8339, %v8335
    %v8342 = vsel %vm8341, 1, 0
    %v8343 = vadd.s32 %v8339, %v8335
    %v8344 = vadd.s32 %v8340, %v8342
    %v8345 = vadd.s32 %v8344, %v8334
    %v8346 = vadd.s32 %v8345, %v8336
    %v8347 = vmul.u32 %v8302, %v8293
    %v8348 = vadd.s32 %v8324, %v8343
    %vm8349 = vc.u32 %v8324, %v8343
    %v8350 = vadd.s32 %v8346, 1
    %v8351 = vsel %vm8349, %v8350, %v8346
    %v8352 = vadd.s32 %v8347, %v8351
    %v8353 = vadd.s32 %v8352, 536870912
    %v8354 = vshrl.u32 %v8353, 30
    %v8355 = vshll.u32 %v8354, 30
    %v8356 = vsub.s32 %v8352, %v8355
    %vm8357 = vcmp.lt.s32.totalorder %v8356, 0
    %v8358 = vsub.s32 0, %v8356
    %v8359 = vsel %vm8357, %v8358, %v8356
    %v8360 = vclz %v8359
    %v8361 = vsub.s32 %v8360, 2
    %vm8362 = vcmp.gt.s32.totalorder 0, %v8361
    %v8363 = vsel %vm8362, 0, %v8361
    %v8364 = vsub.s32 32, %v8363
    %v8365 = vshll.u32 %v8356, %v8363
    %v8366 = vshrl.u32 %v8348, %v8364
    %v8367 = vor.u32 %v8365, %v8366
    %v8368 = vsub.s32 4294967266, %v8363
    %v8369 = vadd.s32 %v8368, 127
    %v8370 = vshll.u32 %v8369, 23
    %v8371 = vor.u32 4788187, %v8370
    %v8372 = vand.u32 2147483647, %v8371
    %v8374 = vcvt.s32.f32 %v8367
    %v8375 = vmul.f32 %v8374, %v8372
    %v8376 = vxor.u32 %v8375, 2147483648
    %v8377 = vsel %vm8256, %v8376, %v8375
    %v8378 = vsub.s32 4, %v8354
    %v8379 = vsel %vm8256, %v8378, %v8354
    %v8380 = vsel %vm8255, %v493, %v8377
    %v8381 = vsel %vm8255, 0, %v8379
    %v8382 = vmul.f32 %v8380, %v8380
    %v8383 = vmul.f32 %v8382, -0.001358992
    %v8384 = vadd.f32 %v8383, 0.041655596
    %v8385 = vmul.f32 %v8382, %v8384
    %v8386 = vadd.f32 %v8385, -0.4999988
    %v8387 = vmul.f32 %v8382, %v8386
    %v8388 = vadd.f32 1.0, %v8387
    %v8389 = vmul.f32 %v8380, %v8380
    %v8390 = vmul.f32 %v8389, -0.00019511016
    %v8391 = vadd.f32 %v8390, 0.008332121
    %v8392 = vmul.f32 %v8389, %v8391
    %v8393 = vadd.f32 %v8392, -0.16666654
    %v8394 = vmul.f32 %v8389, %v8393
    %v8395 = vadd.f32 %v8394, 1.0
    %v8396 = vmul.f32 %v8395, %v8380
    %vm8397 = vweird.f32 %v493
    %v8398 = vand.u32 %v8381, 3
    %vm8399 = vcmp.lt.s32.totalorder %v8398, 2
    %vm8400 = vcmp.eq.s32.totalorder %v8398, 0
    %v8401 = vxor.u32 %v8396, 2147483648
    %v8402 = vsel %vm8400, %v8388, %v8401
    %vm8403 = vcmp.eq.s32.totalorder %v8398, 2
    %v8404 = vxor.u32 %v8388, 2147483648
    %v8405 = vsel %vm8403, %v8404, %v8396
    %v8406 = vsel %vm8399, %v8402, %v8405
    %v8407 = vsel %vm8397, nan, %v8406
    %v8408 = vand.u32 2147483647, %v494
    %vm8409 = vcmp.le.f32.partialorder %v8408, 0.7853982
    %vm8410 = vcmp.lt.s32.totalorder %v494, 0
    %v8411 = vand.u32 %v494, 2139095040
    %v8412 = vshrl.u32 %v8411, 23
    %v8413 = vsub.s32 %v8412, 127
    %v8414 = vand.u32 2147483647, %v494
    %v8415 = vand.u32 %v8414, 8388607
    %v8416 = vor.u32 %v8415, 8388608
    %v8417 = vsub.s32 0, %v8416
    %v8418 = vadd.s32 %v8413, 1
    %vm8419 = vcmp.gt.s32.totalorder %v8418, 0
    %v8420 = vsel %vm8419, %v8418, 0
    %v8421 = vshrl.u32 %v8420, 5
    %v8422 = vand.u32 %v8420, 31
    %v8423 = vsub.s32 32, %v8422
    %v8424 = vshrl.u32 683565275, %v8423
    %v8425 = vshll.u32 683565275, %v8422
    %v8426 = vshrl.u32 2475754826, %v8423
    %v8427 = vor.u32 %v8425, %v8426
    %v8428 = vshll.u32 2475754826, %v8422
    %v8429 = vshrl.u32 2131351028, %v8423
    %v8430 = vor.u32 %v8428, %v8429
    %v8431 = vshll.u32 2131351028, %v8422
    %v8432 = vshrl.u32 2102212464, %v8423
    %v8433 = vor.u32 %v8431, %v8432
    %v8434 = vshll.u32 2102212464, %v8422
    %v8435 = vshrl.u32 920167782, %v8423
    %v8436 = vor.u32 %v8434, %v8435
    %v8437 = vshll.u32 920167782, %v8422
    %v8438 = vshrl.u32 1326507024, %v8423
    %v8439 = vor.u32 %v8437, %v8438
    %vm8440 = vcmp.lt.s32.totalorder %v8421, 1
    %vm8441 = vcmp.lt.s32.totalorder %v8421, 2
    %vm8442 = vcmp.lt.s32.totalorder %v8421, 3
    %vm8443 = vcmp.lt.s32.totalorder %v8421, 4
    %v8444 = vsel %vm8440, %v8424, %v8427
    %v8445 = vsel %vm8443, %v8433, 2102212464
    %v8446 = vsel %vm8442, %v8430, %v8445
    %v8447 = vsel %vm8441, %v8444, %v8446
    %v8448 = vsel %vm8440, %v8427, %v8430
    %v8449 = vsel %vm8443, %v8436, 920167782
    %v8450 = vsel %vm8442, %v8433, %v8449
    %v8451 = vsel %vm8441, %v8448, %v8450
    %v8452 = vsel %vm8440, %v8430, %v8433
    %v8453 = vsel %vm8443, %v8439, 1326507024
    %v8454 = vsel %vm8442, %v8436, %v8453
    %v8455 = vsel %vm8441, %v8452, %v8454
    %v8456 = vshll.u32 %v8416, 8
    %v8457 = vand.u32 %v8456, 65535
    %v8458 = vshrl.u32 %v8456, 16
    %v8459 = vand.u32 %v8455, 65535
    %v8460 = vshrl.u32 %v8455, 16
    %v8461 = vmul.u32 %v8457, %v8459
    %v8462 = vmul.u32 %v8457, %v8460
    %v8463 = vmul.u32 %v8458, %v8459
    %v8464 = vmul.u32 %v8458, %v8460
    %v8465 = vshll.u32 %v8462, 16
    %v8466 = vshrl.u32 %v8462, 16
    %v8467 = vshll.u32 %v8463, 16
    %v8468 = vshrl.u32 %v8463, 16
    %vm8469 = vc.u32 %v8461, %v8465
    %v8470 = vsel %vm8469, 1, 0
    %v8471 = vadd.s32 %v8461, %v8465
    %v8472 = vadd.s32 %v8464, %v8470
    %vm8473 = vc.u32 %v8471, %v8467
    %v8474 = vsel %vm8473, 1, 0
    %v8475 = vadd.s32 %v8471, %v8467
    %v8476 = vadd.s32 %v8472, %v8474
    %v8477 = vadd.s32 %v8476, %v8466
    %v8478 = vadd.s32 %v8477, %v8468
    %v8479 = vand.u32 %v8456, 65535
    %v8480 = vshrl.u32 %v8456, 16
    %v8481 = vand.u32 %v8451, 65535
    %v8482 = vshrl.u32 %v8451, 16
    %v8483 = vmul.u32 %v8479, %v8481
    %v8484 = vmul.u32 %v8479, %v8482
    %v8485 = vmul.u32 %v8480, %v8481
    %v8486 = vmul.u32 %v8480, %v8482
    %v8487 = vshll.u32 %v8484, 16
    %v8488 = vshrl.u32 %v8484, 16
    %v8489 = vshll.u32 %v8485, 16
    %v8490 = vshrl.u32 %v8485, 16
    %vm8491 = vc.u32 %v8483, %v8487
    %v8492 = vsel %vm8491, 1, 0
    %v8493 = vadd.s32 %v8483, %v8487
    %v8494 = vadd.s32 %v8486, %v8492
    %vm8495 = vc.u32 %v8493, %v8489
    %v8496 = vsel %vm8495, 1, 0
    %v8497 = vadd.s32 %v8493, %v8489
    %v8498 = vadd.s32 %v8494, %v8496
    %v8499 = vadd.s32 %v8498, %v8488
    %v8500 = vadd.s32 %v8499, %v8490
    %v8501 = vmul.u32 %v8456, %v8447
    %v8502 = vadd.s32 %v8478, %v8497
    %vm8503 = vc.u32 %v8478, %v8497
    %v8504 = vadd.s32 %v8500, 1
    %v8505 = vsel %vm8503, %v8504, %v8500
    %v8506 = vadd.s32 %v8501, %v8505
    %v8507 = vadd.s32 %v8506, 536870912
    %v8508 = vshrl.u32 %v8507, 30
    %v8509 = vshll.u32 %v8508, 30
    %v8510 = vsub.s32 %v8506, %v8509
    %vm8511 = vcmp.lt.s32.totalorder %v8510, 0
    %v8512 = vsub.s32 0, %v8510
    %v8513 = vsel %vm8511, %v8512, %v8510
    %v8514 = vclz %v8513
    %v8515 = vsub.s32 %v8514, 2
    %vm8516 = vcmp.gt.s32.totalorder 0, %v8515
    %v8517 = vsel %vm8516, 0, %v8515
    %v8518 = vsub.s32 32, %v8517
    %v8519 = vshll.u32 %v8510, %v8517
    %v8520 = vshrl.u32 %v8502, %v8518
    %v8521 = vor.u32 %v8519, %v8520
    %v8522 = vsub.s32 4294967266, %v8517
    %v8523 = vadd.s32 %v8522, 127
    %v8524 = vshll.u32 %v8523, 23
    %v8525 = vor.u32 4788187, %v8524
    %v8526 = vand.u32 2147483647, %v8525
    %v8528 = vcvt.s32.f32 %v8521
    %v8529 = vmul.f32 %v8528, %v8526
    %v8530 = vxor.u32 %v8529, 2147483648
    %v8531 = vsel %vm8410, %v8530, %v8529
    %v8532 = vsub.s32 4, %v8508
    %v8533 = vsel %vm8410, %v8532, %v8508
    %v8534 = vsel %vm8409, %v494, %v8531
    %v8535 = vsel %vm8409, 0, %v8533
    %v8536 = vmul.f32 %v8534, %v8534
    %v8537 = vmul.f32 %v8536, -0.001358992
    %v8538 = vadd.f32 %v8537, 0.041655596
    %v8539 = vmul.f32 %v8536, %v8538
    %v8540 = vadd.f32 %v8539, -0.4999988
    %v8541 = vmul.f32 %v8536, %v8540
    %v8542 = vadd.f32 1.0, %v8541
    %v8543 = vmul.f32 %v8534, %v8534
    %v8544 = vmul.f32 %v8543, -0.00019511016
    %v8545 = vadd.f32 %v8544, 0.008332121
    %v8546 = vmul.f32 %v8543, %v8545
    %v8547 = vadd.f32 %v8546, -0.16666654
    %v8548 = vmul.f32 %v8543, %v8547
    %v8549 = vadd.f32 %v8548, 1.0
    %v8550 = vmul.f32 %v8549, %v8534
    %vm8551 = vweird.f32 %v494
    %v8552 = vand.u32 %v8535, 3
    %vm8553 = vcmp.lt.s32.totalorder %v8552, 2
    %vm8554 = vcmp.eq.s32.totalorder %v8552, 0
    %v8555 = vxor.u32 %v8550, 2147483648
    %v8556 = vsel %vm8554, %v8542, %v8555
    %vm8557 = vcmp.eq.s32.totalorder %v8552, 2
    %v8558 = vxor.u32 %v8542, 2147483648
    %v8559 = vsel %vm8557, %v8558, %v8550
    %v8560 = vsel %vm8553, %v8556, %v8559
    %v8561 = vsel %vm8551, nan, %v8560
    %v8562 = vand.u32 2147483647, %v495
    %vm8563 = vcmp.le.f32.partialorder %v8562, 0.7853982
    %vm8564 = vcmp.lt.s32.totalorder %v495, 0
    %v8565 = vand.u32 %v495, 2139095040
    %v8566 = vshrl.u32 %v8565, 23
    %v8567 = vsub.s32 %v8566, 127
    %v8568 = vand.u32 2147483647, %v495
    %v8569 = vand.u32 %v8568, 8388607
    %v8570 = vor.u32 %v8569, 8388608
    %v8571 = vsub.s32 0, %v8570
    %v8572 = vadd.s32 %v8567, 1
    %vm8573 = vcmp.gt.s32.totalorder %v8572, 0
    %v8574 = vsel %vm8573, %v8572, 0
    %v8575 = vshrl.u32 %v8574, 5
    %v8576 = vand.u32 %v8574, 31
    %v8577 = vsub.s32 32, %v8576
    %v8578 = vshrl.u32 683565275, %v8577
    %v8579 = vshll.u32 683565275, %v8576
    %v8580 = vshrl.u32 2475754826, %v8577
    %v8581 = vor.u32 %v8579, %v8580
    %v8582 = vshll.u32 2475754826, %v8576
    %v8583 = vshrl.u32 2131351028, %v8577
    %v8584 = vor.u32 %v8582, %v8583
    %v8585 = vshll.u32 2131351028, %v8576
    %v8586 = vshrl.u32 2102212464, %v8577
    %v8587 = vor.u32 %v8585, %v8586
    %v8588 = vshll.u32 2102212464, %v8576
    %v8589 = vshrl.u32 920167782, %v8577
    %v8590 = vor.u32 %v8588, %v8589
    %v8591 = vshll.u32 920167782, %v8576
    %v8592 = vshrl.u32 1326507024, %v8577
    %v8593 = vor.u32 %v8591, %v8592
    %vm8594 = vcmp.lt.s32.totalorder %v8575, 1
    %vm8595 = vcmp.lt.s32.totalorder %v8575, 2
    %vm8596 = vcmp.lt.s32.totalorder %v8575, 3
    %vm8597 = vcmp.lt.s32.totalorder %v8575, 4
    %v8598 = vsel %vm8594, %v8578, %v8581
    %v8599 = vsel %vm8597, %v8587, 2102212464
    %v8600 = vsel %vm8596, %v8584, %v8599
    %v8601 = vsel %vm8595, %v8598, %v8600
    %v8602 = vsel %vm8594, %v8581, %v8584
    %v8603 = vsel %vm8597, %v8590, 920167782
    %v8604 = vsel %vm8596, %v8587, %v8603
    %v8605 = vsel %vm8595, %v8602, %v8604
    %v8606 = vsel %vm8594, %v8584, %v8587
    %v8607 = vsel %vm8597, %v8593, 1326507024
    %v8608 = vsel %vm8596, %v8590, %v8607
    %v8609 = vsel %vm8595, %v8606, %v8608
    %v8610 = vshll.u32 %v8570, 8
    %v8611 = vand.u32 %v8610, 65535
    %v8612 = vshrl.u32 %v8610, 16
    %v8613 = vand.u32 %v8609, 65535
    %v8614 = vshrl.u32 %v8609, 16
    %v8615 = vmul.u32 %v8611, %v8613
    %v8616 = vmul.u32 %v8611, %v8614
    %v8617 = vmul.u32 %v8612, %v8613
    %v8618 = vmul.u32 %v8612, %v8614
    %v8619 = vshll.u32 %v8616, 16
    %v8620 = vshrl.u32 %v8616, 16
    %v8621 = vshll.u32 %v8617, 16
    %v8622 = vshrl.u32 %v8617, 16
    %vm8623 = vc.u32 %v8615, %v8619
    %v8624 = vsel %vm8623, 1, 0
    %v8625 = vadd.s32 %v8615, %v8619
    %v8626 = vadd.s32 %v8618, %v8624
    %vm8627 = vc.u32 %v8625, %v8621
    %v8628 = vsel %vm8627, 1, 0
    %v8629 = vadd.s32 %v8625, %v8621
    %v8630 = vadd.s32 %v8626, %v8628
    %v8631 = vadd.s32 %v8630, %v8620
    %v8632 = vadd.s32 %v8631, %v8622
    %v8633 = vand.u32 %v8610, 65535
    %v8634 = vshrl.u32 %v8610, 16
    %v8635 = vand.u32 %v8605, 65535
    %v8636 = vshrl.u32 %v8605, 16
    %v8637 = vmul.u32 %v8633, %v8635
    %v8638 = vmul.u32 %v8633, %v8636
    %v8639 = vmul.u32 %v8634, %v8635
    %v8640 = vmul.u32 %v8634, %v8636
    %v8641 = vshll.u32 %v8638, 16
    %v8642 = vshrl.u32 %v8638, 16
    %v8643 = vshll.u32 %v8639, 16
    %v8644 = vshrl.u32 %v8639, 16
    %vm8645 = vc.u32 %v8637, %v8641
    %v8646 = vsel %vm8645, 1, 0
    %v8647 = vadd.s32 %v8637, %v8641
    %v8648 = vadd.s32 %v8640, %v8646
    %vm8649 = vc.u32 %v8647, %v8643
    %v8650 = vsel %vm8649, 1, 0
    %v8651 = vadd.s32 %v8647, %v8643
    %v8652 = vadd.s32 %v8648, %v8650
    %v8653 = vadd.s32 %v8652, %v8642
    %v8654 = vadd.s32 %v8653, %v8644
    %v8655 = vmul.u32 %v8610, %v8601
    %v8656 = vadd.s32 %v8632, %v8651
    %vm8657 = vc.u32 %v8632, %v8651
    %v8658 = vadd.s32 %v8654, 1
    %v8659 = vsel %vm8657, %v8658, %v8654
    %v8660 = vadd.s32 %v8655, %v8659
    %v8661 = vadd.s32 %v8660, 536870912
    %v8662 = vshrl.u32 %v8661, 30
    %v8663 = vshll.u32 %v8662, 30
    %v8664 = vsub.s32 %v8660, %v8663
    %vm8665 = vcmp.lt.s32.totalorder %v8664, 0
    %v8666 = vsub.s32 0, %v8664
    %v8667 = vsel %vm8665, %v8666, %v8664
    %v8668 = vclz %v8667
    %v8669 = vsub.s32 %v8668, 2
    %vm8670 = vcmp.gt.s32.totalorder 0, %v8669
    %v8671 = vsel %vm8670, 0, %v8669
    %v8672 = vsub.s32 32, %v8671
    %v8673 = vshll.u32 %v8664, %v8671
    %v8674 = vshrl.u32 %v8656, %v8672
    %v8675 = vor.u32 %v8673, %v8674
    %v8676 = vsub.s32 4294967266, %v8671
    %v8677 = vadd.s32 %v8676, 127
    %v8678 = vshll.u32 %v8677, 23
    %v8679 = vor.u32 4788187, %v8678
    %v8680 = vand.u32 2147483647, %v8679
    %v8682 = vcvt.s32.f32 %v8675
    %v8683 = vmul.f32 %v8682, %v8680
    %v8684 = vxor.u32 %v8683, 2147483648
    %v8685 = vsel %vm8564, %v8684, %v8683
    %v8686 = vsub.s32 4, %v8662
    %v8687 = vsel %vm8564, %v8686, %v8662
    %v8688 = vsel %vm8563, %v495, %v8685
    %v8689 = vsel %vm8563, 0, %v8687
    %v8690 = vmul.f32 %v8688, %v8688
    %v8691 = vmul.f32 %v8690, -0.001358992
    %v8692 = vadd.f32 %v8691, 0.041655596
    %v8693 = vmul.f32 %v8690, %v8692
    %v8694 = vadd.f32 %v8693, -0.4999988
    %v8695 = vmul.f32 %v8690, %v8694
    %v8696 = vadd.f32 1.0, %v8695
    %v8697 = vmul.f32 %v8688, %v8688
    %v8698 = vmul.f32 %v8697, -0.00019511016
    %v8699 = vadd.f32 %v8698, 0.008332121
    %v8700 = vmul.f32 %v8697, %v8699
    %v8701 = vadd.f32 %v8700, -0.16666654
    %v8702 = vmul.f32 %v8697, %v8701
    %v8703 = vadd.f32 %v8702, 1.0
    %v8704 = vmul.f32 %v8703, %v8688
    %vm8705 = vweird.f32 %v495
    %v8706 = vand.u32 %v8689, 3
    %vm8707 = vcmp.lt.s32.totalorder %v8706, 2
    %vm8708 = vcmp.eq.s32.totalorder %v8706, 0
    %v8709 = vxor.u32 %v8704, 2147483648
    %v8710 = vsel %vm8708, %v8696, %v8709
    %vm8711 = vcmp.eq.s32.totalorder %v8706, 2
    %v8712 = vxor.u32 %v8696, 2147483648
    %v8713 = vsel %vm8711, %v8712, %v8704
    %v8714 = vsel %vm8707, %v8710, %v8713
    %v8715 = vsel %vm8705, nan, %v8714
    %v8716 = vand.u32 2147483647, %v496
    %vm8717 = vcmp.le.f32.partialorder %v8716, 0.7853982
    %vm8718 = vcmp.lt.s32.totalorder %v496, 0
    %v8719 = vand.u32 %v496, 2139095040
    %v8720 = vshrl.u32 %v8719, 23
    %v8721 = vsub.s32 %v8720, 127
    %v8722 = vand.u32 2147483647, %v496
    %v8723 = vand.u32 %v8722, 8388607
    %v8724 = vor.u32 %v8723, 8388608
    %v8725 = vsub.s32 0, %v8724
    %v8726 = vadd.s32 %v8721, 1
    %vm8727 = vcmp.gt.s32.totalorder %v8726, 0
    %v8728 = vsel %vm8727, %v8726, 0
    %v8729 = vshrl.u32 %v8728, 5
    %v8730 = vand.u32 %v8728, 31
    %v8731 = vsub.s32 32, %v8730
    %v8732 = vshrl.u32 683565275, %v8731
    %v8733 = vshll.u32 683565275, %v8730
    %v8734 = vshrl.u32 2475754826, %v8731
    %v8735 = vor.u32 %v8733, %v8734
    %v8736 = vshll.u32 2475754826, %v8730
    %v8737 = vshrl.u32 2131351028, %v8731
    %v8738 = vor.u32 %v8736, %v8737
    %v8739 = vshll.u32 2131351028, %v8730
    %v8740 = vshrl.u32 2102212464, %v8731
    %v8741 = vor.u32 %v8739, %v8740
    %v8742 = vshll.u32 2102212464, %v8730
    %v8743 = vshrl.u32 920167782, %v8731
    %v8744 = vor.u32 %v8742, %v8743
    %v8745 = vshll.u32 920167782, %v8730
    %v8746 = vshrl.u32 1326507024, %v8731
    %v8747 = vor.u32 %v8745, %v8746
    %vm8748 = vcmp.lt.s32.totalorder %v8729, 1
    %vm8749 = vcmp.lt.s32.totalorder %v8729, 2
    %vm8750 = vcmp.lt.s32.totalorder %v8729, 3
    %vm8751 = vcmp.lt.s32.totalorder %v8729, 4
    %v8752 = vsel %vm8748, %v8732, %v8735
    %v8753 = vsel %vm8751, %v8741, 2102212464
    %v8754 = vsel %vm8750, %v8738, %v8753
    %v8755 = vsel %vm8749, %v8752, %v8754
    %v8756 = vsel %vm8748, %v8735, %v8738
    %v8757 = vsel %vm8751, %v8744, 920167782
    %v8758 = vsel %vm8750, %v8741, %v8757
    %v8759 = vsel %vm8749, %v8756, %v8758
    %v8760 = vsel %vm8748, %v8738, %v8741
    %v8761 = vsel %vm8751, %v8747, 1326507024
    %v8762 = vsel %vm8750, %v8744, %v8761
    %v8763 = vsel %vm8749, %v8760, %v8762
    %v8764 = vshll.u32 %v8724, 8
    %v8765 = vand.u32 %v8764, 65535
    %v8766 = vshrl.u32 %v8764, 16
    %v8767 = vand.u32 %v8763, 65535
    %v8768 = vshrl.u32 %v8763, 16
    %v8769 = vmul.u32 %v8765, %v8767
    %v8770 = vmul.u32 %v8765, %v8768
    %v8771 = vmul.u32 %v8766, %v8767
    %v8772 = vmul.u32 %v8766, %v8768
    %v8773 = vshll.u32 %v8770, 16
    %v8774 = vshrl.u32 %v8770, 16
    %v8775 = vshll.u32 %v8771, 16
    %v8776 = vshrl.u32 %v8771, 16
    %vm8777 = vc.u32 %v8769, %v8773
    %v8778 = vsel %vm8777, 1, 0
    %v8779 = vadd.s32 %v8769, %v8773
    %v8780 = vadd.s32 %v8772, %v8778
    %vm8781 = vc.u32 %v8779, %v8775
    %v8782 = vsel %vm8781, 1, 0
    %v8783 = vadd.s32 %v8779, %v8775
    %v8784 = vadd.s32 %v8780, %v8782
    %v8785 = vadd.s32 %v8784, %v8774
    %v8786 = vadd.s32 %v8785, %v8776
    %v8787 = vand.u32 %v8764, 65535
    %v8788 = vshrl.u32 %v8764, 16
    %v8789 = vand.u32 %v8759, 65535
    %v8790 = vshrl.u32 %v8759, 16
    %v8791 = vmul.u32 %v8787, %v8789
    %v8792 = vmul.u32 %v8787, %v8790
    %v8793 = vmul.u32 %v8788, %v8789
    %v8794 = vmul.u32 %v8788, %v8790
    %v8795 = vshll.u32 %v8792, 16
    %v8796 = vshrl.u32 %v8792, 16
    %v8797 = vshll.u32 %v8793, 16
    %v8798 = vshrl.u32 %v8793, 16
    %vm8799 = vc.u32 %v8791, %v8795
    %v8800 = vsel %vm8799, 1, 0
    %v8801 = vadd.s32 %v8791, %v8795
    %v8802 = vadd.s32 %v8794, %v8800
    %vm8803 = vc.u32 %v8801, %v8797
    %v8804 = vsel %vm8803, 1, 0
    %v8805 = vadd.s32 %v8801, %v8797
    %v8806 = vadd.s32 %v8802, %v8804
    %v8807 = vadd.s32 %v8806, %v8796
    %v8808 = vadd.s32 %v8807, %v8798
    %v8809 = vmul.u32 %v8764, %v8755
    %v8810 = vadd.s32 %v8786, %v8805
    %vm8811 = vc.u32 %v8786, %v8805
    %v8812 = vadd.s32 %v8808, 1
    %v8813 = vsel %vm8811, %v8812, %v8808
    %v8814 = vadd.s32 %v8809, %v8813
    %v8815 = vadd.s32 %v8814, 536870912
    %v8816 = vshrl.u32 %v8815, 30
    %v8817 = vshll.u32 %v8816, 30
    %v8818 = vsub.s32 %v8814, %v8817
    %vm8819 = vcmp.lt.s32.totalorder %v8818, 0
    %v8820 = vsub.s32 0, %v8818
    %v8821 = vsel %vm8819, %v8820, %v8818
    %v8822 = vclz %v8821
    %v8823 = vsub.s32 %v8822, 2
    %vm8824 = vcmp.gt.s32.totalorder 0, %v8823
    %v8825 = vsel %vm8824, 0, %v8823
    %v8826 = vsub.s32 32, %v8825
    %v8827 = vshll.u32 %v8818, %v8825
    %v8828 = vshrl.u32 %v8810, %v8826
    %v8829 = vor.u32 %v8827, %v8828
    %v8830 = vsub.s32 4294967266, %v8825
    %v8831 = vadd.s32 %v8830, 127
    %v8832 = vshll.u32 %v8831, 23
    %v8833 = vor.u32 4788187, %v8832
    %v8834 = vand.u32 2147483647, %v8833
    %v8836 = vcvt.s32.f32 %v8829
    %v8837 = vmul.f32 %v8836, %v8834
    %v8838 = vxor.u32 %v8837, 2147483648
    %v8839 = vsel %vm8718, %v8838, %v8837
    %v8840 = vsub.s32 4, %v8816
    %v8841 = vsel %vm8718, %v8840, %v8816
    %v8842 = vsel %vm8717, %v496, %v8839
    %v8843 = vsel %vm8717, 0, %v8841
    %v8844 = vmul.f32 %v8842, %v8842
    %v8845 = vmul.f32 %v8844, -0.001358992
    %v8846 = vadd.f32 %v8845, 0.041655596
    %v8847 = vmul.f32 %v8844, %v8846
    %v8848 = vadd.f32 %v8847, -0.4999988
    %v8849 = vmul.f32 %v8844, %v8848
    %v8850 = vadd.f32 1.0, %v8849
    %v8851 = vmul.f32 %v8842, %v8842
    %v8852 = vmul.f32 %v8851, -0.00019511016
    %v8853 = vadd.f32 %v8852, 0.008332121
    %v8854 = vmul.f32 %v8851, %v8853
    %v8855 = vadd.f32 %v8854, -0.16666654
    %v8856 = vmul.f32 %v8851, %v8855
    %v8857 = vadd.f32 %v8856, 1.0
    %v8858 = vmul.f32 %v8857, %v8842
    %vm8859 = vweird.f32 %v496
    %v8860 = vand.u32 %v8843, 3
    %vm8861 = vcmp.lt.s32.totalorder %v8860, 2
    %vm8862 = vcmp.eq.s32.totalorder %v8860, 0
    %v8863 = vxor.u32 %v8858, 2147483648
    %v8864 = vsel %vm8862, %v8850, %v8863
    %vm8865 = vcmp.eq.s32.totalorder %v8860, 2
    %v8866 = vxor.u32 %v8850, 2147483648
    %v8867 = vsel %vm8865, %v8866, %v8858
    %v8868 = vsel %vm8861, %v8864, %v8867
    %v8869 = vsel %vm8859, nan, %v8868
    %v8870 = vand.u32 2147483647, %v497
    %vm8871 = vcmp.le.f32.partialorder %v8870, 0.7853982
    %vm8872 = vcmp.lt.s32.totalorder %v497, 0
    %v8873 = vand.u32 %v497, 2139095040
    %v8874 = vshrl.u32 %v8873, 23
    %v8875 = vsub.s32 %v8874, 127
    %v8876 = vand.u32 2147483647, %v497
    %v8877 = vand.u32 %v8876, 8388607
    %v8878 = vor.u32 %v8877, 8388608
    %v8879 = vsub.s32 0, %v8878
    %v8880 = vadd.s32 %v8875, 1
    %vm8881 = vcmp.gt.s32.totalorder %v8880, 0
    %v8882 = vsel %vm8881, %v8880, 0
    %v8883 = vshrl.u32 %v8882, 5
    %v8884 = vand.u32 %v8882, 31
    %v8885 = vsub.s32 32, %v8884
    %v8886 = vshrl.u32 683565275, %v8885
    %v8887 = vshll.u32 683565275, %v8884
    %v8888 = vshrl.u32 2475754826, %v8885
    %v8889 = vor.u32 %v8887, %v8888
    %v8890 = vshll.u32 2475754826, %v8884
    %v8891 = vshrl.u32 2131351028, %v8885
    %v8892 = vor.u32 %v8890, %v8891
    %v8893 = vshll.u32 2131351028, %v8884
    %v8894 = vshrl.u32 2102212464, %v8885
    %v8895 = vor.u32 %v8893, %v8894
    %v8896 = vshll.u32 2102212464, %v8884
    %v8897 = vshrl.u32 920167782, %v8885
    %v8898 = vor.u32 %v8896, %v8897
    %v8899 = vshll.u32 920167782, %v8884
    %v8900 = vshrl.u32 1326507024, %v8885
    %v8901 = vor.u32 %v8899, %v8900
    %vm8902 = vcmp.lt.s32.totalorder %v8883, 1
    %vm8903 = vcmp.lt.s32.totalorder %v8883, 2
    %vm8904 = vcmp.lt.s32.totalorder %v8883, 3
    %vm8905 = vcmp.lt.s32.totalorder %v8883, 4
    %v8906 = vsel %vm8902, %v8886, %v8889
    %v8907 = vsel %vm8905, %v8895, 2102212464
    %v8908 = vsel %vm8904, %v8892, %v8907
    %v8909 = vsel %vm8903, %v8906, %v8908
    %v8910 = vsel %vm8902, %v8889, %v8892
    %v8911 = vsel %vm8905, %v8898, 920167782
    %v8912 = vsel %vm8904, %v8895, %v8911
    %v8913 = vsel %vm8903, %v8910, %v8912
    %v8914 = vsel %vm8902, %v8892, %v8895
    %v8915 = vsel %vm8905, %v8901, 1326507024
    %v8916 = vsel %vm8904, %v8898, %v8915
    %v8917 = vsel %vm8903, %v8914, %v8916
    %v8918 = vshll.u32 %v8878, 8
    %v8919 = vand.u32 %v8918, 65535
    %v8920 = vshrl.u32 %v8918, 16
    %v8921 = vand.u32 %v8917, 65535
    %v8922 = vshrl.u32 %v8917, 16
    %v8923 = vmul.u32 %v8919, %v8921
    %v8924 = vmul.u32 %v8919, %v8922
    %v8925 = vmul.u32 %v8920, %v8921
    %v8926 = vmul.u32 %v8920, %v8922
    %v8927 = vshll.u32 %v8924, 16
    %v8928 = vshrl.u32 %v8924, 16
    %v8929 = vshll.u32 %v8925, 16
    %v8930 = vshrl.u32 %v8925, 16
    %vm8931 = vc.u32 %v8923, %v8927
    %v8932 = vsel %vm8931, 1, 0
    %v8933 = vadd.s32 %v8923, %v8927
    %v8934 = vadd.s32 %v8926, %v8932
    %vm8935 = vc.u32 %v8933, %v8929
    %v8936 = vsel %vm8935, 1, 0
    %v8937 = vadd.s32 %v8933, %v8929
    %v8938 = vadd.s32 %v8934, %v8936
    %v8939 = vadd.s32 %v8938, %v8928
    %v8940 = vadd.s32 %v8939, %v8930
    %v8941 = vand.u32 %v8918, 65535
    %v8942 = vshrl.u32 %v8918, 16
    %v8943 = vand.u32 %v8913, 65535
    %v8944 = vshrl.u32 %v8913, 16
    %v8945 = vmul.u32 %v8941, %v8943
    %v8946 = vmul.u32 %v8941, %v8944
    %v8947 = vmul.u32 %v8942, %v8943
    %v8948 = vmul.u32 %v8942, %v8944
    %v8949 = vshll.u32 %v8946, 16
    %v8950 = vshrl.u32 %v8946, 16
    %v8951 = vshll.u32 %v8947, 16
    %v8952 = vshrl.u32 %v8947, 16
    %vm8953 = vc.u32 %v8945, %v8949
    %v8954 = vsel %vm8953, 1, 0
    %v8955 = vadd.s32 %v8945, %v8949
    %v8956 = vadd.s32 %v8948, %v8954
    %vm8957 = vc.u32 %v8955, %v8951
    %v8958 = vsel %vm8957, 1, 0
    %v8959 = vadd.s32 %v8955, %v8951
    %v8960 = vadd.s32 %v8956, %v8958
    %v8961 = vadd.s32 %v8960, %v8950
    %v8962 = vadd.s32 %v8961, %v8952
    %v8963 = vmul.u32 %v8918, %v8909
    %v8964 = vadd.s32 %v8940, %v8959
    %vm8965 = vc.u32 %v8940, %v8959
    %v8966 = vadd.s32 %v8962, 1
    %v8967 = vsel %vm8965, %v8966, %v8962
    %v8968 = vadd.s32 %v8963, %v8967
    %v8969 = vadd.s32 %v8968, 536870912
    %v8970 = vshrl.u32 %v8969, 30
    %v8971 = vshll.u32 %v8970, 30
    %v8972 = vsub.s32 %v8968, %v8971
    %vm8973 = vcmp.lt.s32.totalorder %v8972, 0
    %v8974 = vsub.s32 0, %v8972
    %v8975 = vsel %vm8973, %v8974, %v8972
    %v8976 = vclz %v8975
    %v8977 = vsub.s32 %v8976, 2
    %vm8978 = vcmp.gt.s32.totalorder 0, %v8977
    %v8979 = vsel %vm8978, 0, %v8977
    %v8980 = vsub.s32 32, %v8979
    %v8981 = vshll.u32 %v8972, %v8979
    %v8982 = vshrl.u32 %v8964, %v8980
    %v8983 = vor.u32 %v8981, %v8982
    %v8984 = vsub.s32 4294967266, %v8979
    %v8985 = vadd.s32 %v8984, 127
    %v8986 = vshll.u32 %v8985, 23
    %v8987 = vor.u32 4788187, %v8986
    %v8988 = vand.u32 2147483647, %v8987
    %v8990 = vcvt.s32.f32 %v8983
    %v8991 = vmul.f32 %v8990, %v8988
    %v8992 = vxor.u32 %v8991, 2147483648
    %v8993 = vsel %vm8872, %v8992, %v8991
    %v8994 = vsub.s32 4, %v8970
    %v8995 = vsel %vm8872, %v8994, %v8970
    %v8996 = vsel %vm8871, %v497, %v8993
    %v8997 = vsel %vm8871, 0, %v8995
    %v8998 = vmul.f32 %v8996, %v8996
    %v8999 = vmul.f32 %v8998, -0.001358992
    %v9000 = vadd.f32 %v8999, 0.041655596
    %v9001 = vmul.f32 %v8998, %v9000
    %v9002 = vadd.f32 %v9001, -0.4999988
    %v9003 = vmul.f32 %v8998, %v9002
    %v9004 = vadd.f32 1.0, %v9003
    %v9005 = vmul.f32 %v8996, %v8996
    %v9006 = vmul.f32 %v9005, -0.00019511016
    %v9007 = vadd.f32 %v9006, 0.008332121
    %v9008 = vmul.f32 %v9005, %v9007
    %v9009 = vadd.f32 %v9008, -0.16666654
    %v9010 = vmul.f32 %v9005, %v9009
    %v9011 = vadd.f32 %v9010, 1.0
    %v9012 = vmul.f32 %v9011, %v8996
    %vm9013 = vweird.f32 %v497
    %v9014 = vand.u32 %v8997, 3
    %vm9015 = vcmp.lt.s32.totalorder %v9014, 2
    %vm9016 = vcmp.eq.s32.totalorder %v9014, 0
    %v9017 = vxor.u32 %v9012, 2147483648
    %v9018 = vsel %vm9016, %v9004, %v9017
    %vm9019 = vcmp.eq.s32.totalorder %v9014, 2
    %v9020 = vxor.u32 %v9004, 2147483648
    %v9021 = vsel %vm9019, %v9020, %v9012
    %v9022 = vsel %vm9015, %v9018, %v9021
    %v9023 = vsel %vm9013, nan, %v9022
    %v9024 = vand.u32 2147483647, %v498
    %vm9025 = vcmp.le.f32.partialorder %v9024, 0.7853982
    %vm9026 = vcmp.lt.s32.totalorder %v498, 0
    %v9027 = vand.u32 %v498, 2139095040
    %v9028 = vshrl.u32 %v9027, 23
    %v9029 = vsub.s32 %v9028, 127
    %v9030 = vand.u32 2147483647, %v498
    %v9031 = vand.u32 %v9030, 8388607
    %v9032 = vor.u32 %v9031, 8388608
    %v9033 = vsub.s32 0, %v9032
    %v9034 = vadd.s32 %v9029, 1
    %vm9035 = vcmp.gt.s32.totalorder %v9034, 0
    %v9036 = vsel %vm9035, %v9034, 0
    %v9037 = vshrl.u32 %v9036, 5
    %v9038 = vand.u32 %v9036, 31
    %v9039 = vsub.s32 32, %v9038
    %v9040 = vshrl.u32 683565275, %v9039
    %v9041 = vshll.u32 683565275, %v9038
    %v9042 = vshrl.u32 2475754826, %v9039
    %v9043 = vor.u32 %v9041, %v9042
    %v9044 = vshll.u32 2475754826, %v9038
    %v9045 = vshrl.u32 2131351028, %v9039
    %v9046 = vor.u32 %v9044, %v9045
    %v9047 = vshll.u32 2131351028, %v9038
    %v9048 = vshrl.u32 2102212464, %v9039
    %v9049 = vor.u32 %v9047, %v9048
    %v9050 = vshll.u32 2102212464, %v9038
    %v9051 = vshrl.u32 920167782, %v9039
    %v9052 = vor.u32 %v9050, %v9051
    %v9053 = vshll.u32 920167782, %v9038
    %v9054 = vshrl.u32 1326507024, %v9039
    %v9055 = vor.u32 %v9053, %v9054
    %vm9056 = vcmp.lt.s32.totalorder %v9037, 1
    %vm9057 = vcmp.lt.s32.totalorder %v9037, 2
    %vm9058 = vcmp.lt.s32.totalorder %v9037, 3
    %vm9059 = vcmp.lt.s32.totalorder %v9037, 4
    %v9060 = vsel %vm9056, %v9040, %v9043
    %v9061 = vsel %vm9059, %v9049, 2102212464
    %v9062 = vsel %vm9058, %v9046, %v9061
    %v9063 = vsel %vm9057, %v9060, %v9062
    %v9064 = vsel %vm9056, %v9043, %v9046
    %v9065 = vsel %vm9059, %v9052, 920167782
    %v9066 = vsel %vm9058, %v9049, %v9065
    %v9067 = vsel %vm9057, %v9064, %v9066
    %v9068 = vsel %vm9056, %v9046, %v9049
    %v9069 = vsel %vm9059, %v9055, 1326507024
    %v9070 = vsel %vm9058, %v9052, %v9069
    %v9071 = vsel %vm9057, %v9068, %v9070
    %v9072 = vshll.u32 %v9032, 8
    %v9073 = vand.u32 %v9072, 65535
    %v9074 = vshrl.u32 %v9072, 16
    %v9075 = vand.u32 %v9071, 65535
    %v9076 = vshrl.u32 %v9071, 16
    %v9077 = vmul.u32 %v9073, %v9075
    %v9078 = vmul.u32 %v9073, %v9076
    %v9079 = vmul.u32 %v9074, %v9075
    %v9080 = vmul.u32 %v9074, %v9076
    %v9081 = vshll.u32 %v9078, 16
    %v9082 = vshrl.u32 %v9078, 16
    %v9083 = vshll.u32 %v9079, 16
    %v9084 = vshrl.u32 %v9079, 16
    %vm9085 = vc.u32 %v9077, %v9081
    %v9086 = vsel %vm9085, 1, 0
    %v9087 = vadd.s32 %v9077, %v9081
    %v9088 = vadd.s32 %v9080, %v9086
    %vm9089 = vc.u32 %v9087, %v9083
    %v9090 = vsel %vm9089, 1, 0
    %v9091 = vadd.s32 %v9087, %v9083
    %v9092 = vadd.s32 %v9088, %v9090
    %v9093 = vadd.s32 %v9092, %v9082
    %v9094 = vadd.s32 %v9093, %v9084
    %v9095 = vand.u32 %v9072, 65535
    %v9096 = vshrl.u32 %v9072, 16
    %v9097 = vand.u32 %v9067, 65535
    %v9098 = vshrl.u32 %v9067, 16
    %v9099 = vmul.u32 %v9095, %v9097
    %v9100 = vmul.u32 %v9095, %v9098
    %v9101 = vmul.u32 %v9096, %v9097
    %v9102 = vmul.u32 %v9096, %v9098
    %v9103 = vshll.u32 %v9100, 16
    %v9104 = vshrl.u32 %v9100, 16
    %v9105 = vshll.u32 %v9101, 16
    %v9106 = vshrl.u32 %v9101, 16
    %vm9107 = vc.u32 %v9099, %v9103
    %v9108 = vsel %vm9107, 1, 0
    %v9109 = vadd.s32 %v9099, %v9103
    %v9110 = vadd.s32 %v9102, %v9108
    %vm9111 = vc.u32 %v9109, %v9105
    %v9112 = vsel %vm9111, 1, 0
    %v9113 = vadd.s32 %v9109, %v9105
    %v9114 = vadd.s32 %v9110, %v9112
    %v9115 = vadd.s32 %v9114, %v9104
    %v9116 = vadd.s32 %v9115, %v9106
    %v9117 = vmul.u32 %v9072, %v9063
    %v9118 = vadd.s32 %v9094, %v9113
    %vm9119 = vc.u32 %v9094, %v9113
    %v9120 = vadd.s32 %v9116, 1
    %v9121 = vsel %vm9119, %v9120, %v9116
    %v9122 = vadd.s32 %v9117, %v9121
    %v9123 = vadd.s32 %v9122, 536870912
    %v9124 = vshrl.u32 %v9123, 30
    %v9125 = vshll.u32 %v9124, 30
    %v9126 = vsub.s32 %v9122, %v9125
    %vm9127 = vcmp.lt.s32.totalorder %v9126, 0
    %v9128 = vsub.s32 0, %v9126
    %v9129 = vsel %vm9127, %v9128, %v9126
    %v9130 = vclz %v9129
    %v9131 = vsub.s32 %v9130, 2
    %vm9132 = vcmp.gt.s32.totalorder 0, %v9131
    %v9133 = vsel %vm9132, 0, %v9131
    %v9134 = vsub.s32 32, %v9133
    %v9135 = vshll.u32 %v9126, %v9133
    %v9136 = vshrl.u32 %v9118, %v9134
    %v9137 = vor.u32 %v9135, %v9136
    %v9138 = vsub.s32 4294967266, %v9133
    %v9139 = vadd.s32 %v9138, 127
    %v9140 = vshll.u32 %v9139, 23
    %v9141 = vor.u32 4788187, %v9140
    %v9142 = vand.u32 2147483647, %v9141
    %v9144 = vcvt.s32.f32 %v9137
    %v9145 = vmul.f32 %v9144, %v9142
    %v9146 = vxor.u32 %v9145, 2147483648
    %v9147 = vsel %vm9026, %v9146, %v9145
    %v9148 = vsub.s32 4, %v9124
    %v9149 = vsel %vm9026, %v9148, %v9124
    %v9150 = vsel %vm9025, %v498, %v9147
    %v9151 = vsel %vm9025, 0, %v9149
    %v9152 = vmul.f32 %v9150, %v9150
    %v9153 = vmul.f32 %v9152, -0.001358992
    %v9154 = vadd.f32 %v9153, 0.041655596
    %v9155 = vmul.f32 %v9152, %v9154
    %v9156 = vadd.f32 %v9155, -0.4999988
    %v9157 = vmul.f32 %v9152, %v9156
    %v9158 = vadd.f32 1.0, %v9157
    %v9159 = vmul.f32 %v9150, %v9150
    %v9160 = vmul.f32 %v9159, -0.00019511016
    %v9161 = vadd.f32 %v9160, 0.008332121
    %v9162 = vmul.f32 %v9159, %v9161
    %v9163 = vadd.f32 %v9162, -0.16666654
    %v9164 = vmul.f32 %v9159, %v9163
    %v9165 = vadd.f32 %v9164, 1.0
    %v9166 = vmul.f32 %v9165, %v9150
    %vm9167 = vweird.f32 %v498
    %v9168 = vand.u32 %v9151, 3
    %vm9169 = vcmp.lt.s32.totalorder %v9168, 2
    %vm9170 = vcmp.eq.s32.totalorder %v9168, 0
    %v9171 = vxor.u32 %v9166, 2147483648
    %v9172 = vsel %vm9170, %v9158, %v9171
    %vm9173 = vcmp.eq.s32.totalorder %v9168, 2
    %v9174 = vxor.u32 %v9158, 2147483648
    %v9175 = vsel %vm9173, %v9174, %v9166
    %v9176 = vsel %vm9169, %v9172, %v9175
    %v9177 = vsel %vm9167, nan, %v9176
    %v9178 = vand.u32 2147483647, %v499
    %vm9179 = vcmp.le.f32.partialorder %v9178, 0.7853982
    %vm9180 = vcmp.lt.s32.totalorder %v499, 0
    %v9181 = vand.u32 %v499, 2139095040
    %v9182 = vshrl.u32 %v9181, 23
    %v9183 = vsub.s32 %v9182, 127
    %v9184 = vand.u32 2147483647, %v499
    %v9185 = vand.u32 %v9184, 8388607
    %v9186 = vor.u32 %v9185, 8388608
    %v9187 = vsub.s32 0, %v9186
    %v9188 = vadd.s32 %v9183, 1
    %vm9189 = vcmp.gt.s32.totalorder %v9188, 0
    %v9190 = vsel %vm9189, %v9188, 0
    %v9191 = vshrl.u32 %v9190, 5
    %v9192 = vand.u32 %v9190, 31
    %v9193 = vsub.s32 32, %v9192
    %v9194 = vshrl.u32 683565275, %v9193
    %v9195 = vshll.u32 683565275, %v9192
    %v9196 = vshrl.u32 2475754826, %v9193
    %v9197 = vor.u32 %v9195, %v9196
    %v9198 = vshll.u32 2475754826, %v9192
    %v9199 = vshrl.u32 2131351028, %v9193
    %v9200 = vor.u32 %v9198, %v9199
    %v9201 = vshll.u32 2131351028, %v9192
    %v9202 = vshrl.u32 2102212464, %v9193
    %v9203 = vor.u32 %v9201, %v9202
    %v9204 = vshll.u32 2102212464, %v9192
    %v9205 = vshrl.u32 920167782, %v9193
    %v9206 = vor.u32 %v9204, %v9205
    %v9207 = vshll.u32 920167782, %v9192
    %v9208 = vshrl.u32 1326507024, %v9193
    %v9209 = vor.u32 %v9207, %v9208
    %vm9210 = vcmp.lt.s32.totalorder %v9191, 1
    %vm9211 = vcmp.lt.s32.totalorder %v9191, 2
    %vm9212 = vcmp.lt.s32.totalorder %v9191, 3
    %vm9213 = vcmp.lt.s32.totalorder %v9191, 4
    %v9214 = vsel %vm9210, %v9194, %v9197
    %v9215 = vsel %vm9213, %v9203, 2102212464
    %v9216 = vsel %vm9212, %v9200, %v9215
    %v9217 = vsel %vm9211, %v9214, %v9216
    %v9218 = vsel %vm9210, %v9197, %v9200
    %v9219 = vsel %vm9213, %v9206, 920167782
    %v9220 = vsel %vm9212, %v9203, %v9219
    %v9221 = vsel %vm9211, %v9218, %v9220
    %v9222 = vsel %vm9210, %v9200, %v9203
    %v9223 = vsel %vm9213, %v9209, 1326507024
    %v9224 = vsel %vm9212, %v9206, %v9223
    %v9225 = vsel %vm9211, %v9222, %v9224
    %v9226 = vshll.u32 %v9186, 8
    %v9227 = vand.u32 %v9226, 65535
    %v9228 = vshrl.u32 %v9226, 16
    %v9229 = vand.u32 %v9225, 65535
    %v9230 = vshrl.u32 %v9225, 16
    %v9231 = vmul.u32 %v9227, %v9229
    %v9232 = vmul.u32 %v9227, %v9230
    %v9233 = vmul.u32 %v9228, %v9229
    %v9234 = vmul.u32 %v9228, %v9230
    %v9235 = vshll.u32 %v9232, 16
    %v9236 = vshrl.u32 %v9232, 16
    %v9237 = vshll.u32 %v9233, 16
    %v9238 = vshrl.u32 %v9233, 16
    %vm9239 = vc.u32 %v9231, %v9235
    %v9240 = vsel %vm9239, 1, 0
    %v9241 = vadd.s32 %v9231, %v9235
    %v9242 = vadd.s32 %v9234, %v9240
    %vm9243 = vc.u32 %v9241, %v9237
    %v9244 = vsel %vm9243, 1, 0
    %v9245 = vadd.s32 %v9241, %v9237
    %v9246 = vadd.s32 %v9242, %v9244
    %v9247 = vadd.s32 %v9246, %v9236
    %v9248 = vadd.s32 %v9247, %v9238
    %v9249 = vand.u32 %v9226, 65535
    %v9250 = vshrl.u32 %v9226, 16
    %v9251 = vand.u32 %v9221, 65535
    %v9252 = vshrl.u32 %v9221, 16
    %v9253 = vmul.u32 %v9249, %v9251
    %v9254 = vmul.u32 %v9249, %v9252
    %v9255 = vmul.u32 %v9250, %v9251
    %v9256 = vmul.u32 %v9250, %v9252
    %v9257 = vshll.u32 %v9254, 16
    %v9258 = vshrl.u32 %v9254, 16
    %v9259 = vshll.u32 %v9255, 16
    %v9260 = vshrl.u32 %v9255, 16
    %vm9261 = vc.u32 %v9253, %v9257
    %v9262 = vsel %vm9261, 1, 0
    %v9263 = vadd.s32 %v9253, %v9257
    %v9264 = vadd.s32 %v9256, %v9262
    %vm9265 = vc.u32 %v9263, %v9259
    %v9266 = vsel %vm9265, 1, 0
    %v9267 = vadd.s32 %v9263, %v9259
    %v9268 = vadd.s32 %v9264, %v9266
    %v9269 = vadd.s32 %v9268, %v9258
    %v9270 = vadd.s32 %v9269, %v9260
    %v9271 = vmul.u32 %v9226, %v9217
    %v9272 = vadd.s32 %v9248, %v9267
    %vm9273 = vc.u32 %v9248, %v9267
    %v9274 = vadd.s32 %v9270, 1
    %v9275 = vsel %vm9273, %v9274, %v9270
    %v9276 = vadd.s32 %v9271, %v9275
    %v9277 = vadd.s32 %v9276, 536870912
    %v9278 = vshrl.u32 %v9277, 30
    %v9279 = vshll.u32 %v9278, 30
    %v9280 = vsub.s32 %v9276, %v9279
    %vm9281 = vcmp.lt.s32.totalorder %v9280, 0
    %v9282 = vsub.s32 0, %v9280
    %v9283 = vsel %vm9281, %v9282, %v9280
    %v9284 = vclz %v9283
    %v9285 = vsub.s32 %v9284, 2
    %vm9286 = vcmp.gt.s32.totalorder 0, %v9285
    %v9287 = vsel %vm9286, 0, %v9285
    %v9288 = vsub.s32 32, %v9287
    %v9289 = vshll.u32 %v9280, %v9287
    %v9290 = vshrl.u32 %v9272, %v9288
    %v9291 = vor.u32 %v9289, %v9290
    %v9292 = vsub.s32 4294967266, %v9287
    %v9293 = vadd.s32 %v9292, 127
    %v9294 = vshll.u32 %v9293, 23
    %v9295 = vor.u32 4788187, %v9294
    %v9296 = vand.u32 2147483647, %v9295
    %v9298 = vcvt.s32.f32 %v9291
    %v9299 = vmul.f32 %v9298, %v9296
    %v9300 = vxor.u32 %v9299, 2147483648
    %v9301 = vsel %vm9180, %v9300, %v9299
    %v9302 = vsub.s32 4, %v9278
    %v9303 = vsel %vm9180, %v9302, %v9278
    %v9304 = vsel %vm9179, %v499, %v9301
    %v9305 = vsel %vm9179, 0, %v9303
    %v9306 = vmul.f32 %v9304, %v9304
    %v9307 = vmul.f32 %v9306, -0.001358992
    %v9308 = vadd.f32 %v9307, 0.041655596
    %v9309 = vmul.f32 %v9306, %v9308
    %v9310 = vadd.f32 %v9309, -0.4999988
    %v9311 = vmul.f32 %v9306, %v9310
    %v9312 = vadd.f32 1.0, %v9311
    %v9313 = vmul.f32 %v9304, %v9304
    %v9314 = vmul.f32 %v9313, -0.00019511016
    %v9315 = vadd.f32 %v9314, 0.008332121
    %v9316 = vmul.f32 %v9313, %v9315
    %v9317 = vadd.f32 %v9316, -0.16666654
    %v9318 = vmul.f32 %v9313, %v9317
    %v9319 = vadd.f32 %v9318, 1.0
    %v9320 = vmul.f32 %v9319, %v9304
    %vm9321 = vweird.f32 %v499
    %v9322 = vand.u32 %v9305, 3
    %vm9323 = vcmp.lt.s32.totalorder %v9322, 2
    %vm9324 = vcmp.eq.s32.totalorder %v9322, 0
    %v9325 = vxor.u32 %v9320, 2147483648
    %v9326 = vsel %vm9324, %v9312, %v9325
    %vm9327 = vcmp.eq.s32.totalorder %v9322, 2
    %v9328 = vxor.u32 %v9312, 2147483648
    %v9329 = vsel %vm9327, %v9328, %v9320
    %v9330 = vsel %vm9323, %v9326, %v9329
    %v9331 = vsel %vm9321, nan, %v9330
    %v9332 = vand.u32 2147483647, %v500
    %vm9333 = vcmp.le.f32.partialorder %v9332, 0.7853982
    %vm9334 = vcmp.lt.s32.totalorder %v500, 0
    %v9335 = vand.u32 %v500, 2139095040
    %v9336 = vshrl.u32 %v9335, 23
    %v9337 = vsub.s32 %v9336, 127
    %v9338 = vand.u32 2147483647, %v500
    %v9339 = vand.u32 %v9338, 8388607
    %v9340 = vor.u32 %v9339, 8388608
    %v9341 = vsub.s32 0, %v9340
    %v9342 = vadd.s32 %v9337, 1
    %vm9343 = vcmp.gt.s32.totalorder %v9342, 0
    %v9344 = vsel %vm9343, %v9342, 0
    %v9345 = vshrl.u32 %v9344, 5
    %v9346 = vand.u32 %v9344, 31
    %v9347 = vsub.s32 32, %v9346
    %v9348 = vshrl.u32 683565275, %v9347
    %v9349 = vshll.u32 683565275, %v9346
    %v9350 = vshrl.u32 2475754826, %v9347
    %v9351 = vor.u32 %v9349, %v9350
    %v9352 = vshll.u32 2475754826, %v9346
    %v9353 = vshrl.u32 2131351028, %v9347
    %v9354 = vor.u32 %v9352, %v9353
    %v9355 = vshll.u32 2131351028, %v9346
    %v9356 = vshrl.u32 2102212464, %v9347
    %v9357 = vor.u32 %v9355, %v9356
    %v9358 = vshll.u32 2102212464, %v9346
    %v9359 = vshrl.u32 920167782, %v9347
    %v9360 = vor.u32 %v9358, %v9359
    %v9361 = vshll.u32 920167782, %v9346
    %v9362 = vshrl.u32 1326507024, %v9347
    %v9363 = vor.u32 %v9361, %v9362
    %vm9364 = vcmp.lt.s32.totalorder %v9345, 1
    %vm9365 = vcmp.lt.s32.totalorder %v9345, 2
    %vm9366 = vcmp.lt.s32.totalorder %v9345, 3
    %vm9367 = vcmp.lt.s32.totalorder %v9345, 4
    %v9368 = vsel %vm9364, %v9348, %v9351
    %v9369 = vsel %vm9367, %v9357, 2102212464
    %v9370 = vsel %vm9366, %v9354, %v9369
    %v9371 = vsel %vm9365, %v9368, %v9370
    %v9372 = vsel %vm9364, %v9351, %v9354
    %v9373 = vsel %vm9367, %v9360, 920167782
    %v9374 = vsel %vm9366, %v9357, %v9373
    %v9375 = vsel %vm9365, %v9372, %v9374
    %v9376 = vsel %vm9364, %v9354, %v9357
    %v9377 = vsel %vm9367, %v9363, 1326507024
    %v9378 = vsel %vm9366, %v9360, %v9377
    %v9379 = vsel %vm9365, %v9376, %v9378
    %v9380 = vshll.u32 %v9340, 8
    %v9381 = vand.u32 %v9380, 65535
    %v9382 = vshrl.u32 %v9380, 16
    %v9383 = vand.u32 %v9379, 65535
    %v9384 = vshrl.u32 %v9379, 16
    %v9385 = vmul.u32 %v9381, %v9383
    %v9386 = vmul.u32 %v9381, %v9384
    %v9387 = vmul.u32 %v9382, %v9383
    %v9388 = vmul.u32 %v9382, %v9384
    %v9389 = vshll.u32 %v9386, 16
    %v9390 = vshrl.u32 %v9386, 16
    %v9391 = vshll.u32 %v9387, 16
    %v9392 = vshrl.u32 %v9387, 16
    %vm9393 = vc.u32 %v9385, %v9389
    %v9394 = vsel %vm9393, 1, 0
    %v9395 = vadd.s32 %v9385, %v9389
    %v9396 = vadd.s32 %v9388, %v9394
    %vm9397 = vc.u32 %v9395, %v9391
    %v9398 = vsel %vm9397, 1, 0
    %v9399 = vadd.s32 %v9395, %v9391
    %v9400 = vadd.s32 %v9396, %v9398
    %v9401 = vadd.s32 %v9400, %v9390
    %v9402 = vadd.s32 %v9401, %v9392
    %v9403 = vand.u32 %v9380, 65535
    %v9404 = vshrl.u32 %v9380, 16
    %v9405 = vand.u32 %v9375, 65535
    %v9406 = vshrl.u32 %v9375, 16
    %v9407 = vmul.u32 %v9403, %v9405
    %v9408 = vmul.u32 %v9403, %v9406
    %v9409 = vmul.u32 %v9404, %v9405
    %v9410 = vmul.u32 %v9404, %v9406
    %v9411 = vshll.u32 %v9408, 16
    %v9412 = vshrl.u32 %v9408, 16
    %v9413 = vshll.u32 %v9409, 16
    %v9414 = vshrl.u32 %v9409, 16
    %vm9415 = vc.u32 %v9407, %v9411
    %v9416 = vsel %vm9415, 1, 0
    %v9417 = vadd.s32 %v9407, %v9411
    %v9418 = vadd.s32 %v9410, %v9416
    %vm9419 = vc.u32 %v9417, %v9413
    %v9420 = vsel %vm9419, 1, 0
    %v9421 = vadd.s32 %v9417, %v9413
    %v9422 = vadd.s32 %v9418, %v9420
    %v9423 = vadd.s32 %v9422, %v9412
    %v9424 = vadd.s32 %v9423, %v9414
    %v9425 = vmul.u32 %v9380, %v9371
    %v9426 = vadd.s32 %v9402, %v9421
    %vm9427 = vc.u32 %v9402, %v9421
    %v9428 = vadd.s32 %v9424, 1
    %v9429 = vsel %vm9427, %v9428, %v9424
    %v9430 = vadd.s32 %v9425, %v9429
    %v9431 = vadd.s32 %v9430, 536870912
    %v9432 = vshrl.u32 %v9431, 30
    %v9433 = vshll.u32 %v9432, 30
    %v9434 = vsub.s32 %v9430, %v9433
    %vm9435 = vcmp.lt.s32.totalorder %v9434, 0
    %v9436 = vsub.s32 0, %v9434
    %v9437 = vsel %vm9435, %v9436, %v9434
    %v9438 = vclz %v9437
    %v9439 = vsub.s32 %v9438, 2
    %vm9440 = vcmp.gt.s32.totalorder 0, %v9439
    %v9441 = vsel %vm9440, 0, %v9439
    %v9442 = vsub.s32 32, %v9441
    %v9443 = vshll.u32 %v9434, %v9441
    %v9444 = vshrl.u32 %v9426, %v9442
    %v9445 = vor.u32 %v9443, %v9444
    %v9446 = vsub.s32 4294967266, %v9441
    %v9447 = vadd.s32 %v9446, 127
    %v9448 = vshll.u32 %v9447, 23
    %v9449 = vor.u32 4788187, %v9448
    %v9450 = vand.u32 2147483647, %v9449
    %v9452 = vcvt.s32.f32 %v9445
    %v9453 = vmul.f32 %v9452, %v9450
    %v9454 = vxor.u32 %v9453, 2147483648
    %v9455 = vsel %vm9334, %v9454, %v9453
    %v9456 = vsub.s32 4, %v9432
    %v9457 = vsel %vm9334, %v9456, %v9432
    %v9458 = vsel %vm9333, %v500, %v9455
    %v9459 = vsel %vm9333, 0, %v9457
    %v9460 = vmul.f32 %v9458, %v9458
    %v9461 = vmul.f32 %v9460, -0.001358992
    %v9462 = vadd.f32 %v9461, 0.041655596
    %v9463 = vmul.f32 %v9460, %v9462
    %v9464 = vadd.f32 %v9463, -0.4999988
    %v9465 = vmul.f32 %v9460, %v9464
    %v9466 = vadd.f32 1.0, %v9465
    %v9467 = vmul.f32 %v9458, %v9458
    %v9468 = vmul.f32 %v9467, -0.00019511016
    %v9469 = vadd.f32 %v9468, 0.008332121
    %v9470 = vmul.f32 %v9467, %v9469
    %v9471 = vadd.f32 %v9470, -0.16666654
    %v9472 = vmul.f32 %v9467, %v9471
    %v9473 = vadd.f32 %v9472, 1.0
    %v9474 = vmul.f32 %v9473, %v9458
    %vm9475 = vweird.f32 %v500
    %v9476 = vand.u32 %v9459, 3
    %vm9477 = vcmp.lt.s32.totalorder %v9476, 2
    %vm9478 = vcmp.eq.s32.totalorder %v9476, 0
    %v9479 = vxor.u32 %v9474, 2147483648
    %v9480 = vsel %vm9478, %v9466, %v9479
    %vm9481 = vcmp.eq.s32.totalorder %v9476, 2
    %v9482 = vxor.u32 %v9466, 2147483648
    %v9483 = vsel %vm9481, %v9482, %v9474
    %v9484 = vsel %vm9477, %v9480, %v9483
    %v9485 = vsel %vm9475, nan, %v9484
    %v9486 = vand.u32 2147483647, %v501
    %vm9487 = vcmp.le.f32.partialorder %v9486, 0.7853982
    %vm9488 = vcmp.lt.s32.totalorder %v501, 0
    %v9489 = vand.u32 %v501, 2139095040
    %v9490 = vshrl.u32 %v9489, 23
    %v9491 = vsub.s32 %v9490, 127
    %v9492 = vand.u32 2147483647, %v501
    %v9493 = vand.u32 %v9492, 8388607
    %v9494 = vor.u32 %v9493, 8388608
    %v9495 = vsub.s32 0, %v9494
    %v9496 = vadd.s32 %v9491, 1
    %vm9497 = vcmp.gt.s32.totalorder %v9496, 0
    %v9498 = vsel %vm9497, %v9496, 0
    %v9499 = vshrl.u32 %v9498, 5
    %v9500 = vand.u32 %v9498, 31
    %v9501 = vsub.s32 32, %v9500
    %v9502 = vshrl.u32 683565275, %v9501
    %v9503 = vshll.u32 683565275, %v9500
    %v9504 = vshrl.u32 2475754826, %v9501
    %v9505 = vor.u32 %v9503, %v9504
    %v9506 = vshll.u32 2475754826, %v9500
    %v9507 = vshrl.u32 2131351028, %v9501
    %v9508 = vor.u32 %v9506, %v9507
    %v9509 = vshll.u32 2131351028, %v9500
    %v9510 = vshrl.u32 2102212464, %v9501
    %v9511 = vor.u32 %v9509, %v9510
    %v9512 = vshll.u32 2102212464, %v9500
    %v9513 = vshrl.u32 920167782, %v9501
    %v9514 = vor.u32 %v9512, %v9513
    %v9515 = vshll.u32 920167782, %v9500
    %v9516 = vshrl.u32 1326507024, %v9501
    %v9517 = vor.u32 %v9515, %v9516
    %vm9518 = vcmp.lt.s32.totalorder %v9499, 1
    %vm9519 = vcmp.lt.s32.totalorder %v9499, 2
    %vm9520 = vcmp.lt.s32.totalorder %v9499, 3
    %vm9521 = vcmp.lt.s32.totalorder %v9499, 4
    %v9522 = vsel %vm9518, %v9502, %v9505
    %v9523 = vsel %vm9521, %v9511, 2102212464
    %v9524 = vsel %vm9520, %v9508, %v9523
    %v9525 = vsel %vm9519, %v9522, %v9524
    %v9526 = vsel %vm9518, %v9505, %v9508
    %v9527 = vsel %vm9521, %v9514, 920167782
    %v9528 = vsel %vm9520, %v9511, %v9527
    %v9529 = vsel %vm9519, %v9526, %v9528
    %v9530 = vsel %vm9518, %v9508, %v9511
    %v9531 = vsel %vm9521, %v9517, 1326507024
    %v9532 = vsel %vm9520, %v9514, %v9531
    %v9533 = vsel %vm9519, %v9530, %v9532
    %v9534 = vshll.u32 %v9494, 8
    %v9535 = vand.u32 %v9534, 65535
    %v9536 = vshrl.u32 %v9534, 16
    %v9537 = vand.u32 %v9533, 65535
    %v9538 = vshrl.u32 %v9533, 16
    %v9539 = vmul.u32 %v9535, %v9537
    %v9540 = vmul.u32 %v9535, %v9538
    %v9541 = vmul.u32 %v9536, %v9537
    %v9542 = vmul.u32 %v9536, %v9538
    %v9543 = vshll.u32 %v9540, 16
    %v9544 = vshrl.u32 %v9540, 16
    %v9545 = vshll.u32 %v9541, 16
    %v9546 = vshrl.u32 %v9541, 16
    %vm9547 = vc.u32 %v9539, %v9543
    %v9548 = vsel %vm9547, 1, 0
    %v9549 = vadd.s32 %v9539, %v9543
    %v9550 = vadd.s32 %v9542, %v9548
    %vm9551 = vc.u32 %v9549, %v9545
    %v9552 = vsel %vm9551, 1, 0
    %v9553 = vadd.s32 %v9549, %v9545
    %v9554 = vadd.s32 %v9550, %v9552
    %v9555 = vadd.s32 %v9554, %v9544
    %v9556 = vadd.s32 %v9555, %v9546
    %v9557 = vand.u32 %v9534, 65535
    %v9558 = vshrl.u32 %v9534, 16
    %v9559 = vand.u32 %v9529, 65535
    %v9560 = vshrl.u32 %v9529, 16
    %v9561 = vmul.u32 %v9557, %v9559
    %v9562 = vmul.u32 %v9557, %v9560
    %v9563 = vmul.u32 %v9558, %v9559
    %v9564 = vmul.u32 %v9558, %v9560
    %v9565 = vshll.u32 %v9562, 16
    %v9566 = vshrl.u32 %v9562, 16
    %v9567 = vshll.u32 %v9563, 16
    %v9568 = vshrl.u32 %v9563, 16
    %vm9569 = vc.u32 %v9561, %v9565
    %v9570 = vsel %vm9569, 1, 0
    %v9571 = vadd.s32 %v9561, %v9565
    %v9572 = vadd.s32 %v9564, %v9570
    %vm9573 = vc.u32 %v9571, %v9567
    %v9574 = vsel %vm9573, 1, 0
    %v9575 = vadd.s32 %v9571, %v9567
    %v9576 = vadd.s32 %v9572, %v9574
    %v9577 = vadd.s32 %v9576, %v9566
    %v9578 = vadd.s32 %v9577, %v9568
    %v9579 = vmul.u32 %v9534, %v9525
    %v9580 = vadd.s32 %v9556, %v9575
    %vm9581 = vc.u32 %v9556, %v9575
    %v9582 = vadd.s32 %v9578, 1
    %v9583 = vsel %vm9581, %v9582, %v9578
    %v9584 = vadd.s32 %v9579, %v9583
    %v9585 = vadd.s32 %v9584, 536870912
    %v9586 = vshrl.u32 %v9585, 30
    %v9587 = vshll.u32 %v9586, 30
    %v9588 = vsub.s32 %v9584, %v9587
    %vm9589 = vcmp.lt.s32.totalorder %v9588, 0
    %v9590 = vsub.s32 0, %v9588
    %v9591 = vsel %vm9589, %v9590, %v9588
    %v9592 = vclz %v9591
    %v9593 = vsub.s32 %v9592, 2
    %vm9594 = vcmp.gt.s32.totalorder 0, %v9593
    %v9595 = vsel %vm9594, 0, %v9593
    %v9596 = vsub.s32 32, %v9595
    %v9597 = vshll.u32 %v9588, %v9595
    %v9598 = vshrl.u32 %v9580, %v9596
    %v9599 = vor.u32 %v9597, %v9598
    %v9600 = vsub.s32 4294967266, %v9595
    %v9601 = vadd.s32 %v9600, 127
    %v9602 = vshll.u32 %v9601, 23
    %v9603 = vor.u32 4788187, %v9602
    %v9604 = vand.u32 2147483647, %v9603
    %v9606 = vcvt.s32.f32 %v9599
    %v9607 = vmul.f32 %v9606, %v9604
    %v9608 = vxor.u32 %v9607, 2147483648
    %v9609 = vsel %vm9488, %v9608, %v9607
    %v9610 = vsub.s32 4, %v9586
    %v9611 = vsel %vm9488, %v9610, %v9586
    %v9612 = vsel %vm9487, %v501, %v9609
    %v9613 = vsel %vm9487, 0, %v9611
    %v9614 = vmul.f32 %v9612, %v9612
    %v9615 = vmul.f32 %v9614, -0.001358992
    %v9616 = vadd.f32 %v9615, 0.041655596
    %v9617 = vmul.f32 %v9614, %v9616
    %v9618 = vadd.f32 %v9617, -0.4999988
    %v9619 = vmul.f32 %v9614, %v9618
    %v9620 = vadd.f32 1.0, %v9619
    %v9621 = vmul.f32 %v9612, %v9612
    %v9622 = vmul.f32 %v9621, -0.00019511016
    %v9623 = vadd.f32 %v9622, 0.008332121
    %v9624 = vmul.f32 %v9621, %v9623
    %v9625 = vadd.f32 %v9624, -0.16666654
    %v9626 = vmul.f32 %v9621, %v9625
    %v9627 = vadd.f32 %v9626, 1.0
    %v9628 = vmul.f32 %v9627, %v9612
    %vm9629 = vweird.f32 %v501
    %v9630 = vand.u32 %v9613, 3
    %vm9631 = vcmp.lt.s32.totalorder %v9630, 2
    %vm9632 = vcmp.eq.s32.totalorder %v9630, 0
    %v9633 = vxor.u32 %v9628, 2147483648
    %v9634 = vsel %vm9632, %v9620, %v9633
    %vm9635 = vcmp.eq.s32.totalorder %v9630, 2
    %v9636 = vxor.u32 %v9620, 2147483648
    %v9637 = vsel %vm9635, %v9636, %v9628
    %v9638 = vsel %vm9631, %v9634, %v9637
    %v9639 = vsel %vm9629, nan, %v9638
    %v9640 = vand.u32 2147483647, %v502
    %vm9641 = vcmp.le.f32.partialorder %v9640, 0.7853982
    %vm9642 = vcmp.lt.s32.totalorder %v502, 0
    %v9643 = vand.u32 %v502, 2139095040
    %v9644 = vshrl.u32 %v9643, 23
    %v9645 = vsub.s32 %v9644, 127
    %v9646 = vand.u32 2147483647, %v502
    %v9647 = vand.u32 %v9646, 8388607
    %v9648 = vor.u32 %v9647, 8388608
    %v9649 = vsub.s32 0, %v9648
    %v9650 = vadd.s32 %v9645, 1
    %vm9651 = vcmp.gt.s32.totalorder %v9650, 0
    %v9652 = vsel %vm9651, %v9650, 0
    %v9653 = vshrl.u32 %v9652, 5
    %v9654 = vand.u32 %v9652, 31
    %v9655 = vsub.s32 32, %v9654
    %v9656 = vshrl.u32 683565275, %v9655
    %v9657 = vshll.u32 683565275, %v9654
    %v9658 = vshrl.u32 2475754826, %v9655
    %v9659 = vor.u32 %v9657, %v9658
    %v9660 = vshll.u32 2475754826, %v9654
    %v9661 = vshrl.u32 2131351028, %v9655
    %v9662 = vor.u32 %v9660, %v9661
    %v9663 = vshll.u32 2131351028, %v9654
    %v9664 = vshrl.u32 2102212464, %v9655
    %v9665 = vor.u32 %v9663, %v9664
    %v9666 = vshll.u32 2102212464, %v9654
    %v9667 = vshrl.u32 920167782, %v9655
    %v9668 = vor.u32 %v9666, %v9667
    %v9669 = vshll.u32 920167782, %v9654
    %v9670 = vshrl.u32 1326507024, %v9655
    %v9671 = vor.u32 %v9669, %v9670
    %vm9672 = vcmp.lt.s32.totalorder %v9653, 1
    %vm9673 = vcmp.lt.s32.totalorder %v9653, 2
    %vm9674 = vcmp.lt.s32.totalorder %v9653, 3
    %vm9675 = vcmp.lt.s32.totalorder %v9653, 4
    %v9676 = vsel %vm9672, %v9656, %v9659
    %v9677 = vsel %vm9675, %v9665, 2102212464
    %v9678 = vsel %vm9674, %v9662, %v9677
    %v9679 = vsel %vm9673, %v9676, %v9678
    %v9680 = vsel %vm9672, %v9659, %v9662
    %v9681 = vsel %vm9675, %v9668, 920167782
    %v9682 = vsel %vm9674, %v9665, %v9681
    %v9683 = vsel %vm9673, %v9680, %v9682
    %v9684 = vsel %vm9672, %v9662, %v9665
    %v9685 = vsel %vm9675, %v9671, 1326507024
    %v9686 = vsel %vm9674, %v9668, %v9685
    %v9687 = vsel %vm9673, %v9684, %v9686
    %v9688 = vshll.u32 %v9648, 8
    %v9689 = vand.u32 %v9688, 65535
    %v9690 = vshrl.u32 %v9688, 16
    %v9691 = vand.u32 %v9687, 65535
    %v9692 = vshrl.u32 %v9687, 16
    %v9693 = vmul.u32 %v9689, %v9691
    %v9694 = vmul.u32 %v9689, %v9692
    %v9695 = vmul.u32 %v9690, %v9691
    %v9696 = vmul.u32 %v9690, %v9692
    %v9697 = vshll.u32 %v9694, 16
    %v9698 = vshrl.u32 %v9694, 16
    %v9699 = vshll.u32 %v9695, 16
    %v9700 = vshrl.u32 %v9695, 16
    %vm9701 = vc.u32 %v9693, %v9697
    %v9702 = vsel %vm9701, 1, 0
    %v9703 = vadd.s32 %v9693, %v9697
    %v9704 = vadd.s32 %v9696, %v9702
    %vm9705 = vc.u32 %v9703, %v9699
    %v9706 = vsel %vm9705, 1, 0
    %v9707 = vadd.s32 %v9703, %v9699
    %v9708 = vadd.s32 %v9704, %v9706
    %v9709 = vadd.s32 %v9708, %v9698
    %v9710 = vadd.s32 %v9709, %v9700
    %v9711 = vand.u32 %v9688, 65535
    %v9712 = vshrl.u32 %v9688, 16
    %v9713 = vand.u32 %v9683, 65535
    %v9714 = vshrl.u32 %v9683, 16
    %v9715 = vmul.u32 %v9711, %v9713
    %v9716 = vmul.u32 %v9711, %v9714
    %v9717 = vmul.u32 %v9712, %v9713
    %v9718 = vmul.u32 %v9712, %v9714
    %v9719 = vshll.u32 %v9716, 16
    %v9720 = vshrl.u32 %v9716, 16
    %v9721 = vshll.u32 %v9717, 16
    %v9722 = vshrl.u32 %v9717, 16
    %vm9723 = vc.u32 %v9715, %v9719
    %v9724 = vsel %vm9723, 1, 0
    %v9725 = vadd.s32 %v9715, %v9719
    %v9726 = vadd.s32 %v9718, %v9724
    %vm9727 = vc.u32 %v9725, %v9721
    %v9728 = vsel %vm9727, 1, 0
    %v9729 = vadd.s32 %v9725, %v9721
    %v9730 = vadd.s32 %v9726, %v9728
    %v9731 = vadd.s32 %v9730, %v9720
    %v9732 = vadd.s32 %v9731, %v9722
    %v9733 = vmul.u32 %v9688, %v9679
    %v9734 = vadd.s32 %v9710, %v9729
    %vm9735 = vc.u32 %v9710, %v9729
    %v9736 = vadd.s32 %v9732, 1
    %v9737 = vsel %vm9735, %v9736, %v9732
    %v9738 = vadd.s32 %v9733, %v9737
    %v9739 = vadd.s32 %v9738, 536870912
    %v9740 = vshrl.u32 %v9739, 30
    %v9741 = vshll.u32 %v9740, 30
    %v9742 = vsub.s32 %v9738, %v9741
    %vm9743 = vcmp.lt.s32.totalorder %v9742, 0
    %v9744 = vsub.s32 0, %v9742
    %v9745 = vsel %vm9743, %v9744, %v9742
    %v9746 = vclz %v9745
    %v9747 = vsub.s32 %v9746, 2
    %vm9748 = vcmp.gt.s32.totalorder 0, %v9747
    %v9749 = vsel %vm9748, 0, %v9747
    %v9750 = vsub.s32 32, %v9749
    %v9751 = vshll.u32 %v9742, %v9749
    %v9752 = vshrl.u32 %v9734, %v9750
    %v9753 = vor.u32 %v9751, %v9752
    %v9754 = vsub.s32 4294967266, %v9749
    %v9755 = vadd.s32 %v9754, 127
    %v9756 = vshll.u32 %v9755, 23
    %v9757 = vor.u32 4788187, %v9756
    %v9758 = vand.u32 2147483647, %v9757
    %v9760 = vcvt.s32.f32 %v9753
    %v9761 = vmul.f32 %v9760, %v9758
    %v9762 = vxor.u32 %v9761, 2147483648
    %v9763 = vsel %vm9642, %v9762, %v9761
    %v9764 = vsub.s32 4, %v9740
    %v9765 = vsel %vm9642, %v9764, %v9740
    %v9766 = vsel %vm9641, %v502, %v9763
    %v9767 = vsel %vm9641, 0, %v9765
    %v9768 = vmul.f32 %v9766, %v9766
    %v9769 = vmul.f32 %v9768, -0.001358992
    %v9770 = vadd.f32 %v9769, 0.041655596
    %v9771 = vmul.f32 %v9768, %v9770
    %v9772 = vadd.f32 %v9771, -0.4999988
    %v9773 = vmul.f32 %v9768, %v9772
    %v9774 = vadd.f32 1.0, %v9773
    %v9775 = vmul.f32 %v9766, %v9766
    %v9776 = vmul.f32 %v9775, -0.00019511016
    %v9777 = vadd.f32 %v9776, 0.008332121
    %v9778 = vmul.f32 %v9775, %v9777
    %v9779 = vadd.f32 %v9778, -0.16666654
    %v9780 = vmul.f32 %v9775, %v9779
    %v9781 = vadd.f32 %v9780, 1.0
    %v9782 = vmul.f32 %v9781, %v9766
    %vm9783 = vweird.f32 %v502
    %v9784 = vand.u32 %v9767, 3
    %vm9785 = vcmp.lt.s32.totalorder %v9784, 2
    %vm9786 = vcmp.eq.s32.totalorder %v9784, 0
    %v9787 = vxor.u32 %v9782, 2147483648
    %v9788 = vsel %vm9786, %v9774, %v9787
    %vm9789 = vcmp.eq.s32.totalorder %v9784, 2
    %v9790 = vxor.u32 %v9774, 2147483648
    %v9791 = vsel %vm9789, %v9790, %v9782
    %v9792 = vsel %vm9785, %v9788, %v9791
    %v9793 = vsel %vm9783, nan, %v9792
    %v9794 = vand.u32 2147483647, %v503
    %vm9795 = vcmp.le.f32.partialorder %v9794, 0.7853982
    %vm9796 = vcmp.lt.s32.totalorder %v503, 0
    %v9797 = vand.u32 %v503, 2139095040
    %v9798 = vshrl.u32 %v9797, 23
    %v9799 = vsub.s32 %v9798, 127
    %v9800 = vand.u32 2147483647, %v503
    %v9801 = vand.u32 %v9800, 8388607
    %v9802 = vor.u32 %v9801, 8388608
    %v9803 = vsub.s32 0, %v9802
    %v9804 = vadd.s32 %v9799, 1
    %vm9805 = vcmp.gt.s32.totalorder %v9804, 0
    %v9806 = vsel %vm9805, %v9804, 0
    %v9807 = vshrl.u32 %v9806, 5
    %v9808 = vand.u32 %v9806, 31
    %v9809 = vsub.s32 32, %v9808
    %v9810 = vshrl.u32 683565275, %v9809
    %v9811 = vshll.u32 683565275, %v9808
    %v9812 = vshrl.u32 2475754826, %v9809
    %v9813 = vor.u32 %v9811, %v9812
    %v9814 = vshll.u32 2475754826, %v9808
    %v9815 = vshrl.u32 2131351028, %v9809
    %v9816 = vor.u32 %v9814, %v9815
    %v9817 = vshll.u32 2131351028, %v9808
    %v9818 = vshrl.u32 2102212464, %v9809
    %v9819 = vor.u32 %v9817, %v9818
    %v9820 = vshll.u32 2102212464, %v9808
    %v9821 = vshrl.u32 920167782, %v9809
    %v9822 = vor.u32 %v9820, %v9821
    %v9823 = vshll.u32 920167782, %v9808
    %v9824 = vshrl.u32 1326507024, %v9809
    %v9825 = vor.u32 %v9823, %v9824
    %vm9826 = vcmp.lt.s32.totalorder %v9807, 1
    %vm9827 = vcmp.lt.s32.totalorder %v9807, 2
    %vm9828 = vcmp.lt.s32.totalorder %v9807, 3
    %vm9829 = vcmp.lt.s32.totalorder %v9807, 4
    %v9830 = vsel %vm9826, %v9810, %v9813
    %v9831 = vsel %vm9829, %v9819, 2102212464
    %v9832 = vsel %vm9828, %v9816, %v9831
    %v9833 = vsel %vm9827, %v9830, %v9832
    %v9834 = vsel %vm9826, %v9813, %v9816
    %v9835 = vsel %vm9829, %v9822, 920167782
    %v9836 = vsel %vm9828, %v9819, %v9835
    %v9837 = vsel %vm9827, %v9834, %v9836
    %v9838 = vsel %vm9826, %v9816, %v9819
    %v9839 = vsel %vm9829, %v9825, 1326507024
    %v9840 = vsel %vm9828, %v9822, %v9839
    %v9841 = vsel %vm9827, %v9838, %v9840
    %v9842 = vshll.u32 %v9802, 8
    %v9843 = vand.u32 %v9842, 65535
    %v9844 = vshrl.u32 %v9842, 16
    %v9845 = vand.u32 %v9841, 65535
    %v9846 = vshrl.u32 %v9841, 16
    %v9847 = vmul.u32 %v9843, %v9845
    %v9848 = vmul.u32 %v9843, %v9846
    %v9849 = vmul.u32 %v9844, %v9845
    %v9850 = vmul.u32 %v9844, %v9846
    %v9851 = vshll.u32 %v9848, 16
    %v9852 = vshrl.u32 %v9848, 16
    %v9853 = vshll.u32 %v9849, 16
    %v9854 = vshrl.u32 %v9849, 16
    %vm9855 = vc.u32 %v9847, %v9851
    %v9856 = vsel %vm9855, 1, 0
    %v9857 = vadd.s32 %v9847, %v9851
    %v9858 = vadd.s32 %v9850, %v9856
    %vm9859 = vc.u32 %v9857, %v9853
    %v9860 = vsel %vm9859, 1, 0
    %v9861 = vadd.s32 %v9857, %v9853
    %v9862 = vadd.s32 %v9858, %v9860
    %v9863 = vadd.s32 %v9862, %v9852
    %v9864 = vadd.s32 %v9863, %v9854
    %v9865 = vand.u32 %v9842, 65535
    %v9866 = vshrl.u32 %v9842, 16
    %v9867 = vand.u32 %v9837, 65535
    %v9868 = vshrl.u32 %v9837, 16
    %v9869 = vmul.u32 %v9865, %v9867
    %v9870 = vmul.u32 %v9865, %v9868
    %v9871 = vmul.u32 %v9866, %v9867
    %v9872 = vmul.u32 %v9866, %v9868
    %v9873 = vshll.u32 %v9870, 16
    %v9874 = vshrl.u32 %v9870, 16
    %v9875 = vshll.u32 %v9871, 16
    %v9876 = vshrl.u32 %v9871, 16
    %vm9877 = vc.u32 %v9869, %v9873
    %v9878 = vsel %vm9877, 1, 0
    %v9879 = vadd.s32 %v9869, %v9873
    %v9880 = vadd.s32 %v9872, %v9878
    %vm9881 = vc.u32 %v9879, %v9875
    %v9882 = vsel %vm9881, 1, 0
    %v9883 = vadd.s32 %v9879, %v9875
    %v9884 = vadd.s32 %v9880, %v9882
    %v9885 = vadd.s32 %v9884, %v9874
    %v9886 = vadd.s32 %v9885, %v9876
    %v9887 = vmul.u32 %v9842, %v9833
    %v9888 = vadd.s32 %v9864, %v9883
    %vm9889 = vc.u32 %v9864, %v9883
    %v9890 = vadd.s32 %v9886, 1
    %v9891 = vsel %vm9889, %v9890, %v9886
    %v9892 = vadd.s32 %v9887, %v9891
    %v9893 = vadd.s32 %v9892, 536870912
    %v9894 = vshrl.u32 %v9893, 30
    %v9895 = vshll.u32 %v9894, 30
    %v9896 = vsub.s32 %v9892, %v9895
    %vm9897 = vcmp.lt.s32.totalorder %v9896, 0
    %v9898 = vsub.s32 0, %v9896
    %v9899 = vsel %vm9897, %v9898, %v9896
    %v9900 = vclz %v9899
    %v9901 = vsub.s32 %v9900, 2
    %vm9902 = vcmp.gt.s32.totalorder 0, %v9901
    %v9903 = vsel %vm9902, 0, %v9901
    %v9904 = vsub.s32 32, %v9903
    %v9905 = vshll.u32 %v9896, %v9903
    %v9906 = vshrl.u32 %v9888, %v9904
    %v9907 = vor.u32 %v9905, %v9906
    %v9908 = vsub.s32 4294967266, %v9903
    %v9909 = vadd.s32 %v9908, 127
    %v9910 = vshll.u32 %v9909, 23
    %v9911 = vor.u32 4788187, %v9910
    %v9912 = vand.u32 2147483647, %v9911
    %v9914 = vcvt.s32.f32 %v9907
    %v9915 = vmul.f32 %v9914, %v9912
    %v9916 = vxor.u32 %v9915, 2147483648
    %v9917 = vsel %vm9796, %v9916, %v9915
    %v9918 = vsub.s32 4, %v9894
    %v9919 = vsel %vm9796, %v9918, %v9894
    %v9920 = vsel %vm9795, %v503, %v9917
    %v9921 = vsel %vm9795, 0, %v9919
    %v9922 = vmul.f32 %v9920, %v9920
    %v9923 = vmul.f32 %v9922, -0.001358992
    %v9924 = vadd.f32 %v9923, 0.041655596
    %v9925 = vmul.f32 %v9922, %v9924
    %v9926 = vadd.f32 %v9925, -0.4999988
    %v9927 = vmul.f32 %v9922, %v9926
    %v9928 = vadd.f32 1.0, %v9927
    %v9929 = vmul.f32 %v9920, %v9920
    %v9930 = vmul.f32 %v9929, -0.00019511016
    %v9931 = vadd.f32 %v9930, 0.008332121
    %v9932 = vmul.f32 %v9929, %v9931
    %v9933 = vadd.f32 %v9932, -0.16666654
    %v9934 = vmul.f32 %v9929, %v9933
    %v9935 = vadd.f32 %v9934, 1.0
    %v9936 = vmul.f32 %v9935, %v9920
    %vm9937 = vweird.f32 %v503
    %v9938 = vand.u32 %v9921, 3
    %vm9939 = vcmp.lt.s32.totalorder %v9938, 2
    %vm9940 = vcmp.eq.s32.totalorder %v9938, 0
    %v9941 = vxor.u32 %v9936, 2147483648
    %v9942 = vsel %vm9940, %v9928, %v9941
    %vm9943 = vcmp.eq.s32.totalorder %v9938, 2
    %v9944 = vxor.u32 %v9928, 2147483648
    %v9945 = vsel %vm9943, %v9944, %v9936
    %v9946 = vsel %vm9939, %v9942, %v9945
    %v9947 = vsel %vm9937, nan, %v9946
    %v9948 = vand.u32 2147483647, %v504
    %vm9949 = vcmp.le.f32.partialorder %v9948, 0.7853982
    %vm9950 = vcmp.lt.s32.totalorder %v504, 0
    %v9951 = vand.u32 %v504, 2139095040
    %v9952 = vshrl.u32 %v9951, 23
    %v9953 = vsub.s32 %v9952, 127
    %v9954 = vand.u32 2147483647, %v504
    %v9955 = vand.u32 %v9954, 8388607
    %v9956 = vor.u32 %v9955, 8388608
    %v9957 = vsub.s32 0, %v9956
    %v9958 = vadd.s32 %v9953, 1
    %vm9959 = vcmp.gt.s32.totalorder %v9958, 0
    %v9960 = vsel %vm9959, %v9958, 0
    %v9961 = vshrl.u32 %v9960, 5
    %v9962 = vand.u32 %v9960, 31
    %v9963 = vsub.s32 32, %v9962
    %v9964 = vshrl.u32 683565275, %v9963
    %v9965 = vshll.u32 683565275, %v9962
    %v9966 = vshrl.u32 2475754826, %v9963
    %v9967 = vor.u32 %v9965, %v9966
    %v9968 = vshll.u32 2475754826, %v9962
    %v9969 = vshrl.u32 2131351028, %v9963
    %v9970 = vor.u32 %v9968, %v9969
    %v9971 = vshll.u32 2131351028, %v9962
    %v9972 = vshrl.u32 2102212464, %v9963
    %v9973 = vor.u32 %v9971, %v9972
    %v9974 = vshll.u32 2102212464, %v9962
    %v9975 = vshrl.u32 920167782, %v9963
    %v9976 = vor.u32 %v9974, %v9975
    %v9977 = vshll.u32 920167782, %v9962
    %v9978 = vshrl.u32 1326507024, %v9963
    %v9979 = vor.u32 %v9977, %v9978
    %vm9980 = vcmp.lt.s32.totalorder %v9961, 1
    %vm9981 = vcmp.lt.s32.totalorder %v9961, 2
    %vm9982 = vcmp.lt.s32.totalorder %v9961, 3
    %vm9983 = vcmp.lt.s32.totalorder %v9961, 4
    %v9984 = vsel %vm9980, %v9964, %v9967
    %v9985 = vsel %vm9983, %v9973, 2102212464
    %v9986 = vsel %vm9982, %v9970, %v9985
    %v9987 = vsel %vm9981, %v9984, %v9986
    %v9988 = vsel %vm9980, %v9967, %v9970
    %v9989 = vsel %vm9983, %v9976, 920167782
    %v9990 = vsel %vm9982, %v9973, %v9989
    %v9991 = vsel %vm9981, %v9988, %v9990
    %v9992 = vsel %vm9980, %v9970, %v9973
    %v9993 = vsel %vm9983, %v9979, 1326507024
    %v9994 = vsel %vm9982, %v9976, %v9993
    %v9995 = vsel %vm9981, %v9992, %v9994
    %v9996 = vshll.u32 %v9956, 8
    %v9997 = vand.u32 %v9996, 65535
    %v9998 = vshrl.u32 %v9996, 16
    %v9999 = vand.u32 %v9995, 65535
    %v10000 = vshrl.u32 %v9995, 16
    %v10001 = vmul.u32 %v9997, %v9999
    %v10002 = vmul.u32 %v9997, %v10000
    %v10003 = vmul.u32 %v9998, %v9999
    %v10004 = vmul.u32 %v9998, %v10000
    %v10005 = vshll.u32 %v10002, 16
    %v10006 = vshrl.u32 %v10002, 16
    %v10007 = vshll.u32 %v10003, 16
    %v10008 = vshrl.u32 %v10003, 16
    %vm10009 = vc.u32 %v10001, %v10005
    %v10010 = vsel %vm10009, 1, 0
    %v10011 = vadd.s32 %v10001, %v10005
    %v10012 = vadd.s32 %v10004, %v10010
    %vm10013 = vc.u32 %v10011, %v10007
    %v10014 = vsel %vm10013, 1, 0
    %v10015 = vadd.s32 %v10011, %v10007
    %v10016 = vadd.s32 %v10012, %v10014
    %v10017 = vadd.s32 %v10016, %v10006
    %v10018 = vadd.s32 %v10017, %v10008
    %v10019 = vand.u32 %v9996, 65535
    %v10020 = vshrl.u32 %v9996, 16
    %v10021 = vand.u32 %v9991, 65535
    %v10022 = vshrl.u32 %v9991, 16
    %v10023 = vmul.u32 %v10019, %v10021
    %v10024 = vmul.u32 %v10019, %v10022
    %v10025 = vmul.u32 %v10020, %v10021
    %v10026 = vmul.u32 %v10020, %v10022
    %v10027 = vshll.u32 %v10024, 16
    %v10028 = vshrl.u32 %v10024, 16
    %v10029 = vshll.u32 %v10025, 16
    %v10030 = vshrl.u32 %v10025, 16
    %vm10031 = vc.u32 %v10023, %v10027
    %v10032 = vsel %vm10031, 1, 0
    %v10033 = vadd.s32 %v10023, %v10027
    %v10034 = vadd.s32 %v10026, %v10032
    %vm10035 = vc.u32 %v10033, %v10029
    %v10036 = vsel %vm10035, 1, 0
    %v10037 = vadd.s32 %v10033, %v10029
    %v10038 = vadd.s32 %v10034, %v10036
    %v10039 = vadd.s32 %v10038, %v10028
    %v10040 = vadd.s32 %v10039, %v10030
    %v10041 = vmul.u32 %v9996, %v9987
    %v10042 = vadd.s32 %v10018, %v10037
    %vm10043 = vc.u32 %v10018, %v10037
    %v10044 = vadd.s32 %v10040, 1
    %v10045 = vsel %vm10043, %v10044, %v10040
    %v10046 = vadd.s32 %v10041, %v10045
    %v10047 = vadd.s32 %v10046, 536870912
    %v10048 = vshrl.u32 %v10047, 30
    %v10049 = vshll.u32 %v10048, 30
    %v10050 = vsub.s32 %v10046, %v10049
    %vm10051 = vcmp.lt.s32.totalorder %v10050, 0
    %v10052 = vsub.s32 0, %v10050
    %v10053 = vsel %vm10051, %v10052, %v10050
    %v10054 = vclz %v10053
    %v10055 = vsub.s32 %v10054, 2
    %vm10056 = vcmp.gt.s32.totalorder 0, %v10055
    %v10057 = vsel %vm10056, 0, %v10055
    %v10058 = vsub.s32 32, %v10057
    %v10059 = vshll.u32 %v10050, %v10057
    %v10060 = vshrl.u32 %v10042, %v10058
    %v10061 = vor.u32 %v10059, %v10060
    %v10062 = vsub.s32 4294967266, %v10057
    %v10063 = vadd.s32 %v10062, 127
    %v10064 = vshll.u32 %v10063, 23
    %v10065 = vor.u32 4788187, %v10064
    %v10066 = vand.u32 2147483647, %v10065
    %v10068 = vcvt.s32.f32 %v10061
    %v10069 = vmul.f32 %v10068, %v10066
    %v10070 = vxor.u32 %v10069, 2147483648
    %v10071 = vsel %vm9950, %v10070, %v10069
    %v10072 = vsub.s32 4, %v10048
    %v10073 = vsel %vm9950, %v10072, %v10048
    %v10074 = vsel %vm9949, %v504, %v10071
    %v10075 = vsel %vm9949, 0, %v10073
    %v10076 = vmul.f32 %v10074, %v10074
    %v10077 = vmul.f32 %v10076, -0.001358992
    %v10078 = vadd.f32 %v10077, 0.041655596
    %v10079 = vmul.f32 %v10076, %v10078
    %v10080 = vadd.f32 %v10079, -0.4999988
    %v10081 = vmul.f32 %v10076, %v10080
    %v10082 = vadd.f32 1.0, %v10081
    %v10083 = vmul.f32 %v10074, %v10074
    %v10084 = vmul.f32 %v10083, -0.00019511016
    %v10085 = vadd.f32 %v10084, 0.008332121
    %v10086 = vmul.f32 %v10083, %v10085
    %v10087 = vadd.f32 %v10086, -0.16666654
    %v10088 = vmul.f32 %v10083, %v10087
    %v10089 = vadd.f32 %v10088, 1.0
    %v10090 = vmul.f32 %v10089, %v10074
    %vm10091 = vweird.f32 %v504
    %v10092 = vand.u32 %v10075, 3
    %vm10093 = vcmp.lt.s32.totalorder %v10092, 2
    %vm10094 = vcmp.eq.s32.totalorder %v10092, 0
    %v10095 = vxor.u32 %v10090, 2147483648
    %v10096 = vsel %vm10094, %v10082, %v10095
    %vm10097 = vcmp.eq.s32.totalorder %v10092, 2
    %v10098 = vxor.u32 %v10082, 2147483648
    %v10099 = vsel %vm10097, %v10098, %v10090
    %v10100 = vsel %vm10093, %v10096, %v10099
    %v10101 = vsel %vm10091, nan, %v10100
    %v10102 = vand.u32 2147483647, %v505
    %vm10103 = vcmp.le.f32.partialorder %v10102, 0.7853982
    %vm10104 = vcmp.lt.s32.totalorder %v505, 0
    %v10105 = vand.u32 %v505, 2139095040
    %v10106 = vshrl.u32 %v10105, 23
    %v10107 = vsub.s32 %v10106, 127
    %v10108 = vand.u32 2147483647, %v505
    %v10109 = vand.u32 %v10108, 8388607
    %v10110 = vor.u32 %v10109, 8388608
    %v10111 = vsub.s32 0, %v10110
    %v10112 = vadd.s32 %v10107, 1
    %vm10113 = vcmp.gt.s32.totalorder %v10112, 0
    %v10114 = vsel %vm10113, %v10112, 0
    %v10115 = vshrl.u32 %v10114, 5
    %v10116 = vand.u32 %v10114, 31
    %v10117 = vsub.s32 32, %v10116
    %v10118 = vshrl.u32 683565275, %v10117
    %v10119 = vshll.u32 683565275, %v10116
    %v10120 = vshrl.u32 2475754826, %v10117
    %v10121 = vor.u32 %v10119, %v10120
    %v10122 = vshll.u32 2475754826, %v10116
    %v10123 = vshrl.u32 2131351028, %v10117
    %v10124 = vor.u32 %v10122, %v10123
    %v10125 = vshll.u32 2131351028, %v10116
    %v10126 = vshrl.u32 2102212464, %v10117
    %v10127 = vor.u32 %v10125, %v10126
    %v10128 = vshll.u32 2102212464, %v10116
    %v10129 = vshrl.u32 920167782, %v10117
    %v10130 = vor.u32 %v10128, %v10129
    %v10131 = vshll.u32 920167782, %v10116
    %v10132 = vshrl.u32 1326507024, %v10117
    %v10133 = vor.u32 %v10131, %v10132
    %vm10134 = vcmp.lt.s32.totalorder %v10115, 1
    %vm10135 = vcmp.lt.s32.totalorder %v10115, 2
    %vm10136 = vcmp.lt.s32.totalorder %v10115, 3
    %vm10137 = vcmp.lt.s32.totalorder %v10115, 4
    %v10138 = vsel %vm10134, %v10118, %v10121
    %v10139 = vsel %vm10137, %v10127, 2102212464
    %v10140 = vsel %vm10136, %v10124, %v10139
    %v10141 = vsel %vm10135, %v10138, %v10140
    %v10142 = vsel %vm10134, %v10121, %v10124
    %v10143 = vsel %vm10137, %v10130, 920167782
    %v10144 = vsel %vm10136, %v10127, %v10143
    %v10145 = vsel %vm10135, %v10142, %v10144
    %v10146 = vsel %vm10134, %v10124, %v10127
    %v10147 = vsel %vm10137, %v10133, 1326507024
    %v10148 = vsel %vm10136, %v10130, %v10147
    %v10149 = vsel %vm10135, %v10146, %v10148
    %v10150 = vshll.u32 %v10110, 8
    %v10151 = vand.u32 %v10150, 65535
    %v10152 = vshrl.u32 %v10150, 16
    %v10153 = vand.u32 %v10149, 65535
    %v10154 = vshrl.u32 %v10149, 16
    %v10155 = vmul.u32 %v10151, %v10153
    %v10156 = vmul.u32 %v10151, %v10154
    %v10157 = vmul.u32 %v10152, %v10153
    %v10158 = vmul.u32 %v10152, %v10154
    %v10159 = vshll.u32 %v10156, 16
    %v10160 = vshrl.u32 %v10156, 16
    %v10161 = vshll.u32 %v10157, 16
    %v10162 = vshrl.u32 %v10157, 16
    %vm10163 = vc.u32 %v10155, %v10159
    %v10164 = vsel %vm10163, 1, 0
    %v10165 = vadd.s32 %v10155, %v10159
    %v10166 = vadd.s32 %v10158, %v10164
    %vm10167 = vc.u32 %v10165, %v10161
    %v10168 = vsel %vm10167, 1, 0
    %v10169 = vadd.s32 %v10165, %v10161
    %v10170 = vadd.s32 %v10166, %v10168
    %v10171 = vadd.s32 %v10170, %v10160
    %v10172 = vadd.s32 %v10171, %v10162
    %v10173 = vand.u32 %v10150, 65535
    %v10174 = vshrl.u32 %v10150, 16
    %v10175 = vand.u32 %v10145, 65535
    %v10176 = vshrl.u32 %v10145, 16
    %v10177 = vmul.u32 %v10173, %v10175
    %v10178 = vmul.u32 %v10173, %v10176
    %v10179 = vmul.u32 %v10174, %v10175
    %v10180 = vmul.u32 %v10174, %v10176
    %v10181 = vshll.u32 %v10178, 16
    %v10182 = vshrl.u32 %v10178, 16
    %v10183 = vshll.u32 %v10179, 16
    %v10184 = vshrl.u32 %v10179, 16
    %vm10185 = vc.u32 %v10177, %v10181
    %v10186 = vsel %vm10185, 1, 0
    %v10187 = vadd.s32 %v10177, %v10181
    %v10188 = vadd.s32 %v10180, %v10186
    %vm10189 = vc.u32 %v10187, %v10183
    %v10190 = vsel %vm10189, 1, 0
    %v10191 = vadd.s32 %v10187, %v10183
    %v10192 = vadd.s32 %v10188, %v10190
    %v10193 = vadd.s32 %v10192, %v10182
    %v10194 = vadd.s32 %v10193, %v10184
    %v10195 = vmul.u32 %v10150, %v10141
    %v10196 = vadd.s32 %v10172, %v10191
    %vm10197 = vc.u32 %v10172, %v10191
    %v10198 = vadd.s32 %v10194, 1
    %v10199 = vsel %vm10197, %v10198, %v10194
    %v10200 = vadd.s32 %v10195, %v10199
    %v10201 = vadd.s32 %v10200, 536870912
    %v10202 = vshrl.u32 %v10201, 30
    %v10203 = vshll.u32 %v10202, 30
    %v10204 = vsub.s32 %v10200, %v10203
    %vm10205 = vcmp.lt.s32.totalorder %v10204, 0
    %v10206 = vsub.s32 0, %v10204
    %v10207 = vsel %vm10205, %v10206, %v10204
    %v10208 = vclz %v10207
    %v10209 = vsub.s32 %v10208, 2
    %vm10210 = vcmp.gt.s32.totalorder 0, %v10209
    %v10211 = vsel %vm10210, 0, %v10209
    %v10212 = vsub.s32 32, %v10211
    %v10213 = vshll.u32 %v10204, %v10211
    %v10214 = vshrl.u32 %v10196, %v10212
    %v10215 = vor.u32 %v10213, %v10214
    %v10216 = vsub.s32 4294967266, %v10211
    %v10217 = vadd.s32 %v10216, 127
    %v10218 = vshll.u32 %v10217, 23
    %v10219 = vor.u32 4788187, %v10218
    %v10220 = vand.u32 2147483647, %v10219
    %v10222 = vcvt.s32.f32 %v10215
    %v10223 = vmul.f32 %v10222, %v10220
    %v10224 = vxor.u32 %v10223, 2147483648
    %v10225 = vsel %vm10104, %v10224, %v10223
    %v10226 = vsub.s32 4, %v10202
    %v10227 = vsel %vm10104, %v10226, %v10202
    %v10228 = vsel %vm10103, %v505, %v10225
    %v10229 = vsel %vm10103, 0, %v10227
    %v10230 = vmul.f32 %v10228, %v10228
    %v10231 = vmul.f32 %v10230, -0.001358992
    %v10232 = vadd.f32 %v10231, 0.041655596
    %v10233 = vmul.f32 %v10230, %v10232
    %v10234 = vadd.f32 %v10233, -0.4999988
    %v10235 = vmul.f32 %v10230, %v10234
    %v10236 = vadd.f32 1.0, %v10235
    %v10237 = vmul.f32 %v10228, %v10228
    %v10238 = vmul.f32 %v10237, -0.00019511016
    %v10239 = vadd.f32 %v10238, 0.008332121
    %v10240 = vmul.f32 %v10237, %v10239
    %v10241 = vadd.f32 %v10240, -0.16666654
    %v10242 = vmul.f32 %v10237, %v10241
    %v10243 = vadd.f32 %v10242, 1.0
    %v10244 = vmul.f32 %v10243, %v10228
    %vm10245 = vweird.f32 %v505
    %v10246 = vand.u32 %v10229, 3
    %vm10247 = vcmp.lt.s32.totalorder %v10246, 2
    %vm10248 = vcmp.eq.s32.totalorder %v10246, 0
    %v10249 = vxor.u32 %v10244, 2147483648
    %v10250 = vsel %vm10248, %v10236, %v10249
    %vm10251 = vcmp.eq.s32.totalorder %v10246, 2
    %v10252 = vxor.u32 %v10236, 2147483648
    %v10253 = vsel %vm10251, %v10252, %v10244
    %v10254 = vsel %vm10247, %v10250, %v10253
    %v10255 = vsel %vm10245, nan, %v10254
    %v10256 = vand.u32 2147483647, %v506
    %vm10257 = vcmp.le.f32.partialorder %v10256, 0.7853982
    %vm10258 = vcmp.lt.s32.totalorder %v506, 0
    %v10259 = vand.u32 %v506, 2139095040
    %v10260 = vshrl.u32 %v10259, 23
    %v10261 = vsub.s32 %v10260, 127
    %v10262 = vand.u32 2147483647, %v506
    %v10263 = vand.u32 %v10262, 8388607
    %v10264 = vor.u32 %v10263, 8388608
    %v10265 = vsub.s32 0, %v10264
    %v10266 = vadd.s32 %v10261, 1
    %vm10267 = vcmp.gt.s32.totalorder %v10266, 0
    %v10268 = vsel %vm10267, %v10266, 0
    %v10269 = vshrl.u32 %v10268, 5
    %v10270 = vand.u32 %v10268, 31
    %v10271 = vsub.s32 32, %v10270
    %v10272 = vshrl.u32 683565275, %v10271
    %v10273 = vshll.u32 683565275, %v10270
    %v10274 = vshrl.u32 2475754826, %v10271
    %v10275 = vor.u32 %v10273, %v10274
    %v10276 = vshll.u32 2475754826, %v10270
    %v10277 = vshrl.u32 2131351028, %v10271
    %v10278 = vor.u32 %v10276, %v10277
    %v10279 = vshll.u32 2131351028, %v10270
    %v10280 = vshrl.u32 2102212464, %v10271
    %v10281 = vor.u32 %v10279, %v10280
    %v10282 = vshll.u32 2102212464, %v10270
    %v10283 = vshrl.u32 920167782, %v10271
    %v10284 = vor.u32 %v10282, %v10283
    %v10285 = vshll.u32 920167782, %v10270
    %v10286 = vshrl.u32 1326507024, %v10271
    %v10287 = vor.u32 %v10285, %v10286
    %vm10288 = vcmp.lt.s32.totalorder %v10269, 1
    %vm10289 = vcmp.lt.s32.totalorder %v10269, 2
    %vm10290 = vcmp.lt.s32.totalorder %v10269, 3
    %vm10291 = vcmp.lt.s32.totalorder %v10269, 4
    %v10292 = vsel %vm10288, %v10272, %v10275
    %v10293 = vsel %vm10291, %v10281, 2102212464
    %v10294 = vsel %vm10290, %v10278, %v10293
    %v10295 = vsel %vm10289, %v10292, %v10294
    %v10296 = vsel %vm10288, %v10275, %v10278
    %v10297 = vsel %vm10291, %v10284, 920167782
    %v10298 = vsel %vm10290, %v10281, %v10297
    %v10299 = vsel %vm10289, %v10296, %v10298
    %v10300 = vsel %vm10288, %v10278, %v10281
    %v10301 = vsel %vm10291, %v10287, 1326507024
    %v10302 = vsel %vm10290, %v10284, %v10301
    %v10303 = vsel %vm10289, %v10300, %v10302
    %v10304 = vshll.u32 %v10264, 8
    %v10305 = vand.u32 %v10304, 65535
    %v10306 = vshrl.u32 %v10304, 16
    %v10307 = vand.u32 %v10303, 65535
    %v10308 = vshrl.u32 %v10303, 16
    %v10309 = vmul.u32 %v10305, %v10307
    %v10310 = vmul.u32 %v10305, %v10308
    %v10311 = vmul.u32 %v10306, %v10307
    %v10312 = vmul.u32 %v10306, %v10308
    %v10313 = vshll.u32 %v10310, 16
    %v10314 = vshrl.u32 %v10310, 16
    %v10315 = vshll.u32 %v10311, 16
    %v10316 = vshrl.u32 %v10311, 16
    %vm10317 = vc.u32 %v10309, %v10313
    %v10318 = vsel %vm10317, 1, 0
    %v10319 = vadd.s32 %v10309, %v10313
    %v10320 = vadd.s32 %v10312, %v10318
    %vm10321 = vc.u32 %v10319, %v10315
    %v10322 = vsel %vm10321, 1, 0
    %v10323 = vadd.s32 %v10319, %v10315
    %v10324 = vadd.s32 %v10320, %v10322
    %v10325 = vadd.s32 %v10324, %v10314
    %v10326 = vadd.s32 %v10325, %v10316
    %v10327 = vand.u32 %v10304, 65535
    %v10328 = vshrl.u32 %v10304, 16
    %v10329 = vand.u32 %v10299, 65535
    %v10330 = vshrl.u32 %v10299, 16
    %v10331 = vmul.u32 %v10327, %v10329
    %v10332 = vmul.u32 %v10327, %v10330
    %v10333 = vmul.u32 %v10328, %v10329
    %v10334 = vmul.u32 %v10328, %v10330
    %v10335 = vshll.u32 %v10332, 16
    %v10336 = vshrl.u32 %v10332, 16
    %v10337 = vshll.u32 %v10333, 16
    %v10338 = vshrl.u32 %v10333, 16
    %vm10339 = vc.u32 %v10331, %v10335
    %v10340 = vsel %vm10339, 1, 0
    %v10341 = vadd.s32 %v10331, %v10335
    %v10342 = vadd.s32 %v10334, %v10340
    %vm10343 = vc.u32 %v10341, %v10337
    %v10344 = vsel %vm10343, 1, 0
    %v10345 = vadd.s32 %v10341, %v10337
    %v10346 = vadd.s32 %v10342, %v10344
    %v10347 = vadd.s32 %v10346, %v10336
    %v10348 = vadd.s32 %v10347, %v10338
    %v10349 = vmul.u32 %v10304, %v10295
    %v10350 = vadd.s32 %v10326, %v10345
    %vm10351 = vc.u32 %v10326, %v10345
    %v10352 = vadd.s32 %v10348, 1
    %v10353 = vsel %vm10351, %v10352, %v10348
    %v10354 = vadd.s32 %v10349, %v10353
    %v10355 = vadd.s32 %v10354, 536870912
    %v10356 = vshrl.u32 %v10355, 30
    %v10357 = vshll.u32 %v10356, 30
    %v10358 = vsub.s32 %v10354, %v10357
    %vm10359 = vcmp.lt.s32.totalorder %v10358, 0
    %v10360 = vsub.s32 0, %v10358
    %v10361 = vsel %vm10359, %v10360, %v10358
    %v10362 = vclz %v10361
    %v10363 = vsub.s32 %v10362, 2
    %vm10364 = vcmp.gt.s32.totalorder 0, %v10363
    %v10365 = vsel %vm10364, 0, %v10363
    %v10366 = vsub.s32 32, %v10365
    %v10367 = vshll.u32 %v10358, %v10365
    %v10368 = vshrl.u32 %v10350, %v10366
    %v10369 = vor.u32 %v10367, %v10368
    %v10370 = vsub.s32 4294967266, %v10365
    %v10371 = vadd.s32 %v10370, 127
    %v10372 = vshll.u32 %v10371, 23
    %v10373 = vor.u32 4788187, %v10372
    %v10374 = vand.u32 2147483647, %v10373
    %v10376 = vcvt.s32.f32 %v10369
    %v10377 = vmul.f32 %v10376, %v10374
    %v10378 = vxor.u32 %v10377, 2147483648
    %v10379 = vsel %vm10258, %v10378, %v10377
    %v10380 = vsub.s32 4, %v10356
    %v10381 = vsel %vm10258, %v10380, %v10356
    %v10382 = vsel %vm10257, %v506, %v10379
    %v10383 = vsel %vm10257, 0, %v10381
    %v10384 = vmul.f32 %v10382, %v10382
    %v10385 = vmul.f32 %v10384, -0.001358992
    %v10386 = vadd.f32 %v10385, 0.041655596
    %v10387 = vmul.f32 %v10384, %v10386
    %v10388 = vadd.f32 %v10387, -0.4999988
    %v10389 = vmul.f32 %v10384, %v10388
    %v10390 = vadd.f32 1.0, %v10389
    %v10391 = vmul.f32 %v10382, %v10382
    %v10392 = vmul.f32 %v10391, -0.00019511016
    %v10393 = vadd.f32 %v10392, 0.008332121
    %v10394 = vmul.f32 %v10391, %v10393
    %v10395 = vadd.f32 %v10394, -0.16666654
    %v10396 = vmul.f32 %v10391, %v10395
    %v10397 = vadd.f32 %v10396, 1.0
    %v10398 = vmul.f32 %v10397, %v10382
    %vm10399 = vweird.f32 %v506
    %v10400 = vand.u32 %v10383, 3
    %vm10401 = vcmp.lt.s32.totalorder %v10400, 2
    %vm10402 = vcmp.eq.s32.totalorder %v10400, 0
    %v10403 = vxor.u32 %v10398, 2147483648
    %v10404 = vsel %vm10402, %v10390, %v10403
    %vm10405 = vcmp.eq.s32.totalorder %v10400, 2
    %v10406 = vxor.u32 %v10390, 2147483648
    %v10407 = vsel %vm10405, %v10406, %v10398
    %v10408 = vsel %vm10401, %v10404, %v10407
    %v10409 = vsel %vm10399, nan, %v10408
    %v10410 = vsel %vm521, %v676, %v5635
    %v10411 = vsel %vm521, %v831, %v5789
    %v10412 = vsel %vm521, %v986, %v5943
    %v10413 = vsel %vm521, %v1141, %v6097
    %v10414 = vsel %vm521, %v1296, %v6251
    %v10415 = vsel %vm521, %v1451, %v6405
    %v10416 = vsel %vm521, %v1606, %v6559
    %v10417 = vsel %vm521, %v1761, %v6713
    %v10418 = vsel %vm521, %v1916, %v6867
    %v10419 = vsel %vm521, %v2071, %v7021
    %v10420 = vsel %vm521, %v2226, %v7175
    %v10421 = vsel %vm521, %v2381, %v7329
    %v10422 = vsel %vm521, %v2536, %v7483
    %v10423 = vsel %vm521, %v2691, %v7637
    %v10424 = vsel %vm521, %v2846, %v7791
    %v10425 = vsel %vm521, %v3001, %v7945
    %v10426 = vsel %vm521, %v3156, %v8099
    %v10427 = vsel %vm521, %v3311, %v8253
    %v10428 = vsel %vm521, %v3466, %v8407
    %v10429 = vsel %vm521, %v3621, %v8561
    %v10430 = vsel %vm521, %v3776, %v8715
    %v10431 = vsel %vm521, %v3931, %v8869
    %v10432 = vsel %vm521, %v4086, %v9023
    %v10433 = vsel %vm521, %v4241, %v9177
    %v10434 = vsel %vm521, %v4396, %v9331
    %v10435 = vsel %vm521, %v4551, %v9485
    %v10436 = vsel %vm521, %v4706, %v9639
    %v10437 = vsel %vm521, %v4861, %v9793
    %v10438 = vsel %vm521, %v5016, %v9947
    %v10439 = vsel %vm521, %v5171, %v10101
    %v10440 = vsel %vm521, %v5326, %v10255
    %v10441 = vsel %vm521, %v5481, %v10409
    %v10442 = vld [vmem:[%s5] sm:$0xff]
    %v10443 = vld [vmem:[%s5 + $0x8] sm:$0xff]
    %v10444 = vld [vmem:[%s5 + $0x10] sm:$0xff]
    %v10445 = vld [vmem:[%s5 + $0x18] sm:$0xff]
    %v10446 = vld [vmem:[%s6] sm:$0x1]
    %v10448 = vperm.slane %v10446, 0
    %vm10450 = vcmask 261120
    %v10452 = vsel %vm10450, %v10410, 0
    %v10455 = vsel %vm10450, %v10411, 0
    %v10458 = vsel %vm10450, %v10412, 0
    %v10461 = vsel %vm10450, %v10413, 0
    %v10464 = vsel %vm10450, %v10414, 0
    %v10467 = vsel %vm10450, %v10415, 0
    %v10470 = vsel %vm10450, %v10416, 0
    %v10473 = vsel %vm10450, %v10417, 0
    %v10476 = vsel %vm10450, %v10418, 0
    %v10479 = vsel %vm10450, %v10419, 0
    %v10482 = vsel %vm10450, %v10420, 0
    %v10485 = vsel %vm10450, %v10421, 0
    %v10488 = vsel %vm10450, %v10422, 0
    %v10491 = vsel %vm10450, %v10423, 0
    %v10494 = vsel %vm10450, %v10424, 0
    %v10497 = vsel %vm10450, %v10425, 0
    %v10500 = vsel %vm10450, %v10426, 0
    %v10503 = vsel %vm10450, %v10427, 0
    %v10506 = vsel %vm10450, %v10428, 0
    %v10509 = vsel %vm10450, %v10429, 0
    %v10512 = vsel %vm10450, %v10430, 0
    %v10515 = vsel %vm10450, %v10431, 0
    %v10518 = vsel %vm10450, %v10432, 0
    %v10521 = vsel %vm10450, %v10433, 0
    %v10524 = vsel %vm10450, %v10434, 0
    %v10527 = vsel %vm10450, %v10435, 0
    %v10530 = vsel %vm10450, %v10436, 0
    %v10533 = vsel %vm10450, %v10437, 0
    %v10536 = vsel %vm10450, %v10438, 0
    %v10539 = vsel %vm10450, %v10439, 0
    %v10542 = vsel %vm10450, %v10440, 0
    %v10545 = vsel %vm10450, %v10441, 0
    %10547 = vmatpush.msra.mxu0 0.0
    %10548 = vmatpush.msra.mxu0 0.0
    %10549 = vmatpush.msra.mxu0 0.0
    %10550 = vmatpush.msra.mxu0 0.0
    %10551 = vmatpush.msra.mxu0 0.0
    %10552 = vmatpush.msra.mxu0 0.0
    %10553 = vmatpush.msra.mxu0 0.0
    %10554 = vmatpush.msra.mxu0 0.0
    %10555 = vmatpush.msra.mxu0 0.0
    %10556 = vmatpush.msra.mxu0 0.0
    %10557 = vmatpush.msra.mxu0 0.0
    %10558 = vmatpush.msra.mxu0 0.0
    %10559 = vmatpush.msra.mxu0 %v10445
    %10560 = vmatpush.msra.mxu0 %v10444
    %10561 = vmatpush.msra.mxu0 %v10443
    %10562 = vmatpush.msra.mxu0 %v10442
    %10563 = vmatmul.f32.gmra.mxu0 %v10452
    %v10564 = vpop.f32.mrf.mxu0
    %v10565 = vadd.f32 %v10448, %v10564
    %10566 = vmatmul.f32.gmra.mxu0 %v10455
    %v10567 = vpop.f32.mrf.mxu0
    %v10568 = vadd.f32 %v10448, %v10567
    %10569 = vmatmul.f32.gmra.mxu0 %v10458
    %v10570 = vpop.f32.mrf.mxu0
    %v10571 = vadd.f32 %v10448, %v10570
    %10572 = vmatmul.f32.gmra.mxu0 %v10461
    %v10573 = vpop.f32.mrf.mxu0
    %v10574 = vadd.f32 %v10448, %v10573
    %10575 = vmatmul.f32.gmra.mxu0 %v10464
    %v10576 = vpop.f32.mrf.mxu0
    %v10577 = vadd.f32 %v10448, %v10576
    %10578 = vmatmul.f32.gmra.mxu0 %v10467
    %v10579 = vpop.f32.mrf.mxu0
    %v10580 = vadd.f32 %v10448, %v10579
    %10581 = vmatmul.f32.gmra.mxu0 %v10470
    %v10582 = vpop.f32.mrf.mxu0
    %v10583 = vadd.f32 %v10448, %v10582
    %10584 = vmatmul.f32.gmra.mxu0 %v10473
    %v10585 = vpop.f32.mrf.mxu0
    %v10586 = vadd.f32 %v10448, %v10585
    %10587 = vmatmul.f32.gmra.mxu0 %v10476
    %v10588 = vpop.f32.mrf.mxu0
    %v10589 = vadd.f32 %v10448, %v10588
    %10590 = vmatmul.f32.gmra.mxu0 %v10479
    %v10591 = vpop.f32.mrf.mxu0
    %v10592 = vadd.f32 %v10448, %v10591
    %10593 = vmatmul.f32.gmra.mxu0 %v10482
    %v10594 = vpop.f32.mrf.mxu0
    %v10595 = vadd.f32 %v10448, %v10594
    %10596 = vmatmul.f32.gmra.mxu0 %v10485
    %v10597 = vpop.f32.mrf.mxu0
    %v10598 = vadd.f32 %v10448, %v10597
    %10599 = vmatmul.f32.gmra.mxu0 %v10488
    %v10600 = vpop.f32.mrf.mxu0
    %v10601 = vadd.f32 %v10448, %v10600
    %10602 = vmatmul.f32.gmra.mxu0 %v10491
    %v10603 = vpop.f32.mrf.mxu0
    %v10604 = vadd.f32 %v10448, %v10603
    %10605 = vmatmul.f32.gmra.mxu0 %v10494
    %v10606 = vpop.f32.mrf.mxu0
    %v10607 = vadd.f32 %v10448, %v10606
    %10608 = vmatmul.f32.gmra.mxu0 %v10497
    %v10609 = vpop.f32.mrf.mxu0
    %v10610 = vadd.f32 %v10448, %v10609
    %10611 = vmatmul.f32.gmra.mxu0 %v10500
    %v10612 = vpop.f32.mrf.mxu0
    %v10613 = vadd.f32 %v10448, %v10612
    %10614 = vmatmul.f32.gmra.mxu0 %v10503
    %v10615 = vpop.f32.mrf.mxu0
    %v10616 = vadd.f32 %v10448, %v10615
    %10617 = vmatmul.f32.gmra.mxu0 %v10506
    %v10618 = vpop.f32.mrf.mxu0
    %v10619 = vadd.f32 %v10448, %v10618
    %10620 = vmatmul.f32.gmra.mxu0 %v10509
    %v10621 = vpop.f32.mrf.mxu0
    %v10622 = vadd.f32 %v10448, %v10621
    %10623 = vmatmul.f32.gmra.mxu0 %v10512
    %v10624 = vpop.f32.mrf.mxu0
    %v10625 = vadd.f32 %v10448, %v10624
    %10626 = vmatmul.f32.gmra.mxu0 %v10515
    %v10627 = vpop.f32.mrf.mxu0
    %v10628 = vadd.f32 %v10448, %v10627
    %10629 = vmatmul.f32.gmra.mxu0 %v10518
    %v10630 = vpop.f32.mrf.mxu0
    %v10631 = vadd.f32 %v10448, %v10630
    %10632 = vmatmul.f32.gmra.mxu0 %v10521
    %v10633 = vpop.f32.mrf.mxu0
    %v10634 = vadd.f32 %v10448, %v10633
    %10635 = vmatmul.f32.gmra.mxu0 %v10524
    %v10636 = vpop.f32.mrf.mxu0
    %v10637 = vadd.f32 %v10448, %v10636
    %10638 = vmatmul.f32.gmra.mxu0 %v10527
    %v10639 = vpop.f32.mrf.mxu0
    %v10640 = vadd.f32 %v10448, %v10639
    %10641 = vmatmul.f32.gmra.mxu0 %v10530
    %v10642 = vpop.f32.mrf.mxu0
    %v10643 = vadd.f32 %v10448, %v10642
    %10644 = vmatmul.f32.gmra.mxu0 %v10533
    %v10645 = vpop.f32.mrf.mxu0
    %v10646 = vadd.f32 %v10448, %v10645
    %10647 = vmatmul.f32.gmra.mxu0 %v10536
    %v10648 = vpop.f32.mrf.mxu0
    %v10649 = vadd.f32 %v10448, %v10648
    %10650 = vmatmul.f32.gmra.mxu0 %v10539
    %v10651 = vpop.f32.mrf.mxu0
    %v10652 = vadd.f32 %v10448, %v10651
    %10653 = vmatmul.f32.gmra.mxu0 %v10542
    %v10654 = vpop.f32.mrf.mxu0
    %v10655 = vadd.f32 %v10448, %v10654
    %10656 = vmatmul.f32.gmra.mxu0 %v10545
    %v10657 = vpop.f32.mrf.mxu0
    %v10658 = vadd.f32 %v10448, %v10657
    %10659 = vdwg.mxu0
    %vm10660 = vcmp.ne.f32.partialorder %v279, -1.0
    %vm10661 = vcmp.ne.f32.partialorder %v280, -1.0
    %vm10662 = vcmp.ne.f32.partialorder %v281, -1.0
    %vm10663 = vcmp.ne.f32.partialorder %v282, -1.0
    %vm10664 = vcmp.ne.f32.partialorder %v283, -1.0
    %vm10665 = vcmp.ne.f32.partialorder %v284, -1.0
    %vm10666 = vcmp.ne.f32.partialorder %v285, -1.0
    %vm10667 = vcmp.ne.f32.partialorder %v286, -1.0
    %vm10668 = vcmp.ne.f32.partialorder %v287, -1.0
    %vm10669 = vcmp.ne.f32.partialorder %v288, -1.0
    %vm10670 = vcmp.ne.f32.partialorder %v289, -1.0
    %vm10671 = vcmp.ne.f32.partialorder %v290, -1.0
    %vm10672 = vcmp.ne.f32.partialorder %v291, -1.0
    %vm10673 = vcmp.ne.f32.partialorder %v292, -1.0
    %vm10674 = vcmp.ne.f32.partialorder %v293, -1.0
    %vm10675 = vcmp.ne.f32.partialorder %v294, -1.0
    %vm10676 = vcmp.ne.f32.partialorder %v295, -1.0
    %vm10677 = vcmp.ne.f32.partialorder %v296, -1.0
    %vm10678 = vcmp.ne.f32.partialorder %v297, -1.0
    %vm10679 = vcmp.ne.f32.partialorder %v298, -1.0
    %vm10680 = vcmp.ne.f32.partialorder %v299, -1.0
    %vm10681 = vcmp.ne.f32.partialorder %v300, -1.0
    %vm10682 = vcmp.ne.f32.partialorder %v301, -1.0
    %vm10683 = vcmp.ne.f32.partialorder %v302, -1.0
    %vm10684 = vcmp.ne.f32.partialorder %v303, -1.0
    %vm10685 = vcmp.ne.f32.partialorder %v304, -1.0
    %vm10686 = vcmp.ne.f32.partialorder %v305, -1.0
    %vm10687 = vcmp.ne.f32.partialorder %v306, -1.0
    %vm10688 = vcmp.ne.f32.partialorder %v307, -1.0
    %vm10689 = vcmp.ne.f32.partialorder %v308, -1.0
    %vm10690 = vcmp.ne.f32.partialorder %v309, -1.0
    %vm10691 = vcmp.ne.f32.partialorder %v310, -1.0
    %v10692 = vsel %vm10660, 1, 0
    %v10693 = vsel %vm10661, 1, 0
    %v10694 = vsel %vm10662, 1, 0
    %v10695 = vsel %vm10663, 1, 0
    %v10696 = vsel %vm10664, 1, 0
    %v10697 = vsel %vm10665, 1, 0
    %v10698 = vsel %vm10666, 1, 0
    %v10699 = vsel %vm10667, 1, 0
    %v10700 = vsel %vm10668, 1, 0
    %v10701 = vsel %vm10669, 1, 0
    %v10702 = vsel %vm10670, 1, 0
    %v10703 = vsel %vm10671, 1, 0
    %v10704 = vsel %vm10672, 1, 0
    %v10705 = vsel %vm10673, 1, 0
    %v10706 = vsel %vm10674, 1, 0
    %v10707 = vsel %vm10675, 1, 0
    %v10708 = vsel %vm10676, 1, 0
    %v10709 = vsel %vm10677, 1, 0
    %v10710 = vsel %vm10678, 1, 0
    %v10711 = vsel %vm10679, 1, 0
    %v10712 = vsel %vm10680, 1, 0
    %v10713 = vsel %vm10681, 1, 0
    %v10714 = vsel %vm10682, 1, 0
    %v10715 = vsel %vm10683, 1, 0
    %v10716 = vsel %vm10684, 1, 0
    %v10717 = vsel %vm10685, 1, 0
    %v10718 = vsel %vm10686, 1, 0
    %v10719 = vsel %vm10687, 1, 0
    %v10720 = vsel %vm10688, 1, 0
    %v10721 = vsel %vm10689, 1, 0
    %v10722 = vsel %vm10690, 1, 0
    %v10723 = vsel %vm10691, 1, 0
    %v10724 = vcvt.s32.f32 %v10692
    %v10725 = vcvt.s32.f32 %v10693
    %v10726 = vcvt.s32.f32 %v10694
    %v10727 = vcvt.s32.f32 %v10695
    %v10728 = vcvt.s32.f32 %v10696
    %v10729 = vcvt.s32.f32 %v10697
    %v10730 = vcvt.s32.f32 %v10698
    %v10731 = vcvt.s32.f32 %v10699
    %v10732 = vcvt.s32.f32 %v10700
    %v10733 = vcvt.s32.f32 %v10701
    %v10734 = vcvt.s32.f32 %v10702
    %v10735 = vcvt.s32.f32 %v10703
    %v10736 = vcvt.s32.f32 %v10704
    %v10737 = vcvt.s32.f32 %v10705
    %v10738 = vcvt.s32.f32 %v10706
    %v10739 = vcvt.s32.f32 %v10707
    %v10740 = vcvt.s32.f32 %v10708
    %v10741 = vcvt.s32.f32 %v10709
    %v10742 = vcvt.s32.f32 %v10710
    %v10743 = vcvt.s32.f32 %v10711
    %v10744 = vcvt.s32.f32 %v10712
    %v10745 = vcvt.s32.f32 %v10713
    %v10746 = vcvt.s32.f32 %v10714
    %v10747 = vcvt.s32.f32 %v10715
    %v10748 = vcvt.s32.f32 %v10716
    %v10749 = vcvt.s32.f32 %v10717
    %v10750 = vcvt.s32.f32 %v10718
    %v10751 = vcvt.s32.f32 %v10719
    %v10752 = vcvt.s32.f32 %v10720
    %v10753 = vcvt.s32.f32 %v10721
    %v10754 = vcvt.s32.f32 %v10722
    %v10755 = vcvt.s32.f32 %v10723
    %10757 = vset.pattern.permute.xlu0 0
    %10758 = vperm.xlu0 %10757, %v10724
    %v10759 = vpop.permute.xlu0 %10758
    %10762 = vset.pattern.permute.xlu0 0
    %10763 = vperm.xlu0 %10762, %v10725
    %v10764 = vpop.permute.xlu0 %10763
    %10767 = vset.pattern.permute.xlu0 0
    %10768 = vperm.xlu0 %10767, %v10726
    %v10769 = vpop.permute.xlu0 %10768
    %10772 = vset.pattern.permute.xlu0 0
    %10773 = vperm.xlu0 %10772, %v10727
    %v10774 = vpop.permute.xlu0 %10773
    %10777 = vset.pattern.permute.xlu0 0
    %10778 = vperm.xlu0 %10777, %v10728
    %v10779 = vpop.permute.xlu0 %10778
    %10782 = vset.pattern.permute.xlu0 0
    %10783 = vperm.xlu0 %10782, %v10729
    %v10784 = vpop.permute.xlu0 %10783
    %10787 = vset.pattern.permute.xlu0 0
    %10788 = vperm.xlu0 %10787, %v10730
    %v10789 = vpop.permute.xlu0 %10788
    %10792 = vset.pattern.permute.xlu0 0
    %10793 = vperm.xlu0 %10792, %v10731
    %v10794 = vpop.permute.xlu0 %10793
    %10797 = vset.pattern.permute.xlu0 0
    %10798 = vperm.xlu0 %10797, %v10732
    %v10799 = vpop.permute.xlu0 %10798
    %10802 = vset.pattern.permute.xlu0 0
    %10803 = vperm.xlu0 %10802, %v10733
    %v10804 = vpop.permute.xlu0 %10803
    %10807 = vset.pattern.permute.xlu0 0
    %10808 = vperm.xlu0 %10807, %v10734
    %v10809 = vpop.permute.xlu0 %10808
    %10812 = vset.pattern.permute.xlu0 0
    %10813 = vperm.xlu0 %10812, %v10735
    %v10814 = vpop.permute.xlu0 %10813
    %10817 = vset.pattern.permute.xlu0 0
    %10818 = vperm.xlu0 %10817, %v10736
    %v10819 = vpop.permute.xlu0 %10818
    %10822 = vset.pattern.permute.xlu0 0
    %10823 = vperm.xlu0 %10822, %v10737
    %v10824 = vpop.permute.xlu0 %10823
    %10827 = vset.pattern.permute.xlu0 0
    %10828 = vperm.xlu0 %10827, %v10738
    %v10829 = vpop.permute.xlu0 %10828
    %10832 = vset.pattern.permute.xlu0 0
    %10833 = vperm.xlu0 %10832, %v10739
    %v10834 = vpop.permute.xlu0 %10833
    %10837 = vset.pattern.permute.xlu0 0
    %10838 = vperm.xlu0 %10837, %v10740
    %v10839 = vpop.permute.xlu0 %10838
    %10842 = vset.pattern.permute.xlu0 0
    %10843 = vperm.xlu0 %10842, %v10741
    %v10844 = vpop.permute.xlu0 %10843
    %10847 = vset.pattern.permute.xlu0 0
    %10848 = vperm.xlu0 %10847, %v10742
    %v10849 = vpop.permute.xlu0 %10848
    %10852 = vset.pattern.permute.xlu0 0
    %10853 = vperm.xlu0 %10852, %v10743
    %v10854 = vpop.permute.xlu0 %10853
    %10857 = vset.pattern.permute.xlu0 0
    %10858 = vperm.xlu0 %10857, %v10744
    %v10859 = vpop.permute.xlu0 %10858
    %10862 = vset.pattern.permute.xlu0 0
    %10863 = vperm.xlu0 %10862, %v10745
    %v10864 = vpop.permute.xlu0 %10863
    %10867 = vset.pattern.permute.xlu0 0
    %10868 = vperm.xlu0 %10867, %v10746
    %v10869 = vpop.permute.xlu0 %10868
    %10872 = vset.pattern.permute.xlu0 0
    %10873 = vperm.xlu0 %10872, %v10747
    %v10874 = vpop.permute.xlu0 %10873
    %10877 = vset.pattern.permute.xlu0 0
    %10878 = vperm.xlu0 %10877, %v10748
    %v10879 = vpop.permute.xlu0 %10878
    %10882 = vset.pattern.permute.xlu0 0
    %10883 = vperm.xlu0 %10882, %v10749
    %v10884 = vpop.permute.xlu0 %10883
    %10887 = vset.pattern.permute.xlu0 0
    %10888 = vperm.xlu0 %10887, %v10750
    %v10889 = vpop.permute.xlu0 %10888
    %10892 = vset.pattern.permute.xlu0 0
    %10893 = vperm.xlu0 %10892, %v10751
    %v10894 = vpop.permute.xlu0 %10893
    %10897 = vset.pattern.permute.xlu0 0
    %10898 = vperm.xlu0 %10897, %v10752
    %v10899 = vpop.permute.xlu0 %10898
    %10902 = vset.pattern.permute.xlu0 0
    %10903 = vperm.xlu0 %10902, %v10753
    %v10904 = vpop.permute.xlu0 %10903
    %10907 = vset.pattern.permute.xlu0 0
    %10908 = vperm.xlu0 %10907, %v10754
    %v10909 = vpop.permute.xlu0 %10908
    %10912 = vset.pattern.permute.xlu0 0
    %10913 = vperm.xlu0 %10912, %v10755
    %v10914 = vpop.permute.xlu0 %10913
    %v10916 = vmul.f32 %v10759, %v10565
    %v10917 = vmul.f32 %v10764, %v10568
    %v10918 = vmul.f32 %v10769, %v10571
    %v10919 = vmul.f32 %v10774, %v10574
    %v10920 = vmul.f32 %v10779, %v10577
    %v10921 = vmul.f32 %v10784, %v10580
    %v10922 = vmul.f32 %v10789, %v10583
    %v10923 = vmul.f32 %v10794, %v10586
    %v10924 = vmul.f32 %v10799, %v10589
    %v10925 = vmul.f32 %v10804, %v10592
    %v10926 = vmul.f32 %v10809, %v10595
    %v10927 = vmul.f32 %v10814, %v10598
    %v10928 = vmul.f32 %v10819, %v10601
    %v10929 = vmul.f32 %v10824, %v10604
    %v10930 = vmul.f32 %v10829, %v10607
    %v10931 = vmul.f32 %v10834, %v10610
    %v10932 = vmul.f32 %v10839, %v10613
    %v10933 = vmul.f32 %v10844, %v10616
    %v10934 = vmul.f32 %v10849, %v10619
    %v10935 = vmul.f32 %v10854, %v10622
    %v10936 = vmul.f32 %v10859, %v10625
    %v10937 = vmul.f32 %v10864, %v10628
    %v10938 = vmul.f32 %v10869, %v10631
    %v10939 = vmul.f32 %v10874, %v10634
    %v10940 = vmul.f32 %v10879, %v10637
    %v10941 = vmul.f32 %v10884, %v10640
    %v10942 = vmul.f32 %v10889, %v10643
    %v10943 = vmul.f32 %v10894, %v10646
    %v10944 = vmul.f32 %v10899, %v10649
    %v10945 = vmul.f32 %v10904, %v10652
    %v10946 = vmul.f32 %v10909, %v10655
    %v10947 = vmul.f32 %v10914, %v10658
    %v10948 = vadd.f32 %v184, %v10916
    %v10949 = vadd.f32 %v187, %v10917
    %v10950 = vadd.f32 %v190, %v10918
    %v10951 = vadd.f32 %v193, %v10919
    %v10952 = vadd.f32 %v196, %v10920
    %v10953 = vadd.f32 %v199, %v10921
    %v10954 = vadd.f32 %v202, %v10922
    %v10955 = vadd.f32 %v205, %v10923
    %v10956 = vadd.f32 %v208, %v10924
    %v10957 = vadd.f32 %v211, %v10925
    %v10958 = vadd.f32 %v214, %v10926
    %v10959 = vadd.f32 %v217, %v10927
    %v10960 = vadd.f32 %v220, %v10928
    %v10961 = vadd.f32 %v223, %v10929
    %v10962 = vadd.f32 %v226, %v10930
    %v10963 = vadd.f32 %v229, %v10931
    %v10964 = vadd.f32 %v232, %v10932
    %v10965 = vadd.f32 %v235, %v10933
    %v10966 = vadd.f32 %v238, %v10934
    %v10967 = vadd.f32 %v241, %v10935
    %v10968 = vadd.f32 %v244, %v10936
    %v10969 = vadd.f32 %v247, %v10937
    %v10970 = vadd.f32 %v250, %v10938
    %v10971 = vadd.f32 %v253, %v10939
    %v10972 = vadd.f32 %v256, %v10940
    %v10973 = vadd.f32 %v259, %v10941
    %v10974 = vadd.f32 %v262, %v10942
    %v10975 = vadd.f32 %v265, %v10943
    %v10976 = vadd.f32 %v268, %v10944
    %v10977 = vadd.f32 %v271, %v10945
    %v10978 = vadd.f32 %v274, %v10946
    %v10979 = vadd.f32 %v277, %v10947
    %v10980 = vpack.c.bf16 %v10948, %v10948
    %v10981 = vpack.c.bf16 %v10949, %v10949
    %v10982 = vpack.c.bf16 %v10950, %v10950
    %v10983 = vpack.c.bf16 %v10951, %v10951
    %v10984 = vpack.c.bf16 %v10952, %v10952
    %v10985 = vpack.c.bf16 %v10953, %v10953
    %v10986 = vpack.c.bf16 %v10954, %v10954
    %v10987 = vpack.c.bf16 %v10955, %v10955
    %v10988 = vpack.c.bf16 %v10956, %v10956
    %v10989 = vpack.c.bf16 %v10957, %v10957
    %v10990 = vpack.c.bf16 %v10958, %v10958
    %v10991 = vpack.c.bf16 %v10959, %v10959
    %v10992 = vpack.c.bf16 %v10960, %v10960
    %v10993 = vpack.c.bf16 %v10961, %v10961
    %v10994 = vpack.c.bf16 %v10962, %v10962
    %v10995 = vpack.c.bf16 %v10963, %v10963
    %v10996 = vpack.c.bf16 %v10964, %v10964
    %v10997 = vpack.c.bf16 %v10965, %v10965
    %v10998 = vpack.c.bf16 %v10966, %v10966
    %v10999 = vpack.c.bf16 %v10967, %v10967
    %v11000 = vpack.c.bf16 %v10968, %v10968
    %v11001 = vpack.c.bf16 %v10969, %v10969
    %v11002 = vpack.c.bf16 %v10970, %v10970
    %v11003 = vpack.c.bf16 %v10971, %v10971
    %v11004 = vpack.c.bf16 %v10972, %v10972
    %v11005 = vpack.c.bf16 %v10973, %v10973
    %v11006 = vpack.c.bf16 %v10974, %v10974
    %v11007 = vpack.c.bf16 %v10975, %v10975
    %v11008 = vpack.c.bf16 %v10976, %v10976
    %v11009 = vpack.c.bf16 %v10977, %v10977
    %v11010 = vpack.c.bf16 %v10978, %v10978
    %v11011 = vpack.c.bf16 %v10979, %v10979
    %11012 = vst [vmem:[#allocation2] sm:$0xf] %v10980
    %11013 = vst [vmem:[#allocation2 + $0x4] sm:$0xf] %v10981
    %11014 = vst [vmem:[#allocation2 + $0x8] sm:$0xf] %v10982
    %11015 = vst [vmem:[#allocation2 + $0xc] sm:$0xf] %v10983
    %11016 = vst [vmem:[#allocation2 + $0x10] sm:$0xf] %v10984
    %11017 = vst [vmem:[#allocation2 + $0x14] sm:$0xf] %v10985
    %11018 = vst [vmem:[#allocation2 + $0x18] sm:$0xf] %v10986
    %11019 = vst [vmem:[#allocation2 + $0x1c] sm:$0xf] %v10987
    %11020 = vst [vmem:[#allocation2 + $0x20] sm:$0xf] %v10988
    %11021 = vst [vmem:[#allocation2 + $0x24] sm:$0xf] %v10989
    %11022 = vst [vmem:[#allocation2 + $0x28] sm:$0xf] %v10990
    %11023 = vst [vmem:[#allocation2 + $0x2c] sm:$0xf] %v10991
    %11024 = vst [vmem:[#allocation2 + $0x30] sm:$0xf] %v10992
    %11025 = vst [vmem:[#allocation2 + $0x34] sm:$0xf] %v10993
    %11026 = vst [vmem:[#allocation2 + $0x38] sm:$0xf] %v10994
    %11027 = vst [vmem:[#allocation2 + $0x3c] sm:$0xf] %v10995
    %11028 = vst [vmem:[#allocation2 + $0x40] sm:$0xf] %v10996
    %11029 = vst [vmem:[#allocation2 + $0x44] sm:$0xf] %v10997
    %11030 = vst [vmem:[#allocation2 + $0x48] sm:$0xf] %v10998
    %11031 = vst [vmem:[#allocation2 + $0x4c] sm:$0xf] %v10999
    %11032 = vst [vmem:[#allocation2 + $0x50] sm:$0xf] %v11000
    %11033 = vst [vmem:[#allocation2 + $0x54] sm:$0xf] %v11001
    %11034 = vst [vmem:[#allocation2 + $0x58] sm:$0xf] %v11002
    %11035 = vst [vmem:[#allocation2 + $0x5c] sm:$0xf] %v11003
    %11036 = vst [vmem:[#allocation2 + $0x60] sm:$0xf] %v11004
    %11037 = vst [vmem:[#allocation2 + $0x64] sm:$0xf] %v11005
    %11038 = vst [vmem:[#allocation2 + $0x68] sm:$0xf] %v11006
    %11039 = vst [vmem:[#allocation2 + $0x6c] sm:$0xf] %v11007
    %11040 = vst [vmem:[#allocation2 + $0x70] sm:$0xf] %v11008
    %11041 = vst [vmem:[#allocation2 + $0x74] sm:$0xf] %v11009
    %11042 = vst [vmem:[#allocation2 + $0x78] sm:$0xf] %v11010
    %11043 = vst [vmem:[#allocation2 + $0x7c] sm:$0xf] %v11011
    // Predicated region
    $region30: #{tpu_custom_call.1} parent=1 // pred_check
      _
    $region31: #{tpu_custom_call.1} parent=1 // pred_check_branch
      %11045 = sbr.rel (0) target = $region33
    $region32: #{tpu_custom_call.1} parent=1 // pred_region
      %11047 = vsyncadd [#allocation3], 0
      %s11048 = sshll.u32 [#allocation2], 4
      %s11049 = int_to_ptr.vmem [resolvable:$true] %s11048
      %s11050 = sshll.u32 %s7, 4
      %s11051 = int_to_ptr.hbm [resolvable:$true] %s11050
      %11056 = dma.vmem_to_hbm [thread:$0]  %s11049, 2048, %s11051, [#allocation3], 64, 64, 4
    $region33: #{tpu_custom_call.1} parent=1 // pred_fallthru
      _
    // Predicated region
    $region34: #{tpu_custom_call.1} parent=1 // pred_check
      _
    $region35: #{tpu_custom_call.1} parent=1 // pred_check_branch
      %11058 = sbr.rel (0) target = $region37
    $region36: #{tpu_custom_call.1} parent=1 // pred_region
      %11060 = dma.done [#allocation3], 2048
    $region37: #{tpu_custom_call.1} parent=1 // pred_fallthru
      _
    %11061 = vsyncpa [#allocation3], 1

</llo_original>
